<compile_context>
chip_gen: v7x
topology: tpu7x:2x2x1
jax: 0.10.0
libtpu: 0.0.40
codegen_flags: <defaults>
</compile_context>

<pallas_src>
import jax
import jax.numpy as jnp
from jax.experimental import pallas as pl
from jax.experimental.pallas import tpu as pltpu

EPS = 1e-5                        # nn.BatchNorm2d default eps
LANE = 128                        # TPU lane width; channel dims padded to this
_VMEM_LIMIT = 48 * 1024 * 1024    # < v7x's 64 MiB physical, > 32 MiB default scoped


# ------------------------------ small helpers ---------------------------------

def _round_up(v, m):
    return (v + m - 1) // m * m


def _pick_tile_rows(Ho, Wo, max_tile_m):
    """Largest divisor TH of Ho with TH*Wo <= max_tile_m (matmul rows / tile)."""
    best = 1
    for d in range(1, Ho + 1):
        if Ho % d == 0 and d * Wo <= max_tile_m:
            best = d
    return best


def _pad_last(a, target, value=0.0):
    return jnp.pad(a.astype(jnp.float32), ((0, 0), (0, target - a.shape[-1])),
                   constant_values=value)


def _cparams():
    return pltpu.CompilerParams(
        dimension_semantics=("parallel", "parallel"),
        vmem_limit_bytes=_VMEM_LIMIT)


def _row_start(r, TH):
    row0 = r * TH
    if TH & (TH - 1) == 0:                   # divisibility hint for aligned slices
        row0 = pl.multiple_of(row0, TH)
    return row0


# ----------------------------- Pallas kernels ---------------------------------

def _make_conv_stats_kernel(TH, Wo, taps, Cin_p, Cp):
    """Tap-wise conv matmul + per-tile partial BN statistics (sum, sum_sq)."""
    KH = 1 + max(dy for dy, _ in taps)

    def kernel(x_ref, w_ref, y_ref, ps_ref):
        row0 = _row_start(pl.program_id(1), TH)
        # (TH + KH - 1, Wp, Cin_p) window of the spatially pre-padded input.
        win = x_ref[0, pl.ds(row0, TH + KH - 1), :, :]
        acc = jnp.zeros((TH * Wo, Cp), jnp.float32)
        for t, (dy, dx) in enumerate(taps):
            a = win[dy:dy + TH, dx:dx + Wo, :].reshape(TH * Wo, Cin_p)
            acc = acc + jnp.dot(a, w_ref[t], preferred_element_type=jnp.float32)
        y_ref[0] = acc.reshape(TH, Wo, Cp).astype(y_ref.dtype)
        ps_ref[0, 0, 0:1, :] = jnp.sum(acc, axis=0, keepdims=True)
        ps_ref[0, 0, 1:2, :] = jnp.sum(acc * acc, axis=0, keepdims=True)

    return kernel


def _make_conv2_bnfused_kernel(TH, Ho, Wo, Cp):
    """3x3 stride-1 conv whose input relu(bn1(y1)) is computed on the fly.
    Conv zero padding of the *activated* input is rebuilt in a VMEM scratch."""
    taps = [(dy, dx) for dy in range(3) for dx in range(3)]

    def kernel(y1_ref, sc_ref, sh_ref, w_ref, y2_ref, ps_ref, pad_ref):
        row0 = _row_start(pl.program_id(1), TH)
        sc = sc_ref[...].reshape(1, 1, Cp)
        sh = sh_ref[...].reshape(1, 1, Cp)

        def bn_relu(v):
            return jnp.maximum(v.astype(jnp.float32) * sc + sh, 0.0)

        top_i = jnp.maximum(row0 - 1, 0)
        bot_i = jnp.minimum(row0 + TH, Ho - 1)
        # halo rows outside the image are zeroed AFTER bn+relu (conv zero-pad).
        top = bn_relu(y1_ref[0, pl.ds(top_i, 1), :, :]) * jnp.where(row0 > 0, 1.0, 0.0)
        body = bn_relu(y1_ref[0, pl.ds(row0, TH), :, :])
        bot = bn_relu(y1_ref[0, pl.ds(bot_i, 1), :, :]) * jnp.where(row0 + TH < Ho, 1.0, 0.0)

        pad_ref[...] = jnp.zeros((TH + 2, Wo + 2, Cp), jnp.bfloat16)
        pad_ref[0:1, 1:Wo + 1, :] = top.astype(jnp.bfloat16)
        pad_ref[1:TH + 1, 1:Wo + 1, :] = body.astype(jnp.bfloat16)
        pad_ref[TH + 1:TH + 2, 1:Wo + 1, :] = bot.astype(jnp.bfloat16)

        acc = jnp.zeros((TH * Wo, Cp), jnp.float32)
        for t, (dy, dx) in enumerate(taps):
            a = pad_ref[dy:dy + TH, dx:dx + Wo, :].reshape(TH * Wo, Cp)
            acc = acc + jnp.dot(a, w_ref[t], preferred_element_type=jnp.float32)
        y2_ref[0] = acc.reshape(TH, Wo, Cp).astype(y2_ref.dtype)
        ps_ref[0, 0, 0:1, :] = jnp.sum(acc, axis=0, keepdims=True)
        ps_ref[0, 0, 1:2, :] = jnp.sum(acc * acc, axis=0, keepdims=True)

    return kernel


def _make_finalize_kernel(TH, Wo, Cp, Cin_p, project):
    """out = relu(skip + relu(bn2(y2))); skip = x  or  x_sub @ w3 + b3 (fused)."""
    if project:
        def kernel(y2_ref, sc_ref, sh_ref, xs_ref, w3_ref, b3_ref, o_ref):
            out = jnp.maximum(
                y2_ref[0].astype(jnp.float32) * sc_ref[...].reshape(1, 1, Cp)
                + sh_ref[...].reshape(1, 1, Cp), 0.0)
            xs = xs_ref[0].reshape(TH * Wo, Cin_p)
            skip = jnp.dot(xs, w3_ref[...], preferred_element_type=jnp.float32)
            skip = (skip + b3_ref[...]).reshape(TH, Wo, Cp)
            o_ref[0] = jnp.maximum(skip + out, 0.0).astype(o_ref.dtype)
        return kernel

    def kernel(y2_ref, sc_ref, sh_ref, xs_ref, o_ref):
        out = jnp.maximum(
            y2_ref[0].astype(jnp.float32) * sc_ref[...].reshape(1, 1, Cp)
            + sh_ref[...].reshape(1, 1, Cp), 0.0)
        o_ref[0] = jnp.maximum(xs_ref[0].astype(jnp.float32) + out, 0.0).astype(o_ref.dtype)
    return kernel


# ------------------------------ pallas_call glue ------------------------------

def _conv_stats_call(xin, w_eff, taps, TH, Ho, Wo):
    N, Hp, Wp, Cin_p = xin.shape
    T, _, Cp = w_eff.shape
    R = Ho // TH
    y, ps = pl.pallas_call(
        _make_conv_stats_kernel(TH, Wo, taps, Cin_p, Cp),
        out_shape=[jax.ShapeDtypeStruct((N, Ho, Wo, Cp), jnp.bfloat16),
                   jax.ShapeDtypeStruct((N, R, 2, Cp), jnp.float32)],
        grid=(N, R),
        # TODO(synk): for very large images switch this full-image block to
        # halo'd row-tiles so per-step VMEM stays bounded by the tile size.
        in_specs=[pl.BlockSpec((1, Hp, Wp, Cin_p), lambda n, r: (n, 0, 0, 0)),
                  pl.BlockSpec((T, Cin_p, Cp), lambda n, r: (0, 0, 0))],
        out_specs=[pl.BlockSpec((1, TH, Wo, Cp), lambda n, r: (n, r, 0, 0)),
                   pl.BlockSpec((1, 1, 2, Cp), lambda n, r: (n, r, 0, 0))],
        compiler_params=_cparams(),
    )(xin, w_eff)
    return y, ps


def _conv2_bnfused_call(y1, scale1, shift1, w2_eff, TH, Ho, Wo):
    N, _, _, Cp = y1.shape
    R = Ho // TH
    y2, ps = pl.pallas_call(
        _make_conv2_bnfused_kernel(TH, Ho, Wo, Cp),
        out_shape=[jax.ShapeDtypeStruct((N, Ho, Wo, Cp), jnp.bfloat16),
                   jax.ShapeDtypeStruct((N, R, 2, Cp), jnp.float32)],
        grid=(N, R),
        in_specs=[pl.BlockSpec((1, Ho, Wo, Cp), lambda n, r: (n, 0, 0, 0)),
                  pl.BlockSpec((1, Cp), lambda n, r: (0, 0)),
                  pl.BlockSpec((1, Cp), lambda n, r: (0, 0)),
                  pl.BlockSpec((9, Cp, Cp), lambda n, r: (0, 0, 0))],
        out_specs=[pl.BlockSpec((1, TH, Wo, Cp), lambda n, r: (n, r, 0, 0)),
                   pl.BlockSpec((1, 1, 2, Cp), lambda n, r: (n, r, 0, 0))],
        scratch_shapes=[pltpu.VMEM((TH + 2, Wo + 2, Cp), jnp.bfloat16)],
        compiler_params=_cparams(),
    )(y1, scale1, shift1, w2_eff)
    return y2, ps


def _finalize_call(y2, scale2, shift2, skip_src, TH, Ho, Wo, w3=None, b3=None):
    N, _, _, Cp = y2.shape
    Cin_p = skip_src.shape[-1]
    R = Ho // TH
    project = w3 is not None
    in_specs = [pl.BlockSpec((1, TH, Wo, Cp), lambda n, r: (n, r, 0, 0)),
                pl.BlockSpec((1, Cp), lambda n, r: (0, 0)),
                pl.BlockSpec((1, Cp), lambda n, r: (0, 0)),
                pl.BlockSpec((1, TH, Wo, Cin_p), lambda n, r: (n, r, 0, 0))]
    args = [y2, scale2, shift2, skip_src]
    if project:
        in_specs += [pl.BlockSpec((Cin_p, Cp), lambda n, r: (0, 0)),
                     pl.BlockSpec((1, Cp), lambda n, r: (0, 0))]
        args += [w3, b3]
    return pl.pallas_call(
        _make_finalize_kernel(TH, Wo, Cp, Cin_p, project),
        out_shape=jax.ShapeDtypeStruct((N, Ho, Wo, Cp), jnp.float32),
        grid=(N, R),
        in_specs=in_specs,
        out_specs=pl.BlockSpec((1, TH, Wo, Cp), lambda n, r: (n, r, 0, 0)),
        compiler_params=_cparams(),
    )(*args)


# ------------------------------- JAX glue --------------------------------------

def _bn_scale_shift(psums, count, gamma_p, beta_p):
    """Finish BN batch stats from per-tile partial sums -> per-channel FMA."""
    s = jnp.sum(psums, axis=(0, 1))                       # (2, Cp)
    mean = s[0:1] / count
    var = jnp.maximum(s[1:2] / count - mean * mean, 0.0)  # guard tiny cancellation
    scale = gamma_p * jax.lax.rsqrt(var + EPS)
    shift = beta_p - mean * scale
    return scale.astype(jnp.float32), shift.astype(jnp.float32)


def _prep_conv1(x, w1, stride):
    """Spatially pad (+ space-to-depth for stride 2), pad channels to 128,
    and reshape weights to (taps, Cin_p, Cout_p)."""
    N, H, W, Cin = x.shape
    Cout = w1.shape[-1]
    Cp = _round_up(Cout, LANE)
    if stride == 1:
        Ho, Wo = H, W
        Cin_p = _round_up(Cin, LANE)
        xin = jnp.pad(x, ((0, 0), (1, 1), (1, 1), (0, Cin_p - Cin)))
        taps = [(dy, dx) for dy in range(3) for dx in range(3)]
        w = jnp.pad(w1.reshape(9, Cin, Cout), ((0, 0), (0, Cin_p - Cin), (0, Cp - Cout)))
    else:
        assert H % 2 == 0 and W % 2 == 0, "stride-2 path assumes even spatial dims"
        Ho, Wo = H // 2, W // 2
        # space-to-depth by 2: channel block (py*2+px) holds x[2i+py, 2j+px, :]
        xs = x.reshape(N, Ho, 2, Wo, 2, Cin).transpose(0, 1, 3, 2, 4, 5)
        xs = xs.reshape(N, Ho, Wo, 4 * Cin)
        Cin_p = _round_up(4 * Cin, LANE)
        xin = jnp.pad(xs, ((0, 0), (1, 0), (1, 0), (0, Cin_p - 4 * Cin)))
        taps = [(dy, dx) for dy in range(2) for dx in range(2)]
        w = jnp.zeros((4, 4 * Cin, Cout), jnp.float32)
        for dy in range(2):
            for dx in range(2):
                for py in range(2):
                    ky = 2 * dy + py - 1
                    if not 0 <= ky <= 2:
                        continue
                    for px in range(2):
                        kx = 2 * dx + px - 1
                        if not 0 <= kx <= 2:
                            continue
                        blk = (py * 2 + px) * Cin
                        w = w.at[dy * 2 + dx, blk:blk + Cin, :].set(w1[ky, kx])
        w = jnp.pad(w, ((0, 0), (0, Cin_p - 4 * Cin), (0, Cp - Cout)))
    return xin.astype(jnp.bfloat16), taps, w.astype(jnp.bfloat16), Ho, Wo, Cp


def residual_block_forward(x_nchw, params, same_shape=True, max_tile_m=128):
    """Pallas forward for the residual block.  NCHW in / NCHW out.

    max_tile_m: target rows of the flattened (rows*W) matmul per grid tile.
      128 keeps the tiny demo multi-tile; raise toward 512-1024 on v5e/v6e
      (128 MiB VMEM) and keep ~256-512 on v7x (64 MiB VMEM).
    """
    x = jnp.transpose(x_nchw, (0, 2, 3, 1)).astype(jnp.float32)   # NHWC
    N, H, W, Cin = x.shape
    stride = 1 if same_shape else 2
    Cout = params["w1"].shape[-1]

    # ---- conv1 (+ BN1 partial stats), tiled over (batch, row-tile) ----------
    xin, taps1, w1_eff, Ho, Wo, Cp = _prep_conv1(x, params["w1"], stride)
    TH = _pick_tile_rows(Ho, Wo, max_tile_m)
    y1, ps1 = _conv_stats_call(xin, w1_eff, taps1, TH, Ho, Wo)

    count = N * Ho * Wo
    scale1, shift1 = _bn_scale_shift(ps1, count,
                                     _pad_last(params["g1"], Cp, 1.0),
                                     _pad_last(params["b1"], Cp, 0.0))

    # ---- conv2 with fused BN1-apply+ReLU on its input (+ BN2 partial stats) --
    w2_eff = jnp.pad(params["w2"].reshape(9, Cout, Cout),
                     ((0, 0), (0, Cp - Cout), (0, Cp - Cout))).astype(jnp.bfloat16)
    y2, ps2 = _conv2_bnfused_call(y1, scale1, shift1, w2_eff, TH, Ho, Wo)

    scale2, shift2 = _bn_scale_shift(ps2, count,
                                     _pad_last(params["g2"], Cp, 1.0),
                                     _pad_last(params["b2"], Cp, 0.0))

    # ---- BN2-apply + ReLU + residual add (+ fused 1x1 projection) + ReLU -----
    if same_shape:
        assert Cin == Cout
        skip_src = jnp.pad(x, ((0, 0), (0, 0), (0, 0), (0, Cp - Cin))).astype(jnp.bfloat16)
        out = _finalize_call(y2, scale2, shift2, skip_src, TH, Ho, Wo)
    else:
        Cin_p = _round_up(Cin, LANE)
        x_sub = jnp.pad(x[:, ::2, ::2, :],
                        ((0, 0), (0, 0), (0, 0), (0, Cin_p - Cin))).astype(jnp.bfloat16)
        w3 = jnp.pad(params["w3"].reshape(Cin, Cout),
                     ((0, Cin_p - Cin), (0, Cp - Cout))).astype(jnp.bfloat16)
        b3 = _pad_last(params["b3"], Cp, 0.0)
        out = _finalize_call(y2, scale2, shift2, x_sub, TH, Ho, Wo, w3=w3, b3=b3)

    out = out[:, :, :, :Cout]                      # drop lane padding
    return jnp.transpose(out, (0, 3, 1, 2))        # back to NCHW


residual_block = jax.jit(residual_block_forward,
                         static_argnames=("same_shape", "max_tile_m"))


# --------------------------- params & pure-JAX reference ----------------------

def init_params(key, in_channel, out_channel, same_shape=True):
    k1, k2, k3, k4 = jax.random.split(key, 4)
    params = {
        "w1": 0.1 * jax.random.normal(k1, (3, 3, in_channel, out_channel), jnp.float32),
        "g1": jnp.ones((1, out_channel), jnp.float32),
        "b1": jnp.zeros((1, out_channel), jnp.float32),
        "w2": 0.1 * jax.random.normal(k2, (3, 3, out_channel, out_channel), jnp.float32),
        "g2": jnp.ones((1, out_channel), jnp.float32),
        "b2": jnp.zeros((1, out_channel), jnp.float32),
    }
    if not same_shape:
        params["w3"] = 0.1 * jax.random.normal(k3, (1, 1, in_channel, out_channel), jnp.float32)
        params["b3"] = 0.1 * jax.random.normal(k4, (1, out_channel), jnp.float32)
    return params


def reference_forward(x_nchw, params, same_shape=True):
    x = jnp.transpose(x_nchw, (0, 2, 3, 1)).astype(jnp.float32)
    stride = 1 if same_shape else 2

    def conv(a, w, s, pad):
        return jax.lax.conv_general_dilated(
            a, w, (s, s), ((pad, pad), (pad, pad)),
            dimension_numbers=("NHWC", "HWIO", "NHWC"))

    def bn(y, g, b):
        m = jnp.mean(y, axis=(0, 1, 2), keepdims=True)
        v = jnp.mean((y - m) ** 2, axis=(0, 1, 2), keepdims=True)
        return (y - m) * jax.lax.rsqrt(v + EPS) * g.reshape(1, 1, 1, -1) + b.reshape(1, 1, 1, -1)

    out = jax.nn.relu(bn(conv(x, params["w1"], stride, 1), params["g1"], params["b1"]))
    out = jax.nn.relu(bn(conv(out, params["w2"], 1, 1), params["g2"], params["b2"]))
    if same_shape:
        skip = x
    else:
        skip = conv(x, params["w3"], stride, 0) + params["b3"].reshape(1, 1, 1, -1)
    out = jax.nn.relu(skip + out)
    return jnp.transpose(out, (0, 3, 1, 2))


# ----------------------------------- main --------------------------------------

if __name__ == "__main__":
    key = jax.random.PRNGKey(0)
    kx, kp1, kp2 = jax.random.split(key, 3)

    # same_shape=True: batch=2, channels 4 -> 4, spatial 16x16 (NCHW input)
    x = jax.random.normal(kx, (2, 4, 16, 16), jnp.float32)
    params = init_params(kp1, 4, 4, same_shape=True)
    out = jax.block_until_ready(residual_block(x, params, same_shape=True))
    ref = reference_forward(x, params, same_shape=True)
    assert out.shape == (2, 4, 16, 16)
    # bf16 MXU inputs (per perf guidance) -> tolerance reflects bf16 precision.
    assert bool(jnp.allclose(out, ref, atol=7e-2, rtol=7e-2)), \
        float(jnp.max(jnp.abs(out - ref)))

    # same_shape=False: stride-2 path with fused 1x1 projection, channels 4 -> 8
    params2 = init_params(kp2, 4, 8, same_shape=False)
    out2 = jax.block_until_ready(residual_block(x, params2, same_shape=False))
    ref2 = reference_forward(x, params2, same_shape=False)
    assert out2.shape == (2, 8, 8, 8)
    assert bool(jnp.allclose(out2, ref2, atol=7e-2, rtol=7e-2)), \
        float(jnp.max(jnp.abs(out2 - ref2)))

    print("KERNEL_OK")
</pallas_src>

<mosaic_0001>
module attributes {stable_mosaic.version = 11 : i64} {
  func.func @kernel(%arg0: i32, %arg1: i32, %arg2: memref<1x18x18x128xbf16, #tpu.memory_space<vmem>>, %arg3: memref<9x128x128xbf16, #tpu.memory_space<vmem>>, %arg4: memref<1x8x16x128xbf16, #tpu.memory_space<vmem>>, %arg5: memref<1x1x2x128xf32, #tpu.memory_space<vmem>>) attributes {dimension_semantics = [#tpu.dimension_semantics<parallel>, #tpu.dimension_semantics<parallel>], iteration_bounds = array<i64: 2, 2>, scalar_prefetch = 0 : i64, scratch_operands = 0 : i64, tpu.core_type = #tpu.core_type<tc>, window_params = [{transform_indices = @transform_0, window_bounds = array<i64: 1, 18, 18, 128>}, {pipeline_mode = #tpu.pipeline_mode<synchronous>, transform_indices = @transform_1, window_bounds = array<i64: 9, 128, 128>}, {transform_indices = @transform_2, window_bounds = array<i64: 1, 8, 16, 128>}, {transform_indices = @transform_3, window_bounds = array<i64: 1, 1, 2, 128>}]} {
    %c8_i32 = arith.constant 8 : i32
    %0 = arith.muli %arg1, %c8_i32 : i32
    %1 = tpu.assume_multiple %0, 8 : i32
    %c0 = arith.constant 0 : index
    %2 = arith.index_cast %1 : i32 to index
    %c0_0 = arith.constant 0 : index
    %c0_1 = arith.constant 0 : index
    %3 = vector.load %arg2[%c0, %2, %c0_0, %c0_1] : memref<1x18x18x128xbf16, #tpu.memory_space<vmem>>, vector<1x10x18x128xbf16>
    %4 = vector.shape_cast %3 : vector<1x10x18x128xbf16> to vector<10x18x128xbf16>
    %cst = arith.constant 0.000000e+00 : f32
    %5 = vector.broadcast %cst : f32 to vector<128x128xf32>
    %6 = vector.extract_strided_slice %4 {offsets = [0, 0, 0], sizes = [8, 16, 128], strides = [1, 1, 1]} : vector<10x18x128xbf16> to vector<8x16x128xbf16>
    %7 = vector.shape_cast %6 : vector<8x16x128xbf16> to vector<128x128xbf16>
    %c0_2 = arith.constant 0 : index
    %c0_3 = arith.constant 0 : index
    %c0_4 = arith.constant 0 : index
    %8 = vector.load %arg3[%c0_2, %c0_3, %c0_4] : memref<9x128x128xbf16, #tpu.memory_space<vmem>>, vector<1x128x128xbf16>
    %9 = vector.shape_cast %8 : vector<1x128x128xbf16> to vector<128x128xbf16>
    %cst_5 = arith.constant dense<0.000000e+00> : vector<128x128xf32>
    %10 = tpu.matmul %7, %9, %cst_5 {dimension_numbers = #tpu.dot_dimension_numbers<[1], [0], [0], [1], [0, 0, 1, 1], [], []>} : vector<128x128xbf16>, vector<128x128xbf16>, vector<128x128xf32> -> vector<128x128xf32>
    %11 = arith.addf %5, %10 : vector<128x128xf32>
    %12 = vector.extract_strided_slice %4 {offsets = [0, 1, 0], sizes = [8, 16, 128], strides = [1, 1, 1]} : vector<10x18x128xbf16> to vector<8x16x128xbf16>
    %13 = vector.shape_cast %12 : vector<8x16x128xbf16> to vector<128x128xbf16>
    %c1 = arith.constant 1 : index
    %c0_6 = arith.constant 0 : index
    %c0_7 = arith.constant 0 : index
    %14 = vector.load %arg3[%c1, %c0_6, %c0_7] : memref<9x128x128xbf16, #tpu.memory_space<vmem>>, vector<1x128x128xbf16>
    %15 = vector.shape_cast %14 : vector<1x128x128xbf16> to vector<128x128xbf16>
    %cst_8 = arith.constant dense<0.000000e+00> : vector<128x128xf32>
    %16 = tpu.matmul %13, %15, %cst_8 {dimension_numbers = #tpu.dot_dimension_numbers<[1], [0], [0], [1], [0, 0, 1, 1], [], []>} : vector<128x128xbf16>, vector<128x128xbf16>, vector<128x128xf32> -> vector<128x128xf32>
    %17 = arith.addf %11, %16 : vector<128x128xf32>
    %18 = vector.extract_strided_slice %4 {offsets = [0, 2, 0], sizes = [8, 16, 128], strides = [1, 1, 1]} : vector<10x18x128xbf16> to vector<8x16x128xbf16>
    %19 = vector.shape_cast %18 : vector<8x16x128xbf16> to vector<128x128xbf16>
    %c2 = arith.constant 2 : index
    %c0_9 = arith.constant 0 : index
    %c0_10 = arith.constant 0 : index
    %20 = vector.load %arg3[%c2, %c0_9, %c0_10] : memref<9x128x128xbf16, #tpu.memory_space<vmem>>, vector<1x128x128xbf16>
    %21 = vector.shape_cast %20 : vector<1x128x128xbf16> to vector<128x128xbf16>
    %cst_11 = arith.constant dense<0.000000e+00> : vector<128x128xf32>
    %22 = tpu.matmul %19, %21, %cst_11 {dimension_numbers = #tpu.dot_dimension_numbers<[1], [0], [0], [1], [0, 0, 1, 1], [], []>} : vector<128x128xbf16>, vector<128x128xbf16>, vector<128x128xf32> -> vector<128x128xf32>
    %23 = arith.addf %17, %22 : vector<128x128xf32>
    %24 = vector.extract_strided_slice %4 {offsets = [1, 0, 0], sizes = [8, 16, 128], strides = [1, 1, 1]} : vector<10x18x128xbf16> to vector<8x16x128xbf16>
    %25 = vector.shape_cast %24 : vector<8x16x128xbf16> to vector<128x128xbf16>
    %c3 = arith.constant 3 : index
    %c0_12 = arith.constant 0 : index
    %c0_13 = arith.constant 0 : index
    %26 = vector.load %arg3[%c3, %c0_12, %c0_13] : memref<9x128x128xbf16, #tpu.memory_space<vmem>>, vector<1x128x128xbf16>
    %27 = vector.shape_cast %26 : vector<1x128x128xbf16> to vector<128x128xbf16>
    %cst_14 = arith.constant dense<0.000000e+00> : vector<128x128xf32>
    %28 = tpu.matmul %25, %27, %cst_14 {dimension_numbers = #tpu.dot_dimension_numbers<[1], [0], [0], [1], [0, 0, 1, 1], [], []>} : vector<128x128xbf16>, vector<128x128xbf16>, vector<128x128xf32> -> vector<128x128xf32>
    %29 = arith.addf %23, %28 : vector<128x128xf32>
    %30 = vector.extract_strided_slice %4 {offsets = [1, 1, 0], sizes = [8, 16, 128], strides = [1, 1, 1]} : vector<10x18x128xbf16> to vector<8x16x128xbf16>
    %31 = vector.shape_cast %30 : vector<8x16x128xbf16> to vector<128x128xbf16>
    %c4 = arith.constant 4 : index
    %c0_15 = arith.constant 0 : index
    %c0_16 = arith.constant 0 : index
    %32 = vector.load %arg3[%c4, %c0_15, %c0_16] : memref<9x128x128xbf16, #tpu.memory_space<vmem>>, vector<1x128x128xbf16>
    %33 = vector.shape_cast %32 : vector<1x128x128xbf16> to vector<128x128xbf16>
    %cst_17 = arith.constant dense<0.000000e+00> : vector<128x128xf32>
    %34 = tpu.matmul %31, %33, %cst_17 {dimension_numbers = #tpu.dot_dimension_numbers<[1], [0], [0], [1], [0, 0, 1, 1], [], []>} : vector<128x128xbf16>, vector<128x128xbf16>, vector<128x128xf32> -> vector<128x128xf32>
    %35 = arith.addf %29, %34 : vector<128x128xf32>
    %36 = vector.extract_strided_slice %4 {offsets = [1, 2, 0], sizes = [8, 16, 128], strides = [1, 1, 1]} : vector<10x18x128xbf16> to vector<8x16x128xbf16>
    %37 = vector.shape_cast %36 : vector<8x16x128xbf16> to vector<128x128xbf16>
    %c5 = arith.constant 5 : index
    %c0_18 = arith.constant 0 : index
    %c0_19 = arith.constant 0 : index
    %38 = vector.load %arg3[%c5, %c0_18, %c0_19] : memref<9x128x128xbf16, #tpu.memory_space<vmem>>, vector<1x128x128xbf16>
    %39 = vector.shape_cast %38 : vector<1x128x128xbf16> to vector<128x128xbf16>
    %cst_20 = arith.constant dense<0.000000e+00> : vector<128x128xf32>
    %40 = tpu.matmul %37, %39, %cst_20 {dimension_numbers = #tpu.dot_dimension_numbers<[1], [0], [0], [1], [0, 0, 1, 1], [], []>} : vector<128x128xbf16>, vector<128x128xbf16>, vector<128x128xf32> -> vector<128x128xf32>
    %41 = arith.addf %35, %40 : vector<128x128xf32>
    %42 = vector.extract_strided_slice %4 {offsets = [2, 0, 0], sizes = [8, 16, 128], strides = [1, 1, 1]} : vector<10x18x128xbf16> to vector<8x16x128xbf16>
    %43 = vector.shape_cast %42 : vector<8x16x128xbf16> to vector<128x128xbf16>
    %c6 = arith.constant 6 : index
    %c0_21 = arith.constant 0 : index
    %c0_22 = arith.constant 0 : index
    %44 = vector.load %arg3[%c6, %c0_21, %c0_22] : memref<9x128x128xbf16, #tpu.memory_space<vmem>>, vector<1x128x128xbf16>
    %45 = vector.shape_cast %44 : vector<1x128x128xbf16> to vector<128x128xbf16>
    %cst_23 = arith.constant dense<0.000000e+00> : vector<128x128xf32>
    %46 = tpu.matmul %43, %45, %cst_23 {dimension_numbers = #tpu.dot_dimension_numbers<[1], [0], [0], [1], [0, 0, 1, 1], [], []>} : vector<128x128xbf16>, vector<128x128xbf16>, vector<128x128xf32> -> vector<128x128xf32>
    %47 = arith.addf %41, %46 : vector<128x128xf32>
    %48 = vector.extract_strided_slice %4 {offsets = [2, 1, 0], sizes = [8, 16, 128], strides = [1, 1, 1]} : vector<10x18x128xbf16> to vector<8x16x128xbf16>
    %49 = vector.shape_cast %48 : vector<8x16x128xbf16> to vector<128x128xbf16>
    %c7 = arith.constant 7 : index
    %c0_24 = arith.constant 0 : index
    %c0_25 = arith.constant 0 : index
    %50 = vector.load %arg3[%c7, %c0_24, %c0_25] : memref<9x128x128xbf16, #tpu.memory_space<vmem>>, vector<1x128x128xbf16>
    %51 = vector.shape_cast %50 : vector<1x128x128xbf16> to vector<128x128xbf16>
    %cst_26 = arith.constant dense<0.000000e+00> : vector<128x128xf32>
    %52 = tpu.matmul %49, %51, %cst_26 {dimension_numbers = #tpu.dot_dimension_numbers<[1], [0], [0], [1], [0, 0, 1, 1], [], []>} : vector<128x128xbf16>, vector<128x128xbf16>, vector<128x128xf32> -> vector<128x128xf32>
    %53 = arith.addf %47, %52 : vector<128x128xf32>
    %54 = vector.extract_strided_slice %4 {offsets = [2, 2, 0], sizes = [8, 16, 128], strides = [1, 1, 1]} : vector<10x18x128xbf16> to vector<8x16x128xbf16>
    %55 = vector.shape_cast %54 : vector<8x16x128xbf16> to vector<128x128xbf16>
    %c8 = arith.constant 8 : index
    %c0_27 = arith.constant 0 : index
    %c0_28 = arith.constant 0 : index
    %56 = vector.load %arg3[%c8, %c0_27, %c0_28] : memref<9x128x128xbf16, #tpu.memory_space<vmem>>, vector<1x128x128xbf16>
    %57 = vector.shape_cast %56 : vector<1x128x128xbf16> to vector<128x128xbf16>
    %cst_29 = arith.constant dense<0.000000e+00> : vector<128x128xf32>
    %58 = tpu.matmul %55, %57, %cst_29 {dimension_numbers = #tpu.dot_dimension_numbers<[1], [0], [0], [1], [0, 0, 1, 1], [], []>} : vector<128x128xbf16>, vector<128x128xbf16>, vector<128x128xf32> -> vector<128x128xf32>
    %59 = arith.addf %53, %58 : vector<128x128xf32>
    %60 = vector.shape_cast %59 : vector<128x128xf32> to vector<8x16x128xf32>
    %61 = arith.truncf %60 : vector<8x16x128xf32> to vector<8x16x128xbf16>
    %c0_30 = arith.constant 0 : index
    %c0_31 = arith.constant 0 : index
    %c0_32 = arith.constant 0 : index
    %c0_33 = arith.constant 0 : index
    %62 = vector.load %arg4[%c0_30, %c0_31, %c0_32, %c0_33] : memref<1x8x16x128xbf16, #tpu.memory_space<vmem>>, vector<1x8x16x128xbf16>
    %63 = vector.shape_cast %62 : vector<1x8x16x128xbf16> to vector<8x16x128xbf16>
    %64 = vector.shape_cast %61 : vector<8x16x128xbf16> to vector<1x8x16x128xbf16>
    tpu.vector_store %arg4[%c0_30, %c0_31, %c0_32, %c0_33], %64 {strides = array<i32>} : memref<1x8x16x128xbf16, #tpu.memory_space<vmem>>, vector<1x8x16x128xbf16>,
    %cst_34 = arith.constant dense<0.000000e+00> : vector<128xf32>
    %65 = vector.multi_reduction <add>, %59, %cst_34 [0] : vector<128x128xf32> to vector<128xf32>
    %66 = vector.shape_cast %65 : vector<128xf32> to vector<1x128xf32>
    %c0_35 = arith.constant 0 : index
    %c0_36 = arith.constant 0 : index
    %c0_37 = arith.constant 0 : index
    %c0_38 = arith.constant 0 : index
    %67 = vector.load %arg5[%c0_35, %c0_36, %c0_37, %c0_38] : memref<1x1x2x128xf32, #tpu.memory_space<vmem>>, vector<1x1x1x128xf32>
    %68 = vector.shape_cast %67 : vector<1x1x1x128xf32> to vector<1x128xf32>
    %69 = vector.shape_cast %66 : vector<1x128xf32> to vector<1x1x1x128xf32>
    tpu.vector_store %arg5[%c0_35, %c0_36, %c0_37, %c0_38], %69 {strides = array<i32>} : memref<1x1x2x128xf32, #tpu.memory_space<vmem>>, vector<1x1x1x128xf32>,
    %70 = arith.mulf %59, %59 : vector<128x128xf32>
    %cst_39 = arith.constant dense<0.000000e+00> : vector<128xf32>
    %71 = vector.multi_reduction <add>, %70, %cst_39 [0] : vector<128x128xf32> to vector<128xf32>
    %72 = vector.shape_cast %71 : vector<128xf32> to vector<1x128xf32>
    %c0_40 = arith.constant 0 : index
    %c0_41 = arith.constant 0 : index
    %c1_42 = arith.constant 1 : index
    %c0_43 = arith.constant 0 : index
    %73 = vector.load %arg5[%c0_40, %c0_41, %c1_42, %c0_43] : memref<1x1x2x128xf32, #tpu.memory_space<vmem>>, vector<1x1x1x128xf32>
    %74 = vector.shape_cast %73 : vector<1x1x1x128xf32> to vector<1x128xf32>
    %75 = vector.shape_cast %72 : vector<1x128xf32> to vector<1x1x1x128xf32>
    tpu.vector_store %arg5[%c0_40, %c0_41, %c1_42, %c0_43], %75 {strides = array<i32>} : memref<1x1x2x128xf32, #tpu.memory_space<vmem>>, vector<1x1x1x128xf32>,
    return
  }
  func.func @transform_0(%arg0: i32, %arg1: i32) -> (i32, i32, i32, i32) {
    %c0_i32 = arith.constant 0 : i32
    %c0_i32_0 = arith.constant 0 : i32
    %c0_i32_1 = arith.constant 0 : i32
    %c0_i32_2 = arith.constant 0 : i32
    return %arg0, %c0_i32, %c0_i32_0, %c0_i32_1 : i32, i32, i32, i32
  }
  func.func @transform_1(%arg0: i32, %arg1: i32) -> (i32, i32, i32) {
    %c0_i32 = arith.constant 0 : i32
    %c0_i32_0 = arith.constant 0 : i32
    %c0_i32_1 = arith.constant 0 : i32
    %c0_i32_2 = arith.constant 0 : i32
    return %c0_i32, %c0_i32_0, %c0_i32_1 : i32, i32, i32
  }
  func.func @transform_2(%arg0: i32, %arg1: i32) -> (i32, i32, i32, i32) {
    %c0_i32 = arith.constant 0 : i32
    %c0_i32_0 = arith.constant 0 : i32
    %c0_i32_1 = arith.constant 0 : i32
    return %arg0, %arg1, %c0_i32, %c0_i32_0 : i32, i32, i32, i32
  }
  func.func @transform_3(%arg0: i32, %arg1: i32) -> (i32, i32, i32, i32) {
    %c0_i32 = arith.constant 0 : i32
    %c0_i32_0 = arith.constant 0 : i32
    %c0_i32_1 = arith.constant 0 : i32
    return %arg0, %arg1, %c0_i32, %c0_i32_0 : i32, i32, i32, i32
  }
}

module attributes {stable_mosaic.version = 11 : i64} {
  func.func @kernel(%arg0: i32, %arg1: i32, %arg2: memref<1x8x16x128xbf16, #tpu.memory_space<vmem>>, %arg3: memref<1x128xf32, #tpu.memory_space<vmem>>, %arg4: memref<1x128xf32, #tpu.memory_space<vmem>>, %arg5: memref<1x8x16x128xbf16, #tpu.memory_space<vmem>>, %arg6: memref<1x8x16x128xf32, #tpu.memory_space<vmem>>) attributes {dimension_semantics = [#tpu.dimension_semantics<parallel>, #tpu.dimension_semantics<parallel>], iteration_bounds = array<i64: 2, 2>, scalar_prefetch = 0 : i64, scratch_operands = 0 : i64, tpu.core_type = #tpu.core_type<tc>, window_params = [{transform_indices = @transform_0, window_bounds = array<i64: 1, 8, 16, 128>}, {pipeline_mode = #tpu.pipeline_mode<synchronous>, transform_indices = @transform_1, window_bounds = array<i64: 1, 128>}, {pipeline_mode = #tpu.pipeline_mode<synchronous>, transform_indices = @transform_2, window_bounds = array<i64: 1, 128>}, {transform_indices = @transform_3, window_bounds = array<i64: 1, 8, 16, 128>}, {transform_indices = @transform_4, window_bounds = array<i64: 1, 8, 16, 128>}]} {
    %c0 = arith.constant 0 : index
    %c0_0 = arith.constant 0 : index
    %c0_1 = arith.constant 0 : index
    %c0_2 = arith.constant 0 : index
    %0 = vector.load %arg2[%c0, %c0_0, %c0_1, %c0_2] : memref<1x8x16x128xbf16, #tpu.memory_space<vmem>>, vector<1x8x16x128xbf16>
    %1 = vector.shape_cast %0 : vector<1x8x16x128xbf16> to vector<8x16x128xbf16>
    %2 = arith.extf %1 : vector<8x16x128xbf16> to vector<8x16x128xf32>
    %c0_3 = arith.constant 0 : index
    %c0_4 = arith.constant 0 : index
    %3 = vector.load %arg3[%c0_3, %c0_4] : memref<1x128xf32, #tpu.memory_space<vmem>>, vector<1x128xf32>
    %4 = vector.shape_cast %3 : vector<1x128xf32> to vector<1x1x128xf32>
    %5 = vector.broadcast %4 : vector<1x1x128xf32> to vector<8x16x128xf32>
    %6 = arith.mulf %2, %5 : vector<8x16x128xf32>
    %c0_5 = arith.constant 0 : index
    %c0_6 = arith.constant 0 : index
    %7 = vector.load %arg4[%c0_5, %c0_6] : memref<1x128xf32, #tpu.memory_space<vmem>>, vector<1x128xf32>
    %8 = vector.shape_cast %7 : vector<1x128xf32> to vector<1x1x128xf32>
    %9 = vector.broadcast %8 : vector<1x1x128xf32> to vector<8x16x128xf32>
    %10 = arith.addf %6, %9 : vector<8x16x128xf32>
    %cst = arith.constant 0.000000e+00 : f32
    %11 = vector.broadcast %cst : f32 to vector<8x16x128xf32>
    %12 = arith.maximumf %10, %11 : vector<8x16x128xf32>
    %c0_7 = arith.constant 0 : index
    %c0_8 = arith.constant 0 : index
    %c0_9 = arith.constant 0 : index
    %c0_10 = arith.constant 0 : index
    %13 = vector.load %arg5[%c0_7, %c0_8, %c0_9, %c0_10] : memref<1x8x16x128xbf16, #tpu.memory_space<vmem>>, vector<1x8x16x128xbf16>
    %14 = vector.shape_cast %13 : vector<1x8x16x128xbf16> to vector<8x16x128xbf16>
    %15 = arith.extf %14 : vector<8x16x128xbf16> to vector<8x16x128xf32>
    %16 = arith.addf %15, %12 : vector<8x16x128xf32>
    %cst_11 = arith.constant 0.000000e+00 : f32
    %17 = vector.broadcast %cst_11 : f32 to vector<8x16x128xf32>
    %18 = arith.maximumf %16, %17 : vector<8x16x128xf32>
    %c0_12 = arith.constant 0 : index
    %c0_13 = arith.constant 0 : index
    %c0_14 = arith.constant 0 : index
    %c0_15 = arith.constant 0 : index
    %19 = vector.load %arg6[%c0_12, %c0_13, %c0_14, %c0_15] : memref<1x8x16x128xf32, #tpu.memory_space<vmem>>, vector<1x8x16x128xf32>
    %20 = vector.shape_cast %19 : vector<1x8x16x128xf32> to vector<8x16x128xf32>
    %21 = vector.shape_cast %18 : vector<8x16x128xf32> to vector<1x8x16x128xf32>
    tpu.vector_store %arg6[%c0_12, %c0_13, %c0_14, %c0_15], %21 {strides = array<i32>} : memref<1x8x16x128xf32, #tpu.memory_space<vmem>>, vector<1x8x16x128xf32>,
    return
  }
  func.func @transform_0(%arg0: i32, %arg1: i32) -> (i32, i32, i32, i32) {
    %c0_i32 = arith.constant 0 : i32
    %c0_i32_0 = arith.constant 0 : i32
    %c0_i32_1 = arith.constant 0 : i32
    return %arg0, %arg1, %c0_i32, %c0_i32_0 : i32, i32, i32, i32
  }
  func.func @transform_1(%arg0: i32, %arg1: i32) -> (i32, i32) {
    %c0_i32 = arith.constant 0 : i32
    %c0_i32_0 = arith.constant 0 : i32
    %c0_i32_1 = arith.constant 0 : i32
    return %c0_i32, %c0_i32_0 : i32, i32
  }
  func.func @transform_2(%arg0: i32, %arg1: i32) -> (i32, i32) {
    %c0_i32 = arith.constant 0 : i32
    %c0_i32_0 = arith.constant 0 : i32
    %c0_i32_1 = arith.constant 0 : i32
    return %c0_i32, %c0_i32_0 : i32, i32
  }
  func.func @transform_3(%arg0: i32, %arg1: i32) -> (i32, i32, i32, i32) {
    %c0_i32 = arith.constant 0 : i32
    %c0_i32_0 = arith.constant 0 : i32
    %c0_i32_1 = arith.constant 0 : i32
    return %arg0, %arg1, %c0_i32, %c0_i32_0 : i32, i32, i32, i32
  }
  func.func @transform_4(%arg0: i32, %arg1: i32) -> (i32, i32, i32, i32) {
    %c0_i32 = arith.constant 0 : i32
    %c0_i32_0 = arith.constant 0 : i32
    %c0_i32_1 = arith.constant 0 : i32
    return %arg0, %arg1, %c0_i32, %c0_i32_0 : i32, i32, i32, i32
  }
}

module attributes {stable_mosaic.version = 11 : i64} {
  func.func @kernel(%arg0: i32, %arg1: i32, %arg2: memref<1x16x16x128xbf16, #tpu.memory_space<vmem>>, %arg3: memref<1x128xf32, #tpu.memory_space<vmem>>, %arg4: memref<1x128xf32, #tpu.memory_space<vmem>>, %arg5: memref<9x128x128xbf16, #tpu.memory_space<vmem>>, %arg6: memref<1x8x16x128xbf16, #tpu.memory_space<vmem>>, %arg7: memref<1x1x2x128xf32, #tpu.memory_space<vmem>>, %arg8: memref<10x18x128xbf16, #tpu.memory_space<vmem>>) attributes {dimension_semantics = [#tpu.dimension_semantics<parallel>, #tpu.dimension_semantics<parallel>], iteration_bounds = array<i64: 2, 2>, scalar_prefetch = 0 : i64, scratch_operands = 1 : i64, tpu.core_type = #tpu.core_type<tc>, window_params = [{transform_indices = @transform_0, window_bounds = array<i64: 1, 16, 16, 128>}, {pipeline_mode = #tpu.pipeline_mode<synchronous>, transform_indices = @transform_1, window_bounds = array<i64: 1, 128>}, {pipeline_mode = #tpu.pipeline_mode<synchronous>, transform_indices = @transform_2, window_bounds = array<i64: 1, 128>}, {pipeline_mode = #tpu.pipeline_mode<synchronous>, transform_indices = @transform_3, window_bounds = array<i64: 9, 128, 128>}, {transform_indices = @transform_4, window_bounds = array<i64: 1, 8, 16, 128>}, {transform_indices = @transform_5, window_bounds = array<i64: 1, 1, 2, 128>}]} {
    %c8_i32 = arith.constant 8 : i32
    %0 = arith.muli %arg1, %c8_i32 : i32
    %1 = tpu.assume_multiple %0, 8 : i32
    %c0 = arith.constant 0 : index
    %c0_0 = arith.constant 0 : index
    %2 = vector.load %arg3[%c0, %c0_0] : memref<1x128xf32, #tpu.memory_space<vmem>>, vector<1x128xf32>
    %3 = vector.shape_cast %2 : vector<1x128xf32> to vector<1x1x128xf32>
    %c0_1 = arith.constant 0 : index
    %c0_2 = arith.constant 0 : index
    %4 = vector.load %arg4[%c0_1, %c0_2] : memref<1x128xf32, #tpu.memory_space<vmem>>, vector<1x128xf32>
    %5 = vector.shape_cast %4 : vector<1x128xf32> to vector<1x1x128xf32>
    %c1_i32 = arith.constant 1 : i32
    %6 = arith.subi %1, %c1_i32 : i32
    %c0_i32 = arith.constant 0 : i32
    %7 = arith.maxsi %6, %c0_i32 : i32
    %c8_i32_3 = arith.constant 8 : i32
    %8 = arith.addi %1, %c8_i32_3 : i32
    %c15_i32 = arith.constant 15 : i32
    %9 = arith.minsi %8, %c15_i32 : i32
    %c0_4 = arith.constant 0 : index
    %10 = arith.index_cast %7 : i32 to index
    %c0_5 = arith.constant 0 : index
    %c0_6 = arith.constant 0 : index
    %11 = vector.load %arg2[%c0_4, %10, %c0_5, %c0_6] : memref<1x16x16x128xbf16, #tpu.memory_space<vmem>>, vector<1x1x16x128xbf16>
    %12 = vector.shape_cast %11 : vector<1x1x16x128xbf16> to vector<1x16x128xbf16>
    %13 = arith.extf %12 : vector<1x16x128xbf16> to vector<1x16x128xf32>
    %14 = vector.broadcast %3 : vector<1x1x128xf32> to vector<1x16x128xf32>
    %15 = arith.mulf %13, %14 : vector<1x16x128xf32>
    %16 = vector.broadcast %5 : vector<1x1x128xf32> to vector<1x16x128xf32>
    %17 = arith.addf %15, %16 : vector<1x16x128xf32>
    %cst = arith.constant 0.000000e+00 : f32
    %18 = vector.broadcast %cst : f32 to vector<1x16x128xf32>
    %19 = arith.maximumf %17, %18 : vector<1x16x128xf32>
    %c0_i32_7 = arith.constant 0 : i32
    %20 = arith.cmpi sgt, %1, %c0_i32_7 : i32
    %cst_8 = arith.constant 1.000000e+00 : f32
    %cst_9 = arith.constant 0.000000e+00 : f32
    %21 = arith.select %20, %cst_8, %cst_9 : f32
    %22 = vector.broadcast %21 : f32 to vector<1x16x128xf32>
    %23 = arith.mulf %19, %22 : vector<1x16x128xf32>
    %c0_10 = arith.constant 0 : index
    %24 = arith.index_cast %1 : i32 to index
    %c0_11 = arith.constant 0 : index
    %c0_12 = arith.constant 0 : index
    %25 = vector.load %arg2[%c0_10, %24, %c0_11, %c0_12] : memref<1x16x16x128xbf16, #tpu.memory_space<vmem>>, vector<1x8x16x128xbf16>
    %26 = vector.shape_cast %25 : vector<1x8x16x128xbf16> to vector<8x16x128xbf16>
    %27 = arith.extf %26 : vector<8x16x128xbf16> to vector<8x16x128xf32>
    %28 = vector.broadcast %3 : vector<1x1x128xf32> to vector<8x16x128xf32>
    %29 = arith.mulf %27, %28 : vector<8x16x128xf32>
    %30 = vector.broadcast %5 : vector<1x1x128xf32> to vector<8x16x128xf32>
    %31 = arith.addf %29, %30 : vector<8x16x128xf32>
    %cst_13 = arith.constant 0.000000e+00 : f32
    %32 = vector.broadcast %cst_13 : f32 to vector<8x16x128xf32>
    %33 = arith.maximumf %31, %32 : vector<8x16x128xf32>
    %c0_14 = arith.constant 0 : index
    %34 = arith.index_cast %9 : i32 to index
    %c0_15 = arith.constant 0 : index
    %c0_16 = arith.constant 0 : index
    %35 = vector.load %arg2[%c0_14, %34, %c0_15, %c0_16] : memref<1x16x16x128xbf16, #tpu.memory_space<vmem>>, vector<1x1x16x128xbf16>
    %36 = vector.shape_cast %35 : vector<1x1x16x128xbf16> to vector<1x16x128xbf16>
    %37 = arith.extf %36 : vector<1x16x128xbf16> to vector<1x16x128xf32>
    %38 = vector.broadcast %3 : vector<1x1x128xf32> to vector<1x16x128xf32>
    %39 = arith.mulf %37, %38 : vector<1x16x128xf32>
    %40 = vector.broadcast %5 : vector<1x1x128xf32> to vector<1x16x128xf32>
    %41 = arith.addf %39, %40 : vector<1x16x128xf32>
    %cst_17 = arith.constant 0.000000e+00 : f32
    %42 = vector.broadcast %cst_17 : f32 to vector<1x16x128xf32>
    %43 = arith.maximumf %41, %42 : vector<1x16x128xf32>
    %c8_i32_18 = arith.constant 8 : i32
    %44 = arith.addi %1, %c8_i32_18 : i32
    %c16_i32 = arith.constant 16 : i32
    %45 = arith.cmpi slt, %44, %c16_i32 : i32
    %cst_19 = arith.constant 1.000000e+00 : f32
    %cst_20 = arith.constant 0.000000e+00 : f32
    %46 = arith.select %45, %cst_19, %cst_20 : f32
    %47 = vector.broadcast %46 : f32 to vector<1x16x128xf32>
    %48 = arith.mulf %43, %47 : vector<1x16x128xf32>
    %cst_21 = arith.constant 0.000000e+00 : bf16
    %49 = vector.broadcast %cst_21 : bf16 to vector<10x18x128xbf16>
    %c0_22 = arith.constant 0 : index
    %c0_23 = arith.constant 0 : index
    %c0_24 = arith.constant 0 : index
    %50 = vector.load %arg8[%c0_22, %c0_23, %c0_24] : memref<10x18x128xbf16, #tpu.memory_space<vmem>>, vector<10x18x128xbf16>
    tpu.vector_store %arg8[%c0_22, %c0_23, %c0_24], %49 {strides = array<i32>} : memref<10x18x128xbf16, #tpu.memory_space<vmem>>, vector<10x18x128xbf16>,
    %51 = arith.truncf %23 : vector<1x16x128xf32> to vector<1x16x128xbf16>
    %c0_25 = arith.constant 0 : index
    %c1 = arith.constant 1 : index
    %c0_26 = arith.constant 0 : index
    %52 = vector.load %arg8[%c0_25, %c1, %c0_26] : memref<10x18x128xbf16, #tpu.memory_space<vmem>>, vector<1x16x128xbf16>
    tpu.vector_store %arg8[%c0_25, %c1, %c0_26], %51 {strides = array<i32>} : memref<10x18x128xbf16, #tpu.memory_space<vmem>>, vector<1x16x128xbf16>,
    %53 = arith.truncf %33 : vector<8x16x128xf32> to vector<8x16x128xbf16>
    %c1_27 = arith.constant 1 : index
    %c1_28 = arith.constant 1 : index
    %c0_29 = arith.constant 0 : index
    %54 = vector.load %arg8[%c1_27, %c1_28, %c0_29] : memref<10x18x128xbf16, #tpu.memory_space<vmem>>, vector<8x16x128xbf16>
    tpu.vector_store %arg8[%c1_27, %c1_28, %c0_29], %53 {strides = array<i32>} : memref<10x18x128xbf16, #tpu.memory_space<vmem>>, vector<8x16x128xbf16>,
    %55 = arith.truncf %48 : vector<1x16x128xf32> to vector<1x16x128xbf16>
    %c9 = arith.constant 9 : index
    %c1_30 = arith.constant 1 : index
    %c0_31 = arith.constant 0 : index
    %56 = vector.load %arg8[%c9, %c1_30, %c0_31] : memref<10x18x128xbf16, #tpu.memory_space<vmem>>, vector<1x16x128xbf16>
    tpu.vector_store %arg8[%c9, %c1_30, %c0_31], %55 {strides = array<i32>} : memref<10x18x128xbf16, #tpu.memory_space<vmem>>, vector<1x16x128xbf16>,
    %cst_32 = arith.constant 0.000000e+00 : f32
    %57 = vector.broadcast %cst_32 : f32 to vector<128x128xf32>
    %c0_33 = arith.constant 0 : index
    %c0_34 = arith.constant 0 : index
    %c0_35 = arith.constant 0 : index
    %58 = vector.load %arg8[%c0_33, %c0_34, %c0_35] : memref<10x18x128xbf16, #tpu.memory_space<vmem>>, vector<8x16x128xbf16>
    %59 = vector.shape_cast %58 : vector<8x16x128xbf16> to vector<128x128xbf16>
    %c0_36 = arith.constant 0 : index
    %c0_37 = arith.constant 0 : index
    %c0_38 = arith.constant 0 : index
    %60 = vector.load %arg5[%c0_36, %c0_37, %c0_38] : memref<9x128x128xbf16, #tpu.memory_space<vmem>>, vector<1x128x128xbf16>
    %61 = vector.shape_cast %60 : vector<1x128x128xbf16> to vector<128x128xbf16>
    %cst_39 = arith.constant dense<0.000000e+00> : vector<128x128xf32>
    %62 = tpu.matmul %59, %61, %cst_39 {dimension_numbers = #tpu.dot_dimension_numbers<[1], [0], [0], [1], [0, 0, 1, 1], [], []>} : vector<128x128xbf16>, vector<128x128xbf16>, vector<128x128xf32> -> vector<128x128xf32>
    %63 = arith.addf %57, %62 : vector<128x128xf32>
    %c0_40 = arith.constant 0 : index
    %c1_41 = arith.constant 1 : index
    %c0_42 = arith.constant 0 : index
    %64 = vector.load %arg8[%c0_40, %c1_41, %c0_42] : memref<10x18x128xbf16, #tpu.memory_space<vmem>>, vector<8x16x128xbf16>
    %65 = vector.shape_cast %64 : vector<8x16x128xbf16> to vector<128x128xbf16>
    %c1_43 = arith.constant 1 : index
    %c0_44 = arith.constant 0 : index
    %c0_45 = arith.constant 0 : index
    %66 = vector.load %arg5[%c1_43, %c0_44, %c0_45] : memref<9x128x128xbf16, #tpu.memory_space<vmem>>, vector<1x128x128xbf16>
    %67 = vector.shape_cast %66 : vector<1x128x128xbf16> to vector<128x128xbf16>
    %cst_46 = arith.constant dense<0.000000e+00> : vector<128x128xf32>
    %68 = tpu.matmul %65, %67, %cst_46 {dimension_numbers = #tpu.dot_dimension_numbers<[1], [0], [0], [1], [0, 0, 1, 1], [], []>} : vector<128x128xbf16>, vector<128x128xbf16>, vector<128x128xf32> -> vector<128x128xf32>
    %69 = arith.addf %63, %68 : vector<128x128xf32>
    %c0_47 = arith.constant 0 : index
    %c2 = arith.constant 2 : index
    %c0_48 = arith.constant 0 : index
    %70 = vector.load %arg8[%c0_47, %c2, %c0_48] : memref<10x18x128xbf16, #tpu.memory_space<vmem>>, vector<8x16x128xbf16>
    %71 = vector.shape_cast %70 : vector<8x16x128xbf16> to vector<128x128xbf16>
    %c2_49 = arith.constant 2 : index
    %c0_50 = arith.constant 0 : index
    %c0_51 = arith.constant 0 : index
    %72 = vector.load %arg5[%c2_49, %c0_50, %c0_51] : memref<9x128x128xbf16, #tpu.memory_space<vmem>>, vector<1x128x128xbf16>
    %73 = vector.shape_cast %72 : vector<1x128x128xbf16> to vector<128x128xbf16>
    %cst_52 = arith.constant dense<0.000000e+00> : vector<128x128xf32>
    %74 = tpu.matmul %71, %73, %cst_52 {dimension_numbers = #tpu.dot_dimension_numbers<[1], [0], [0], [1], [0, 0, 1, 1], [], []>} : vector<128x128xbf16>, vector<128x128xbf16>, vector<128x128xf32> -> vector<128x128xf32>
    %75 = arith.addf %69, %74 : vector<128x128xf32>
    %c1_53 = arith.constant 1 : index
    %c0_54 = arith.constant 0 : index
    %c0_55 = arith.constant 0 : index
    %76 = vector.load %arg8[%c1_53, %c0_54, %c0_55] : memref<10x18x128xbf16, #tpu.memory_space<vmem>>, vector<8x16x128xbf16>
    %77 = vector.shape_cast %76 : vector<8x16x128xbf16> to vector<128x128xbf16>
    %c3 = arith.constant 3 : index
    %c0_56 = arith.constant 0 : index
    %c0_57 = arith.constant 0 : index
    %78 = vector.load %arg5[%c3, %c0_56, %c0_57] : memref<9x128x128xbf16, #tpu.memory_space<vmem>>, vector<1x128x128xbf16>
    %79 = vector.shape_cast %78 : vector<1x128x128xbf16> to vector<128x128xbf16>
    %cst_58 = arith.constant dense<0.000000e+00> : vector<128x128xf32>
    %80 = tpu.matmul %77, %79, %cst_58 {dimension_numbers = #tpu.dot_dimension_numbers<[1], [0], [0], [1], [0, 0, 1, 1], [], []>} : vector<128x128xbf16>, vector<128x128xbf16>, vector<128x128xf32> -> vector<128x128xf32>
    %81 = arith.addf %75, %80 : vector<128x128xf32>
    %c1_59 = arith.constant 1 : index
    %c1_60 = arith.constant 1 : index
    %c0_61 = arith.constant 0 : index
    %82 = vector.load %arg8[%c1_59, %c1_60, %c0_61] : memref<10x18x128xbf16, #tpu.memory_space<vmem>>, vector<8x16x128xbf16>
    %83 = vector.shape_cast %82 : vector<8x16x128xbf16> to vector<128x128xbf16>
    %c4 = arith.constant 4 : index
    %c0_62 = arith.constant 0 : index
    %c0_63 = arith.constant 0 : index
    %84 = vector.load %arg5[%c4, %c0_62, %c0_63] : memref<9x128x128xbf16, #tpu.memory_space<vmem>>, vector<1x128x128xbf16>
    %85 = vector.shape_cast %84 : vector<1x128x128xbf16> to vector<128x128xbf16>
    %cst_64 = arith.constant dense<0.000000e+00> : vector<128x128xf32>
    %86 = tpu.matmul %83, %85, %cst_64 {dimension_numbers = #tpu.dot_dimension_numbers<[1], [0], [0], [1], [0, 0, 1, 1], [], []>} : vector<128x128xbf16>, vector<128x128xbf16>, vector<128x128xf32> -> vector<128x128xf32>
    %87 = arith.addf %81, %86 : vector<128x128xf32>
    %c1_65 = arith.constant 1 : index
    %c2_66 = arith.constant 2 : index
    %c0_67 = arith.constant 0 : index
    %88 = vector.load %arg8[%c1_65, %c2_66, %c0_67] : memref<10x18x128xbf16, #tpu.memory_space<vmem>>, vector<8x16x128xbf16>
    %89 = vector.shape_cast %88 : vector<8x16x128xbf16> to vector<128x128xbf16>
    %c5 = arith.constant 5 : index
    %c0_68 = arith.constant 0 : index
    %c0_69 = arith.constant 0 : index
    %90 = vector.load %arg5[%c5, %c0_68, %c0_69] : memref<9x128x128xbf16, #tpu.memory_space<vmem>>, vector<1x128x128xbf16>
    %91 = vector.shape_cast %90 : vector<1x128x128xbf16> to vector<128x128xbf16>
    %cst_70 = arith.constant dense<0.000000e+00> : vector<128x128xf32>
    %92 = tpu.matmul %89, %91, %cst_70 {dimension_numbers = #tpu.dot_dimension_numbers<[1], [0], [0], [1], [0, 0, 1, 1], [], []>} : vector<128x128xbf16>, vector<128x128xbf16>, vector<128x128xf32> -> vector<128x128xf32>
    %93 = arith.addf %87, %92 : vector<128x128xf32>
    %c2_71 = arith.constant 2 : index
    %c0_72 = arith.constant 0 : index
    %c0_73 = arith.constant 0 : index
    %94 = vector.load %arg8[%c2_71, %c0_72, %c0_73] : memref<10x18x128xbf16, #tpu.memory_space<vmem>>, vector<8x16x128xbf16>
    %95 = vector.shape_cast %94 : vector<8x16x128xbf16> to vector<128x128xbf16>
    %c6 = arith.constant 6 : index
    %c0_74 = arith.constant 0 : index
    %c0_75 = arith.constant 0 : index
    %96 = vector.load %arg5[%c6, %c0_74, %c0_75] : memref<9x128x128xbf16, #tpu.memory_space<vmem>>, vector<1x128x128xbf16>
    %97 = vector.shape_cast %96 : vector<1x128x128xbf16> to vector<128x128xbf16>
    %cst_76 = arith.constant dense<0.000000e+00> : vector<128x128xf32>
    %98 = tpu.matmul %95, %97, %cst_76 {dimension_numbers = #tpu.dot_dimension_numbers<[1], [0], [0], [1], [0, 0, 1, 1], [], []>} : vector<128x128xbf16>, vector<128x128xbf16>, vector<128x128xf32> -> vector<128x128xf32>
    %99 = arith.addf %93, %98 : vector<128x128xf32>
    %c2_77 = arith.constant 2 : index
    %c1_78 = arith.constant 1 : index
    %c0_79 = arith.constant 0 : index
    %100 = vector.load %arg8[%c2_77, %c1_78, %c0_79] : memref<10x18x128xbf16, #tpu.memory_space<vmem>>, vector<8x16x128xbf16>
    %101 = vector.shape_cast %100 : vector<8x16x128xbf16> to vector<128x128xbf16>
    %c7 = arith.constant 7 : index
    %c0_80 = arith.constant 0 : index
    %c0_81 = arith.constant 0 : index
    %102 = vector.load %arg5[%c7, %c0_80, %c0_81] : memref<9x128x128xbf16, #tpu.memory_space<vmem>>, vector<1x128x128xbf16>
    %103 = vector.shape_cast %102 : vector<1x128x128xbf16> to vector<128x128xbf16>
    %cst_82 = arith.constant dense<0.000000e+00> : vector<128x128xf32>
    %104 = tpu.matmul %101, %103, %cst_82 {dimension_numbers = #tpu.dot_dimension_numbers<[1], [0], [0], [1], [0, 0, 1, 1], [], []>} : vector<128x128xbf16>, vector<128x128xbf16>, vector<128x128xf32> -> vector<128x128xf32>
    %105 = arith.addf %99, %104 : vector<128x128xf32>
    %c2_83 = arith.constant 2 : index
    %c2_84 = arith.constant 2 : index
    %c0_85 = arith.constant 0 : index
    %106 = vector.load %arg8[%c2_83, %c2_84, %c0_85] : memref<10x18x128xbf16, #tpu.memory_space<vmem>>, vector<8x16x128xbf16>
    %107 = vector.shape_cast %106 : vector<8x16x128xbf16> to vector<128x128xbf16>
    %c8 = arith.constant 8 : index
    %c0_86 = arith.constant 0 : index
    %c0_87 = arith.constant 0 : index
    %108 = vector.load %arg5[%c8, %c0_86, %c0_87] : memref<9x128x128xbf16, #tpu.memory_space<vmem>>, vector<1x128x128xbf16>
    %109 = vector.shape_cast %108 : vector<1x128x128xbf16> to vector<128x128xbf16>
    %cst_88 = arith.constant dense<0.000000e+00> : vector<128x128xf32>
    %110 = tpu.matmul %107, %109, %cst_88 {dimension_numbers = #tpu.dot_dimension_numbers<[1], [0], [0], [1], [0, 0, 1, 1], [], []>} : vector<128x128xbf16>, vector<128x128xbf16>, vector<128x128xf32> -> vector<128x128xf32>
    %111 = arith.addf %105, %110 : vector<128x128xf32>
    %112 = vector.shape_cast %111 : vector<128x128xf32> to vector<8x16x128xf32>
    %113 = arith.truncf %112 : vector<8x16x128xf32> to vector<8x16x128xbf16>
    %c0_89 = arith.constant 0 : index
    %c0_90 = arith.constant 0 : index
    %c0_91 = arith.constant 0 : index
    %c0_92 = arith.constant 0 : index
    %114 = vector.load %arg6[%c0_89, %c0_90, %c0_91, %c0_92] : memref<1x8x16x128xbf16, #tpu.memory_space<vmem>>, vector<1x8x16x128xbf16>
    %115 = vector.shape_cast %114 : vector<1x8x16x128xbf16> to vector<8x16x128xbf16>
    %116 = vector.shape_cast %113 : vector<8x16x128xbf16> to vector<1x8x16x128xbf16>
    tpu.vector_store %arg6[%c0_89, %c0_90, %c0_91, %c0_92], %116 {strides = array<i32>} : memref<1x8x16x128xbf16, #tpu.memory_space<vmem>>, vector<1x8x16x128xbf16>,
    %cst_93 = arith.constant dense<0.000000e+00> : vector<128xf32>
    %117 = vector.multi_reduction <add>, %111, %cst_93 [0] : vector<128x128xf32> to vector<128xf32>
    %118 = vector.shape_cast %117 : vector<128xf32> to vector<1x128xf32>
    %c0_94 = arith.constant 0 : index
    %c0_95 = arith.constant 0 : index
    %c0_96 = arith.constant 0 : index
    %c0_97 = arith.constant 0 : index
    %119 = vector.load %arg7[%c0_94, %c0_95, %c0_96, %c0_97] : memref<1x1x2x128xf32, #tpu.memory_space<vmem>>, vector<1x1x1x128xf32>
    %120 = vector.shape_cast %119 : vector<1x1x1x128xf32> to vector<1x128xf32>
    %121 = vector.shape_cast %118 : vector<1x128xf32> to vector<1x1x1x128xf32>
    tpu.vector_store %arg7[%c0_94, %c0_95, %c0_96, %c0_97], %121 {strides = array<i32>} : memref<1x1x2x128xf32, #tpu.memory_space<vmem>>, vector<1x1x1x128xf32>,
    %122 = arith.mulf %111, %111 : vector<128x128xf32>
    %cst_98 = arith.constant dense<0.000000e+00> : vector<128xf32>
    %123 = vector.multi_reduction <add>, %122, %cst_98 [0] : vector<128x128xf32> to vector<128xf32>
    %124 = vector.shape_cast %123 : vector<128xf32> to vector<1x128xf32>
    %c0_99 = arith.constant 0 : index
    %c0_100 = arith.constant 0 : index
    %c1_101 = arith.constant 1 : index
    %c0_102 = arith.constant 0 : index
    %125 = vector.load %arg7[%c0_99, %c0_100, %c1_101, %c0_102] : memref<1x1x2x128xf32, #tpu.memory_space<vmem>>, vector<1x1x1x128xf32>
    %126 = vector.shape_cast %125 : vector<1x1x1x128xf32> to vector<1x128xf32>
    %127 = vector.shape_cast %124 : vector<1x128xf32> to vector<1x1x1x128xf32>
    tpu.vector_store %arg7[%c0_99, %c0_100, %c1_101, %c0_102], %127 {strides = array<i32>} : memref<1x1x2x128xf32, #tpu.memory_space<vmem>>, vector<1x1x1x128xf32>,
    return
  }
  func.func @transform_0(%arg0: i32, %arg1: i32) -> (i32, i32, i32, i32) {
    %c0_i32 = arith.constant 0 : i32
    %c0_i32_0 = arith.constant 0 : i32
    %c0_i32_1 = arith.constant 0 : i32
    %c0_i32_2 = arith.constant 0 : i32
    return %arg0, %c0_i32, %c0_i32_0, %c0_i32_1 : i32, i32, i32, i32
  }
  func.func @transform_1(%arg0: i32, %arg1: i32) -> (i32, i32) {
    %c0_i32 = arith.constant 0 : i32
    %c0_i32_0 = arith.constant 0 : i32
    %c0_i32_1 = arith.constant 0 : i32
    return %c0_i32, %c0_i32_0 : i32, i32
  }
  func.func @transform_2(%arg0: i32, %arg1: i32) -> (i32, i32) {
    %c0_i32 = arith.constant 0 : i32
    %c0_i32_0 = arith.constant 0 : i32
    %c0_i32_1 = arith.constant 0 : i32
    return %c0_i32, %c0_i32_0 : i32, i32
  }
  func.func @transform_3(%arg0: i32, %arg1: i32) -> (i32, i32, i32) {
    %c0_i32 = arith.constant 0 : i32
    %c0_i32_0 = arith.constant 0 : i32
    %c0_i32_1 = arith.constant 0 : i32
    %c0_i32_2 = arith.constant 0 : i32
    return %c0_i32, %c0_i32_0, %c0_i32_1 : i32, i32, i32
  }
  func.func @transform_4(%arg0: i32, %arg1: i32) -> (i32, i32, i32, i32) {
    %c0_i32 = arith.constant 0 : i32
    %c0_i32_0 = arith.constant 0 : i32
    %c0_i32_1 = arith.constant 0 : i32
    return %arg0, %arg1, %c0_i32, %c0_i32_0 : i32, i32, i32, i32
  }
  func.func @transform_5(%arg0: i32, %arg1: i32) -> (i32, i32, i32, i32) {
    %c0_i32 = arith.constant 0 : i32
    %c0_i32_0 = arith.constant 0 : i32
    %c0_i32_1 = arith.constant 0 : i32
    return %arg0, %arg1, %c0_i32, %c0_i32_0 : i32, i32, i32, i32
  }
}

</mosaic_0001>

<llo_original>
// kernel: residual_block_forward.5
$region0: #{residual_block_forward.5}
  #allocation0 [shape = 'u32[]', space=smem, size = 0x4, offset = 0x4, fixed_abs, tag = 'smem constant byte address 0x4 - core index']
  #allocation1 [shape = 'u32[144,128]{1,0:T(1,128)}', space=vmem, size = 0x12000, scoped, tag = 'internal scratch']
  %s0 = inlined_call_operand.vmem [shape: bf16[2,16,16,128], index: 0, kind: input, shape index: {}]
  %s1 = inlined_call_operand.vmem [shape: f32[1,128], index: 1, kind: input, shape index: {}]
  %s2 = inlined_call_operand.vmem [shape: f32[1,128], index: 2, kind: input, shape index: {}]
  %s3 = inlined_call_operand.vmem [shape: bf16[2,16,16,128], index: 3, kind: input, shape index: {}]
  %s4 = inlined_call_operand.vmem [shape: f32[2,16,16,128], index: 4, kind: output, shape index: {}]
  %s5 = sld [smem:[#allocation0]]
  $region49: #{residual_block_forward.5} parent=0
    _
  %s7 = ssub.s32 1, %s5
  %s8 = scalar_select 0, %s7, %s5
  loop: start=0, step=1, limit=6
  $region2: #{residual_block_forward.5} parent=0 // loop_pre_header
    _
  $region3: #{residual_block_forward.5} parent=0 // loop_header
    %s10 = sphi 0, %s14
    %p11 = scmp.ge.s32.totalorder %s10, 6
    %s17 = sphi 0, %s29
    %s18 = sphi 0, %s25
    %s19 = sphi 0, %s17
    %s20 = sphi 0, %s18
    %s21 = sphi 0, %s19
    %s22 = sphi 0, %s20
    %s34 = sphi 0, %s36
    %s37 = sphi 0, %s34
    %s38 = sphi 0, %s37
    %s54 = sphi 0, %s38
    %s58 = sphi 0, %s58
    %s60 = sphi 0, %s58
    %s61 = sphi 0, %s60
    %s75 = sphi 0, %s61
    %s79 = sphi 0, %s79
    %s81 = sphi 0, %s79
    %s82 = sphi 0, %s81
    %s96 = sphi 0, %s82
    %s104 = sphi 0, %s106
    %s107 = sphi 0, %s104
    %s108 = sphi 0, %s107
    %s124 = sphi 0, %s108
    %s132 = sphi 0, %s134
    %s135 = sphi 0, %s132
    %s136 = sphi 0, %s135
    %s152 = sphi 0, %s136
  $region4: #{residual_block_forward.5} parent=0 // loop_header_branch
    %13 = sbr.rel (%p11) target = $region8
  $region5: #{residual_block_forward.5} parent=0 // loop_body
    %s15 = ssub.s32 %s10, 1
    %s16 = ssub.s32 %s10, 2
    %s23 = sadd.s32 1, %s18
    %p24 = scmp.ge.s32.totalorder %s23, 2
    %s25 = scalar_select %p24, 0, %s23
    %s26 = sadd.s32 1, %s17
    %s27 = scalar_select %p24, %s26, %s17
    %p28 = scmp.ge.s32.totalorder %s27, 2
    %s29 = scalar_select %p28, 0, %s27
    %s30 = ssub.s32 %s17, %s29
    %s31 = ssub.s32 %s18, %s25
    %s32 = sor.u32 %s30, %s31
    %p33 = scmp.eq.s32.totalorder %s32, 0
    %s35 = sadd.s32 %s34, 1
    %s36 = scalar_select %p33, %s34, %s35
    %p39 = pneg %p33
    %p40 = scmp.eq.s32.totalorder %s10, 3
    %p41 = por %p39, %p40
    %p42 = scmp.ne.s32.totalorder %s34, %s37
    %p43 = scmp.eq.s32.totalorder %s10, 0
    %p44 = por %p42, %p43
    %p45 = scmp.ne.s32.totalorder %s34, %s37
    %p46 = scmp.eq.s32.totalorder %s15, 3
    %p47 = por %p45, %p46
    %p48 = scmp.ne.s32.totalorder %s37, %s38
    %p49 = scmp.eq.s32.totalorder %s15, 0
    %p50 = por %p48, %p49
    %p51 = scmp.ne.s32.totalorder %s37, %s38
    %p52 = scmp.eq.s32.totalorder %s16, 3
    %p53 = por %p51, %p52
    %p55 = scmp.ne.s32.totalorder %s38, %s54
    %p56 = scmp.eq.s32.totalorder %s16, 0
    %p57 = por %p55, %p56
    %s59 = sadd.s32 %s58, 1
    %p62 = scmp.eq.s32.totalorder %s10, 3
    %p63 = scmp.ne.s32.totalorder %s58, %s60
    %p64 = scmp.eq.s32.totalorder %s10, 0
    %p65 = por %p63, %p64
    %p66 = scmp.ne.s32.totalorder %s58, %s60
    %p67 = scmp.eq.s32.totalorder %s15, 3
    %p68 = por %p66, %p67
    %p69 = scmp.ne.s32.totalorder %s60, %s61
    %p70 = scmp.eq.s32.totalorder %s15, 0
    %p71 = por %p69, %p70
    %p72 = scmp.ne.s32.totalorder %s60, %s61
    %p73 = scmp.eq.s32.totalorder %s16, 3
    %p74 = por %p72, %p73
    %p76 = scmp.ne.s32.totalorder %s61, %s75
    %p77 = scmp.eq.s32.totalorder %s16, 0
    %p78 = por %p76, %p77
    %s80 = sadd.s32 %s79, 1
    %p83 = scmp.eq.s32.totalorder %s10, 3
    %p84 = scmp.ne.s32.totalorder %s79, %s81
    %p85 = scmp.eq.s32.totalorder %s10, 0
    %p86 = por %p84, %p85
    %p87 = scmp.ne.s32.totalorder %s79, %s81
    %p88 = scmp.eq.s32.totalorder %s15, 3
    %p89 = por %p87, %p88
    %p90 = scmp.ne.s32.totalorder %s81, %s82
    %p91 = scmp.eq.s32.totalorder %s15, 0
    %p92 = por %p90, %p91
    %p93 = scmp.ne.s32.totalorder %s81, %s82
    %p94 = scmp.eq.s32.totalorder %s16, 3
    %p95 = por %p93, %p94
    %p97 = scmp.ne.s32.totalorder %s82, %s96
    %p98 = scmp.eq.s32.totalorder %s16, 0
    %p99 = por %p97, %p98
    %s100 = ssub.s32 %s17, %s29
    %s101 = ssub.s32 %s18, %s25
    %s102 = sor.u32 %s100, %s101
    %p103 = scmp.eq.s32.totalorder %s102, 0
    %s105 = sadd.s32 %s104, 1
    %s106 = scalar_select %p103, %s104, %s105
    %p109 = pneg %p103
    %p110 = scmp.eq.s32.totalorder %s10, 3
    %p111 = por %p109, %p110
    %p112 = scmp.ne.s32.totalorder %s104, %s107
    %p113 = scmp.eq.s32.totalorder %s10, 0
    %p114 = por %p112, %p113
    %p115 = scmp.ne.s32.totalorder %s104, %s107
    %p116 = scmp.eq.s32.totalorder %s15, 3
    %p117 = por %p115, %p116
    %p118 = scmp.ne.s32.totalorder %s107, %s108
    %p119 = scmp.eq.s32.totalorder %s15, 0
    %p120 = por %p118, %p119
    %p121 = scmp.ne.s32.totalorder %s107, %s108
    %p122 = scmp.eq.s32.totalorder %s16, 3
    %p123 = por %p121, %p122
    %p125 = scmp.ne.s32.totalorder %s108, %s124
    %p126 = scmp.eq.s32.totalorder %s16, 0
    %p127 = por %p125, %p126
    %s128 = ssub.s32 %s17, %s29
    %s129 = ssub.s32 %s18, %s25
    %s130 = sor.u32 %s128, %s129
    %p131 = scmp.eq.s32.totalorder %s130, 0
    %s133 = sadd.s32 %s132, 1
    %s134 = scalar_select %p131, %s132, %s133
    %p137 = pneg %p131
    %p138 = scmp.eq.s32.totalorder %s10, 3
    %p139 = por %p137, %p138
    %p140 = scmp.ne.s32.totalorder %s132, %s135
    %p141 = scmp.eq.s32.totalorder %s10, 0
    %p142 = por %p140, %p141
    %p143 = scmp.ne.s32.totalorder %s132, %s135
    %p144 = scmp.eq.s32.totalorder %s15, 3
    %p145 = por %p143, %p144
    %p146 = scmp.ne.s32.totalorder %s135, %s136
    %p147 = scmp.eq.s32.totalorder %s15, 0
    %p148 = por %p146, %p147
    %p149 = scmp.ne.s32.totalorder %s135, %s136
    %p150 = scmp.eq.s32.totalorder %s16, 3
    %p151 = por %p149, %p150
    %p153 = scmp.ne.s32.totalorder %s136, %s152
    %p154 = scmp.eq.s32.totalorder %s16, 0
    %p155 = por %p153, %p154
    %p156 = scmp.le.s32.totalorder 1, %s10
    %p157 = scmp.lt.s32.totalorder %s10, 5
    %p158 = pnand %p156, %p157
    %p159 = pneg %p158
    // Predicated region
    $region9: #{residual_block_forward.5} parent=5 // pred_check
      _
    $region10: #{residual_block_forward.5} parent=5 // pred_check_branch
      %161 = sbr.rel (%p158) target = $region12
    $region11: #{residual_block_forward.5} parent=5 // pred_region
      %s162 = ssub.s32 %s10, 1
      // Predicated region
      $region13: #{residual_block_forward.5} parent=11 // pred_check
        %p163 = pneg %p71
      $region14: #{residual_block_forward.5} parent=11 // pred_check_branch
        %165 = sbr.rel (%p163) target = $region16
      $region15: #{residual_block_forward.5} parent=11 // pred_region
        _
      $region16: #{residual_block_forward.5} parent=11 // pred_fallthru
        _
      // Predicated region
      $region17: #{residual_block_forward.5} parent=11 // pred_check
        %p166 = pneg %p92
      $region18: #{residual_block_forward.5} parent=11 // pred_check_branch
        %168 = sbr.rel (%p166) target = $region20
      $region19: #{residual_block_forward.5} parent=11 // pred_region
        _
      $region20: #{residual_block_forward.5} parent=11 // pred_fallthru
        _
    $region12: #{residual_block_forward.5} parent=5 // pred_fallthru
      _
    %p169 = scmp.lt.s32.totalorder %s10, 4
    // Predicated region
    $region21: #{residual_block_forward.5} parent=5 // pred_check
      %p170 = pneg %p169
    $region22: #{residual_block_forward.5} parent=5 // pred_check_branch
      %172 = sbr.rel (%p170) target = $region24
    $region23: #{residual_block_forward.5} parent=5 // pred_region
      // Predicated region
      $region25: #{residual_block_forward.5} parent=23 // pred_check
        %p173 = pneg %p44
      $region26: #{residual_block_forward.5} parent=23 // pred_check_branch
        %175 = sbr.rel (%p173) target = $region28
      $region27: #{residual_block_forward.5} parent=23 // pred_region
        %s176 = smul.u32 8, %s18
        %p177 = scmp.lt.s32.totalorder %s17, 1
        %s178 = scalar_select %p177, %s17, 1
        %p179 = scmp.lt.s32.totalorder %s176, 15
        %s180 = scalar_select %p179, %s176, 15
        %s181 = smul.addr %s180, 2
        %s182 = smul.addr %s178, 32
        %s183 = sadd.s32 %s181, %s182
        %s184 = smul.addr %s183, 4
        %s185 = scalar_lea.vmem %s0, %s184
        %s186 = smul.u32 8, %s18
      $region28: #{residual_block_forward.5} parent=23 // pred_fallthru
        _
      // Predicated region
      $region29: #{residual_block_forward.5} parent=23 // pred_check
        %p187 = pneg %p114
      $region30: #{residual_block_forward.5} parent=23 // pred_check_branch
        %189 = sbr.rel (%p187) target = $region32
      $region31: #{residual_block_forward.5} parent=23 // pred_region
        %s190 = smul.u32 8, %s18
        %p191 = scmp.lt.s32.totalorder %s17, 1
        %s192 = scalar_select %p191, %s17, 1
        %p193 = scmp.lt.s32.totalorder %s190, 15
        %s194 = scalar_select %p193, %s190, 15
        %s195 = smul.addr %s194, 2
        %s196 = smul.addr %s192, 32
        %s197 = sadd.s32 %s195, %s196
        %s198 = smul.addr %s197, 4
        %s199 = scalar_lea.vmem %s3, %s198
        %s200 = smul.u32 8, %s18
      $region32: #{residual_block_forward.5} parent=23 // pred_fallthru
        _
    $region24: #{residual_block_forward.5} parent=5 // pred_fallthru
      _
    %p201 = scmp.le.s32.totalorder 1, %s10
    %p202 = scmp.lt.s32.totalorder %s10, 5
    %p203 = pnand %p201, %p202
    %p204 = pneg %p203
    // Predicated region
    $region33: #{residual_block_forward.5} parent=5 // pred_check
      _
    $region34: #{residual_block_forward.5} parent=5 // pred_check_branch
      %206 = sbr.rel (%p203) target = $region36
    $region35: #{residual_block_forward.5} parent=5 // pred_region
      %s207 = ssub.s32 %s10, 1
      %s208 = smul.u32 8, %s20
      %p209 = scmp.lt.s32.totalorder %s19, 1
      %s210 = scalar_select %p209, %s19, 1
      %p211 = scmp.lt.s32.totalorder %s208, 15
      %s212 = scalar_select %p211, %s208, 15
      %s213 = smul.addr %s212, 2
      %s214 = smul.addr %s210, 32
      %s215 = sadd.s32 %s213, %s214
      %s216 = smul.addr %s215, 4
      %s217 = scalar_lea.vmem %s0, %s216
      %p218 = pneg %p50
      %p219 = pneg %p47
      %p220 = pneg %p71
      %p221 = pneg %p68
      %p222 = pneg %p92
      %p223 = pneg %p89
      %s224 = smul.u32 8, %s20
      %p225 = scmp.lt.s32.totalorder %s19, 1
      %s226 = scalar_select %p225, %s19, 1
      %p227 = scmp.lt.s32.totalorder %s224, 15
      %s228 = scalar_select %p227, %s224, 15
      %s229 = smul.addr %s228, 2
      %s230 = smul.addr %s226, 32
      %s231 = sadd.s32 %s229, %s230
      %s232 = smul.addr %s231, 4
      %s233 = scalar_lea.vmem %s3, %s232
      %p234 = pneg %p120
      %p235 = pneg %p117
      %p236 = pneg %p148
      %p237 = pneg %p145
      %s238 = smul.u32 8, %s20
      %p239 = scmp.lt.s32.totalorder %s19, 1
      %s240 = scalar_select %p239, %s19, 1
      %p241 = scmp.lt.s32.totalorder %s238, 15
      %s242 = scalar_select %p241, %s238, 15
      %s243 = smul.addr %s242, 2
      %s244 = smul.addr %s240, 32
      %s245 = sadd.s32 %s243, %s244
      %s246 = smul.addr %s245, 8
      %s247 = scalar_lea.vmem %s4, %s246
      %s248 = smul.u32 8, %s20
      %p249 = scmp.lt.s32.totalorder %s19, 1
      %s250 = scalar_select %p249, %s19, 1
      %p251 = scmp.lt.s32.totalorder %s248, 15
      %s252 = scalar_select %p251, %s248, 15
      %s253 = smul.addr %s252, 2
      %s254 = smul.addr %s250, 32
      %s255 = sadd.s32 %s253, %s254
      %s256 = smul.addr %s255, 4
      %s257 = scalar_lea.vmem %s0, %s256
      %s258 = smul.u32 8, %s20
      %s259 = smul.u32 8, %s20
      %p260 = scmp.lt.s32.totalorder %s19, 1
      %s261 = scalar_select %p260, %s19, 1
      %p262 = scmp.lt.s32.totalorder %s259, 15
      %s263 = scalar_select %p262, %s259, 15
      %s264 = smul.addr %s263, 2
      %s265 = smul.addr %s261, 32
      %s266 = sadd.s32 %s264, %s265
      %s267 = smul.addr %s266, 4
      %s268 = scalar_lea.vmem %s3, %s267
      %s269 = smul.u32 8, %s20
      %s270 = smul.u32 8, %s20
      %p271 = scmp.lt.s32.totalorder %s19, 1
      %s272 = scalar_select %p271, %s19, 1
      %p273 = scmp.lt.s32.totalorder %s270, 15
      %s274 = scalar_select %p273, %s270, 15
      %s275 = smul.addr %s274, 2
      %s276 = smul.addr %s272, 32
      %s277 = sadd.s32 %s275, %s276
      %s278 = smul.addr %s277, 8
      %s279 = scalar_lea.vmem %s4, %s278
      %s280 = smul.u32 8, %s20
      %v281 = vld [vmem:[%s257] sm:$0xf]
      %v282 = vld [vmem:[%s257 + $0x4] sm:$0xf]
      %v283 = vld [vmem:[%s257 + $0x8] sm:$0xf]
      %v284 = vld [vmem:[%s257 + $0xc] sm:$0xf]
      %v285 = vld [vmem:[%s257 + $0x10] sm:$0xf]
      %v286 = vld [vmem:[%s257 + $0x14] sm:$0xf]
      %v287 = vld [vmem:[%s257 + $0x18] sm:$0xf]
      %v288 = vld [vmem:[%s257 + $0x1c] sm:$0xf]
      %v289 = vld [vmem:[%s257 + $0x20] sm:$0xf]
      %v290 = vld [vmem:[%s257 + $0x24] sm:$0xf]
      %v291 = vld [vmem:[%s257 + $0x28] sm:$0xf]
      %v292 = vld [vmem:[%s257 + $0x2c] sm:$0xf]
      %v293 = vld [vmem:[%s257 + $0x30] sm:$0xf]
      %v294 = vld [vmem:[%s257 + $0x34] sm:$0xf]
      %v295 = vld [vmem:[%s257 + $0x38] sm:$0xf]
      %v296 = vld [vmem:[%s257 + $0x3c] sm:$0xf]
      %v297 = vunpack.c.l.bf16 %v281
      %v298 = vunpack.c.l.bf16 %v282
      %v299 = vunpack.c.l.bf16 %v283
      %v300 = vunpack.c.l.bf16 %v284
      %v301 = vunpack.c.l.bf16 %v285
      %v302 = vunpack.c.l.bf16 %v286
      %v303 = vunpack.c.l.bf16 %v287
      %v304 = vunpack.c.l.bf16 %v288
      %v305 = vunpack.c.l.bf16 %v289
      %v306 = vunpack.c.l.bf16 %v290
      %v307 = vunpack.c.l.bf16 %v291
      %v308 = vunpack.c.l.bf16 %v292
      %v309 = vunpack.c.l.bf16 %v293
      %v310 = vunpack.c.l.bf16 %v294
      %v311 = vunpack.c.l.bf16 %v295
      %v312 = vunpack.c.l.bf16 %v296
      %v313 = vld [vmem:[%s1] sm:$0x1]
      %v315 = vlaneseq
      %v316 = vshrl.u32 %v315, 7
      %v317 = vsub.s32 0, %v316
      %v318 = vrot.slane %v313, %v317
      %v320 = vmul.f32 %v297, %v318
      %v321 = vmul.f32 %v298, %v318
      %v322 = vmul.f32 %v299, %v318
      %v323 = vmul.f32 %v300, %v318
      %v324 = vmul.f32 %v301, %v318
      %v325 = vmul.f32 %v302, %v318
      %v326 = vmul.f32 %v303, %v318
      %v327 = vmul.f32 %v304, %v318
      %v328 = vmul.f32 %v305, %v318
      %v329 = vmul.f32 %v306, %v318
      %v330 = vmul.f32 %v307, %v318
      %v331 = vmul.f32 %v308, %v318
      %v332 = vmul.f32 %v309, %v318
      %v333 = vmul.f32 %v310, %v318
      %v334 = vmul.f32 %v311, %v318
      %v335 = vmul.f32 %v312, %v318
      %v336 = vld [vmem:[%s2] sm:$0x1]
      %v338 = vlaneseq
      %v339 = vshrl.u32 %v338, 7
      %v340 = vsub.s32 0, %v339
      %v341 = vrot.slane %v336, %v340
      %v343 = vadd.f32 %v320, %v341
      %v344 = vadd.f32 %v321, %v341
      %v345 = vadd.f32 %v322, %v341
      %v346 = vadd.f32 %v323, %v341
      %v347 = vadd.f32 %v324, %v341
      %v348 = vadd.f32 %v325, %v341
      %v349 = vadd.f32 %v326, %v341
      %v350 = vadd.f32 %v327, %v341
      %v351 = vadd.f32 %v328, %v341
      %v352 = vadd.f32 %v329, %v341
      %v353 = vadd.f32 %v330, %v341
      %v354 = vadd.f32 %v331, %v341
      %v355 = vadd.f32 %v332, %v341
      %v356 = vadd.f32 %v333, %v341
      %v357 = vadd.f32 %v334, %v341
      %v358 = vadd.f32 %v335, %v341
      %v359 = vmax.f32 %v343, 0.0
      %v360 = vmax.f32 %v344, 0.0
      %v361 = vmax.f32 %v345, 0.0
      %v362 = vmax.f32 %v346, 0.0
      %v363 = vmax.f32 %v347, 0.0
      %v364 = vmax.f32 %v348, 0.0
      %v365 = vmax.f32 %v349, 0.0
      %v366 = vmax.f32 %v350, 0.0
      %v367 = vmax.f32 %v351, 0.0
      %v368 = vmax.f32 %v352, 0.0
      %v369 = vmax.f32 %v353, 0.0
      %v370 = vmax.f32 %v354, 0.0
      %v371 = vmax.f32 %v355, 0.0
      %v372 = vmax.f32 %v356, 0.0
      %v373 = vmax.f32 %v357, 0.0
      %v374 = vmax.f32 %v358, 0.0
      %v375 = vld [vmem:[%s268] sm:$0xf]
      %v376 = vld [vmem:[%s268 + $0x4] sm:$0xf]
      %v377 = vld [vmem:[%s268 + $0x8] sm:$0xf]
      %v378 = vld [vmem:[%s268 + $0xc] sm:$0xf]
      %v379 = vld [vmem:[%s268 + $0x10] sm:$0xf]
      %v380 = vld [vmem:[%s268 + $0x14] sm:$0xf]
      %v381 = vld [vmem:[%s268 + $0x18] sm:$0xf]
      %v382 = vld [vmem:[%s268 + $0x1c] sm:$0xf]
      %v383 = vld [vmem:[%s268 + $0x20] sm:$0xf]
      %v384 = vld [vmem:[%s268 + $0x24] sm:$0xf]
      %v385 = vld [vmem:[%s268 + $0x28] sm:$0xf]
      %v386 = vld [vmem:[%s268 + $0x2c] sm:$0xf]
      %v387 = vld [vmem:[%s268 + $0x30] sm:$0xf]
      %v388 = vld [vmem:[%s268 + $0x34] sm:$0xf]
      %v389 = vld [vmem:[%s268 + $0x38] sm:$0xf]
      %v390 = vld [vmem:[%s268 + $0x3c] sm:$0xf]
      %v391 = vunpack.c.l.bf16 %v375
      %v392 = vunpack.c.l.bf16 %v376
      %v393 = vunpack.c.l.bf16 %v377
      %v394 = vunpack.c.l.bf16 %v378
      %v395 = vunpack.c.l.bf16 %v379
      %v396 = vunpack.c.l.bf16 %v380
      %v397 = vunpack.c.l.bf16 %v381
      %v398 = vunpack.c.l.bf16 %v382
      %v399 = vunpack.c.l.bf16 %v383
      %v400 = vunpack.c.l.bf16 %v384
      %v401 = vunpack.c.l.bf16 %v385
      %v402 = vunpack.c.l.bf16 %v386
      %v403 = vunpack.c.l.bf16 %v387
      %v404 = vunpack.c.l.bf16 %v388
      %v405 = vunpack.c.l.bf16 %v389
      %v406 = vunpack.c.l.bf16 %v390
      %v407 = vadd.f32 %v391, %v359
      %v408 = vadd.f32 %v392, %v360
      %v409 = vadd.f32 %v393, %v361
      %v410 = vadd.f32 %v394, %v362
      %v411 = vadd.f32 %v395, %v363
      %v412 = vadd.f32 %v396, %v364
      %v413 = vadd.f32 %v397, %v365
      %v414 = vadd.f32 %v398, %v366
      %v415 = vadd.f32 %v399, %v367
      %v416 = vadd.f32 %v400, %v368
      %v417 = vadd.f32 %v401, %v369
      %v418 = vadd.f32 %v402, %v370
      %v419 = vadd.f32 %v403, %v371
      %v420 = vadd.f32 %v404, %v372
      %v421 = vadd.f32 %v405, %v373
      %v422 = vadd.f32 %v406, %v374
      %v423 = vmax.f32 %v407, 0.0
      %v424 = vmax.f32 %v408, 0.0
      %v425 = vmax.f32 %v409, 0.0
      %v426 = vmax.f32 %v410, 0.0
      %v427 = vmax.f32 %v411, 0.0
      %v428 = vmax.f32 %v412, 0.0
      %v429 = vmax.f32 %v413, 0.0
      %v430 = vmax.f32 %v414, 0.0
      %v431 = vmax.f32 %v415, 0.0
      %v432 = vmax.f32 %v416, 0.0
      %v433 = vmax.f32 %v417, 0.0
      %v434 = vmax.f32 %v418, 0.0
      %v435 = vmax.f32 %v419, 0.0
      %v436 = vmax.f32 %v420, 0.0
      %v437 = vmax.f32 %v421, 0.0
      %v438 = vmax.f32 %v422, 0.0
      %439 = vst [vmem:[%s279] sm:$0xff] %v423
      %440 = vst [vmem:[%s279 + $0x8] sm:$0xff] %v424
      %441 = vst [vmem:[%s279 + $0x10] sm:$0xff] %v425
      %442 = vst [vmem:[%s279 + $0x18] sm:$0xff] %v426
      %443 = vst [vmem:[%s279 + $0x20] sm:$0xff] %v427
      %444 = vst [vmem:[%s279 + $0x28] sm:$0xff] %v428
      %445 = vst [vmem:[%s279 + $0x30] sm:$0xff] %v429
      %446 = vst [vmem:[%s279 + $0x38] sm:$0xff] %v430
      %447 = vst [vmem:[%s279 + $0x40] sm:$0xff] %v431
      %448 = vst [vmem:[%s279 + $0x48] sm:$0xff] %v432
      %449 = vst [vmem:[%s279 + $0x50] sm:$0xff] %v433
      %450 = vst [vmem:[%s279 + $0x58] sm:$0xff] %v434
      %451 = vst [vmem:[%s279 + $0x60] sm:$0xff] %v435
      %452 = vst [vmem:[%s279 + $0x68] sm:$0xff] %v436
      %453 = vst [vmem:[%s279 + $0x70] sm:$0xff] %v437
      %454 = vst [vmem:[%s279 + $0x78] sm:$0xff] %v438
      %s455 = smul.u32 8, %s20
      %p456 = scmp.lt.s32.totalorder %s19, 1
      %s457 = scalar_select %p456, %s19, 1
      %p458 = scmp.lt.s32.totalorder %s455, 15
      %s459 = scalar_select %p458, %s455, 15
      %s460 = smul.addr %s459, 2
      %s461 = smul.addr %s457, 32
      %s462 = sadd.s32 %s460, %s461
      %s463 = smul.addr %s462, 8
      %s464 = scalar_lea.vmem %s4, %s463
      // Predicated region
      $region37: #{residual_block_forward.5} parent=35 // pred_check
        %p465 = pneg %p145
      $region38: #{residual_block_forward.5} parent=35 // pred_check_branch
        %467 = sbr.rel (%p465) target = $region40
      $region39: #{residual_block_forward.5} parent=35 // pred_region
        %s468 = smul.u32 8, %s20
      $region40: #{residual_block_forward.5} parent=35 // pred_fallthru
        _
    $region36: #{residual_block_forward.5} parent=5 // pred_fallthru
      _
    %p469 = scmp.le.s32.totalorder 2, %s10
    // Predicated region
    $region41: #{residual_block_forward.5} parent=5 // pred_check
      %p470 = pneg %p469
    $region42: #{residual_block_forward.5} parent=5 // pred_check_branch
      %472 = sbr.rel (%p470) target = $region44
    $region43: #{residual_block_forward.5} parent=5 // pred_region
      %s473 = ssub.s32 %s10, 2
      // Predicated region
      $region45: #{residual_block_forward.5} parent=43 // pred_check
        %p474 = pneg %p151
      $region46: #{residual_block_forward.5} parent=43 // pred_check_branch
        %476 = sbr.rel (%p474) target = $region48
      $region47: #{residual_block_forward.5} parent=43 // pred_region
        %s477 = smul.u32 8, %s22
        %p478 = scmp.lt.s32.totalorder %s21, 1
        %s479 = scalar_select %p478, %s21, 1
        %p480 = scmp.lt.s32.totalorder %s477, 15
        %s481 = scalar_select %p480, %s477, 15
        %s482 = smul.addr %s481, 2
        %s483 = smul.addr %s479, 32
        %s484 = sadd.s32 %s482, %s483
        %s485 = smul.addr %s484, 8
        %s486 = scalar_lea.vmem %s4, %s485
      $region48: #{residual_block_forward.5} parent=43 // pred_fallthru
        _
    $region44: #{residual_block_forward.5} parent=5 // pred_fallthru
      _
  $region6: #{residual_block_forward.5} parent=0 // loop_footer
    %s14 = sadd.s32 1, %s10
  $region7: #{residual_block_forward.5} parent=0 // loop_footer_branch
    %9 = sbr.rel target = $region3
  $region8: #{residual_block_forward.5} parent=0 // loop_exit
    _

// kernel: residual_block_forward.3
$region0: #{residual_block_forward.3}
  #allocation0 [shape = 'u32[]', space=smem, size = 0x4, offset = 0x4, fixed_abs, tag = 'smem constant byte address 0x4 - core index']
  #allocation1 [shape = 'u32[144,128]{1,0:T(1,128)}', space=vmem, size = 0x12000, scoped, tag = 'internal scratch']
  %s0 = inlined_call_operand.vmem [shape: bf16[2,18,18,128], index: 0, kind: input, shape index: {}]
  %s1 = inlined_call_operand.vmem [shape: bf16[9,128,128], index: 1, kind: input, shape index: {}]
  %s2 = inlined_call_operand.vmem [shape: bf16[2,16,16,128], index: 2, kind: output, shape index: {0}]
  %s3 = inlined_call_operand.vmem [shape: f32[2,2,2,128], index: 3, kind: output, shape index: {1}]
  %4 = xla_tuple %s2, %s3
  %s5 = sld [smem:[#allocation0]]
  $region49: #{residual_block_forward.3} parent=0
    _
  %s7 = ssub.s32 1, %s5
  %s8 = scalar_select 0, %s7, %s5
  loop: start=0, step=1, limit=6
  $region2: #{residual_block_forward.3} parent=0 // loop_pre_header
    _
  $region3: #{residual_block_forward.3} parent=0 // loop_header
    %s10 = sphi 0, %s14
    %p11 = scmp.ge.s32.totalorder %s10, 6
    %s17 = sphi 0, %s29
    %s18 = sphi 0, %s25
    %s19 = sphi 0, %s17
    %s20 = sphi 0, %s18
    %s21 = sphi 0, %s19
    %s22 = sphi 0, %s20
    %s32 = sphi 0, %s34
    %s35 = sphi 0, %s32
    %s36 = sphi 0, %s35
    %s52 = sphi 0, %s36
    %s56 = sphi 0, %s56
    %s58 = sphi 0, %s56
    %s59 = sphi 0, %s58
    %s73 = sphi 0, %s59
    %s81 = sphi 0, %s83
    %s84 = sphi 0, %s81
    %s85 = sphi 0, %s84
    %s101 = sphi 0, %s85
    %s109 = sphi 0, %s111
    %s112 = sphi 0, %s109
    %s113 = sphi 0, %s112
    %s129 = sphi 0, %s113
  $region4: #{residual_block_forward.3} parent=0 // loop_header_branch
    %13 = sbr.rel (%p11) target = $region8
  $region5: #{residual_block_forward.3} parent=0 // loop_body
    %s15 = ssub.s32 %s10, 1
    %s16 = ssub.s32 %s10, 2
    %s23 = sadd.s32 1, %s18
    %p24 = scmp.ge.s32.totalorder %s23, 2
    %s25 = scalar_select %p24, 0, %s23
    %s26 = sadd.s32 1, %s17
    %s27 = scalar_select %p24, %s26, %s17
    %p28 = scmp.ge.s32.totalorder %s27, 2
    %s29 = scalar_select %p28, 0, %s27
    %s30 = ssub.s32 %s17, %s29
    %p31 = scmp.eq.s32.totalorder %s30, 0
    %s33 = sadd.s32 %s32, 1
    %s34 = scalar_select %p31, %s32, %s33
    %p37 = pneg %p31
    %p38 = scmp.eq.s32.totalorder %s10, 3
    %p39 = por %p37, %p38
    %p40 = scmp.ne.s32.totalorder %s32, %s35
    %p41 = scmp.eq.s32.totalorder %s10, 0
    %p42 = por %p40, %p41
    %p43 = scmp.ne.s32.totalorder %s32, %s35
    %p44 = scmp.eq.s32.totalorder %s15, 3
    %p45 = por %p43, %p44
    %p46 = scmp.ne.s32.totalorder %s35, %s36
    %p47 = scmp.eq.s32.totalorder %s15, 0
    %p48 = por %p46, %p47
    %p49 = scmp.ne.s32.totalorder %s35, %s36
    %p50 = scmp.eq.s32.totalorder %s16, 3
    %p51 = por %p49, %p50
    %p53 = scmp.ne.s32.totalorder %s36, %s52
    %p54 = scmp.eq.s32.totalorder %s16, 0
    %p55 = por %p53, %p54
    %s57 = sadd.s32 %s56, 1
    %p60 = scmp.eq.s32.totalorder %s10, 3
    %p61 = scmp.ne.s32.totalorder %s56, %s58
    %p62 = scmp.eq.s32.totalorder %s10, 0
    %p63 = por %p61, %p62
    %p64 = scmp.ne.s32.totalorder %s56, %s58
    %p65 = scmp.eq.s32.totalorder %s15, 3
    %p66 = por %p64, %p65
    %p67 = scmp.ne.s32.totalorder %s58, %s59
    %p68 = scmp.eq.s32.totalorder %s15, 0
    %p69 = por %p67, %p68
    %p70 = scmp.ne.s32.totalorder %s58, %s59
    %p71 = scmp.eq.s32.totalorder %s16, 3
    %p72 = por %p70, %p71
    %p74 = scmp.ne.s32.totalorder %s59, %s73
    %p75 = scmp.eq.s32.totalorder %s16, 0
    %p76 = por %p74, %p75
    %s77 = ssub.s32 %s17, %s29
    %s78 = ssub.s32 %s18, %s25
    %s79 = sor.u32 %s77, %s78
    %p80 = scmp.eq.s32.totalorder %s79, 0
    %s82 = sadd.s32 %s81, 1
    %s83 = scalar_select %p80, %s81, %s82
    %p86 = pneg %p80
    %p87 = scmp.eq.s32.totalorder %s10, 3
    %p88 = por %p86, %p87
    %p89 = scmp.ne.s32.totalorder %s81, %s84
    %p90 = scmp.eq.s32.totalorder %s10, 0
    %p91 = por %p89, %p90
    %p92 = scmp.ne.s32.totalorder %s81, %s84
    %p93 = scmp.eq.s32.totalorder %s15, 3
    %p94 = por %p92, %p93
    %p95 = scmp.ne.s32.totalorder %s84, %s85
    %p96 = scmp.eq.s32.totalorder %s15, 0
    %p97 = por %p95, %p96
    %p98 = scmp.ne.s32.totalorder %s84, %s85
    %p99 = scmp.eq.s32.totalorder %s16, 3
    %p100 = por %p98, %p99
    %p102 = scmp.ne.s32.totalorder %s85, %s101
    %p103 = scmp.eq.s32.totalorder %s16, 0
    %p104 = por %p102, %p103
    %s105 = ssub.s32 %s17, %s29
    %s106 = ssub.s32 %s18, %s25
    %s107 = sor.u32 %s105, %s106
    %p108 = scmp.eq.s32.totalorder %s107, 0
    %s110 = sadd.s32 %s109, 1
    %s111 = scalar_select %p108, %s109, %s110
    %p114 = pneg %p108
    %p115 = scmp.eq.s32.totalorder %s10, 3
    %p116 = por %p114, %p115
    %p117 = scmp.ne.s32.totalorder %s109, %s112
    %p118 = scmp.eq.s32.totalorder %s10, 0
    %p119 = por %p117, %p118
    %p120 = scmp.ne.s32.totalorder %s109, %s112
    %p121 = scmp.eq.s32.totalorder %s15, 3
    %p122 = por %p120, %p121
    %p123 = scmp.ne.s32.totalorder %s112, %s113
    %p124 = scmp.eq.s32.totalorder %s15, 0
    %p125 = por %p123, %p124
    %p126 = scmp.ne.s32.totalorder %s112, %s113
    %p127 = scmp.eq.s32.totalorder %s16, 3
    %p128 = por %p126, %p127
    %p130 = scmp.ne.s32.totalorder %s113, %s129
    %p131 = scmp.eq.s32.totalorder %s16, 0
    %p132 = por %p130, %p131
    %p133 = scmp.le.s32.totalorder 1, %s10
    %p134 = scmp.lt.s32.totalorder %s10, 5
    %p135 = pnand %p133, %p134
    %p136 = pneg %p135
    // Predicated region
    $region9: #{residual_block_forward.3} parent=5 // pred_check
      _
    $region10: #{residual_block_forward.3} parent=5 // pred_check_branch
      %138 = sbr.rel (%p135) target = $region12
    $region11: #{residual_block_forward.3} parent=5 // pred_region
      %s139 = ssub.s32 %s10, 1
      // Predicated region
      $region13: #{residual_block_forward.3} parent=11 // pred_check
        %p140 = pneg %p69
      $region14: #{residual_block_forward.3} parent=11 // pred_check_branch
        %142 = sbr.rel (%p140) target = $region16
      $region15: #{residual_block_forward.3} parent=11 // pred_region
        _
      $region16: #{residual_block_forward.3} parent=11 // pred_fallthru
        _
    $region12: #{residual_block_forward.3} parent=5 // pred_fallthru
      _
    %p143 = scmp.lt.s32.totalorder %s10, 4
    // Predicated region
    $region17: #{residual_block_forward.3} parent=5 // pred_check
      %p144 = pneg %p143
    $region18: #{residual_block_forward.3} parent=5 // pred_check_branch
      %146 = sbr.rel (%p144) target = $region20
    $region19: #{residual_block_forward.3} parent=5 // pred_region
      // Predicated region
      $region21: #{residual_block_forward.3} parent=19 // pred_check
        %p147 = pneg %p42
      $region22: #{residual_block_forward.3} parent=19 // pred_check_branch
        %149 = sbr.rel (%p147) target = $region24
      $region23: #{residual_block_forward.3} parent=19 // pred_region
        %p150 = scmp.lt.s32.totalorder %s17, 1
        %s151 = scalar_select %p150, %s17, 1
        %s152 = smul.addr %s151, 54
        %s153 = smul.addr %s152, 4
        %s154 = scalar_lea.vmem %s0, %s153
      $region24: #{residual_block_forward.3} parent=19 // pred_fallthru
        _
    $region20: #{residual_block_forward.3} parent=5 // pred_fallthru
      _
    %p155 = scmp.le.s32.totalorder 1, %s10
    %p156 = scmp.lt.s32.totalorder %s10, 5
    %p157 = pnand %p155, %p156
    %p158 = pneg %p157
    // Predicated region
    $region25: #{residual_block_forward.3} parent=5 // pred_check
      _
    $region26: #{residual_block_forward.3} parent=5 // pred_check_branch
      %160 = sbr.rel (%p157) target = $region28
    $region27: #{residual_block_forward.3} parent=5 // pred_region
      %s161 = ssub.s32 %s10, 1
      %p162 = scmp.lt.s32.totalorder %s19, 1
      %s163 = scalar_select %p162, %s19, 1
      %s164 = smul.addr %s163, 54
      %s165 = smul.addr %s164, 4
      %s166 = scalar_lea.vmem %s0, %s165
      %p167 = pneg %p48
      %p168 = pneg %p45
      %p169 = pneg %p69
      %p170 = pneg %p66
      %p171 = pneg %p97
      %p172 = pneg %p94
      %s173 = smul.u32 8, %s20
      %p174 = scmp.lt.s32.totalorder %s19, 1
      %s175 = scalar_select %p174, %s19, 1
      %p176 = scmp.lt.s32.totalorder %s173, 15
      %s177 = scalar_select %p176, %s173, 15
      %s178 = smul.addr %s177, 2
      %s179 = smul.addr %s175, 32
      %s180 = sadd.s32 %s178, %s179
      %s181 = smul.addr %s180, 4
      %s182 = scalar_lea.vmem %s2, %s181
      %p183 = pneg %p125
      %p184 = pneg %p122
      %p185 = scmp.lt.s32.totalorder %s19, 1
      %s186 = scalar_select %p185, %s19, 1
      %p187 = scmp.lt.s32.totalorder %s20, 1
      %s188 = scalar_select %p187, %s20, 1
      %s189 = smul.addr %s186, 2
      %s190 = sadd.s32 %s188, %s189
      %s191 = smul.addr %s190, 2
      %s192 = scalar_lea.vmem %s3, %s191
      %p193 = scmp.lt.s32.totalorder %s19, 1
      %s194 = scalar_select %p193, %s19, 1
      %s195 = smul.addr %s194, 54
      %s196 = smul.addr %s195, 4
      %s197 = scalar_lea.vmem %s0, %s196
      %s198 = smul.u32 8, %s20
      %p199 = scmp.lt.s32.totalorder %s19, 1
      %s200 = scalar_select %p199, %s19, 1
      %p201 = scmp.lt.s32.totalorder %s198, 15
      %s202 = scalar_select %p201, %s198, 15
      %s203 = smul.addr %s202, 2
      %s204 = smul.addr %s200, 32
      %s205 = sadd.s32 %s203, %s204
      %s206 = smul.addr %s205, 4
      %s207 = scalar_lea.vmem %s2, %s206
      %s208 = smul.u32 8, %s20
      %p209 = scmp.lt.s32.totalorder %s19, 1
      %s210 = scalar_select %p209, %s19, 1
      %p211 = scmp.lt.s32.totalorder %s20, 1
      %s212 = scalar_select %p211, %s20, 1
      %s213 = smul.addr %s210, 2
      %s214 = sadd.s32 %s212, %s213
      %s215 = smul.addr %s214, 2
      %s216 = scalar_lea.vmem %s3, %s215
      %s218 = smul.u32 %s20, 8
      %s219 = smul.u32 %s218, 3
      %s220 = smul.addr %s219, 4
      %s221 = scalar_lea.vmem %s197, %s220
      %v222 = vld [vmem:[%s221] sm:$0xf]
      %v223 = vld [vmem:[%s221 + $0x4] sm:$0xf]
      %v224 = vld [vmem:[%s221 + $0x8] sm:$0x1]
      %v225 = vld [vmem:[%s221 + $0xc] sm:$0xf]
      %v226 = vld [vmem:[%s221 + $0x10] sm:$0xf]
      %v227 = vld [vmem:[%s221 + $0x14] sm:$0x1]
      %v228 = vld [vmem:[%s221 + $0x18] sm:$0xf]
      %v229 = vld [vmem:[%s221 + $0x1c] sm:$0xf]
      %v230 = vld [vmem:[%s221 + $0x20] sm:$0x1]
      %v231 = vld [vmem:[%s221 + $0x24] sm:$0xf]
      %v232 = vld [vmem:[%s221 + $0x28] sm:$0xf]
      %v233 = vld [vmem:[%s221 + $0x2c] sm:$0x1]
      %v234 = vld [vmem:[%s221 + $0x30] sm:$0xf]
      %v235 = vld [vmem:[%s221 + $0x34] sm:$0xf]
      %v236 = vld [vmem:[%s221 + $0x38] sm:$0x1]
      %v237 = vld [vmem:[%s221 + $0x3c] sm:$0xf]
      %v238 = vld [vmem:[%s221 + $0x40] sm:$0xf]
      %v239 = vld [vmem:[%s221 + $0x44] sm:$0x1]
      %v240 = vld [vmem:[%s221 + $0x48] sm:$0xf]
      %v241 = vld [vmem:[%s221 + $0x4c] sm:$0xf]
      %v242 = vld [vmem:[%s221 + $0x50] sm:$0x1]
      %v243 = vld [vmem:[%s221 + $0x54] sm:$0xf]
      %v244 = vld [vmem:[%s221 + $0x58] sm:$0xf]
      %v245 = vld [vmem:[%s221 + $0x5c] sm:$0x1]
      %v246 = vld [vmem:[%s221 + $0x60] sm:$0xf]
      %v247 = vld [vmem:[%s221 + $0x64] sm:$0xf]
      %v248 = vld [vmem:[%s221 + $0x68] sm:$0x1]
      %v249 = vld [vmem:[%s221 + $0x6c] sm:$0xf]
      %v250 = vld [vmem:[%s221 + $0x70] sm:$0xf]
      %v251 = vld [vmem:[%s221 + $0x74] sm:$0x1]
      %v252 = vld [vmem:[%s1] sm:$0xf]
      %v253 = vld [vmem:[%s1 + $0x4] sm:$0xf]
      %v254 = vld [vmem:[%s1 + $0x8] sm:$0xf]
      %v255 = vld [vmem:[%s1 + $0xc] sm:$0xf]
      %v256 = vld [vmem:[%s1 + $0x10] sm:$0xf]
      %v257 = vld [vmem:[%s1 + $0x14] sm:$0xf]
      %v258 = vld [vmem:[%s1 + $0x18] sm:$0xf]
      %v259 = vld [vmem:[%s1 + $0x1c] sm:$0xf]
      %v260 = vld [vmem:[%s1 + $0x20] sm:$0xf]
      %v261 = vld [vmem:[%s1 + $0x24] sm:$0xf]
      %v262 = vld [vmem:[%s1 + $0x28] sm:$0xf]
      %v263 = vld [vmem:[%s1 + $0x2c] sm:$0xf]
      %v264 = vld [vmem:[%s1 + $0x30] sm:$0xf]
      %v265 = vld [vmem:[%s1 + $0x34] sm:$0xf]
      %v266 = vld [vmem:[%s1 + $0x38] sm:$0xf]
      %v267 = vld [vmem:[%s1 + $0x3c] sm:$0xf]
      %vm268 = vsmask.f32 3328
      %vm269 = vsmask.f32 7440
      %vm270 = vmor %vm268, %vm269
      %v272 = vshrl.u32 %v222, 16
      %v274 = vrot.slane %v272, 4
      %v275 = vshll.u32 %v222, 16
      %v277 = vrot.slane %v275, 5
      %v278 = vor.u32 %v274, %v277
      %v279 = vrot.slane %v278, 4
      %v281 = vshll.u32 %v223, 16
      %v283 = vrot.slane %v281, 5
      %v284 = vsel %vm270, %v279, %v283
      %v285 = vshrl.u32 %v223, 16
      %v287 = vrot.slane %v285, 4
      %v288 = vor.u32 %v287, %v283
      %v289 = vrot.slane %v288, 4
      %v291 = vshll.u32 %v224, 16
      %v293 = vrot.slane %v291, 5
      %v294 = vsel %vm270, %v289, %v293
      %v296 = vshrl.u32 %v225, 16
      %v298 = vrot.slane %v296, 4
      %v299 = vshll.u32 %v225, 16
      %v301 = vrot.slane %v299, 5
      %v302 = vor.u32 %v298, %v301
      %v303 = vrot.slane %v302, 4
      %v305 = vshll.u32 %v226, 16
      %v307 = vrot.slane %v305, 5
      %v308 = vsel %vm270, %v303, %v307
      %v309 = vshrl.u32 %v226, 16
      %v311 = vrot.slane %v309, 4
      %v312 = vor.u32 %v311, %v307
      %v313 = vrot.slane %v312, 4
      %v315 = vshll.u32 %v227, 16
      %v317 = vrot.slane %v315, 5
      %v318 = vsel %vm270, %v313, %v317
      %v320 = vshrl.u32 %v228, 16
      %v322 = vrot.slane %v320, 4
      %v323 = vshll.u32 %v228, 16
      %v325 = vrot.slane %v323, 5
      %v326 = vor.u32 %v322, %v325
      %v327 = vrot.slane %v326, 4
      %v329 = vshll.u32 %v229, 16
      %v331 = vrot.slane %v329, 5
      %v332 = vsel %vm270, %v327, %v331
      %v333 = vshrl.u32 %v229, 16
      %v335 = vrot.slane %v333, 4
      %v336 = vor.u32 %v335, %v331
      %v337 = vrot.slane %v336, 4
      %v339 = vshll.u32 %v230, 16
      %v341 = vrot.slane %v339, 5
      %v342 = vsel %vm270, %v337, %v341
      %v344 = vshrl.u32 %v231, 16
      %v346 = vrot.slane %v344, 4
      %v347 = vshll.u32 %v231, 16
      %v349 = vrot.slane %v347, 5
      %v350 = vor.u32 %v346, %v349
      %v351 = vrot.slane %v350, 4
      %v353 = vshll.u32 %v232, 16
      %v355 = vrot.slane %v353, 5
      %v356 = vsel %vm270, %v351, %v355
      %v357 = vshrl.u32 %v232, 16
      %v359 = vrot.slane %v357, 4
      %v360 = vor.u32 %v359, %v355
      %v361 = vrot.slane %v360, 4
      %v363 = vshll.u32 %v233, 16
      %v365 = vrot.slane %v363, 5
      %v366 = vsel %vm270, %v361, %v365
      %v368 = vshrl.u32 %v234, 16
      %v370 = vrot.slane %v368, 4
      %v371 = vshll.u32 %v234, 16
      %v373 = vrot.slane %v371, 5
      %v374 = vor.u32 %v370, %v373
      %v375 = vrot.slane %v374, 4
      %v377 = vshll.u32 %v235, 16
      %v379 = vrot.slane %v377, 5
      %v380 = vsel %vm270, %v375, %v379
      %v381 = vshrl.u32 %v235, 16
      %v383 = vrot.slane %v381, 4
      %v384 = vor.u32 %v383, %v379
      %v385 = vrot.slane %v384, 4
      %v387 = vshll.u32 %v236, 16
      %v389 = vrot.slane %v387, 5
      %v390 = vsel %vm270, %v385, %v389
      %v392 = vshrl.u32 %v237, 16
      %v394 = vrot.slane %v392, 4
      %v395 = vshll.u32 %v237, 16
      %v397 = vrot.slane %v395, 5
      %v398 = vor.u32 %v394, %v397
      %v399 = vrot.slane %v398, 4
      %v401 = vshll.u32 %v238, 16
      %v403 = vrot.slane %v401, 5
      %v404 = vsel %vm270, %v399, %v403
      %v405 = vshrl.u32 %v238, 16
      %v407 = vrot.slane %v405, 4
      %v408 = vor.u32 %v407, %v403
      %v409 = vrot.slane %v408, 4
      %v411 = vshll.u32 %v239, 16
      %v413 = vrot.slane %v411, 5
      %v414 = vsel %vm270, %v409, %v413
      %v416 = vshrl.u32 %v240, 16
      %v418 = vrot.slane %v416, 4
      %v419 = vshll.u32 %v240, 16
      %v421 = vrot.slane %v419, 5
      %v422 = vor.u32 %v418, %v421
      %v423 = vrot.slane %v422, 4
      %v425 = vshll.u32 %v241, 16
      %v427 = vrot.slane %v425, 5
      %v428 = vsel %vm270, %v423, %v427
      %v429 = vshrl.u32 %v241, 16
      %v431 = vrot.slane %v429, 4
      %v432 = vor.u32 %v431, %v427
      %v433 = vrot.slane %v432, 4
      %v435 = vshll.u32 %v242, 16
      %v437 = vrot.slane %v435, 5
      %v438 = vsel %vm270, %v433, %v437
      %v440 = vshrl.u32 %v243, 16
      %v442 = vrot.slane %v440, 4
      %v443 = vshll.u32 %v243, 16
      %v445 = vrot.slane %v443, 5
      %v446 = vor.u32 %v442, %v445
      %v447 = vrot.slane %v446, 4
      %v449 = vshll.u32 %v244, 16
      %v451 = vrot.slane %v449, 5
      %v452 = vsel %vm270, %v447, %v451
      %v453 = vshrl.u32 %v244, 16
      %v455 = vrot.slane %v453, 4
      %v456 = vor.u32 %v455, %v451
      %v457 = vrot.slane %v456, 4
      %v459 = vshll.u32 %v245, 16
      %v461 = vrot.slane %v459, 5
      %v462 = vsel %vm270, %v457, %v461
      %s463 = scalar_lea.vmem %s1, 64
      %v464 = vld [vmem:[%s463] sm:$0xf]
      %v465 = vld [vmem:[%s463 + $0x4] sm:$0xf]
      %v466 = vld [vmem:[%s463 + $0x8] sm:$0xf]
      %v467 = vld [vmem:[%s463 + $0xc] sm:$0xf]
      %v468 = vld [vmem:[%s463 + $0x10] sm:$0xf]
      %v469 = vld [vmem:[%s463 + $0x14] sm:$0xf]
      %v470 = vld [vmem:[%s463 + $0x18] sm:$0xf]
      %v471 = vld [vmem:[%s463 + $0x1c] sm:$0xf]
      %v472 = vld [vmem:[%s463 + $0x20] sm:$0xf]
      %v473 = vld [vmem:[%s463 + $0x24] sm:$0xf]
      %v474 = vld [vmem:[%s463 + $0x28] sm:$0xf]
      %v475 = vld [vmem:[%s463 + $0x2c] sm:$0xf]
      %v476 = vld [vmem:[%s463 + $0x30] sm:$0xf]
      %v477 = vld [vmem:[%s463 + $0x34] sm:$0xf]
      %v478 = vld [vmem:[%s463 + $0x38] sm:$0xf]
      %v479 = vld [vmem:[%s463 + $0x3c] sm:$0xf]
      %v480 = vunpack.c.l.b16 %v284
      %v481 = vunpack.c.l.b16 %v294
      %v482 = vunpack.c.l.b16 %v308
      %v483 = vunpack.c.l.b16 %v318
      %v484 = vunpack.c.l.b16 %v332
      %v485 = vunpack.c.l.b16 %v342
      %v486 = vunpack.c.l.b16 %v356
      %v487 = vunpack.c.l.b16 %v366
      %v488 = vunpack.c.l.b16 %v380
      %v489 = vunpack.c.l.b16 %v390
      %v490 = vunpack.c.l.b16 %v404
      %v491 = vunpack.c.l.b16 %v414
      %v492 = vunpack.c.l.b16 %v428
      %v493 = vunpack.c.l.b16 %v438
      %v494 = vunpack.c.l.b16 %v452
      %v495 = vunpack.c.l.b16 %v462
      %v496 = vpack.c.b16 %v481, %v480
      %v497 = vpack.c.b16 %v483, %v482
      %v498 = vpack.c.b16 %v485, %v484
      %v499 = vpack.c.b16 %v487, %v486
      %v500 = vpack.c.b16 %v489, %v488
      %v501 = vpack.c.b16 %v491, %v490
      %v502 = vpack.c.b16 %v493, %v492
      %v503 = vpack.c.b16 %v495, %v494
      %v528 = vunpack.c.l.b16 %v464
      %v529 = vunpack.c.l.b16 %v465
      %v530 = vunpack.c.l.b16 %v466
      %v531 = vunpack.c.l.b16 %v467
      %v532 = vunpack.c.l.b16 %v468
      %v533 = vunpack.c.l.b16 %v469
      %v534 = vunpack.c.l.b16 %v470
      %v535 = vunpack.c.l.b16 %v471
      %v536 = vunpack.c.l.b16 %v472
      %v537 = vunpack.c.l.b16 %v473
      %v538 = vunpack.c.l.b16 %v474
      %v539 = vunpack.c.l.b16 %v475
      %v540 = vunpack.c.l.b16 %v476
      %v541 = vunpack.c.l.b16 %v477
      %v542 = vunpack.c.l.b16 %v478
      %v543 = vunpack.c.l.b16 %v479
      %v544 = vpack.c.b16 %v529, %v528
      %v545 = vpack.c.b16 %v531, %v530
      %v546 = vpack.c.b16 %v533, %v532
      %v547 = vpack.c.b16 %v535, %v534
      %v548 = vpack.c.b16 %v537, %v536
      %v549 = vpack.c.b16 %v539, %v538
      %v550 = vpack.c.b16 %v541, %v540
      %v551 = vpack.c.b16 %v543, %v542
      %560 = vmatprep.subr.bf16.mxu0 0
      %561 = vmatpush1.bf16.msra.mxu0 %v544
      %562 = vmatprep.subr.bf16.mxu0 0
      %563 = vmatpush1.bf16.msra.mxu0 %v545
      %564 = vmatprep.subr.bf16.mxu0 0
      %565 = vmatpush1.bf16.msra.mxu0 %v546
      %566 = vmatprep.subr.bf16.mxu0 0
      %567 = vmatpush1.bf16.msra.mxu0 %v547
      %568 = vmatprep.subr.bf16.mxu0 0
      %569 = vmatpush1.bf16.msra.mxu0 %v548
      %570 = vmatprep.subr.bf16.mxu0 0
      %571 = vmatpush1.bf16.msra.mxu0 %v549
      %572 = vmatprep.subr.bf16.mxu0 0
      %573 = vmatpush1.bf16.msra.mxu0 %v550
      %574 = vmatprep.subr.bf16.mxu0 0
      %575 = vmatpush1.bf16.msra.mxu0 %v551
      %576 = vmatprep.subr.bf16.mxu0 0
      %577 = vmatpush1.bf16.msra.mxu0 0
      %578 = vmatprep.subr.bf16.mxu0 0
      %579 = vmatpush1.bf16.msra.mxu0 0
      %580 = vmatprep.subr.bf16.mxu0 0
      %581 = vmatpush1.bf16.msra.mxu0 0
      %582 = vmatprep.subr.bf16.mxu0 0
      %583 = vmatpush1.bf16.msra.mxu0 0
      %584 = vmatprep.subr.bf16.mxu0 0
      %585 = vmatpush1.bf16.msra.mxu0 0
      %586 = vmatprep.subr.bf16.mxu0 0
      %587 = vmatpush1.bf16.msra.mxu0 0
      %588 = vmatprep.subr.bf16.mxu0 0
      %589 = vmatpush1.bf16.msra.mxu0 0
      %590 = vmatprep.subr.bf16.mxu0 0
      %591 = vmatpush1.bf16.msra.mxu0 0
      %592 = vmatprep.mubr.bf16.mxu0 0
      %593 = vmatmul.mubr.bf16.gmra.mrb[0].mxu0 %v496
      %v594 = vpop.f32.mrb[0].mxu0
      %v595 = vadd.f32 0.0, %v594
      %v596 = vpop.f32.mrb[0].mxu0
      %v597 = vpop.f32.mrb[0].mxu0
      %v598 = vadd.f32 0.0, %v597
      %v599 = vpop.f32.mrb[0].mxu0
      %600 = vmatprep.mubr.bf16.mxu0 0
      %601 = vmatmul.mubr.bf16.gmra.mrb[0].mxu0 %v497
      %v602 = vpop.f32.mrb[0].mxu0
      %v603 = vadd.f32 0.0, %v602
      %v604 = vpop.f32.mrb[0].mxu0
      %v605 = vpop.f32.mrb[0].mxu0
      %v606 = vadd.f32 0.0, %v605
      %v607 = vpop.f32.mrb[0].mxu0
      %608 = vmatprep.mubr.bf16.mxu0 0
      %609 = vmatmul.mubr.bf16.gmra.mrb[0].mxu0 %v498
      %v610 = vpop.f32.mrb[0].mxu0
      %v611 = vadd.f32 0.0, %v610
      %v612 = vpop.f32.mrb[0].mxu0
      %v613 = vpop.f32.mrb[0].mxu0
      %v614 = vadd.f32 0.0, %v613
      %v615 = vpop.f32.mrb[0].mxu0
      %616 = vmatprep.mubr.bf16.mxu0 0
      %617 = vmatmul.mubr.bf16.gmra.mrb[0].mxu0 %v499
      %v618 = vpop.f32.mrb[0].mxu0
      %v619 = vadd.f32 0.0, %v618
      %v620 = vpop.f32.mrb[0].mxu0
      %v621 = vpop.f32.mrb[0].mxu0
      %v622 = vadd.f32 0.0, %v621
      %v623 = vpop.f32.mrb[0].mxu0
      %624 = vmatprep.mubr.bf16.mxu0 0
      %625 = vmatmul.mubr.bf16.gmra.mrb[0].mxu0 %v500
      %v626 = vpop.f32.mrb[0].mxu0
      %v627 = vadd.f32 0.0, %v626
      %v628 = vpop.f32.mrb[0].mxu0
      %v629 = vpop.f32.mrb[0].mxu0
      %v630 = vadd.f32 0.0, %v629
      %v631 = vpop.f32.mrb[0].mxu0
      %632 = vmatprep.mubr.bf16.mxu0 0
      %633 = vmatmul.mubr.bf16.gmra.mrb[0].mxu0 %v501
      %v634 = vpop.f32.mrb[0].mxu0
      %v635 = vadd.f32 0.0, %v634
      %v636 = vpop.f32.mrb[0].mxu0
      %v637 = vpop.f32.mrb[0].mxu0
      %v638 = vadd.f32 0.0, %v637
      %v639 = vpop.f32.mrb[0].mxu0
      %640 = vmatprep.mubr.bf16.mxu0 0
      %641 = vmatmul.mubr.bf16.gmra.mrb[0].mxu0 %v502
      %v642 = vpop.f32.mrb[0].mxu0
      %v643 = vadd.f32 0.0, %v642
      %v644 = vpop.f32.mrb[0].mxu0
      %v645 = vpop.f32.mrb[0].mxu0
      %v646 = vadd.f32 0.0, %v645
      %v647 = vpop.f32.mrb[0].mxu0
      %648 = vmatprep.mubr.bf16.mxu0 0
      %649 = vmatmul.mubr.bf16.gmra.mrb[0].mxu0 %v503
      %v650 = vpop.f32.mrb[0].mxu0
      %v651 = vadd.f32 0.0, %v650
      %v652 = vpop.f32.mrb[0].mxu0
      %v653 = vpop.f32.mrb[0].mxu0
      %v654 = vadd.f32 0.0, %v653
      %v655 = vpop.f32.mrb[0].mxu0
      %656 = vdwg.mxu0
      %v673 = vunpack.c.l.b16 %v222
      %v674 = vunpack.c.l.b16 %v223
      %v675 = vunpack.c.l.b16 %v225
      %v676 = vunpack.c.l.b16 %v226
      %v677 = vunpack.c.l.b16 %v228
      %v678 = vunpack.c.l.b16 %v229
      %v679 = vunpack.c.l.b16 %v231
      %v680 = vunpack.c.l.b16 %v232
      %v681 = vunpack.c.l.b16 %v234
      %v682 = vunpack.c.l.b16 %v235
      %v683 = vunpack.c.l.b16 %v237
      %v684 = vunpack.c.l.b16 %v238
      %v685 = vunpack.c.l.b16 %v240
      %v686 = vunpack.c.l.b16 %v241
      %v687 = vunpack.c.l.b16 %v243
      %v688 = vunpack.c.l.b16 %v244
      %v689 = vpack.c.b16 %v674, %v673
      %v690 = vpack.c.b16 %v676, %v675
      %v691 = vpack.c.b16 %v678, %v677
      %v692 = vpack.c.b16 %v680, %v679
      %v693 = vpack.c.b16 %v682, %v681
      %v694 = vpack.c.b16 %v684, %v683
      %v695 = vpack.c.b16 %v686, %v685
      %v696 = vpack.c.b16 %v688, %v687
      %v721 = vunpack.c.l.b16 %v252
      %v722 = vunpack.c.l.b16 %v253
      %v723 = vunpack.c.l.b16 %v254
      %v724 = vunpack.c.l.b16 %v255
      %v725 = vunpack.c.l.b16 %v256
      %v726 = vunpack.c.l.b16 %v257
      %v727 = vunpack.c.l.b16 %v258
      %v728 = vunpack.c.l.b16 %v259
      %v729 = vunpack.c.l.b16 %v260
      %v730 = vunpack.c.l.b16 %v261
      %v731 = vunpack.c.l.b16 %v262
      %v732 = vunpack.c.l.b16 %v263
      %v733 = vunpack.c.l.b16 %v264
      %v734 = vunpack.c.l.b16 %v265
      %v735 = vunpack.c.l.b16 %v266
      %v736 = vunpack.c.l.b16 %v267
      %v737 = vpack.c.b16 %v722, %v721
      %v738 = vpack.c.b16 %v724, %v723
      %v739 = vpack.c.b16 %v726, %v725
      %v740 = vpack.c.b16 %v728, %v727
      %v741 = vpack.c.b16 %v730, %v729
      %v742 = vpack.c.b16 %v732, %v731
      %v743 = vpack.c.b16 %v734, %v733
      %v744 = vpack.c.b16 %v736, %v735
      %753 = vmatprep.subr.bf16.mxu0 0
      %754 = vmatpush1.bf16.msra.mxu0 %v737
      %755 = vmatprep.subr.bf16.mxu0 0
      %756 = vmatpush1.bf16.msra.mxu0 %v738
      %757 = vmatprep.subr.bf16.mxu0 0
      %758 = vmatpush1.bf16.msra.mxu0 %v739
      %759 = vmatprep.subr.bf16.mxu0 0
      %760 = vmatpush1.bf16.msra.mxu0 %v740
      %761 = vmatprep.subr.bf16.mxu0 0
      %762 = vmatpush1.bf16.msra.mxu0 %v741
      %763 = vmatprep.subr.bf16.mxu0 0
      %764 = vmatpush1.bf16.msra.mxu0 %v742
      %765 = vmatprep.subr.bf16.mxu0 0
      %766 = vmatpush1.bf16.msra.mxu0 %v743
      %767 = vmatprep.subr.bf16.mxu0 0
      %768 = vmatpush1.bf16.msra.mxu0 %v744
      %769 = vmatprep.subr.bf16.mxu0 0
      %770 = vmatpush1.bf16.msra.mxu0 0
      %771 = vmatprep.subr.bf16.mxu0 0
      %772 = vmatpush1.bf16.msra.mxu0 0
      %773 = vmatprep.subr.bf16.mxu0 0
      %774 = vmatpush1.bf16.msra.mxu0 0
      %775 = vmatprep.subr.bf16.mxu0 0
      %776 = vmatpush1.bf16.msra.mxu0 0
      %777 = vmatprep.subr.bf16.mxu0 0
      %778 = vmatpush1.bf16.msra.mxu0 0
      %779 = vmatprep.subr.bf16.mxu0 0
      %780 = vmatpush1.bf16.msra.mxu0 0
      %781 = vmatprep.subr.bf16.mxu0 0
      %782 = vmatpush1.bf16.msra.mxu0 0
      %783 = vmatprep.subr.bf16.mxu0 0
      %784 = vmatpush1.bf16.msra.mxu0 0
      %785 = vmatprep.mubr.bf16.mxu0 0
      %786 = vmatmul.mubr.bf16.gmra.mrb[0].mxu0 %v689
      %v787 = vpop.f32.mrb[0].mxu0
      %v788 = vadd.f32 %v595, %v787
      %v789 = vpop.f32.mrb[0].mxu0
      %v790 = vpop.f32.mrb[0].mxu0
      %v791 = vadd.f32 %v598, %v790
      %v792 = vpop.f32.mrb[0].mxu0
      %793 = vmatprep.mubr.bf16.mxu0 0
      %794 = vmatmul.mubr.bf16.gmra.mrb[0].mxu0 %v690
      %v795 = vpop.f32.mrb[0].mxu0
      %v796 = vadd.f32 %v603, %v795
      %v797 = vpop.f32.mrb[0].mxu0
      %v798 = vpop.f32.mrb[0].mxu0
      %v799 = vadd.f32 %v606, %v798
      %v800 = vpop.f32.mrb[0].mxu0
      %801 = vmatprep.mubr.bf16.mxu0 0
      %802 = vmatmul.mubr.bf16.gmra.mrb[0].mxu0 %v691
      %v803 = vpop.f32.mrb[0].mxu0
      %v804 = vadd.f32 %v611, %v803
      %v805 = vpop.f32.mrb[0].mxu0
      %v806 = vpop.f32.mrb[0].mxu0
      %v807 = vadd.f32 %v614, %v806
      %v808 = vpop.f32.mrb[0].mxu0
      %809 = vmatprep.mubr.bf16.mxu0 0
      %810 = vmatmul.mubr.bf16.gmra.mrb[0].mxu0 %v692
      %v811 = vpop.f32.mrb[0].mxu0
      %v812 = vadd.f32 %v619, %v811
      %v813 = vpop.f32.mrb[0].mxu0
      %v814 = vpop.f32.mrb[0].mxu0
      %v815 = vadd.f32 %v622, %v814
      %v816 = vpop.f32.mrb[0].mxu0
      %817 = vmatprep.mubr.bf16.mxu0 0
      %818 = vmatmul.mubr.bf16.gmra.mrb[0].mxu0 %v693
      %v819 = vpop.f32.mrb[0].mxu0
      %v820 = vadd.f32 %v627, %v819
      %v821 = vpop.f32.mrb[0].mxu0
      %v822 = vpop.f32.mrb[0].mxu0
      %v823 = vadd.f32 %v630, %v822
      %v824 = vpop.f32.mrb[0].mxu0
      %825 = vmatprep.mubr.bf16.mxu0 0
      %826 = vmatmul.mubr.bf16.gmra.mrb[0].mxu0 %v694
      %v827 = vpop.f32.mrb[0].mxu0
      %v828 = vadd.f32 %v635, %v827
      %v829 = vpop.f32.mrb[0].mxu0
      %v830 = vpop.f32.mrb[0].mxu0
      %v831 = vadd.f32 %v638, %v830
      %v832 = vpop.f32.mrb[0].mxu0
      %833 = vmatprep.mubr.bf16.mxu0 0
      %834 = vmatmul.mubr.bf16.gmra.mrb[0].mxu0 %v695
      %v835 = vpop.f32.mrb[0].mxu0
      %v836 = vadd.f32 %v643, %v835
      %v837 = vpop.f32.mrb[0].mxu0
      %v838 = vpop.f32.mrb[0].mxu0
      %v839 = vadd.f32 %v646, %v838
      %v840 = vpop.f32.mrb[0].mxu0
      %841 = vmatprep.mubr.bf16.mxu0 0
      %842 = vmatmul.mubr.bf16.gmra.mrb[0].mxu0 %v696
      %v843 = vpop.f32.mrb[0].mxu0
      %v844 = vadd.f32 %v651, %v843
      %v845 = vpop.f32.mrb[0].mxu0
      %v846 = vpop.f32.mrb[0].mxu0
      %v847 = vadd.f32 %v654, %v846
      %v848 = vpop.f32.mrb[0].mxu0
      %849 = vdwg.mxu0
      %vm858 = vcmask 1042432
      %vm859 = vcmask 1046532
      %vm860 = vmor %vm858, %vm859
      %v861 = vrot.slane %v222, 5
      %v862 = vrot.slane %v861, 4
      %v863 = vrot.slane %v223, 5
      %v864 = vsel %vm860, %v862, %v863
      %v865 = vrot.slane %v863, 4
      %v866 = vrot.slane %v224, 5
      %v867 = vsel %vm860, %v865, %v866
      %v868 = vrot.slane %v225, 5
      %v869 = vrot.slane %v868, 4
      %v870 = vrot.slane %v226, 5
      %v871 = vsel %vm860, %v869, %v870
      %v872 = vrot.slane %v870, 4
      %v873 = vrot.slane %v227, 5
      %v874 = vsel %vm860, %v872, %v873
      %v875 = vrot.slane %v228, 5
      %v876 = vrot.slane %v875, 4
      %v877 = vrot.slane %v229, 5
      %v878 = vsel %vm860, %v876, %v877
      %v879 = vrot.slane %v877, 4
      %v880 = vrot.slane %v230, 5
      %v881 = vsel %vm860, %v879, %v880
      %v882 = vrot.slane %v231, 5
      %v883 = vrot.slane %v882, 4
      %v884 = vrot.slane %v232, 5
      %v885 = vsel %vm860, %v883, %v884
      %v886 = vrot.slane %v884, 4
      %v887 = vrot.slane %v233, 5
      %v888 = vsel %vm860, %v886, %v887
      %v889 = vrot.slane %v234, 5
      %v890 = vrot.slane %v889, 4
      %v891 = vrot.slane %v235, 5
      %v892 = vsel %vm860, %v890, %v891
      %v893 = vrot.slane %v891, 4
      %v894 = vrot.slane %v236, 5
      %v895 = vsel %vm860, %v893, %v894
      %v896 = vrot.slane %v237, 5
      %v897 = vrot.slane %v896, 4
      %v898 = vrot.slane %v238, 5
      %v899 = vsel %vm860, %v897, %v898
      %v900 = vrot.slane %v898, 4
      %v901 = vrot.slane %v239, 5
      %v902 = vsel %vm860, %v900, %v901
      %v903 = vrot.slane %v240, 5
      %v904 = vrot.slane %v903, 4
      %v905 = vrot.slane %v241, 5
      %v906 = vsel %vm860, %v904, %v905
      %v907 = vrot.slane %v905, 4
      %v908 = vrot.slane %v242, 5
      %v909 = vsel %vm860, %v907, %v908
      %v910 = vrot.slane %v243, 5
      %v911 = vrot.slane %v910, 4
      %v912 = vrot.slane %v244, 5
      %v913 = vsel %vm860, %v911, %v912
      %v914 = vrot.slane %v912, 4
      %v915 = vrot.slane %v245, 5
      %v916 = vsel %vm860, %v914, %v915
      %s917 = scalar_lea.vmem %s1, 128
      %v918 = vld [vmem:[%s917] sm:$0xf]
      %v919 = vld [vmem:[%s917 + $0x4] sm:$0xf]
      %v920 = vld [vmem:[%s917 + $0x8] sm:$0xf]
      %v921 = vld [vmem:[%s917 + $0xc] sm:$0xf]
      %v922 = vld [vmem:[%s917 + $0x10] sm:$0xf]
      %v923 = vld [vmem:[%s917 + $0x14] sm:$0xf]
      %v924 = vld [vmem:[%s917 + $0x18] sm:$0xf]
      %v925 = vld [vmem:[%s917 + $0x1c] sm:$0xf]
      %v926 = vld [vmem:[%s917 + $0x20] sm:$0xf]
      %v927 = vld [vmem:[%s917 + $0x24] sm:$0xf]
      %v928 = vld [vmem:[%s917 + $0x28] sm:$0xf]
      %v929 = vld [vmem:[%s917 + $0x2c] sm:$0xf]
      %v930 = vld [vmem:[%s917 + $0x30] sm:$0xf]
      %v931 = vld [vmem:[%s917 + $0x34] sm:$0xf]
      %v932 = vld [vmem:[%s917 + $0x38] sm:$0xf]
      %v933 = vld [vmem:[%s917 + $0x3c] sm:$0xf]
      %v934 = vunpack.c.l.b16 %v864
      %v935 = vunpack.c.l.b16 %v867
      %v936 = vunpack.c.l.b16 %v871
      %v937 = vunpack.c.l.b16 %v874
      %v938 = vunpack.c.l.b16 %v878
      %v939 = vunpack.c.l.b16 %v881
      %v940 = vunpack.c.l.b16 %v885
      %v941 = vunpack.c.l.b16 %v888
      %v942 = vunpack.c.l.b16 %v892
      %v943 = vunpack.c.l.b16 %v895
      %v944 = vunpack.c.l.b16 %v899
      %v945 = vunpack.c.l.b16 %v902
      %v946 = vunpack.c.l.b16 %v906
      %v947 = vunpack.c.l.b16 %v909
      %v948 = vunpack.c.l.b16 %v913
      %v949 = vunpack.c.l.b16 %v916
      %v950 = vpack.c.b16 %v935, %v934
      %v951 = vpack.c.b16 %v937, %v936
      %v952 = vpack.c.b16 %v939, %v938
      %v953 = vpack.c.b16 %v941, %v940
      %v954 = vpack.c.b16 %v943, %v942
      %v955 = vpack.c.b16 %v945, %v944
      %v956 = vpack.c.b16 %v947, %v946
      %v957 = vpack.c.b16 %v949, %v948
      %v982 = vunpack.c.l.b16 %v918
      %v983 = vunpack.c.l.b16 %v919
      %v984 = vunpack.c.l.b16 %v920
      %v985 = vunpack.c.l.b16 %v921
      %v986 = vunpack.c.l.b16 %v922
      %v987 = vunpack.c.l.b16 %v923
      %v988 = vunpack.c.l.b16 %v924
      %v989 = vunpack.c.l.b16 %v925
      %v990 = vunpack.c.l.b16 %v926
      %v991 = vunpack.c.l.b16 %v927
      %v992 = vunpack.c.l.b16 %v928
      %v993 = vunpack.c.l.b16 %v929
      %v994 = vunpack.c.l.b16 %v930
      %v995 = vunpack.c.l.b16 %v931
      %v996 = vunpack.c.l.b16 %v932
      %v997 = vunpack.c.l.b16 %v933
      %v998 = vpack.c.b16 %v983, %v982
      %v999 = vpack.c.b16 %v985, %v984
      %v1000 = vpack.c.b16 %v987, %v986
      %v1001 = vpack.c.b16 %v989, %v988
      %v1002 = vpack.c.b16 %v991, %v990
      %v1003 = vpack.c.b16 %v993, %v992
      %v1004 = vpack.c.b16 %v995, %v994
      %v1005 = vpack.c.b16 %v997, %v996
      %1014 = vmatprep.subr.bf16.mxu0 0
      %1015 = vmatpush1.bf16.msra.mxu0 %v998
      %1016 = vmatprep.subr.bf16.mxu0 0
      %1017 = vmatpush1.bf16.msra.mxu0 %v999
      %1018 = vmatprep.subr.bf16.mxu0 0
      %1019 = vmatpush1.bf16.msra.mxu0 %v1000
      %1020 = vmatprep.subr.bf16.mxu0 0
      %1021 = vmatpush1.bf16.msra.mxu0 %v1001
      %1022 = vmatprep.subr.bf16.mxu0 0
      %1023 = vmatpush1.bf16.msra.mxu0 %v1002
      %1024 = vmatprep.subr.bf16.mxu0 0
      %1025 = vmatpush1.bf16.msra.mxu0 %v1003
      %1026 = vmatprep.subr.bf16.mxu0 0
      %1027 = vmatpush1.bf16.msra.mxu0 %v1004
      %1028 = vmatprep.subr.bf16.mxu0 0
      %1029 = vmatpush1.bf16.msra.mxu0 %v1005
      %1030 = vmatprep.subr.bf16.mxu0 0
      %1031 = vmatpush1.bf16.msra.mxu0 0
      %1032 = vmatprep.subr.bf16.mxu0 0
      %1033 = vmatpush1.bf16.msra.mxu0 0
      %1034 = vmatprep.subr.bf16.mxu0 0
      %1035 = vmatpush1.bf16.msra.mxu0 0
      %1036 = vmatprep.subr.bf16.mxu0 0
      %1037 = vmatpush1.bf16.msra.mxu0 0
      %1038 = vmatprep.subr.bf16.mxu0 0
      %1039 = vmatpush1.bf16.msra.mxu0 0
      %1040 = vmatprep.subr.bf16.mxu0 0
      %1041 = vmatpush1.bf16.msra.mxu0 0
      %1042 = vmatprep.subr.bf16.mxu0 0
      %1043 = vmatpush1.bf16.msra.mxu0 0
      %1044 = vmatprep.subr.bf16.mxu0 0
      %1045 = vmatpush1.bf16.msra.mxu0 0
      %1046 = vmatprep.mubr.bf16.mxu0 0
      %1047 = vmatmul.mubr.bf16.gmra.mrb[0].mxu0 %v950
      %v1048 = vpop.f32.mrb[0].mxu0
      %v1049 = vadd.f32 0.0, %v1048
      %v1050 = vpop.f32.mrb[0].mxu0
      %v1051 = vpop.f32.mrb[0].mxu0
      %v1052 = vadd.f32 0.0, %v1051
      %v1053 = vpop.f32.mrb[0].mxu0
      %1054 = vmatprep.mubr.bf16.mxu0 0
      %1055 = vmatmul.mubr.bf16.gmra.mrb[0].mxu0 %v951
      %v1056 = vpop.f32.mrb[0].mxu0
      %v1057 = vadd.f32 0.0, %v1056
      %v1058 = vpop.f32.mrb[0].mxu0
      %v1059 = vpop.f32.mrb[0].mxu0
      %v1060 = vadd.f32 0.0, %v1059
      %v1061 = vpop.f32.mrb[0].mxu0
      %1062 = vmatprep.mubr.bf16.mxu0 0
      %1063 = vmatmul.mubr.bf16.gmra.mrb[0].mxu0 %v952
      %v1064 = vpop.f32.mrb[0].mxu0
      %v1065 = vadd.f32 0.0, %v1064
      %v1066 = vpop.f32.mrb[0].mxu0
      %v1067 = vpop.f32.mrb[0].mxu0
      %v1068 = vadd.f32 0.0, %v1067
      %v1069 = vpop.f32.mrb[0].mxu0
      %1070 = vmatprep.mubr.bf16.mxu0 0
      %1071 = vmatmul.mubr.bf16.gmra.mrb[0].mxu0 %v953
      %v1072 = vpop.f32.mrb[0].mxu0
      %v1073 = vadd.f32 0.0, %v1072
      %v1074 = vpop.f32.mrb[0].mxu0
      %v1075 = vpop.f32.mrb[0].mxu0
      %v1076 = vadd.f32 0.0, %v1075
      %v1077 = vpop.f32.mrb[0].mxu0
      %1078 = vmatprep.mubr.bf16.mxu0 0
      %1079 = vmatmul.mubr.bf16.gmra.mrb[0].mxu0 %v954
      %v1080 = vpop.f32.mrb[0].mxu0
      %v1081 = vadd.f32 0.0, %v1080
      %v1082 = vpop.f32.mrb[0].mxu0
      %v1083 = vpop.f32.mrb[0].mxu0
      %v1084 = vadd.f32 0.0, %v1083
      %v1085 = vpop.f32.mrb[0].mxu0
      %1086 = vmatprep.mubr.bf16.mxu0 0
      %1087 = vmatmul.mubr.bf16.gmra.mrb[0].mxu0 %v955
      %v1088 = vpop.f32.mrb[0].mxu0
      %v1089 = vadd.f32 0.0, %v1088
      %v1090 = vpop.f32.mrb[0].mxu0
      %v1091 = vpop.f32.mrb[0].mxu0
      %v1092 = vadd.f32 0.0, %v1091
      %v1093 = vpop.f32.mrb[0].mxu0
      %1094 = vmatprep.mubr.bf16.mxu0 0
      %1095 = vmatmul.mubr.bf16.gmra.mrb[0].mxu0 %v956
      %v1096 = vpop.f32.mrb[0].mxu0
      %v1097 = vadd.f32 0.0, %v1096
      %v1098 = vpop.f32.mrb[0].mxu0
      %v1099 = vpop.f32.mrb[0].mxu0
      %v1100 = vadd.f32 0.0, %v1099
      %v1101 = vpop.f32.mrb[0].mxu0
      %1102 = vmatprep.mubr.bf16.mxu0 0
      %1103 = vmatmul.mubr.bf16.gmra.mrb[0].mxu0 %v957
      %v1104 = vpop.f32.mrb[0].mxu0
      %v1105 = vadd.f32 0.0, %v1104
      %v1106 = vpop.f32.mrb[0].mxu0
      %v1107 = vpop.f32.mrb[0].mxu0
      %v1108 = vadd.f32 0.0, %v1107
      %v1109 = vpop.f32.mrb[0].mxu0
      %1110 = vdwg.mxu0
      %v1111 = vadd.f32 %v788, %v1049
      %v1112 = vadd.f32 %v791, %v1052
      %v1113 = vadd.f32 %v796, %v1057
      %v1114 = vadd.f32 %v799, %v1060
      %v1115 = vadd.f32 %v804, %v1065
      %v1116 = vadd.f32 %v807, %v1068
      %v1117 = vadd.f32 %v812, %v1073
      %v1118 = vadd.f32 %v815, %v1076
      %v1119 = vadd.f32 %v820, %v1081
      %v1120 = vadd.f32 %v823, %v1084
      %v1121 = vadd.f32 %v828, %v1089
      %v1122 = vadd.f32 %v831, %v1092
      %v1123 = vadd.f32 %v836, %v1097
      %v1124 = vadd.f32 %v839, %v1100
      %v1125 = vadd.f32 %v844, %v1105
      %v1126 = vadd.f32 %v847, %v1108
      %s1127 = scalar_lea.vmem %s1, 192
      %v1128 = vld [vmem:[%s1127] sm:$0xf]
      %v1129 = vld [vmem:[%s1127 + $0x4] sm:$0xf]
      %v1130 = vld [vmem:[%s1127 + $0x8] sm:$0xf]
      %v1131 = vld [vmem:[%s1127 + $0xc] sm:$0xf]
      %v1132 = vld [vmem:[%s1127 + $0x10] sm:$0xf]
      %v1133 = vld [vmem:[%s1127 + $0x14] sm:$0xf]
      %v1134 = vld [vmem:[%s1127 + $0x18] sm:$0xf]
      %v1135 = vld [vmem:[%s1127 + $0x1c] sm:$0xf]
      %v1136 = vld [vmem:[%s1127 + $0x20] sm:$0xf]
      %v1137 = vld [vmem:[%s1127 + $0x24] sm:$0xf]
      %v1138 = vld [vmem:[%s1127 + $0x28] sm:$0xf]
      %v1139 = vld [vmem:[%s1127 + $0x2c] sm:$0xf]
      %v1140 = vld [vmem:[%s1127 + $0x30] sm:$0xf]
      %v1141 = vld [vmem:[%s1127 + $0x34] sm:$0xf]
      %v1142 = vld [vmem:[%s1127 + $0x38] sm:$0xf]
      %v1143 = vld [vmem:[%s1127 + $0x3c] sm:$0xf]
      %v1146 = vunpack.c.l.b16 %v246
      %v1147 = vunpack.c.l.b16 %v247
      %v1148 = vpack.c.b16 %v1147, %v1146
      %v1166 = vunpack.c.l.b16 %v1128
      %v1167 = vunpack.c.l.b16 %v1129
      %v1168 = vunpack.c.l.b16 %v1130
      %v1169 = vunpack.c.l.b16 %v1131
      %v1170 = vunpack.c.l.b16 %v1132
      %v1171 = vunpack.c.l.b16 %v1133
      %v1172 = vunpack.c.l.b16 %v1134
      %v1173 = vunpack.c.l.b16 %v1135
      %v1174 = vunpack.c.l.b16 %v1136
      %v1175 = vunpack.c.l.b16 %v1137
      %v1176 = vunpack.c.l.b16 %v1138
      %v1177 = vunpack.c.l.b16 %v1139
      %v1178 = vunpack.c.l.b16 %v1140
      %v1179 = vunpack.c.l.b16 %v1141
      %v1180 = vunpack.c.l.b16 %v1142
      %v1181 = vunpack.c.l.b16 %v1143
      %v1182 = vpack.c.b16 %v1167, %v1166
      %v1183 = vpack.c.b16 %v1169, %v1168
      %v1184 = vpack.c.b16 %v1171, %v1170
      %v1185 = vpack.c.b16 %v1173, %v1172
      %v1186 = vpack.c.b16 %v1175, %v1174
      %v1187 = vpack.c.b16 %v1177, %v1176
      %v1188 = vpack.c.b16 %v1179, %v1178
      %v1189 = vpack.c.b16 %v1181, %v1180
      %1198 = vmatprep.subr.bf16.mxu0 0
      %1199 = vmatpush1.bf16.msra.mxu0 %v1182
      %1200 = vmatprep.subr.bf16.mxu0 0
      %1201 = vmatpush1.bf16.msra.mxu0 %v1183
      %1202 = vmatprep.subr.bf16.mxu0 0
      %1203 = vmatpush1.bf16.msra.mxu0 %v1184
      %1204 = vmatprep.subr.bf16.mxu0 0
      %1205 = vmatpush1.bf16.msra.mxu0 %v1185
      %1206 = vmatprep.subr.bf16.mxu0 0
      %1207 = vmatpush1.bf16.msra.mxu0 %v1186
      %1208 = vmatprep.subr.bf16.mxu0 0
      %1209 = vmatpush1.bf16.msra.mxu0 %v1187
      %1210 = vmatprep.subr.bf16.mxu0 0
      %1211 = vmatpush1.bf16.msra.mxu0 %v1188
      %1212 = vmatprep.subr.bf16.mxu0 0
      %1213 = vmatpush1.bf16.msra.mxu0 %v1189
      %1214 = vmatprep.subr.bf16.mxu0 0
      %1215 = vmatpush1.bf16.msra.mxu0 0
      %1216 = vmatprep.subr.bf16.mxu0 0
      %1217 = vmatpush1.bf16.msra.mxu0 0
      %1218 = vmatprep.subr.bf16.mxu0 0
      %1219 = vmatpush1.bf16.msra.mxu0 0
      %1220 = vmatprep.subr.bf16.mxu0 0
      %1221 = vmatpush1.bf16.msra.mxu0 0
      %1222 = vmatprep.subr.bf16.mxu0 0
      %1223 = vmatpush1.bf16.msra.mxu0 0
      %1224 = vmatprep.subr.bf16.mxu0 0
      %1225 = vmatpush1.bf16.msra.mxu0 0
      %1226 = vmatprep.subr.bf16.mxu0 0
      %1227 = vmatpush1.bf16.msra.mxu0 0
      %1228 = vmatprep.subr.bf16.mxu0 0
      %1229 = vmatpush1.bf16.msra.mxu0 0
      %1230 = vmatprep.mubr.bf16.mxu0 0
      %1231 = vmatmul.mubr.bf16.gmra.mrb[0].mxu0 %v690
      %v1232 = vpop.f32.mrb[0].mxu0
      %v1233 = vadd.f32 0.0, %v1232
      %v1234 = vpop.f32.mrb[0].mxu0
      %v1235 = vpop.f32.mrb[0].mxu0
      %v1236 = vadd.f32 0.0, %v1235
      %v1237 = vpop.f32.mrb[0].mxu0
      %1238 = vmatprep.mubr.bf16.mxu0 0
      %1239 = vmatmul.mubr.bf16.gmra.mrb[0].mxu0 %v691
      %v1240 = vpop.f32.mrb[0].mxu0
      %v1241 = vadd.f32 0.0, %v1240
      %v1242 = vpop.f32.mrb[0].mxu0
      %v1243 = vpop.f32.mrb[0].mxu0
      %v1244 = vadd.f32 0.0, %v1243
      %v1245 = vpop.f32.mrb[0].mxu0
      %1246 = vmatprep.mubr.bf16.mxu0 0
      %1247 = vmatmul.mubr.bf16.gmra.mrb[0].mxu0 %v692
      %v1248 = vpop.f32.mrb[0].mxu0
      %v1249 = vadd.f32 0.0, %v1248
      %v1250 = vpop.f32.mrb[0].mxu0
      %v1251 = vpop.f32.mrb[0].mxu0
      %v1252 = vadd.f32 0.0, %v1251
      %v1253 = vpop.f32.mrb[0].mxu0
      %1254 = vmatprep.mubr.bf16.mxu0 0
      %1255 = vmatmul.mubr.bf16.gmra.mrb[0].mxu0 %v693
      %v1256 = vpop.f32.mrb[0].mxu0
      %v1257 = vadd.f32 0.0, %v1256
      %v1258 = vpop.f32.mrb[0].mxu0
      %v1259 = vpop.f32.mrb[0].mxu0
      %v1260 = vadd.f32 0.0, %v1259
      %v1261 = vpop.f32.mrb[0].mxu0
      %1262 = vmatprep.mubr.bf16.mxu0 0
      %1263 = vmatmul.mubr.bf16.gmra.mrb[0].mxu0 %v694
      %v1264 = vpop.f32.mrb[0].mxu0
      %v1265 = vadd.f32 0.0, %v1264
      %v1266 = vpop.f32.mrb[0].mxu0
      %v1267 = vpop.f32.mrb[0].mxu0
      %v1268 = vadd.f32 0.0, %v1267
      %v1269 = vpop.f32.mrb[0].mxu0
      %1270 = vmatprep.mubr.bf16.mxu0 0
      %1271 = vmatmul.mubr.bf16.gmra.mrb[0].mxu0 %v695
      %v1272 = vpop.f32.mrb[0].mxu0
      %v1273 = vadd.f32 0.0, %v1272
      %v1274 = vpop.f32.mrb[0].mxu0
      %v1275 = vpop.f32.mrb[0].mxu0
      %v1276 = vadd.f32 0.0, %v1275
      %v1277 = vpop.f32.mrb[0].mxu0
      %1278 = vmatprep.mubr.bf16.mxu0 0
      %1279 = vmatmul.mubr.bf16.gmra.mrb[0].mxu0 %v696
      %v1280 = vpop.f32.mrb[0].mxu0
      %v1281 = vadd.f32 0.0, %v1280
      %v1282 = vpop.f32.mrb[0].mxu0
      %v1283 = vpop.f32.mrb[0].mxu0
      %v1284 = vadd.f32 0.0, %v1283
      %v1285 = vpop.f32.mrb[0].mxu0
      %1286 = vmatprep.mubr.bf16.mxu0 0
      %1287 = vmatmul.mubr.bf16.gmra.mrb[0].mxu0 %v1148
      %v1288 = vpop.f32.mrb[0].mxu0
      %v1289 = vadd.f32 0.0, %v1288
      %v1290 = vpop.f32.mrb[0].mxu0
      %v1291 = vpop.f32.mrb[0].mxu0
      %v1292 = vadd.f32 0.0, %v1291
      %v1293 = vpop.f32.mrb[0].mxu0
      %1294 = vdwg.mxu0
      %v1295 = vadd.f32 %v1111, %v1233
      %v1296 = vadd.f32 %v1112, %v1236
      %v1297 = vadd.f32 %v1113, %v1241
      %v1298 = vadd.f32 %v1114, %v1244
      %v1299 = vadd.f32 %v1115, %v1249
      %v1300 = vadd.f32 %v1116, %v1252
      %v1301 = vadd.f32 %v1117, %v1257
      %v1302 = vadd.f32 %v1118, %v1260
      %v1303 = vadd.f32 %v1119, %v1265
      %v1304 = vadd.f32 %v1120, %v1268
      %v1305 = vadd.f32 %v1121, %v1273
      %v1306 = vadd.f32 %v1122, %v1276
      %v1307 = vadd.f32 %v1123, %v1281
      %v1308 = vadd.f32 %v1124, %v1284
      %v1309 = vadd.f32 %v1125, %v1289
      %v1310 = vadd.f32 %v1126, %v1292
      %v1312 = vshrl.u32 %v246, 16
      %v1314 = vrot.slane %v1312, 4
      %v1315 = vshll.u32 %v246, 16
      %v1317 = vrot.slane %v1315, 5
      %v1318 = vor.u32 %v1314, %v1317
      %v1319 = vrot.slane %v1318, 4
      %v1321 = vshll.u32 %v247, 16
      %v1323 = vrot.slane %v1321, 5
      %v1324 = vsel %vm270, %v1319, %v1323
      %v1325 = vshrl.u32 %v247, 16
      %v1327 = vrot.slane %v1325, 4
      %v1328 = vor.u32 %v1327, %v1323
      %v1329 = vrot.slane %v1328, 4
      %v1331 = vshll.u32 %v248, 16
      %v1333 = vrot.slane %v1331, 5
      %v1334 = vsel %vm270, %v1329, %v1333
      %s1335 = scalar_lea.vmem %s1, 256
      %v1336 = vld [vmem:[%s1335] sm:$0xf]
      %v1337 = vld [vmem:[%s1335 + $0x4] sm:$0xf]
      %v1338 = vld [vmem:[%s1335 + $0x8] sm:$0xf]
      %v1339 = vld [vmem:[%s1335 + $0xc] sm:$0xf]
      %v1340 = vld [vmem:[%s1335 + $0x10] sm:$0xf]
      %v1341 = vld [vmem:[%s1335 + $0x14] sm:$0xf]
      %v1342 = vld [vmem:[%s1335 + $0x18] sm:$0xf]
      %v1343 = vld [vmem:[%s1335 + $0x1c] sm:$0xf]
      %v1344 = vld [vmem:[%s1335 + $0x20] sm:$0xf]
      %v1345 = vld [vmem:[%s1335 + $0x24] sm:$0xf]
      %v1346 = vld [vmem:[%s1335 + $0x28] sm:$0xf]
      %v1347 = vld [vmem:[%s1335 + $0x2c] sm:$0xf]
      %v1348 = vld [vmem:[%s1335 + $0x30] sm:$0xf]
      %v1349 = vld [vmem:[%s1335 + $0x34] sm:$0xf]
      %v1350 = vld [vmem:[%s1335 + $0x38] sm:$0xf]
      %v1351 = vld [vmem:[%s1335 + $0x3c] sm:$0xf]
      %v1352 = vunpack.c.l.b16 %v1324
      %v1353 = vunpack.c.l.b16 %v1334
      %v1354 = vpack.c.b16 %v1353, %v1352
      %v1372 = vunpack.c.l.b16 %v1336
      %v1373 = vunpack.c.l.b16 %v1337
      %v1374 = vunpack.c.l.b16 %v1338
      %v1375 = vunpack.c.l.b16 %v1339
      %v1376 = vunpack.c.l.b16 %v1340
      %v1377 = vunpack.c.l.b16 %v1341
      %v1378 = vunpack.c.l.b16 %v1342
      %v1379 = vunpack.c.l.b16 %v1343
      %v1380 = vunpack.c.l.b16 %v1344
      %v1381 = vunpack.c.l.b16 %v1345
      %v1382 = vunpack.c.l.b16 %v1346
      %v1383 = vunpack.c.l.b16 %v1347
      %v1384 = vunpack.c.l.b16 %v1348
      %v1385 = vunpack.c.l.b16 %v1349
      %v1386 = vunpack.c.l.b16 %v1350
      %v1387 = vunpack.c.l.b16 %v1351
      %v1388 = vpack.c.b16 %v1373, %v1372
      %v1389 = vpack.c.b16 %v1375, %v1374
      %v1390 = vpack.c.b16 %v1377, %v1376
      %v1391 = vpack.c.b16 %v1379, %v1378
      %v1392 = vpack.c.b16 %v1381, %v1380
      %v1393 = vpack.c.b16 %v1383, %v1382
      %v1394 = vpack.c.b16 %v1385, %v1384
      %v1395 = vpack.c.b16 %v1387, %v1386
      %1404 = vmatprep.subr.bf16.mxu0 0
      %1405 = vmatpush1.bf16.msra.mxu0 %v1388
      %1406 = vmatprep.subr.bf16.mxu0 0
      %1407 = vmatpush1.bf16.msra.mxu0 %v1389
      %1408 = vmatprep.subr.bf16.mxu0 0
      %1409 = vmatpush1.bf16.msra.mxu0 %v1390
      %1410 = vmatprep.subr.bf16.mxu0 0
      %1411 = vmatpush1.bf16.msra.mxu0 %v1391
      %1412 = vmatprep.subr.bf16.mxu0 0
      %1413 = vmatpush1.bf16.msra.mxu0 %v1392
      %1414 = vmatprep.subr.bf16.mxu0 0
      %1415 = vmatpush1.bf16.msra.mxu0 %v1393
      %1416 = vmatprep.subr.bf16.mxu0 0
      %1417 = vmatpush1.bf16.msra.mxu0 %v1394
      %1418 = vmatprep.subr.bf16.mxu0 0
      %1419 = vmatpush1.bf16.msra.mxu0 %v1395
      %1420 = vmatprep.subr.bf16.mxu0 0
      %1421 = vmatpush1.bf16.msra.mxu0 0
      %1422 = vmatprep.subr.bf16.mxu0 0
      %1423 = vmatpush1.bf16.msra.mxu0 0
      %1424 = vmatprep.subr.bf16.mxu0 0
      %1425 = vmatpush1.bf16.msra.mxu0 0
      %1426 = vmatprep.subr.bf16.mxu0 0
      %1427 = vmatpush1.bf16.msra.mxu0 0
      %1428 = vmatprep.subr.bf16.mxu0 0
      %1429 = vmatpush1.bf16.msra.mxu0 0
      %1430 = vmatprep.subr.bf16.mxu0 0
      %1431 = vmatpush1.bf16.msra.mxu0 0
      %1432 = vmatprep.subr.bf16.mxu0 0
      %1433 = vmatpush1.bf16.msra.mxu0 0
      %1434 = vmatprep.subr.bf16.mxu0 0
      %1435 = vmatpush1.bf16.msra.mxu0 0
      %1436 = vmatprep.mubr.bf16.mxu0 0
      %1437 = vmatmul.mubr.bf16.gmra.mrb[0].mxu0 %v497
      %v1438 = vpop.f32.mrb[0].mxu0
      %v1439 = vadd.f32 0.0, %v1438
      %v1440 = vpop.f32.mrb[0].mxu0
      %v1441 = vpop.f32.mrb[0].mxu0
      %v1442 = vadd.f32 0.0, %v1441
      %v1443 = vpop.f32.mrb[0].mxu0
      %1444 = vmatprep.mubr.bf16.mxu0 0
      %1445 = vmatmul.mubr.bf16.gmra.mrb[0].mxu0 %v498
      %v1446 = vpop.f32.mrb[0].mxu0
      %v1447 = vadd.f32 0.0, %v1446
      %v1448 = vpop.f32.mrb[0].mxu0
      %v1449 = vpop.f32.mrb[0].mxu0
      %v1450 = vadd.f32 0.0, %v1449
      %v1451 = vpop.f32.mrb[0].mxu0
      %1452 = vmatprep.mubr.bf16.mxu0 0
      %1453 = vmatmul.mubr.bf16.gmra.mrb[0].mxu0 %v499
      %v1454 = vpop.f32.mrb[0].mxu0
      %v1455 = vadd.f32 0.0, %v1454
      %v1456 = vpop.f32.mrb[0].mxu0
      %v1457 = vpop.f32.mrb[0].mxu0
      %v1458 = vadd.f32 0.0, %v1457
      %v1459 = vpop.f32.mrb[0].mxu0
      %1460 = vmatprep.mubr.bf16.mxu0 0
      %1461 = vmatmul.mubr.bf16.gmra.mrb[0].mxu0 %v500
      %v1462 = vpop.f32.mrb[0].mxu0
      %v1463 = vadd.f32 0.0, %v1462
      %v1464 = vpop.f32.mrb[0].mxu0
      %v1465 = vpop.f32.mrb[0].mxu0
      %v1466 = vadd.f32 0.0, %v1465
      %v1467 = vpop.f32.mrb[0].mxu0
      %1468 = vmatprep.mubr.bf16.mxu0 0
      %1469 = vmatmul.mubr.bf16.gmra.mrb[0].mxu0 %v501
      %v1470 = vpop.f32.mrb[0].mxu0
      %v1471 = vadd.f32 0.0, %v1470
      %v1472 = vpop.f32.mrb[0].mxu0
      %v1473 = vpop.f32.mrb[0].mxu0
      %v1474 = vadd.f32 0.0, %v1473
      %v1475 = vpop.f32.mrb[0].mxu0
      %1476 = vmatprep.mubr.bf16.mxu0 0
      %1477 = vmatmul.mubr.bf16.gmra.mrb[0].mxu0 %v502
      %v1478 = vpop.f32.mrb[0].mxu0
      %v1479 = vadd.f32 0.0, %v1478
      %v1480 = vpop.f32.mrb[0].mxu0
      %v1481 = vpop.f32.mrb[0].mxu0
      %v1482 = vadd.f32 0.0, %v1481
      %v1483 = vpop.f32.mrb[0].mxu0
      %1484 = vmatprep.mubr.bf16.mxu0 0
      %1485 = vmatmul.mubr.bf16.gmra.mrb[0].mxu0 %v503
      %v1486 = vpop.f32.mrb[0].mxu0
      %v1487 = vadd.f32 0.0, %v1486
      %v1488 = vpop.f32.mrb[0].mxu0
      %v1489 = vpop.f32.mrb[0].mxu0
      %v1490 = vadd.f32 0.0, %v1489
      %v1491 = vpop.f32.mrb[0].mxu0
      %1492 = vmatprep.mubr.bf16.mxu0 0
      %1493 = vmatmul.mubr.bf16.gmra.mrb[0].mxu0 %v1354
      %v1494 = vpop.f32.mrb[0].mxu0
      %v1495 = vadd.f32 0.0, %v1494
      %v1496 = vpop.f32.mrb[0].mxu0
      %v1497 = vpop.f32.mrb[0].mxu0
      %v1498 = vadd.f32 0.0, %v1497
      %v1499 = vpop.f32.mrb[0].mxu0
      %1500 = vdwg.mxu0
      %v1501 = vadd.f32 %v1295, %v1439
      %v1502 = vadd.f32 %v1296, %v1442
      %v1503 = vadd.f32 %v1297, %v1447
      %v1504 = vadd.f32 %v1298, %v1450
      %v1505 = vadd.f32 %v1299, %v1455
      %v1506 = vadd.f32 %v1300, %v1458
      %v1507 = vadd.f32 %v1301, %v1463
      %v1508 = vadd.f32 %v1302, %v1466
      %v1509 = vadd.f32 %v1303, %v1471
      %v1510 = vadd.f32 %v1304, %v1474
      %v1511 = vadd.f32 %v1305, %v1479
      %v1512 = vadd.f32 %v1306, %v1482
      %v1513 = vadd.f32 %v1307, %v1487
      %v1514 = vadd.f32 %v1308, %v1490
      %v1515 = vadd.f32 %v1309, %v1495
      %v1516 = vadd.f32 %v1310, %v1498
      %v1518 = vrot.slane %v246, 5
      %v1519 = vrot.slane %v1518, 4
      %v1520 = vrot.slane %v247, 5
      %v1521 = vsel %vm860, %v1519, %v1520
      %v1522 = vrot.slane %v1520, 4
      %v1523 = vrot.slane %v248, 5
      %v1524 = vsel %vm860, %v1522, %v1523
      %s1525 = scalar_lea.vmem %s1, 320
      %v1526 = vld [vmem:[%s1525] sm:$0xf]
      %v1527 = vld [vmem:[%s1525 + $0x4] sm:$0xf]
      %v1528 = vld [vmem:[%s1525 + $0x8] sm:$0xf]
      %v1529 = vld [vmem:[%s1525 + $0xc] sm:$0xf]
      %v1530 = vld [vmem:[%s1525 + $0x10] sm:$0xf]
      %v1531 = vld [vmem:[%s1525 + $0x14] sm:$0xf]
      %v1532 = vld [vmem:[%s1525 + $0x18] sm:$0xf]
      %v1533 = vld [vmem:[%s1525 + $0x1c] sm:$0xf]
      %v1534 = vld [vmem:[%s1525 + $0x20] sm:$0xf]
      %v1535 = vld [vmem:[%s1525 + $0x24] sm:$0xf]
      %v1536 = vld [vmem:[%s1525 + $0x28] sm:$0xf]
      %v1537 = vld [vmem:[%s1525 + $0x2c] sm:$0xf]
      %v1538 = vld [vmem:[%s1525 + $0x30] sm:$0xf]
      %v1539 = vld [vmem:[%s1525 + $0x34] sm:$0xf]
      %v1540 = vld [vmem:[%s1525 + $0x38] sm:$0xf]
      %v1541 = vld [vmem:[%s1525 + $0x3c] sm:$0xf]
      %v1542 = vunpack.c.l.b16 %v1521
      %v1543 = vunpack.c.l.b16 %v1524
      %v1544 = vpack.c.b16 %v1543, %v1542
      %v1562 = vunpack.c.l.b16 %v1526
      %v1563 = vunpack.c.l.b16 %v1527
      %v1564 = vunpack.c.l.b16 %v1528
      %v1565 = vunpack.c.l.b16 %v1529
      %v1566 = vunpack.c.l.b16 %v1530
      %v1567 = vunpack.c.l.b16 %v1531
      %v1568 = vunpack.c.l.b16 %v1532
      %v1569 = vunpack.c.l.b16 %v1533
      %v1570 = vunpack.c.l.b16 %v1534
      %v1571 = vunpack.c.l.b16 %v1535
      %v1572 = vunpack.c.l.b16 %v1536
      %v1573 = vunpack.c.l.b16 %v1537
      %v1574 = vunpack.c.l.b16 %v1538
      %v1575 = vunpack.c.l.b16 %v1539
      %v1576 = vunpack.c.l.b16 %v1540
      %v1577 = vunpack.c.l.b16 %v1541
      %v1578 = vpack.c.b16 %v1563, %v1562
      %v1579 = vpack.c.b16 %v1565, %v1564
      %v1580 = vpack.c.b16 %v1567, %v1566
      %v1581 = vpack.c.b16 %v1569, %v1568
      %v1582 = vpack.c.b16 %v1571, %v1570
      %v1583 = vpack.c.b16 %v1573, %v1572
      %v1584 = vpack.c.b16 %v1575, %v1574
      %v1585 = vpack.c.b16 %v1577, %v1576
      %1594 = vmatprep.subr.bf16.mxu0 0
      %1595 = vmatpush1.bf16.msra.mxu0 %v1578
      %1596 = vmatprep.subr.bf16.mxu0 0
      %1597 = vmatpush1.bf16.msra.mxu0 %v1579
      %1598 = vmatprep.subr.bf16.mxu0 0
      %1599 = vmatpush1.bf16.msra.mxu0 %v1580
      %1600 = vmatprep.subr.bf16.mxu0 0
      %1601 = vmatpush1.bf16.msra.mxu0 %v1581
      %1602 = vmatprep.subr.bf16.mxu0 0
      %1603 = vmatpush1.bf16.msra.mxu0 %v1582
      %1604 = vmatprep.subr.bf16.mxu0 0
      %1605 = vmatpush1.bf16.msra.mxu0 %v1583
      %1606 = vmatprep.subr.bf16.mxu0 0
      %1607 = vmatpush1.bf16.msra.mxu0 %v1584
      %1608 = vmatprep.subr.bf16.mxu0 0
      %1609 = vmatpush1.bf16.msra.mxu0 %v1585
      %1610 = vmatprep.subr.bf16.mxu0 0
      %1611 = vmatpush1.bf16.msra.mxu0 0
      %1612 = vmatprep.subr.bf16.mxu0 0
      %1613 = vmatpush1.bf16.msra.mxu0 0
      %1614 = vmatprep.subr.bf16.mxu0 0
      %1615 = vmatpush1.bf16.msra.mxu0 0
      %1616 = vmatprep.subr.bf16.mxu0 0
      %1617 = vmatpush1.bf16.msra.mxu0 0
      %1618 = vmatprep.subr.bf16.mxu0 0
      %1619 = vmatpush1.bf16.msra.mxu0 0
      %1620 = vmatprep.subr.bf16.mxu0 0
      %1621 = vmatpush1.bf16.msra.mxu0 0
      %1622 = vmatprep.subr.bf16.mxu0 0
      %1623 = vmatpush1.bf16.msra.mxu0 0
      %1624 = vmatprep.subr.bf16.mxu0 0
      %1625 = vmatpush1.bf16.msra.mxu0 0
      %1626 = vmatprep.mubr.bf16.mxu0 0
      %1627 = vmatmul.mubr.bf16.gmra.mrb[0].mxu0 %v951
      %v1628 = vpop.f32.mrb[0].mxu0
      %v1629 = vadd.f32 0.0, %v1628
      %v1630 = vpop.f32.mrb[0].mxu0
      %v1631 = vpop.f32.mrb[0].mxu0
      %v1632 = vadd.f32 0.0, %v1631
      %v1633 = vpop.f32.mrb[0].mxu0
      %1634 = vmatprep.mubr.bf16.mxu0 0
      %1635 = vmatmul.mubr.bf16.gmra.mrb[0].mxu0 %v952
      %v1636 = vpop.f32.mrb[0].mxu0
      %v1637 = vadd.f32 0.0, %v1636
      %v1638 = vpop.f32.mrb[0].mxu0
      %v1639 = vpop.f32.mrb[0].mxu0
      %v1640 = vadd.f32 0.0, %v1639
      %v1641 = vpop.f32.mrb[0].mxu0
      %1642 = vmatprep.mubr.bf16.mxu0 0
      %1643 = vmatmul.mubr.bf16.gmra.mrb[0].mxu0 %v953
      %v1644 = vpop.f32.mrb[0].mxu0
      %v1645 = vadd.f32 0.0, %v1644
      %v1646 = vpop.f32.mrb[0].mxu0
      %v1647 = vpop.f32.mrb[0].mxu0
      %v1648 = vadd.f32 0.0, %v1647
      %v1649 = vpop.f32.mrb[0].mxu0
      %1650 = vmatprep.mubr.bf16.mxu0 0
      %1651 = vmatmul.mubr.bf16.gmra.mrb[0].mxu0 %v954
      %v1652 = vpop.f32.mrb[0].mxu0
      %v1653 = vadd.f32 0.0, %v1652
      %v1654 = vpop.f32.mrb[0].mxu0
      %v1655 = vpop.f32.mrb[0].mxu0
      %v1656 = vadd.f32 0.0, %v1655
      %v1657 = vpop.f32.mrb[0].mxu0
      %1658 = vmatprep.mubr.bf16.mxu0 0
      %1659 = vmatmul.mubr.bf16.gmra.mrb[0].mxu0 %v955
      %v1660 = vpop.f32.mrb[0].mxu0
      %v1661 = vadd.f32 0.0, %v1660
      %v1662 = vpop.f32.mrb[0].mxu0
      %v1663 = vpop.f32.mrb[0].mxu0
      %v1664 = vadd.f32 0.0, %v1663
      %v1665 = vpop.f32.mrb[0].mxu0
      %1666 = vmatprep.mubr.bf16.mxu0 0
      %1667 = vmatmul.mubr.bf16.gmra.mrb[0].mxu0 %v956
      %v1668 = vpop.f32.mrb[0].mxu0
      %v1669 = vadd.f32 0.0, %v1668
      %v1670 = vpop.f32.mrb[0].mxu0
      %v1671 = vpop.f32.mrb[0].mxu0
      %v1672 = vadd.f32 0.0, %v1671
      %v1673 = vpop.f32.mrb[0].mxu0
      %1674 = vmatprep.mubr.bf16.mxu0 0
      %1675 = vmatmul.mubr.bf16.gmra.mrb[0].mxu0 %v957
      %v1676 = vpop.f32.mrb[0].mxu0
      %v1677 = vadd.f32 0.0, %v1676
      %v1678 = vpop.f32.mrb[0].mxu0
      %v1679 = vpop.f32.mrb[0].mxu0
      %v1680 = vadd.f32 0.0, %v1679
      %v1681 = vpop.f32.mrb[0].mxu0
      %1682 = vmatprep.mubr.bf16.mxu0 0
      %1683 = vmatmul.mubr.bf16.gmra.mrb[0].mxu0 %v1544
      %v1684 = vpop.f32.mrb[0].mxu0
      %v1685 = vadd.f32 0.0, %v1684
      %v1686 = vpop.f32.mrb[0].mxu0
      %v1687 = vpop.f32.mrb[0].mxu0
      %v1688 = vadd.f32 0.0, %v1687
      %v1689 = vpop.f32.mrb[0].mxu0
      %1690 = vdwg.mxu0
      %v1691 = vadd.f32 %v1501, %v1629
      %v1692 = vadd.f32 %v1502, %v1632
      %v1693 = vadd.f32 %v1503, %v1637
      %v1694 = vadd.f32 %v1504, %v1640
      %v1695 = vadd.f32 %v1505, %v1645
      %v1696 = vadd.f32 %v1506, %v1648
      %v1697 = vadd.f32 %v1507, %v1653
      %v1698 = vadd.f32 %v1508, %v1656
      %v1699 = vadd.f32 %v1509, %v1661
      %v1700 = vadd.f32 %v1510, %v1664
      %v1701 = vadd.f32 %v1511, %v1669
      %v1702 = vadd.f32 %v1512, %v1672
      %v1703 = vadd.f32 %v1513, %v1677
      %v1704 = vadd.f32 %v1514, %v1680
      %v1705 = vadd.f32 %v1515, %v1685
      %v1706 = vadd.f32 %v1516, %v1688
      %s1707 = scalar_lea.vmem %s1, 384
      %v1708 = vld [vmem:[%s1707] sm:$0xf]
      %v1709 = vld [vmem:[%s1707 + $0x4] sm:$0xf]
      %v1710 = vld [vmem:[%s1707 + $0x8] sm:$0xf]
      %v1711 = vld [vmem:[%s1707 + $0xc] sm:$0xf]
      %v1712 = vld [vmem:[%s1707 + $0x10] sm:$0xf]
      %v1713 = vld [vmem:[%s1707 + $0x14] sm:$0xf]
      %v1714 = vld [vmem:[%s1707 + $0x18] sm:$0xf]
      %v1715 = vld [vmem:[%s1707 + $0x1c] sm:$0xf]
      %v1716 = vld [vmem:[%s1707 + $0x20] sm:$0xf]
      %v1717 = vld [vmem:[%s1707 + $0x24] sm:$0xf]
      %v1718 = vld [vmem:[%s1707 + $0x28] sm:$0xf]
      %v1719 = vld [vmem:[%s1707 + $0x2c] sm:$0xf]
      %v1720 = vld [vmem:[%s1707 + $0x30] sm:$0xf]
      %v1721 = vld [vmem:[%s1707 + $0x34] sm:$0xf]
      %v1722 = vld [vmem:[%s1707 + $0x38] sm:$0xf]
      %v1723 = vld [vmem:[%s1707 + $0x3c] sm:$0xf]
      %v1726 = vunpack.c.l.b16 %v249
      %v1727 = vunpack.c.l.b16 %v250
      %v1728 = vpack.c.b16 %v1727, %v1726
      %v1746 = vunpack.c.l.b16 %v1708
      %v1747 = vunpack.c.l.b16 %v1709
      %v1748 = vunpack.c.l.b16 %v1710
      %v1749 = vunpack.c.l.b16 %v1711
      %v1750 = vunpack.c.l.b16 %v1712
      %v1751 = vunpack.c.l.b16 %v1713
      %v1752 = vunpack.c.l.b16 %v1714
      %v1753 = vunpack.c.l.b16 %v1715
      %v1754 = vunpack.c.l.b16 %v1716
      %v1755 = vunpack.c.l.b16 %v1717
      %v1756 = vunpack.c.l.b16 %v1718
      %v1757 = vunpack.c.l.b16 %v1719
      %v1758 = vunpack.c.l.b16 %v1720
      %v1759 = vunpack.c.l.b16 %v1721
      %v1760 = vunpack.c.l.b16 %v1722
      %v1761 = vunpack.c.l.b16 %v1723
      %v1762 = vpack.c.b16 %v1747, %v1746
      %v1763 = vpack.c.b16 %v1749, %v1748
      %v1764 = vpack.c.b16 %v1751, %v1750
      %v1765 = vpack.c.b16 %v1753, %v1752
      %v1766 = vpack.c.b16 %v1755, %v1754
      %v1767 = vpack.c.b16 %v1757, %v1756
      %v1768 = vpack.c.b16 %v1759, %v1758
      %v1769 = vpack.c.b16 %v1761, %v1760
      %1778 = vmatprep.subr.bf16.mxu0 0
      %1779 = vmatpush1.bf16.msra.mxu0 %v1762
      %1780 = vmatprep.subr.bf16.mxu0 0
      %1781 = vmatpush1.bf16.msra.mxu0 %v1763
      %1782 = vmatprep.subr.bf16.mxu0 0
      %1783 = vmatpush1.bf16.msra.mxu0 %v1764
      %1784 = vmatprep.subr.bf16.mxu0 0
      %1785 = vmatpush1.bf16.msra.mxu0 %v1765
      %1786 = vmatprep.subr.bf16.mxu0 0
      %1787 = vmatpush1.bf16.msra.mxu0 %v1766
      %1788 = vmatprep.subr.bf16.mxu0 0
      %1789 = vmatpush1.bf16.msra.mxu0 %v1767
      %1790 = vmatprep.subr.bf16.mxu0 0
      %1791 = vmatpush1.bf16.msra.mxu0 %v1768
      %1792 = vmatprep.subr.bf16.mxu0 0
      %1793 = vmatpush1.bf16.msra.mxu0 %v1769
      %1794 = vmatprep.subr.bf16.mxu0 0
      %1795 = vmatpush1.bf16.msra.mxu0 0
      %1796 = vmatprep.subr.bf16.mxu0 0
      %1797 = vmatpush1.bf16.msra.mxu0 0
      %1798 = vmatprep.subr.bf16.mxu0 0
      %1799 = vmatpush1.bf16.msra.mxu0 0
      %1800 = vmatprep.subr.bf16.mxu0 0
      %1801 = vmatpush1.bf16.msra.mxu0 0
      %1802 = vmatprep.subr.bf16.mxu0 0
      %1803 = vmatpush1.bf16.msra.mxu0 0
      %1804 = vmatprep.subr.bf16.mxu0 0
      %1805 = vmatpush1.bf16.msra.mxu0 0
      %1806 = vmatprep.subr.bf16.mxu0 0
      %1807 = vmatpush1.bf16.msra.mxu0 0
      %1808 = vmatprep.subr.bf16.mxu0 0
      %1809 = vmatpush1.bf16.msra.mxu0 0
      %1810 = vmatprep.mubr.bf16.mxu0 0
      %1811 = vmatmul.mubr.bf16.gmra.mrb[0].mxu0 %v691
      %v1812 = vpop.f32.mrb[0].mxu0
      %v1813 = vadd.f32 0.0, %v1812
      %v1814 = vpop.f32.mrb[0].mxu0
      %v1815 = vpop.f32.mrb[0].mxu0
      %v1816 = vadd.f32 0.0, %v1815
      %v1817 = vpop.f32.mrb[0].mxu0
      %1818 = vmatprep.mubr.bf16.mxu0 0
      %1819 = vmatmul.mubr.bf16.gmra.mrb[0].mxu0 %v692
      %v1820 = vpop.f32.mrb[0].mxu0
      %v1821 = vadd.f32 0.0, %v1820
      %v1822 = vpop.f32.mrb[0].mxu0
      %v1823 = vpop.f32.mrb[0].mxu0
      %v1824 = vadd.f32 0.0, %v1823
      %v1825 = vpop.f32.mrb[0].mxu0
      %1826 = vmatprep.mubr.bf16.mxu0 0
      %1827 = vmatmul.mubr.bf16.gmra.mrb[0].mxu0 %v693
      %v1828 = vpop.f32.mrb[0].mxu0
      %v1829 = vadd.f32 0.0, %v1828
      %v1830 = vpop.f32.mrb[0].mxu0
      %v1831 = vpop.f32.mrb[0].mxu0
      %v1832 = vadd.f32 0.0, %v1831
      %v1833 = vpop.f32.mrb[0].mxu0
      %1834 = vmatprep.mubr.bf16.mxu0 0
      %1835 = vmatmul.mubr.bf16.gmra.mrb[0].mxu0 %v694
      %v1836 = vpop.f32.mrb[0].mxu0
      %v1837 = vadd.f32 0.0, %v1836
      %v1838 = vpop.f32.mrb[0].mxu0
      %v1839 = vpop.f32.mrb[0].mxu0
      %v1840 = vadd.f32 0.0, %v1839
      %v1841 = vpop.f32.mrb[0].mxu0
      %1842 = vmatprep.mubr.bf16.mxu0 0
      %1843 = vmatmul.mubr.bf16.gmra.mrb[0].mxu0 %v695
      %v1844 = vpop.f32.mrb[0].mxu0
      %v1845 = vadd.f32 0.0, %v1844
      %v1846 = vpop.f32.mrb[0].mxu0
      %v1847 = vpop.f32.mrb[0].mxu0
      %v1848 = vadd.f32 0.0, %v1847
      %v1849 = vpop.f32.mrb[0].mxu0
      %1850 = vmatprep.mubr.bf16.mxu0 0
      %1851 = vmatmul.mubr.bf16.gmra.mrb[0].mxu0 %v696
      %v1852 = vpop.f32.mrb[0].mxu0
      %v1853 = vadd.f32 0.0, %v1852
      %v1854 = vpop.f32.mrb[0].mxu0
      %v1855 = vpop.f32.mrb[0].mxu0
      %v1856 = vadd.f32 0.0, %v1855
      %v1857 = vpop.f32.mrb[0].mxu0
      %1858 = vmatprep.mubr.bf16.mxu0 0
      %1859 = vmatmul.mubr.bf16.gmra.mrb[0].mxu0 %v1148
      %v1860 = vpop.f32.mrb[0].mxu0
      %v1861 = vadd.f32 0.0, %v1860
      %v1862 = vpop.f32.mrb[0].mxu0
      %v1863 = vpop.f32.mrb[0].mxu0
      %v1864 = vadd.f32 0.0, %v1863
      %v1865 = vpop.f32.mrb[0].mxu0
      %1866 = vmatprep.mubr.bf16.mxu0 0
      %1867 = vmatmul.mubr.bf16.gmra.mrb[0].mxu0 %v1728
      %v1868 = vpop.f32.mrb[0].mxu0
      %v1869 = vadd.f32 0.0, %v1868
      %v1870 = vpop.f32.mrb[0].mxu0
      %v1871 = vpop.f32.mrb[0].mxu0
      %v1872 = vadd.f32 0.0, %v1871
      %v1873 = vpop.f32.mrb[0].mxu0
      %1874 = vdwg.mxu0
      %v1875 = vadd.f32 %v1691, %v1813
      %v1876 = vadd.f32 %v1692, %v1816
      %v1877 = vadd.f32 %v1693, %v1821
      %v1878 = vadd.f32 %v1694, %v1824
      %v1879 = vadd.f32 %v1695, %v1829
      %v1880 = vadd.f32 %v1696, %v1832
      %v1881 = vadd.f32 %v1697, %v1837
      %v1882 = vadd.f32 %v1698, %v1840
      %v1883 = vadd.f32 %v1699, %v1845
      %v1884 = vadd.f32 %v1700, %v1848
      %v1885 = vadd.f32 %v1701, %v1853
      %v1886 = vadd.f32 %v1702, %v1856
      %v1887 = vadd.f32 %v1703, %v1861
      %v1888 = vadd.f32 %v1704, %v1864
      %v1889 = vadd.f32 %v1705, %v1869
      %v1890 = vadd.f32 %v1706, %v1872
      %v1892 = vshrl.u32 %v249, 16
      %v1894 = vrot.slane %v1892, 4
      %v1895 = vshll.u32 %v249, 16
      %v1897 = vrot.slane %v1895, 5
      %v1898 = vor.u32 %v1894, %v1897
      %v1899 = vrot.slane %v1898, 4
      %v1901 = vshll.u32 %v250, 16
      %v1903 = vrot.slane %v1901, 5
      %v1904 = vsel %vm270, %v1899, %v1903
      %v1905 = vshrl.u32 %v250, 16
      %v1907 = vrot.slane %v1905, 4
      %v1908 = vor.u32 %v1907, %v1903
      %v1909 = vrot.slane %v1908, 4
      %v1911 = vshll.u32 %v251, 16
      %v1913 = vrot.slane %v1911, 5
      %v1914 = vsel %vm270, %v1909, %v1913
      %s1915 = scalar_lea.vmem %s1, 448
      %v1916 = vld [vmem:[%s1915] sm:$0xf]
      %v1917 = vld [vmem:[%s1915 + $0x4] sm:$0xf]
      %v1918 = vld [vmem:[%s1915 + $0x8] sm:$0xf]
      %v1919 = vld [vmem:[%s1915 + $0xc] sm:$0xf]
      %v1920 = vld [vmem:[%s1915 + $0x10] sm:$0xf]
      %v1921 = vld [vmem:[%s1915 + $0x14] sm:$0xf]
      %v1922 = vld [vmem:[%s1915 + $0x18] sm:$0xf]
      %v1923 = vld [vmem:[%s1915 + $0x1c] sm:$0xf]
      %v1924 = vld [vmem:[%s1915 + $0x20] sm:$0xf]
      %v1925 = vld [vmem:[%s1915 + $0x24] sm:$0xf]
      %v1926 = vld [vmem:[%s1915 + $0x28] sm:$0xf]
      %v1927 = vld [vmem:[%s1915 + $0x2c] sm:$0xf]
      %v1928 = vld [vmem:[%s1915 + $0x30] sm:$0xf]
      %v1929 = vld [vmem:[%s1915 + $0x34] sm:$0xf]
      %v1930 = vld [vmem:[%s1915 + $0x38] sm:$0xf]
      %v1931 = vld [vmem:[%s1915 + $0x3c] sm:$0xf]
      %v1932 = vunpack.c.l.b16 %v1904
      %v1933 = vunpack.c.l.b16 %v1914
      %v1934 = vpack.c.b16 %v1933, %v1932
      %v1952 = vunpack.c.l.b16 %v1916
      %v1953 = vunpack.c.l.b16 %v1917
      %v1954 = vunpack.c.l.b16 %v1918
      %v1955 = vunpack.c.l.b16 %v1919
      %v1956 = vunpack.c.l.b16 %v1920
      %v1957 = vunpack.c.l.b16 %v1921
      %v1958 = vunpack.c.l.b16 %v1922
      %v1959 = vunpack.c.l.b16 %v1923
      %v1960 = vunpack.c.l.b16 %v1924
      %v1961 = vunpack.c.l.b16 %v1925
      %v1962 = vunpack.c.l.b16 %v1926
      %v1963 = vunpack.c.l.b16 %v1927
      %v1964 = vunpack.c.l.b16 %v1928
      %v1965 = vunpack.c.l.b16 %v1929
      %v1966 = vunpack.c.l.b16 %v1930
      %v1967 = vunpack.c.l.b16 %v1931
      %v1968 = vpack.c.b16 %v1953, %v1952
      %v1969 = vpack.c.b16 %v1955, %v1954
      %v1970 = vpack.c.b16 %v1957, %v1956
      %v1971 = vpack.c.b16 %v1959, %v1958
      %v1972 = vpack.c.b16 %v1961, %v1960
      %v1973 = vpack.c.b16 %v1963, %v1962
      %v1974 = vpack.c.b16 %v1965, %v1964
      %v1975 = vpack.c.b16 %v1967, %v1966
      %1984 = vmatprep.subr.bf16.mxu0 0
      %1985 = vmatpush1.bf16.msra.mxu0 %v1968
      %1986 = vmatprep.subr.bf16.mxu0 0
      %1987 = vmatpush1.bf16.msra.mxu0 %v1969
      %1988 = vmatprep.subr.bf16.mxu0 0
      %1989 = vmatpush1.bf16.msra.mxu0 %v1970
      %1990 = vmatprep.subr.bf16.mxu0 0
      %1991 = vmatpush1.bf16.msra.mxu0 %v1971
      %1992 = vmatprep.subr.bf16.mxu0 0
      %1993 = vmatpush1.bf16.msra.mxu0 %v1972
      %1994 = vmatprep.subr.bf16.mxu0 0
      %1995 = vmatpush1.bf16.msra.mxu0 %v1973
      %1996 = vmatprep.subr.bf16.mxu0 0
      %1997 = vmatpush1.bf16.msra.mxu0 %v1974
      %1998 = vmatprep.subr.bf16.mxu0 0
      %1999 = vmatpush1.bf16.msra.mxu0 %v1975
      %2000 = vmatprep.subr.bf16.mxu0 0
      %2001 = vmatpush1.bf16.msra.mxu0 0
      %2002 = vmatprep.subr.bf16.mxu0 0
      %2003 = vmatpush1.bf16.msra.mxu0 0
      %2004 = vmatprep.subr.bf16.mxu0 0
      %2005 = vmatpush1.bf16.msra.mxu0 0
      %2006 = vmatprep.subr.bf16.mxu0 0
      %2007 = vmatpush1.bf16.msra.mxu0 0
      %2008 = vmatprep.subr.bf16.mxu0 0
      %2009 = vmatpush1.bf16.msra.mxu0 0
      %2010 = vmatprep.subr.bf16.mxu0 0
      %2011 = vmatpush1.bf16.msra.mxu0 0
      %2012 = vmatprep.subr.bf16.mxu0 0
      %2013 = vmatpush1.bf16.msra.mxu0 0
      %2014 = vmatprep.subr.bf16.mxu0 0
      %2015 = vmatpush1.bf16.msra.mxu0 0
      %2016 = vmatprep.mubr.bf16.mxu0 0
      %2017 = vmatmul.mubr.bf16.gmra.mrb[0].mxu0 %v498
      %v2018 = vpop.f32.mrb[0].mxu0
      %v2019 = vadd.f32 0.0, %v2018
      %v2020 = vpop.f32.mrb[0].mxu0
      %v2021 = vpop.f32.mrb[0].mxu0
      %v2022 = vadd.f32 0.0, %v2021
      %v2023 = vpop.f32.mrb[0].mxu0
      %2024 = vmatprep.mubr.bf16.mxu0 0
      %2025 = vmatmul.mubr.bf16.gmra.mrb[0].mxu0 %v499
      %v2026 = vpop.f32.mrb[0].mxu0
      %v2027 = vadd.f32 0.0, %v2026
      %v2028 = vpop.f32.mrb[0].mxu0
      %v2029 = vpop.f32.mrb[0].mxu0
      %v2030 = vadd.f32 0.0, %v2029
      %v2031 = vpop.f32.mrb[0].mxu0
      %2032 = vmatprep.mubr.bf16.mxu0 0
      %2033 = vmatmul.mubr.bf16.gmra.mrb[0].mxu0 %v500
      %v2034 = vpop.f32.mrb[0].mxu0
      %v2035 = vadd.f32 0.0, %v2034
      %v2036 = vpop.f32.mrb[0].mxu0
      %v2037 = vpop.f32.mrb[0].mxu0
      %v2038 = vadd.f32 0.0, %v2037
      %v2039 = vpop.f32.mrb[0].mxu0
      %2040 = vmatprep.mubr.bf16.mxu0 0
      %2041 = vmatmul.mubr.bf16.gmra.mrb[0].mxu0 %v501
      %v2042 = vpop.f32.mrb[0].mxu0
      %v2043 = vadd.f32 0.0, %v2042
      %v2044 = vpop.f32.mrb[0].mxu0
      %v2045 = vpop.f32.mrb[0].mxu0
      %v2046 = vadd.f32 0.0, %v2045
      %v2047 = vpop.f32.mrb[0].mxu0
      %2048 = vmatprep.mubr.bf16.mxu0 0
      %2049 = vmatmul.mubr.bf16.gmra.mrb[0].mxu0 %v502
      %v2050 = vpop.f32.mrb[0].mxu0
      %v2051 = vadd.f32 0.0, %v2050
      %v2052 = vpop.f32.mrb[0].mxu0
      %v2053 = vpop.f32.mrb[0].mxu0
      %v2054 = vadd.f32 0.0, %v2053
      %v2055 = vpop.f32.mrb[0].mxu0
      %2056 = vmatprep.mubr.bf16.mxu0 0
      %2057 = vmatmul.mubr.bf16.gmra.mrb[0].mxu0 %v503
      %v2058 = vpop.f32.mrb[0].mxu0
      %v2059 = vadd.f32 0.0, %v2058
      %v2060 = vpop.f32.mrb[0].mxu0
      %v2061 = vpop.f32.mrb[0].mxu0
      %v2062 = vadd.f32 0.0, %v2061
      %v2063 = vpop.f32.mrb[0].mxu0
      %2064 = vmatprep.mubr.bf16.mxu0 0
      %2065 = vmatmul.mubr.bf16.gmra.mrb[0].mxu0 %v1354
      %v2066 = vpop.f32.mrb[0].mxu0
      %v2067 = vadd.f32 0.0, %v2066
      %v2068 = vpop.f32.mrb[0].mxu0
      %v2069 = vpop.f32.mrb[0].mxu0
      %v2070 = vadd.f32 0.0, %v2069
      %v2071 = vpop.f32.mrb[0].mxu0
      %2072 = vmatprep.mubr.bf16.mxu0 0
      %2073 = vmatmul.mubr.bf16.gmra.mrb[0].mxu0 %v1934
      %v2074 = vpop.f32.mrb[0].mxu0
      %v2075 = vadd.f32 0.0, %v2074
      %v2076 = vpop.f32.mrb[0].mxu0
      %v2077 = vpop.f32.mrb[0].mxu0
      %v2078 = vadd.f32 0.0, %v2077
      %v2079 = vpop.f32.mrb[0].mxu0
      %2080 = vdwg.mxu0
      %v2081 = vadd.f32 %v1875, %v2019
      %v2082 = vadd.f32 %v1876, %v2022
      %v2083 = vadd.f32 %v1877, %v2027
      %v2084 = vadd.f32 %v1878, %v2030
      %v2085 = vadd.f32 %v1879, %v2035
      %v2086 = vadd.f32 %v1880, %v2038
      %v2087 = vadd.f32 %v1881, %v2043
      %v2088 = vadd.f32 %v1882, %v2046
      %v2089 = vadd.f32 %v1883, %v2051
      %v2090 = vadd.f32 %v1884, %v2054
      %v2091 = vadd.f32 %v1885, %v2059
      %v2092 = vadd.f32 %v1886, %v2062
      %v2093 = vadd.f32 %v1887, %v2067
      %v2094 = vadd.f32 %v1888, %v2070
      %v2095 = vadd.f32 %v1889, %v2075
      %v2096 = vadd.f32 %v1890, %v2078
      %v2098 = vrot.slane %v249, 5
      %v2099 = vrot.slane %v2098, 4
      %v2100 = vrot.slane %v250, 5
      %v2101 = vsel %vm860, %v2099, %v2100
      %v2102 = vrot.slane %v2100, 4
      %v2103 = vrot.slane %v251, 5
      %v2104 = vsel %vm860, %v2102, %v2103
      %s2105 = scalar_lea.vmem %s1, 512
      %v2106 = vld [vmem:[%s2105] sm:$0xf]
      %v2107 = vld [vmem:[%s2105 + $0x4] sm:$0xf]
      %v2108 = vld [vmem:[%s2105 + $0x8] sm:$0xf]
      %v2109 = vld [vmem:[%s2105 + $0xc] sm:$0xf]
      %v2110 = vld [vmem:[%s2105 + $0x10] sm:$0xf]
      %v2111 = vld [vmem:[%s2105 + $0x14] sm:$0xf]
      %v2112 = vld [vmem:[%s2105 + $0x18] sm:$0xf]
      %v2113 = vld [vmem:[%s2105 + $0x1c] sm:$0xf]
      %v2114 = vld [vmem:[%s2105 + $0x20] sm:$0xf]
      %v2115 = vld [vmem:[%s2105 + $0x24] sm:$0xf]
      %v2116 = vld [vmem:[%s2105 + $0x28] sm:$0xf]
      %v2117 = vld [vmem:[%s2105 + $0x2c] sm:$0xf]
      %v2118 = vld [vmem:[%s2105 + $0x30] sm:$0xf]
      %v2119 = vld [vmem:[%s2105 + $0x34] sm:$0xf]
      %v2120 = vld [vmem:[%s2105 + $0x38] sm:$0xf]
      %v2121 = vld [vmem:[%s2105 + $0x3c] sm:$0xf]
      %v2122 = vunpack.c.l.b16 %v2101
      %v2123 = vunpack.c.l.b16 %v2104
      %v2124 = vpack.c.b16 %v2123, %v2122
      %v2142 = vunpack.c.l.b16 %v2106
      %v2143 = vunpack.c.l.b16 %v2107
      %v2144 = vunpack.c.l.b16 %v2108
      %v2145 = vunpack.c.l.b16 %v2109
      %v2146 = vunpack.c.l.b16 %v2110
      %v2147 = vunpack.c.l.b16 %v2111
      %v2148 = vunpack.c.l.b16 %v2112
      %v2149 = vunpack.c.l.b16 %v2113
      %v2150 = vunpack.c.l.b16 %v2114
      %v2151 = vunpack.c.l.b16 %v2115
      %v2152 = vunpack.c.l.b16 %v2116
      %v2153 = vunpack.c.l.b16 %v2117
      %v2154 = vunpack.c.l.b16 %v2118
      %v2155 = vunpack.c.l.b16 %v2119
      %v2156 = vunpack.c.l.b16 %v2120
      %v2157 = vunpack.c.l.b16 %v2121
      %v2158 = vpack.c.b16 %v2143, %v2142
      %v2159 = vpack.c.b16 %v2145, %v2144
      %v2160 = vpack.c.b16 %v2147, %v2146
      %v2161 = vpack.c.b16 %v2149, %v2148
      %v2162 = vpack.c.b16 %v2151, %v2150
      %v2163 = vpack.c.b16 %v2153, %v2152
      %v2164 = vpack.c.b16 %v2155, %v2154
      %v2165 = vpack.c.b16 %v2157, %v2156
      %2174 = vmatprep.subr.bf16.mxu0 0
      %2175 = vmatpush1.bf16.msra.mxu0 %v2158
      %2176 = vmatprep.subr.bf16.mxu0 0
      %2177 = vmatpush1.bf16.msra.mxu0 %v2159
      %2178 = vmatprep.subr.bf16.mxu0 0
      %2179 = vmatpush1.bf16.msra.mxu0 %v2160
      %2180 = vmatprep.subr.bf16.mxu0 0
      %2181 = vmatpush1.bf16.msra.mxu0 %v2161
      %2182 = vmatprep.subr.bf16.mxu0 0
      %2183 = vmatpush1.bf16.msra.mxu0 %v2162
      %2184 = vmatprep.subr.bf16.mxu0 0
      %2185 = vmatpush1.bf16.msra.mxu0 %v2163
      %2186 = vmatprep.subr.bf16.mxu0 0
      %2187 = vmatpush1.bf16.msra.mxu0 %v2164
      %2188 = vmatprep.subr.bf16.mxu0 0
      %2189 = vmatpush1.bf16.msra.mxu0 %v2165
      %2190 = vmatprep.subr.bf16.mxu0 0
      %2191 = vmatpush1.bf16.msra.mxu0 0
      %2192 = vmatprep.subr.bf16.mxu0 0
      %2193 = vmatpush1.bf16.msra.mxu0 0
      %2194 = vmatprep.subr.bf16.mxu0 0
      %2195 = vmatpush1.bf16.msra.mxu0 0
      %2196 = vmatprep.subr.bf16.mxu0 0
      %2197 = vmatpush1.bf16.msra.mxu0 0
      %2198 = vmatprep.subr.bf16.mxu0 0
      %2199 = vmatpush1.bf16.msra.mxu0 0
      %2200 = vmatprep.subr.bf16.mxu0 0
      %2201 = vmatpush1.bf16.msra.mxu0 0
      %2202 = vmatprep.subr.bf16.mxu0 0
      %2203 = vmatpush1.bf16.msra.mxu0 0
      %2204 = vmatprep.subr.bf16.mxu0 0
      %2205 = vmatpush1.bf16.msra.mxu0 0
      %2206 = vmatprep.mubr.bf16.mxu0 0
      %2207 = vmatmul.mubr.bf16.gmra.mrb[0].mxu0 %v952
      %v2208 = vpop.f32.mrb[0].mxu0
      %v2209 = vadd.f32 0.0, %v2208
      %v2210 = vpop.f32.mrb[0].mxu0
      %v2211 = vpop.f32.mrb[0].mxu0
      %v2212 = vadd.f32 0.0, %v2211
      %v2213 = vpop.f32.mrb[0].mxu0
      %2214 = vmatprep.mubr.bf16.mxu0 0
      %2215 = vmatmul.mubr.bf16.gmra.mrb[0].mxu0 %v953
      %v2216 = vpop.f32.mrb[0].mxu0
      %v2217 = vadd.f32 0.0, %v2216
      %v2218 = vpop.f32.mrb[0].mxu0
      %v2219 = vpop.f32.mrb[0].mxu0
      %v2220 = vadd.f32 0.0, %v2219
      %v2221 = vpop.f32.mrb[0].mxu0
      %2222 = vmatprep.mubr.bf16.mxu0 0
      %2223 = vmatmul.mubr.bf16.gmra.mrb[0].mxu0 %v954
      %v2224 = vpop.f32.mrb[0].mxu0
      %v2225 = vadd.f32 0.0, %v2224
      %v2226 = vpop.f32.mrb[0].mxu0
      %v2227 = vpop.f32.mrb[0].mxu0
      %v2228 = vadd.f32 0.0, %v2227
      %v2229 = vpop.f32.mrb[0].mxu0
      %2230 = vmatprep.mubr.bf16.mxu0 0
      %2231 = vmatmul.mubr.bf16.gmra.mrb[0].mxu0 %v955
      %v2232 = vpop.f32.mrb[0].mxu0
      %v2233 = vadd.f32 0.0, %v2232
      %v2234 = vpop.f32.mrb[0].mxu0
      %v2235 = vpop.f32.mrb[0].mxu0
      %v2236 = vadd.f32 0.0, %v2235
      %v2237 = vpop.f32.mrb[0].mxu0
      %2238 = vmatprep.mubr.bf16.mxu0 0
      %2239 = vmatmul.mubr.bf16.gmra.mrb[0].mxu0 %v956
      %v2240 = vpop.f32.mrb[0].mxu0
      %v2241 = vadd.f32 0.0, %v2240
      %v2242 = vpop.f32.mrb[0].mxu0
      %v2243 = vpop.f32.mrb[0].mxu0
      %v2244 = vadd.f32 0.0, %v2243
      %v2245 = vpop.f32.mrb[0].mxu0
      %2246 = vmatprep.mubr.bf16.mxu0 0
      %2247 = vmatmul.mubr.bf16.gmra.mrb[0].mxu0 %v957
      %v2248 = vpop.f32.mrb[0].mxu0
      %v2249 = vadd.f32 0.0, %v2248
      %v2250 = vpop.f32.mrb[0].mxu0
      %v2251 = vpop.f32.mrb[0].mxu0
      %v2252 = vadd.f32 0.0, %v2251
      %v2253 = vpop.f32.mrb[0].mxu0
      %2254 = vmatprep.mubr.bf16.mxu0 0
      %2255 = vmatmul.mubr.bf16.gmra.mrb[0].mxu0 %v1544
      %v2256 = vpop.f32.mrb[0].mxu0
      %v2257 = vadd.f32 0.0, %v2256
      %v2258 = vpop.f32.mrb[0].mxu0
      %v2259 = vpop.f32.mrb[0].mxu0
      %v2260 = vadd.f32 0.0, %v2259
      %v2261 = vpop.f32.mrb[0].mxu0
      %2262 = vmatprep.mubr.bf16.mxu0 0
      %2263 = vmatmul.mubr.bf16.gmra.mrb[0].mxu0 %v2124
      %v2264 = vpop.f32.mrb[0].mxu0
      %v2265 = vadd.f32 0.0, %v2264
      %v2266 = vpop.f32.mrb[0].mxu0
      %v2267 = vpop.f32.mrb[0].mxu0
      %v2268 = vadd.f32 0.0, %v2267
      %v2269 = vpop.f32.mrb[0].mxu0
      %2270 = vdwg.mxu0
      %v2271 = vadd.f32 %v2081, %v2209
      %v2272 = vadd.f32 %v2082, %v2212
      %v2273 = vadd.f32 %v2083, %v2217
      %v2274 = vadd.f32 %v2084, %v2220
      %v2275 = vadd.f32 %v2085, %v2225
      %v2276 = vadd.f32 %v2086, %v2228
      %v2277 = vadd.f32 %v2087, %v2233
      %v2278 = vadd.f32 %v2088, %v2236
      %v2279 = vadd.f32 %v2089, %v2241
      %v2280 = vadd.f32 %v2090, %v2244
      %v2281 = vadd.f32 %v2091, %v2249
      %v2282 = vadd.f32 %v2092, %v2252
      %v2283 = vadd.f32 %v2093, %v2257
      %v2284 = vadd.f32 %v2094, %v2260
      %v2285 = vadd.f32 %v2095, %v2265
      %v2286 = vadd.f32 %v2096, %v2268
      %v2287 = vpack.c.bf16 %v2272, %v2271
      %v2288 = vpack.c.bf16 %v2274, %v2273
      %v2289 = vpack.c.bf16 %v2276, %v2275
      %v2290 = vpack.c.bf16 %v2278, %v2277
      %v2291 = vpack.c.bf16 %v2280, %v2279
      %v2292 = vpack.c.bf16 %v2282, %v2281
      %v2293 = vpack.c.bf16 %v2284, %v2283
      %v2294 = vpack.c.bf16 %v2286, %v2285
      %v2303 = vunpack.c.l.b16 %v2287
      %v2304 = vunpack.c.h.b16 %v2287
      %v2305 = vunpack.c.l.b16 %v2288
      %v2306 = vunpack.c.h.b16 %v2288
      %v2307 = vunpack.c.l.b16 %v2289
      %v2308 = vunpack.c.h.b16 %v2289
      %v2309 = vunpack.c.l.b16 %v2290
      %v2310 = vunpack.c.h.b16 %v2290
      %v2311 = vunpack.c.l.b16 %v2291
      %v2312 = vunpack.c.h.b16 %v2291
      %v2313 = vunpack.c.l.b16 %v2292
      %v2314 = vunpack.c.h.b16 %v2292
      %v2315 = vunpack.c.l.b16 %v2293
      %v2316 = vunpack.c.h.b16 %v2293
      %v2317 = vunpack.c.l.b16 %v2294
      %v2318 = vunpack.c.h.b16 %v2294
      %v2319 = vpack.c.b16 %v2303, %v2303
      %v2320 = vpack.c.b16 %v2304, %v2304
      %v2321 = vpack.c.b16 %v2305, %v2305
      %v2322 = vpack.c.b16 %v2306, %v2306
      %v2323 = vpack.c.b16 %v2307, %v2307
      %v2324 = vpack.c.b16 %v2308, %v2308
      %v2325 = vpack.c.b16 %v2309, %v2309
      %v2326 = vpack.c.b16 %v2310, %v2310
      %v2327 = vpack.c.b16 %v2311, %v2311
      %v2328 = vpack.c.b16 %v2312, %v2312
      %v2329 = vpack.c.b16 %v2313, %v2313
      %v2330 = vpack.c.b16 %v2314, %v2314
      %v2331 = vpack.c.b16 %v2315, %v2315
      %v2332 = vpack.c.b16 %v2316, %v2316
      %v2333 = vpack.c.b16 %v2317, %v2317
      %v2334 = vpack.c.b16 %v2318, %v2318
      %2351 = vst [vmem:[%s207] sm:$0xf] %v2319
      %2352 = vst [vmem:[%s207 + $0x4] sm:$0xf] %v2320
      %2353 = vst [vmem:[%s207 + $0x8] sm:$0xf] %v2321
      %2354 = vst [vmem:[%s207 + $0xc] sm:$0xf] %v2322
      %2355 = vst [vmem:[%s207 + $0x10] sm:$0xf] %v2323
      %2356 = vst [vmem:[%s207 + $0x14] sm:$0xf] %v2324
      %2357 = vst [vmem:[%s207 + $0x18] sm:$0xf] %v2325
      %2358 = vst [vmem:[%s207 + $0x1c] sm:$0xf] %v2326
      %2359 = vst [vmem:[%s207 + $0x20] sm:$0xf] %v2327
      %2360 = vst [vmem:[%s207 + $0x24] sm:$0xf] %v2328
      %2361 = vst [vmem:[%s207 + $0x28] sm:$0xf] %v2329
      %2362 = vst [vmem:[%s207 + $0x2c] sm:$0xf] %v2330
      %2363 = vst [vmem:[%s207 + $0x30] sm:$0xf] %v2331
      %2364 = vst [vmem:[%s207 + $0x34] sm:$0xf] %v2332
      %2365 = vst [vmem:[%s207 + $0x38] sm:$0xf] %v2333
      %2366 = vst [vmem:[%s207 + $0x3c] sm:$0xf] %v2334
      %v2367 = vadd.f32 %v2271, %v2272
      %v2368 = vadd.f32 %v2367, %v2273
      %v2369 = vadd.f32 %v2368, %v2274
      %v2370 = vadd.f32 %v2369, %v2275
      %v2371 = vadd.f32 %v2370, %v2276
      %v2372 = vadd.f32 %v2371, %v2277
      %v2373 = vadd.f32 %v2372, %v2278
      %v2374 = vadd.f32 %v2373, %v2279
      %v2375 = vadd.f32 %v2374, %v2280
      %v2376 = vadd.f32 %v2375, %v2281
      %v2377 = vadd.f32 %v2376, %v2282
      %v2378 = vadd.f32 %v2377, %v2283
      %v2379 = vadd.f32 %v2378, %v2284
      %v2380 = vadd.f32 %v2379, %v2285
      %v2381 = vadd.f32 %v2380, %v2286
      %v2382 = vrot.slane %v2381, 4
      %v2383 = vadd.f32 %v2381, %v2382
      %v2384 = vrot.slane %v2383, 2
      %v2385 = vadd.f32 %v2383, %v2384
      %v2386 = vrot.slane %v2385, 1
      %v2387 = vadd.f32 %v2385, %v2386
      %2388 = vst [vmem:[%s216] sm:$0x1] %v2387
      %v2389 = vmul.f32 %v2271, %v2271
      %v2390 = vmul.f32 %v2272, %v2272
      %v2391 = vmul.f32 %v2273, %v2273
      %v2392 = vmul.f32 %v2274, %v2274
      %v2393 = vmul.f32 %v2275, %v2275
      %v2394 = vmul.f32 %v2276, %v2276
      %v2395 = vmul.f32 %v2277, %v2277
      %v2396 = vmul.f32 %v2278, %v2278
      %v2397 = vmul.f32 %v2279, %v2279
      %v2398 = vmul.f32 %v2280, %v2280
      %v2399 = vmul.f32 %v2281, %v2281
      %v2400 = vmul.f32 %v2282, %v2282
      %v2401 = vmul.f32 %v2283, %v2283
      %v2402 = vmul.f32 %v2284, %v2284
      %v2403 = vmul.f32 %v2285, %v2285
      %v2404 = vmul.f32 %v2286, %v2286
      %v2405 = vadd.f32 %v2389, %v2390
      %v2406 = vadd.f32 %v2405, %v2391
      %v2407 = vadd.f32 %v2406, %v2392
      %v2408 = vadd.f32 %v2407, %v2393
      %v2409 = vadd.f32 %v2408, %v2394
      %v2410 = vadd.f32 %v2409, %v2395
      %v2411 = vadd.f32 %v2410, %v2396
      %v2412 = vadd.f32 %v2411, %v2397
      %v2413 = vadd.f32 %v2412, %v2398
      %v2414 = vadd.f32 %v2413, %v2399
      %v2415 = vadd.f32 %v2414, %v2400
      %v2416 = vadd.f32 %v2415, %v2401
      %v2417 = vadd.f32 %v2416, %v2402
      %v2418 = vadd.f32 %v2417, %v2403
      %v2419 = vadd.f32 %v2418, %v2404
      %v2420 = vrot.slane %v2419, 4
      %v2421 = vadd.f32 %v2419, %v2420
      %v2422 = vrot.slane %v2421, 2
      %v2423 = vadd.f32 %v2421, %v2422
      %v2424 = vrot.slane %v2423, 1
      %v2425 = vadd.f32 %v2423, %v2424
      %2426 = vst [vmem:[%s216 + $0x1] sm:$0x1] %v2425
      %s2427 = smul.u32 8, %s20
      %p2428 = scmp.lt.s32.totalorder %s19, 1
      %s2429 = scalar_select %p2428, %s19, 1
      %p2430 = scmp.lt.s32.totalorder %s2427, 15
      %s2431 = scalar_select %p2430, %s2427, 15
      %s2432 = smul.addr %s2431, 2
      %s2433 = smul.addr %s2429, 32
      %s2434 = sadd.s32 %s2432, %s2433
      %s2435 = smul.addr %s2434, 4
      %s2436 = scalar_lea.vmem %s2, %s2435
      %p2437 = scmp.lt.s32.totalorder %s19, 1
      %s2438 = scalar_select %p2437, %s19, 1
      %p2439 = scmp.lt.s32.totalorder %s20, 1
      %s2440 = scalar_select %p2439, %s20, 1
      %s2441 = smul.addr %s2438, 2
      %s2442 = sadd.s32 %s2440, %s2441
      %s2443 = smul.addr %s2442, 2
      %s2444 = scalar_lea.vmem %s3, %s2443
      // Predicated region
      $region29: #{residual_block_forward.3} parent=27 // pred_check
        %p2445 = pneg %p94
      $region30: #{residual_block_forward.3} parent=27 // pred_check_branch
        %2447 = sbr.rel (%p2445) target = $region32
      $region31: #{residual_block_forward.3} parent=27 // pred_region
        %s2448 = smul.u32 8, %s20
      $region32: #{residual_block_forward.3} parent=27 // pred_fallthru
        _
      // Predicated region
      $region33: #{residual_block_forward.3} parent=27 // pred_check
        %p2449 = pneg %p122
      $region34: #{residual_block_forward.3} parent=27 // pred_check_branch
        %2451 = sbr.rel (%p2449) target = $region36
      $region35: #{residual_block_forward.3} parent=27 // pred_region
        _
      $region36: #{residual_block_forward.3} parent=27 // pred_fallthru
        _
    $region28: #{residual_block_forward.3} parent=5 // pred_fallthru
      _
    %p2452 = scmp.le.s32.totalorder 2, %s10
    // Predicated region
    $region37: #{residual_block_forward.3} parent=5 // pred_check
      %p2453 = pneg %p2452
    $region38: #{residual_block_forward.3} parent=5 // pred_check_branch
      %2455 = sbr.rel (%p2453) target = $region40
    $region39: #{residual_block_forward.3} parent=5 // pred_region
      %s2456 = ssub.s32 %s10, 2
      // Predicated region
      $region41: #{residual_block_forward.3} parent=39 // pred_check
        %p2457 = pneg %p100
      $region42: #{residual_block_forward.3} parent=39 // pred_check_branch
        %2459 = sbr.rel (%p2457) target = $region44
      $region43: #{residual_block_forward.3} parent=39 // pred_region
        %s2460 = smul.u32 8, %s22
        %p2461 = scmp.lt.s32.totalorder %s21, 1
        %s2462 = scalar_select %p2461, %s21, 1
        %p2463 = scmp.lt.s32.totalorder %s2460, 15
        %s2464 = scalar_select %p2463, %s2460, 15
        %s2465 = smul.addr %s2464, 2
        %s2466 = smul.addr %s2462, 32
        %s2467 = sadd.s32 %s2465, %s2466
        %s2468 = smul.addr %s2467, 4
        %s2469 = scalar_lea.vmem %s2, %s2468
      $region44: #{residual_block_forward.3} parent=39 // pred_fallthru
        _
      // Predicated region
      $region45: #{residual_block_forward.3} parent=39 // pred_check
        %p2470 = pneg %p128
      $region46: #{residual_block_forward.3} parent=39 // pred_check_branch
        %2472 = sbr.rel (%p2470) target = $region48
      $region47: #{residual_block_forward.3} parent=39 // pred_region
        %p2473 = scmp.lt.s32.totalorder %s21, 1
        %s2474 = scalar_select %p2473, %s21, 1
        %p2475 = scmp.lt.s32.totalorder %s22, 1
        %s2476 = scalar_select %p2475, %s22, 1
        %s2477 = smul.addr %s2474, 2
        %s2478 = sadd.s32 %s2476, %s2477
        %s2479 = smul.addr %s2478, 2
        %s2480 = scalar_lea.vmem %s3, %s2479
      $region48: #{residual_block_forward.3} parent=39 // pred_fallthru
        _
    $region40: #{residual_block_forward.3} parent=5 // pred_fallthru
      _
  $region6: #{residual_block_forward.3} parent=0 // loop_footer
    %s14 = sadd.s32 1, %s10
  $region7: #{residual_block_forward.3} parent=0 // loop_footer_branch
    %9 = sbr.rel target = $region3
  $region8: #{residual_block_forward.3} parent=0 // loop_exit
    _

// kernel: residual_block_forward.4
$region0: #{residual_block_forward.4}
  #allocation0 [shape = 'u32[]', space=smem, size = 0x4, offset = 0x4, fixed_abs, tag = 'smem constant byte address 0x4 - core index']
  #allocation1 [shape = 'u32[144,128]{1,0:T(1,128)}', space=vmem, size = 0x12000, scoped, tag = 'internal scratch']
  #allocation2 [shape = 'bf16[10,18,128]{2,1,0:T(8,128)(2,1)}', space=vmem, size = 0xf000, scoped, tag = 'scratch operand']
  %s0 = inlined_call_operand.vmem [shape: bf16[2,16,16,128], index: 0, kind: input, shape index: {}]
  %s1 = inlined_call_operand.vmem [shape: f32[1,128], index: 1, kind: input, shape index: {}]
  %s2 = inlined_call_operand.vmem [shape: f32[1,128], index: 2, kind: input, shape index: {}]
  %s3 = inlined_call_operand.vmem [shape: bf16[9,128,128], index: 3, kind: input, shape index: {}]
  %s4 = inlined_call_operand.vmem [shape: bf16[2,16,16,128], index: 4, kind: output, shape index: {0}]
  %s5 = inlined_call_operand.vmem [shape: f32[2,2,2,128], index: 5, kind: output, shape index: {1}]
  %6 = xla_tuple %s4, %s5
  %s7 = sld [smem:[#allocation0]]
  $region57: #{residual_block_forward.4} parent=0
    _
  %s9 = ssub.s32 1, %s7
  %s10 = scalar_select 0, %s9, %s7
  loop: start=0, step=1, limit=6
  $region2: #{residual_block_forward.4} parent=0 // loop_pre_header
    _
  $region3: #{residual_block_forward.4} parent=0 // loop_header
    %s12 = sphi 0, %s16
    %p13 = scmp.ge.s32.totalorder %s12, 6
    %s19 = sphi 0, %s31
    %s20 = sphi 0, %s27
    %s21 = sphi 0, %s19
    %s22 = sphi 0, %s20
    %s23 = sphi 0, %s21
    %s24 = sphi 0, %s22
    %s34 = sphi 0, %s36
    %s37 = sphi 0, %s34
    %s38 = sphi 0, %s37
    %s54 = sphi 0, %s38
    %s58 = sphi 0, %s58
    %s60 = sphi 0, %s58
    %s61 = sphi 0, %s60
    %s75 = sphi 0, %s61
    %s79 = sphi 0, %s79
    %s81 = sphi 0, %s79
    %s82 = sphi 0, %s81
    %s96 = sphi 0, %s82
    %s100 = sphi 0, %s100
    %s102 = sphi 0, %s100
    %s103 = sphi 0, %s102
    %s117 = sphi 0, %s103
    %s125 = sphi 0, %s127
    %s128 = sphi 0, %s125
    %s129 = sphi 0, %s128
    %s145 = sphi 0, %s129
    %s153 = sphi 0, %s155
    %s156 = sphi 0, %s153
    %s157 = sphi 0, %s156
    %s173 = sphi 0, %s157
  $region4: #{residual_block_forward.4} parent=0 // loop_header_branch
    %15 = sbr.rel (%p13) target = $region8
  $region5: #{residual_block_forward.4} parent=0 // loop_body
    %s17 = ssub.s32 %s12, 1
    %s18 = ssub.s32 %s12, 2
    %s25 = sadd.s32 1, %s20
    %p26 = scmp.ge.s32.totalorder %s25, 2
    %s27 = scalar_select %p26, 0, %s25
    %s28 = sadd.s32 1, %s19
    %s29 = scalar_select %p26, %s28, %s19
    %p30 = scmp.ge.s32.totalorder %s29, 2
    %s31 = scalar_select %p30, 0, %s29
    %s32 = ssub.s32 %s19, %s31
    %p33 = scmp.eq.s32.totalorder %s32, 0
    %s35 = sadd.s32 %s34, 1
    %s36 = scalar_select %p33, %s34, %s35
    %p39 = pneg %p33
    %p40 = scmp.eq.s32.totalorder %s12, 3
    %p41 = por %p39, %p40
    %p42 = scmp.ne.s32.totalorder %s34, %s37
    %p43 = scmp.eq.s32.totalorder %s12, 0
    %p44 = por %p42, %p43
    %p45 = scmp.ne.s32.totalorder %s34, %s37
    %p46 = scmp.eq.s32.totalorder %s17, 3
    %p47 = por %p45, %p46
    %p48 = scmp.ne.s32.totalorder %s37, %s38
    %p49 = scmp.eq.s32.totalorder %s17, 0
    %p50 = por %p48, %p49
    %p51 = scmp.ne.s32.totalorder %s37, %s38
    %p52 = scmp.eq.s32.totalorder %s18, 3
    %p53 = por %p51, %p52
    %p55 = scmp.ne.s32.totalorder %s38, %s54
    %p56 = scmp.eq.s32.totalorder %s18, 0
    %p57 = por %p55, %p56
    %s59 = sadd.s32 %s58, 1
    %p62 = scmp.eq.s32.totalorder %s12, 3
    %p63 = scmp.ne.s32.totalorder %s58, %s60
    %p64 = scmp.eq.s32.totalorder %s12, 0
    %p65 = por %p63, %p64
    %p66 = scmp.ne.s32.totalorder %s58, %s60
    %p67 = scmp.eq.s32.totalorder %s17, 3
    %p68 = por %p66, %p67
    %p69 = scmp.ne.s32.totalorder %s60, %s61
    %p70 = scmp.eq.s32.totalorder %s17, 0
    %p71 = por %p69, %p70
    %p72 = scmp.ne.s32.totalorder %s60, %s61
    %p73 = scmp.eq.s32.totalorder %s18, 3
    %p74 = por %p72, %p73
    %p76 = scmp.ne.s32.totalorder %s61, %s75
    %p77 = scmp.eq.s32.totalorder %s18, 0
    %p78 = por %p76, %p77
    %s80 = sadd.s32 %s79, 1
    %p83 = scmp.eq.s32.totalorder %s12, 3
    %p84 = scmp.ne.s32.totalorder %s79, %s81
    %p85 = scmp.eq.s32.totalorder %s12, 0
    %p86 = por %p84, %p85
    %p87 = scmp.ne.s32.totalorder %s79, %s81
    %p88 = scmp.eq.s32.totalorder %s17, 3
    %p89 = por %p87, %p88
    %p90 = scmp.ne.s32.totalorder %s81, %s82
    %p91 = scmp.eq.s32.totalorder %s17, 0
    %p92 = por %p90, %p91
    %p93 = scmp.ne.s32.totalorder %s81, %s82
    %p94 = scmp.eq.s32.totalorder %s18, 3
    %p95 = por %p93, %p94
    %p97 = scmp.ne.s32.totalorder %s82, %s96
    %p98 = scmp.eq.s32.totalorder %s18, 0
    %p99 = por %p97, %p98
    %s101 = sadd.s32 %s100, 1
    %p104 = scmp.eq.s32.totalorder %s12, 3
    %p105 = scmp.ne.s32.totalorder %s100, %s102
    %p106 = scmp.eq.s32.totalorder %s12, 0
    %p107 = por %p105, %p106
    %p108 = scmp.ne.s32.totalorder %s100, %s102
    %p109 = scmp.eq.s32.totalorder %s17, 3
    %p110 = por %p108, %p109
    %p111 = scmp.ne.s32.totalorder %s102, %s103
    %p112 = scmp.eq.s32.totalorder %s17, 0
    %p113 = por %p111, %p112
    %p114 = scmp.ne.s32.totalorder %s102, %s103
    %p115 = scmp.eq.s32.totalorder %s18, 3
    %p116 = por %p114, %p115
    %p118 = scmp.ne.s32.totalorder %s103, %s117
    %p119 = scmp.eq.s32.totalorder %s18, 0
    %p120 = por %p118, %p119
    %s121 = ssub.s32 %s19, %s31
    %s122 = ssub.s32 %s20, %s27
    %s123 = sor.u32 %s121, %s122
    %p124 = scmp.eq.s32.totalorder %s123, 0
    %s126 = sadd.s32 %s125, 1
    %s127 = scalar_select %p124, %s125, %s126
    %p130 = pneg %p124
    %p131 = scmp.eq.s32.totalorder %s12, 3
    %p132 = por %p130, %p131
    %p133 = scmp.ne.s32.totalorder %s125, %s128
    %p134 = scmp.eq.s32.totalorder %s12, 0
    %p135 = por %p133, %p134
    %p136 = scmp.ne.s32.totalorder %s125, %s128
    %p137 = scmp.eq.s32.totalorder %s17, 3
    %p138 = por %p136, %p137
    %p139 = scmp.ne.s32.totalorder %s128, %s129
    %p140 = scmp.eq.s32.totalorder %s17, 0
    %p141 = por %p139, %p140
    %p142 = scmp.ne.s32.totalorder %s128, %s129
    %p143 = scmp.eq.s32.totalorder %s18, 3
    %p144 = por %p142, %p143
    %p146 = scmp.ne.s32.totalorder %s129, %s145
    %p147 = scmp.eq.s32.totalorder %s18, 0
    %p148 = por %p146, %p147
    %s149 = ssub.s32 %s19, %s31
    %s150 = ssub.s32 %s20, %s27
    %s151 = sor.u32 %s149, %s150
    %p152 = scmp.eq.s32.totalorder %s151, 0
    %s154 = sadd.s32 %s153, 1
    %s155 = scalar_select %p152, %s153, %s154
    %p158 = pneg %p152
    %p159 = scmp.eq.s32.totalorder %s12, 3
    %p160 = por %p158, %p159
    %p161 = scmp.ne.s32.totalorder %s153, %s156
    %p162 = scmp.eq.s32.totalorder %s12, 0
    %p163 = por %p161, %p162
    %p164 = scmp.ne.s32.totalorder %s153, %s156
    %p165 = scmp.eq.s32.totalorder %s17, 3
    %p166 = por %p164, %p165
    %p167 = scmp.ne.s32.totalorder %s156, %s157
    %p168 = scmp.eq.s32.totalorder %s17, 0
    %p169 = por %p167, %p168
    %p170 = scmp.ne.s32.totalorder %s156, %s157
    %p171 = scmp.eq.s32.totalorder %s18, 3
    %p172 = por %p170, %p171
    %p174 = scmp.ne.s32.totalorder %s157, %s173
    %p175 = scmp.eq.s32.totalorder %s18, 0
    %p176 = por %p174, %p175
    %p177 = scmp.le.s32.totalorder 1, %s12
    %p178 = scmp.lt.s32.totalorder %s12, 5
    %p179 = pnand %p177, %p178
    %p180 = pneg %p179
    // Predicated region
    $region9: #{residual_block_forward.4} parent=5 // pred_check
      _
    $region10: #{residual_block_forward.4} parent=5 // pred_check_branch
      %182 = sbr.rel (%p179) target = $region12
    $region11: #{residual_block_forward.4} parent=5 // pred_region
      %s183 = ssub.s32 %s12, 1
      // Predicated region
      $region13: #{residual_block_forward.4} parent=11 // pred_check
        %p184 = pneg %p71
      $region14: #{residual_block_forward.4} parent=11 // pred_check_branch
        %186 = sbr.rel (%p184) target = $region16
      $region15: #{residual_block_forward.4} parent=11 // pred_region
        _
      $region16: #{residual_block_forward.4} parent=11 // pred_fallthru
        _
      // Predicated region
      $region17: #{residual_block_forward.4} parent=11 // pred_check
        %p187 = pneg %p92
      $region18: #{residual_block_forward.4} parent=11 // pred_check_branch
        %189 = sbr.rel (%p187) target = $region20
      $region19: #{residual_block_forward.4} parent=11 // pred_region
        _
      $region20: #{residual_block_forward.4} parent=11 // pred_fallthru
        _
      // Predicated region
      $region21: #{residual_block_forward.4} parent=11 // pred_check
        %p190 = pneg %p113
      $region22: #{residual_block_forward.4} parent=11 // pred_check_branch
        %192 = sbr.rel (%p190) target = $region24
      $region23: #{residual_block_forward.4} parent=11 // pred_region
        _
      $region24: #{residual_block_forward.4} parent=11 // pred_fallthru
        _
    $region12: #{residual_block_forward.4} parent=5 // pred_fallthru
      _
    %p193 = scmp.lt.s32.totalorder %s12, 4
    // Predicated region
    $region25: #{residual_block_forward.4} parent=5 // pred_check
      %p194 = pneg %p193
    $region26: #{residual_block_forward.4} parent=5 // pred_check_branch
      %196 = sbr.rel (%p194) target = $region28
    $region27: #{residual_block_forward.4} parent=5 // pred_region
      // Predicated region
      $region29: #{residual_block_forward.4} parent=27 // pred_check
        %p197 = pneg %p44
      $region30: #{residual_block_forward.4} parent=27 // pred_check_branch
        %199 = sbr.rel (%p197) target = $region32
      $region31: #{residual_block_forward.4} parent=27 // pred_region
        %p200 = scmp.lt.s32.totalorder %s19, 1
        %s201 = scalar_select %p200, %s19, 1
        %s202 = smul.addr %s201, 32
        %s203 = smul.addr %s202, 4
        %s204 = scalar_lea.vmem %s0, %s203
      $region32: #{residual_block_forward.4} parent=27 // pred_fallthru
        _
    $region28: #{residual_block_forward.4} parent=5 // pred_fallthru
      _
    %p205 = scmp.le.s32.totalorder 1, %s12
    %p206 = scmp.lt.s32.totalorder %s12, 5
    %p207 = pnand %p205, %p206
    %p208 = pneg %p207
    // Predicated region
    $region33: #{residual_block_forward.4} parent=5 // pred_check
      _
    $region34: #{residual_block_forward.4} parent=5 // pred_check_branch
      %210 = sbr.rel (%p207) target = $region36
    $region35: #{residual_block_forward.4} parent=5 // pred_region
      %s211 = ssub.s32 %s12, 1
      %p212 = scmp.lt.s32.totalorder %s21, 1
      %s213 = scalar_select %p212, %s21, 1
      %s214 = smul.addr %s213, 32
      %s215 = smul.addr %s214, 4
      %s216 = scalar_lea.vmem %s0, %s215
      %p217 = pneg %p50
      %p218 = pneg %p47
      %p219 = pneg %p71
      %p220 = pneg %p68
      %p221 = pneg %p92
      %p222 = pneg %p89
      %p223 = pneg %p113
      %p224 = pneg %p110
      %p225 = pneg %p141
      %p226 = pneg %p138
      %s227 = smul.u32 8, %s22
      %p228 = scmp.lt.s32.totalorder %s21, 1
      %s229 = scalar_select %p228, %s21, 1
      %p230 = scmp.lt.s32.totalorder %s227, 15
      %s231 = scalar_select %p230, %s227, 15
      %s232 = smul.addr %s231, 2
      %s233 = smul.addr %s229, 32
      %s234 = sadd.s32 %s232, %s233
      %s235 = smul.addr %s234, 4
      %s236 = scalar_lea.vmem %s4, %s235
      %p237 = pneg %p169
      %p238 = pneg %p166
      %p239 = scmp.lt.s32.totalorder %s21, 1
      %s240 = scalar_select %p239, %s21, 1
      %p241 = scmp.lt.s32.totalorder %s22, 1
      %s242 = scalar_select %p241, %s22, 1
      %s243 = smul.addr %s240, 2
      %s244 = sadd.s32 %s242, %s243
      %s245 = smul.addr %s244, 2
      %s246 = scalar_lea.vmem %s5, %s245
      %p247 = scmp.lt.s32.totalorder %s21, 1
      %s248 = scalar_select %p247, %s21, 1
      %s249 = smul.addr %s248, 32
      %s250 = smul.addr %s249, 4
      %s251 = scalar_lea.vmem %s0, %s250
      %s252 = smul.u32 8, %s22
      %p253 = scmp.lt.s32.totalorder %s21, 1
      %s254 = scalar_select %p253, %s21, 1
      %p255 = scmp.lt.s32.totalorder %s252, 15
      %s256 = scalar_select %p255, %s252, 15
      %s257 = smul.addr %s256, 2
      %s258 = smul.addr %s254, 32
      %s259 = sadd.s32 %s257, %s258
      %s260 = smul.addr %s259, 4
      %s261 = scalar_lea.vmem %s4, %s260
      %s262 = smul.u32 8, %s22
      %p263 = scmp.lt.s32.totalorder %s21, 1
      %s264 = scalar_select %p263, %s21, 1
      %p265 = scmp.lt.s32.totalorder %s22, 1
      %s266 = scalar_select %p265, %s22, 1
      %s267 = smul.addr %s264, 2
      %s268 = sadd.s32 %s266, %s267
      %s269 = smul.addr %s268, 2
      %s270 = scalar_lea.vmem %s5, %s269
      %s272 = smul.u32 %s22, 8
      %v273 = vld [vmem:[%s1] sm:$0x1]
      %v274 = vld [vmem:[%s2] sm:$0x1]
      %s275 = ssub.s32 %s272, 1
      %p276 = scmp.gt.s32.totalorder %s275, 0
      %s277 = scalar_select %p276, %s275, 0
      %s278 = sadd.s32 %s272, 8
      %p279 = scmp.lt.s32.totalorder %s278, 15
      %s280 = scalar_select %p279, %s278, 15
      %s281 = smul.u32 %s277, 2
      %s282 = smul.addr %s281, 4
      %s283 = scalar_lea.vmem %s251, %s282
      %v284 = vld [vmem:[%s283] sm:$0xf]
      %v285 = vld [vmem:[%s283 + $0x4] sm:$0xf]
      %v286 = vunpack.c.l.bf16 %v284
      %v287 = vunpack.c.l.bf16 %v285
      %v289 = vlaneseq
      %v290 = vshrl.u32 %v289, 7
      %v291 = vsub.s32 0, %v290
      %v292 = vrot.slane %v273, %v291
      %v294 = vmul.f32 %v286, %v292
      %v295 = vmul.f32 %v287, %v292
      %v297 = vlaneseq
      %v298 = vshrl.u32 %v297, 7
      %v299 = vsub.s32 0, %v298
      %v300 = vrot.slane %v274, %v299
      %v302 = vadd.f32 %v294, %v300
      %v303 = vadd.f32 %v295, %v300
      %v304 = vmax.f32 %v302, 0.0
      %v305 = vmax.f32 %v303, 0.0
      %p306 = scmp.gt.s32.totalorder %s272, 0
      %s307 = scalar_select %p306, 1.0, 0.0
      %v308 = vstv %s307
      %v309 = vmul.f32 %v304, %v308
      %v310 = vmul.f32 %v305, %v308
      %s311 = smul.u32 %s272, 2
      %s312 = smul.addr %s311, 4
      %s313 = scalar_lea.vmem %s251, %s312
      %v314 = vld [vmem:[%s313] sm:$0xf]
      %v315 = vld [vmem:[%s313 + $0x4] sm:$0xf]
      %v316 = vld [vmem:[%s313 + $0x8] sm:$0xf]
      %v317 = vld [vmem:[%s313 + $0xc] sm:$0xf]
      %v318 = vld [vmem:[%s313 + $0x10] sm:$0xf]
      %v319 = vld [vmem:[%s313 + $0x14] sm:$0xf]
      %v320 = vld [vmem:[%s313 + $0x18] sm:$0xf]
      %v321 = vld [vmem:[%s313 + $0x1c] sm:$0xf]
      %v322 = vld [vmem:[%s313 + $0x20] sm:$0xf]
      %v323 = vld [vmem:[%s313 + $0x24] sm:$0xf]
      %v324 = vld [vmem:[%s313 + $0x28] sm:$0xf]
      %v325 = vld [vmem:[%s313 + $0x2c] sm:$0xf]
      %v326 = vld [vmem:[%s313 + $0x30] sm:$0xf]
      %v327 = vld [vmem:[%s313 + $0x34] sm:$0xf]
      %v328 = vld [vmem:[%s313 + $0x38] sm:$0xf]
      %v329 = vld [vmem:[%s313 + $0x3c] sm:$0xf]
      %v330 = vunpack.c.l.bf16 %v314
      %v331 = vunpack.c.l.bf16 %v315
      %v332 = vunpack.c.l.bf16 %v316
      %v333 = vunpack.c.l.bf16 %v317
      %v334 = vunpack.c.l.bf16 %v318
      %v335 = vunpack.c.l.bf16 %v319
      %v336 = vunpack.c.l.bf16 %v320
      %v337 = vunpack.c.l.bf16 %v321
      %v338 = vunpack.c.l.bf16 %v322
      %v339 = vunpack.c.l.bf16 %v323
      %v340 = vunpack.c.l.bf16 %v324
      %v341 = vunpack.c.l.bf16 %v325
      %v342 = vunpack.c.l.bf16 %v326
      %v343 = vunpack.c.l.bf16 %v327
      %v344 = vunpack.c.l.bf16 %v328
      %v345 = vunpack.c.l.bf16 %v329
      %v346 = vmul.f32 %v330, %v292
      %v347 = vmul.f32 %v331, %v292
      %v348 = vmul.f32 %v332, %v292
      %v349 = vmul.f32 %v333, %v292
      %v350 = vmul.f32 %v334, %v292
      %v351 = vmul.f32 %v335, %v292
      %v352 = vmul.f32 %v336, %v292
      %v353 = vmul.f32 %v337, %v292
      %v354 = vmul.f32 %v338, %v292
      %v355 = vmul.f32 %v339, %v292
      %v356 = vmul.f32 %v340, %v292
      %v357 = vmul.f32 %v341, %v292
      %v358 = vmul.f32 %v342, %v292
      %v359 = vmul.f32 %v343, %v292
      %v360 = vmul.f32 %v344, %v292
      %v361 = vmul.f32 %v345, %v292
      %v362 = vadd.f32 %v346, %v300
      %v363 = vadd.f32 %v347, %v300
      %v364 = vadd.f32 %v348, %v300
      %v365 = vadd.f32 %v349, %v300
      %v366 = vadd.f32 %v350, %v300
      %v367 = vadd.f32 %v351, %v300
      %v368 = vadd.f32 %v352, %v300
      %v369 = vadd.f32 %v353, %v300
      %v370 = vadd.f32 %v354, %v300
      %v371 = vadd.f32 %v355, %v300
      %v372 = vadd.f32 %v356, %v300
      %v373 = vadd.f32 %v357, %v300
      %v374 = vadd.f32 %v358, %v300
      %v375 = vadd.f32 %v359, %v300
      %v376 = vadd.f32 %v360, %v300
      %v377 = vadd.f32 %v361, %v300
      %v378 = vmax.f32 %v362, 0.0
      %v379 = vmax.f32 %v363, 0.0
      %v380 = vmax.f32 %v364, 0.0
      %v381 = vmax.f32 %v365, 0.0
      %v382 = vmax.f32 %v366, 0.0
      %v383 = vmax.f32 %v367, 0.0
      %v384 = vmax.f32 %v368, 0.0
      %v385 = vmax.f32 %v369, 0.0
      %v386 = vmax.f32 %v370, 0.0
      %v387 = vmax.f32 %v371, 0.0
      %v388 = vmax.f32 %v372, 0.0
      %v389 = vmax.f32 %v373, 0.0
      %v390 = vmax.f32 %v374, 0.0
      %v391 = vmax.f32 %v375, 0.0
      %v392 = vmax.f32 %v376, 0.0
      %v393 = vmax.f32 %v377, 0.0
      %s394 = smul.u32 %s280, 2
      %s395 = smul.addr %s394, 4
      %s396 = scalar_lea.vmem %s251, %s395
      %v397 = vld [vmem:[%s396] sm:$0xf]
      %v398 = vld [vmem:[%s396 + $0x4] sm:$0xf]
      %v399 = vunpack.c.l.bf16 %v397
      %v400 = vunpack.c.l.bf16 %v398
      %v401 = vmul.f32 %v399, %v292
      %v402 = vmul.f32 %v400, %v292
      %v403 = vadd.f32 %v401, %v300
      %v404 = vadd.f32 %v402, %v300
      %v405 = vmax.f32 %v403, 0.0
      %v406 = vmax.f32 %v404, 0.0
      %p407 = scmp.lt.s32.totalorder %s278, 16
      %s408 = scalar_select %p407, 1.0, 0.0
      %v409 = vstv %s408
      %v410 = vmul.f32 %v405, %v409
      %v411 = vmul.f32 %v406, %v409
      %412 = vst [vmem:[#allocation2] sm:$0xf] 0
      %413 = vst [vmem:[#allocation2 + $0x4] sm:$0xf] 0
      %414 = vst [vmem:[#allocation2 + $0x8] sm:$0x1] 0
      %415 = vst [vmem:[#allocation2 + $0xc] sm:$0xf] 0
      %416 = vst [vmem:[#allocation2 + $0x10] sm:$0xf] 0
      %417 = vst [vmem:[#allocation2 + $0x14] sm:$0x1] 0
      %418 = vst [vmem:[#allocation2 + $0x18] sm:$0xf] 0
      %419 = vst [vmem:[#allocation2 + $0x1c] sm:$0xf] 0
      %420 = vst [vmem:[#allocation2 + $0x20] sm:$0x1] 0
      %421 = vst [vmem:[#allocation2 + $0x24] sm:$0xf] 0
      %422 = vst [vmem:[#allocation2 + $0x28] sm:$0xf] 0
      %423 = vst [vmem:[#allocation2 + $0x2c] sm:$0x1] 0
      %424 = vst [vmem:[#allocation2 + $0x30] sm:$0xf] 0
      %425 = vst [vmem:[#allocation2 + $0x34] sm:$0xf] 0
      %426 = vst [vmem:[#allocation2 + $0x38] sm:$0x1] 0
      %427 = vst [vmem:[#allocation2 + $0x3c] sm:$0xf] 0
      %428 = vst [vmem:[#allocation2 + $0x40] sm:$0xf] 0
      %429 = vst [vmem:[#allocation2 + $0x44] sm:$0x1] 0
      %430 = vst [vmem:[#allocation2 + $0x48] sm:$0xf] 0
      %431 = vst [vmem:[#allocation2 + $0x4c] sm:$0xf] 0
      %432 = vst [vmem:[#allocation2 + $0x50] sm:$0x1] 0
      %433 = vst [vmem:[#allocation2 + $0x54] sm:$0xf] 0
      %434 = vst [vmem:[#allocation2 + $0x58] sm:$0xf] 0
      %435 = vst [vmem:[#allocation2 + $0x5c] sm:$0x1] 0
      %436 = vst [vmem:[#allocation2 + $0x60] sm:$0xf] 0
      %437 = vst [vmem:[#allocation2 + $0x64] sm:$0xf] 0
      %438 = vst [vmem:[#allocation2 + $0x68] sm:$0x1] 0
      %439 = vst [vmem:[#allocation2 + $0x6c] sm:$0xf] 0
      %440 = vst [vmem:[#allocation2 + $0x70] sm:$0xf] 0
      %441 = vst [vmem:[#allocation2 + $0x74] sm:$0x1] 0
      %v442 = vpack.c.bf16 %v310, %v309
      %v444 = vunpack.c.l.b16 %v442
      %v445 = vunpack.c.h.b16 %v442
      %v446 = vpack.c.b16 %v444, %v444
      %v447 = vpack.c.b16 %v445, %v445
      %vm448 = vsmask.f32 256
      %vm449 = vsmask.f32 4368
      %vm450 = vmor %vm448, %vm449
      %v452 = vshrl.u32 %v446, 16
      %v454 = vrot.slane %v452, 7
      %v455 = vshll.u32 %v446, 16
      %v457 = vor.u32 %v454, %v455
      %v458 = vrot.slane %v454, 4
      %v460 = vshrl.u32 %v447, 16
      %v462 = vrot.slane %v460, 7
      %v463 = vshll.u32 %v447, 16
      %v465 = vor.u32 %v462, %v463
      %v466 = vsel %vm450, %v458, %v465
      %v467 = vrot.slane %v462, 4
      %vm471 = vcmask 1043456
      %vm472 = vsmask.f32 7938
      %vm473 = vmand %vm471, %vm472
      %v474 = vld [vmem:[#allocation2] sm:$0xf]
      %v475 = vsel %vm473, %v457, %v474
      %476 = vst [vmem:[#allocation2] sm:$0xf] %v475
      %477 = vst [vmem:[#allocation2 + $0x4] sm:$0xf] %v466
      %vm478 = vcmask 1040384
      %vm479 = vmand %vm478, %vm448
      %v480 = vld [vmem:[#allocation2 + $0x8] sm:$0x1]
      %v481 = vsel %vm479, %v467, %v480
      %482 = vst [vmem:[#allocation2 + $0x8] sm:$0x1] %v481
      %v483 = vpack.c.bf16 %v379, %v378
      %v484 = vpack.c.bf16 %v381, %v380
      %v485 = vpack.c.bf16 %v383, %v382
      %v486 = vpack.c.bf16 %v385, %v384
      %v487 = vpack.c.bf16 %v387, %v386
      %v488 = vpack.c.bf16 %v389, %v388
      %v489 = vpack.c.bf16 %v391, %v390
      %v490 = vpack.c.bf16 %v393, %v392
      %v499 = vunpack.c.l.b16 %v483
      %v500 = vunpack.c.h.b16 %v483
      %v501 = vunpack.c.l.b16 %v484
      %v502 = vunpack.c.h.b16 %v484
      %v503 = vunpack.c.l.b16 %v485
      %v504 = vunpack.c.h.b16 %v485
      %v505 = vunpack.c.l.b16 %v486
      %v506 = vunpack.c.h.b16 %v486
      %v507 = vunpack.c.l.b16 %v487
      %v508 = vunpack.c.h.b16 %v487
      %v509 = vunpack.c.l.b16 %v488
      %v510 = vunpack.c.h.b16 %v488
      %v511 = vunpack.c.l.b16 %v489
      %v512 = vunpack.c.h.b16 %v489
      %v513 = vunpack.c.l.b16 %v490
      %v514 = vunpack.c.h.b16 %v490
      %v515 = vpack.c.b16 %v499, %v499
      %v516 = vpack.c.b16 %v500, %v500
      %v517 = vpack.c.b16 %v501, %v501
      %v518 = vpack.c.b16 %v502, %v502
      %v519 = vpack.c.b16 %v503, %v503
      %v520 = vpack.c.b16 %v504, %v504
      %v521 = vpack.c.b16 %v505, %v505
      %v522 = vpack.c.b16 %v506, %v506
      %v523 = vpack.c.b16 %v507, %v507
      %v524 = vpack.c.b16 %v508, %v508
      %v525 = vpack.c.b16 %v509, %v509
      %v526 = vpack.c.b16 %v510, %v510
      %v527 = vpack.c.b16 %v511, %v511
      %v528 = vpack.c.b16 %v512, %v512
      %v529 = vpack.c.b16 %v513, %v513
      %v530 = vpack.c.b16 %v514, %v514
      %v532 = vshrl.u32 %v515, 16
      %v534 = vrot.slane %v532, 7
      %v535 = vshll.u32 %v515, 16
      %v537 = vor.u32 %v534, %v535
      %v538 = vrot.slane %v534, 4
      %v540 = vshrl.u32 %v516, 16
      %v542 = vrot.slane %v540, 7
      %v543 = vshll.u32 %v516, 16
      %v545 = vor.u32 %v542, %v543
      %v546 = vsel %vm450, %v538, %v545
      %v547 = vrot.slane %v542, 4
      %v549 = vshrl.u32 %v517, 16
      %v551 = vrot.slane %v549, 7
      %v552 = vshll.u32 %v517, 16
      %v554 = vor.u32 %v551, %v552
      %v555 = vrot.slane %v551, 4
      %v557 = vshrl.u32 %v518, 16
      %v559 = vrot.slane %v557, 7
      %v560 = vshll.u32 %v518, 16
      %v562 = vor.u32 %v559, %v560
      %v563 = vsel %vm450, %v555, %v562
      %v564 = vrot.slane %v559, 4
      %v566 = vshrl.u32 %v519, 16
      %v568 = vrot.slane %v566, 7
      %v569 = vshll.u32 %v519, 16
      %v571 = vor.u32 %v568, %v569
      %v572 = vrot.slane %v568, 4
      %v574 = vshrl.u32 %v520, 16
      %v576 = vrot.slane %v574, 7
      %v577 = vshll.u32 %v520, 16
      %v579 = vor.u32 %v576, %v577
      %v580 = vsel %vm450, %v572, %v579
      %v581 = vrot.slane %v576, 4
      %v583 = vshrl.u32 %v521, 16
      %v585 = vrot.slane %v583, 7
      %v586 = vshll.u32 %v521, 16
      %v588 = vor.u32 %v585, %v586
      %v589 = vrot.slane %v585, 4
      %v591 = vshrl.u32 %v522, 16
      %v593 = vrot.slane %v591, 7
      %v594 = vshll.u32 %v522, 16
      %v596 = vor.u32 %v593, %v594
      %v597 = vsel %vm450, %v589, %v596
      %v598 = vrot.slane %v593, 4
      %v600 = vshrl.u32 %v523, 16
      %v602 = vrot.slane %v600, 7
      %v603 = vshll.u32 %v523, 16
      %v605 = vor.u32 %v602, %v603
      %v606 = vrot.slane %v602, 4
      %v608 = vshrl.u32 %v524, 16
      %v610 = vrot.slane %v608, 7
      %v611 = vshll.u32 %v524, 16
      %v613 = vor.u32 %v610, %v611
      %v614 = vsel %vm450, %v606, %v613
      %v615 = vrot.slane %v610, 4
      %v617 = vshrl.u32 %v525, 16
      %v619 = vrot.slane %v617, 7
      %v620 = vshll.u32 %v525, 16
      %v622 = vor.u32 %v619, %v620
      %v623 = vrot.slane %v619, 4
      %v625 = vshrl.u32 %v526, 16
      %v627 = vrot.slane %v625, 7
      %v628 = vshll.u32 %v526, 16
      %v630 = vor.u32 %v627, %v628
      %v631 = vsel %vm450, %v623, %v630
      %v632 = vrot.slane %v627, 4
      %v634 = vshrl.u32 %v527, 16
      %v636 = vrot.slane %v634, 7
      %v637 = vshll.u32 %v527, 16
      %v639 = vor.u32 %v636, %v637
      %v640 = vrot.slane %v636, 4
      %v642 = vshrl.u32 %v528, 16
      %v644 = vrot.slane %v642, 7
      %v645 = vshll.u32 %v528, 16
      %v647 = vor.u32 %v644, %v645
      %v648 = vsel %vm450, %v640, %v647
      %v649 = vrot.slane %v644, 4
      %v651 = vshrl.u32 %v529, 16
      %v653 = vrot.slane %v651, 7
      %v654 = vshll.u32 %v529, 16
      %v656 = vor.u32 %v653, %v654
      %v657 = vrot.slane %v653, 4
      %v659 = vshrl.u32 %v530, 16
      %v661 = vrot.slane %v659, 7
      %v662 = vshll.u32 %v530, 16
      %v664 = vor.u32 %v661, %v662
      %v665 = vsel %vm450, %v657, %v664
      %v666 = vrot.slane %v661, 4
      %s691 = scalar_lea.vmem [#allocation2], 12
      %v692 = vld [vmem:[%s691] sm:$0xf]
      %v693 = vsel %vm473, %v537, %v692
      %694 = vst [vmem:[%s691] sm:$0xf] %v693
      %695 = vst [vmem:[%s691 + $0x4] sm:$0xf] %v546
      %v696 = vld [vmem:[%s691 + $0x8] sm:$0x1]
      %v697 = vsel %vm479, %v547, %v696
      %698 = vst [vmem:[%s691 + $0x8] sm:$0x1] %v697
      %v699 = vld [vmem:[%s691 + $0xc] sm:$0xf]
      %v700 = vsel %vm473, %v554, %v699
      %701 = vst [vmem:[%s691 + $0xc] sm:$0xf] %v700
      %702 = vst [vmem:[%s691 + $0x10] sm:$0xf] %v563
      %v703 = vld [vmem:[%s691 + $0x14] sm:$0x1]
      %v704 = vsel %vm479, %v564, %v703
      %705 = vst [vmem:[%s691 + $0x14] sm:$0x1] %v704
      %v706 = vld [vmem:[%s691 + $0x18] sm:$0xf]
      %v707 = vsel %vm473, %v571, %v706
      %708 = vst [vmem:[%s691 + $0x18] sm:$0xf] %v707
      %709 = vst [vmem:[%s691 + $0x1c] sm:$0xf] %v580
      %v710 = vld [vmem:[%s691 + $0x20] sm:$0x1]
      %v711 = vsel %vm479, %v581, %v710
      %712 = vst [vmem:[%s691 + $0x20] sm:$0x1] %v711
      %v713 = vld [vmem:[%s691 + $0x24] sm:$0xf]
      %v714 = vsel %vm473, %v588, %v713
      %715 = vst [vmem:[%s691 + $0x24] sm:$0xf] %v714
      %716 = vst [vmem:[%s691 + $0x28] sm:$0xf] %v597
      %v717 = vld [vmem:[%s691 + $0x2c] sm:$0x1]
      %v718 = vsel %vm479, %v598, %v717
      %719 = vst [vmem:[%s691 + $0x2c] sm:$0x1] %v718
      %v720 = vld [vmem:[%s691 + $0x30] sm:$0xf]
      %v721 = vsel %vm473, %v605, %v720
      %722 = vst [vmem:[%s691 + $0x30] sm:$0xf] %v721
      %723 = vst [vmem:[%s691 + $0x34] sm:$0xf] %v614
      %v724 = vld [vmem:[%s691 + $0x38] sm:$0x1]
      %v725 = vsel %vm479, %v615, %v724
      %726 = vst [vmem:[%s691 + $0x38] sm:$0x1] %v725
      %v727 = vld [vmem:[%s691 + $0x3c] sm:$0xf]
      %v728 = vsel %vm473, %v622, %v727
      %729 = vst [vmem:[%s691 + $0x3c] sm:$0xf] %v728
      %730 = vst [vmem:[%s691 + $0x40] sm:$0xf] %v631
      %v731 = vld [vmem:[%s691 + $0x44] sm:$0x1]
      %v732 = vsel %vm479, %v632, %v731
      %733 = vst [vmem:[%s691 + $0x44] sm:$0x1] %v732
      %v734 = vld [vmem:[%s691 + $0x48] sm:$0xf]
      %v735 = vsel %vm473, %v639, %v734
      %736 = vst [vmem:[%s691 + $0x48] sm:$0xf] %v735
      %737 = vst [vmem:[%s691 + $0x4c] sm:$0xf] %v648
      %v738 = vld [vmem:[%s691 + $0x50] sm:$0x1]
      %v739 = vsel %vm479, %v649, %v738
      %740 = vst [vmem:[%s691 + $0x50] sm:$0x1] %v739
      %v741 = vld [vmem:[%s691 + $0x54] sm:$0xf]
      %v742 = vsel %vm473, %v656, %v741
      %743 = vst [vmem:[%s691 + $0x54] sm:$0xf] %v742
      %744 = vst [vmem:[%s691 + $0x58] sm:$0xf] %v665
      %v745 = vld [vmem:[%s691 + $0x5c] sm:$0x1]
      %v746 = vsel %vm479, %v666, %v745
      %747 = vst [vmem:[%s691 + $0x5c] sm:$0x1] %v746
      %v748 = vpack.c.bf16 %v411, %v410
      %v750 = vunpack.c.l.b16 %v748
      %v751 = vunpack.c.h.b16 %v748
      %v752 = vpack.c.b16 %v750, %v750
      %v753 = vpack.c.b16 %v751, %v751
      %v755 = vshrl.u32 %v752, 16
      %v757 = vrot.slane %v755, 7
      %v758 = vshll.u32 %v752, 16
      %v760 = vor.u32 %v757, %v758
      %v761 = vrot.slane %v757, 4
      %v763 = vshrl.u32 %v753, 16
      %v765 = vrot.slane %v763, 7
      %v766 = vshll.u32 %v753, 16
      %v768 = vor.u32 %v765, %v766
      %v769 = vsel %vm450, %v761, %v768
      %v770 = vrot.slane %v765, 4
      %s774 = scalar_lea.vmem [#allocation2], 108
      %v775 = vld [vmem:[%s774] sm:$0xf]
      %v776 = vsel %vm473, %v760, %v775
      %777 = vst [vmem:[%s774] sm:$0xf] %v776
      %778 = vst [vmem:[%s774 + $0x4] sm:$0xf] %v769
      %v779 = vld [vmem:[%s774 + $0x8] sm:$0x1]
      %v780 = vsel %vm479, %v770, %v779
      %781 = vst [vmem:[%s774 + $0x8] sm:$0x1] %v780
      %v782 = vld [vmem:[#allocation2] sm:$0xf]
      %v783 = vld [vmem:[#allocation2 + $0x4] sm:$0xf]
      %v784 = vld [vmem:[#allocation2 + $0xc] sm:$0xf]
      %v785 = vld [vmem:[#allocation2 + $0x10] sm:$0xf]
      %v786 = vld [vmem:[#allocation2 + $0x18] sm:$0xf]
      %v787 = vld [vmem:[#allocation2 + $0x1c] sm:$0xf]
      %v788 = vld [vmem:[#allocation2 + $0x24] sm:$0xf]
      %v789 = vld [vmem:[#allocation2 + $0x28] sm:$0xf]
      %v790 = vld [vmem:[#allocation2 + $0x30] sm:$0xf]
      %v791 = vld [vmem:[#allocation2 + $0x34] sm:$0xf]
      %v792 = vld [vmem:[#allocation2 + $0x3c] sm:$0xf]
      %v793 = vld [vmem:[#allocation2 + $0x40] sm:$0xf]
      %v794 = vld [vmem:[#allocation2 + $0x48] sm:$0xf]
      %v795 = vld [vmem:[#allocation2 + $0x4c] sm:$0xf]
      %v796 = vld [vmem:[#allocation2 + $0x54] sm:$0xf]
      %v797 = vld [vmem:[#allocation2 + $0x58] sm:$0xf]
      %v798 = vld [vmem:[%s3] sm:$0xf]
      %v799 = vld [vmem:[%s3 + $0x4] sm:$0xf]
      %v800 = vld [vmem:[%s3 + $0x8] sm:$0xf]
      %v801 = vld [vmem:[%s3 + $0xc] sm:$0xf]
      %v802 = vld [vmem:[%s3 + $0x10] sm:$0xf]
      %v803 = vld [vmem:[%s3 + $0x14] sm:$0xf]
      %v804 = vld [vmem:[%s3 + $0x18] sm:$0xf]
      %v805 = vld [vmem:[%s3 + $0x1c] sm:$0xf]
      %v806 = vld [vmem:[%s3 + $0x20] sm:$0xf]
      %v807 = vld [vmem:[%s3 + $0x24] sm:$0xf]
      %v808 = vld [vmem:[%s3 + $0x28] sm:$0xf]
      %v809 = vld [vmem:[%s3 + $0x2c] sm:$0xf]
      %v810 = vld [vmem:[%s3 + $0x30] sm:$0xf]
      %v811 = vld [vmem:[%s3 + $0x34] sm:$0xf]
      %v812 = vld [vmem:[%s3 + $0x38] sm:$0xf]
      %v813 = vld [vmem:[%s3 + $0x3c] sm:$0xf]
      %v814 = vld [vmem:[#allocation2 + $0x8] sm:$0x1]
      %v815 = vld [vmem:[#allocation2 + $0x14] sm:$0x1]
      %v816 = vld [vmem:[#allocation2 + $0x20] sm:$0x1]
      %v817 = vld [vmem:[#allocation2 + $0x2c] sm:$0x1]
      %v818 = vld [vmem:[#allocation2 + $0x38] sm:$0x1]
      %v819 = vld [vmem:[#allocation2 + $0x44] sm:$0x1]
      %v820 = vld [vmem:[#allocation2 + $0x50] sm:$0x1]
      %v821 = vld [vmem:[#allocation2 + $0x5c] sm:$0x1]
      %vm822 = vsmask.f32 3328
      %vm823 = vsmask.f32 7440
      %vm824 = vmor %vm822, %vm823
      %v826 = vshrl.u32 %v782, 16
      %v828 = vrot.slane %v826, 4
      %v829 = vshll.u32 %v782, 16
      %v831 = vrot.slane %v829, 5
      %v832 = vor.u32 %v828, %v831
      %v833 = vrot.slane %v832, 4
      %v835 = vshll.u32 %v783, 16
      %v837 = vrot.slane %v835, 5
      %v838 = vsel %vm824, %v833, %v837
      %v839 = vshrl.u32 %v783, 16
      %v841 = vrot.slane %v839, 4
      %v842 = vor.u32 %v841, %v837
      %v843 = vrot.slane %v842, 4
      %v845 = vshll.u32 %v814, 16
      %v847 = vrot.slane %v845, 5
      %v848 = vsel %vm824, %v843, %v847
      %v850 = vshrl.u32 %v784, 16
      %v852 = vrot.slane %v850, 4
      %v853 = vshll.u32 %v784, 16
      %v855 = vrot.slane %v853, 5
      %v856 = vor.u32 %v852, %v855
      %v857 = vrot.slane %v856, 4
      %v859 = vshll.u32 %v785, 16
      %v861 = vrot.slane %v859, 5
      %v862 = vsel %vm824, %v857, %v861
      %v863 = vshrl.u32 %v785, 16
      %v865 = vrot.slane %v863, 4
      %v866 = vor.u32 %v865, %v861
      %v867 = vrot.slane %v866, 4
      %v869 = vshll.u32 %v815, 16
      %v871 = vrot.slane %v869, 5
      %v872 = vsel %vm824, %v867, %v871
      %v874 = vshrl.u32 %v786, 16
      %v876 = vrot.slane %v874, 4
      %v877 = vshll.u32 %v786, 16
      %v879 = vrot.slane %v877, 5
      %v880 = vor.u32 %v876, %v879
      %v881 = vrot.slane %v880, 4
      %v883 = vshll.u32 %v787, 16
      %v885 = vrot.slane %v883, 5
      %v886 = vsel %vm824, %v881, %v885
      %v887 = vshrl.u32 %v787, 16
      %v889 = vrot.slane %v887, 4
      %v890 = vor.u32 %v889, %v885
      %v891 = vrot.slane %v890, 4
      %v893 = vshll.u32 %v816, 16
      %v895 = vrot.slane %v893, 5
      %v896 = vsel %vm824, %v891, %v895
      %v898 = vshrl.u32 %v788, 16
      %v900 = vrot.slane %v898, 4
      %v901 = vshll.u32 %v788, 16
      %v903 = vrot.slane %v901, 5
      %v904 = vor.u32 %v900, %v903
      %v905 = vrot.slane %v904, 4
      %v907 = vshll.u32 %v789, 16
      %v909 = vrot.slane %v907, 5
      %v910 = vsel %vm824, %v905, %v909
      %v911 = vshrl.u32 %v789, 16
      %v913 = vrot.slane %v911, 4
      %v914 = vor.u32 %v913, %v909
      %v915 = vrot.slane %v914, 4
      %v917 = vshll.u32 %v817, 16
      %v919 = vrot.slane %v917, 5
      %v920 = vsel %vm824, %v915, %v919
      %v922 = vshrl.u32 %v790, 16
      %v924 = vrot.slane %v922, 4
      %v925 = vshll.u32 %v790, 16
      %v927 = vrot.slane %v925, 5
      %v928 = vor.u32 %v924, %v927
      %v929 = vrot.slane %v928, 4
      %v931 = vshll.u32 %v791, 16
      %v933 = vrot.slane %v931, 5
      %v934 = vsel %vm824, %v929, %v933
      %v935 = vshrl.u32 %v791, 16
      %v937 = vrot.slane %v935, 4
      %v938 = vor.u32 %v937, %v933
      %v939 = vrot.slane %v938, 4
      %v941 = vshll.u32 %v818, 16
      %v943 = vrot.slane %v941, 5
      %v944 = vsel %vm824, %v939, %v943
      %v946 = vshrl.u32 %v792, 16
      %v948 = vrot.slane %v946, 4
      %v949 = vshll.u32 %v792, 16
      %v951 = vrot.slane %v949, 5
      %v952 = vor.u32 %v948, %v951
      %v953 = vrot.slane %v952, 4
      %v955 = vshll.u32 %v793, 16
      %v957 = vrot.slane %v955, 5
      %v958 = vsel %vm824, %v953, %v957
      %v959 = vshrl.u32 %v793, 16
      %v961 = vrot.slane %v959, 4
      %v962 = vor.u32 %v961, %v957
      %v963 = vrot.slane %v962, 4
      %v965 = vshll.u32 %v819, 16
      %v967 = vrot.slane %v965, 5
      %v968 = vsel %vm824, %v963, %v967
      %v970 = vshrl.u32 %v794, 16
      %v972 = vrot.slane %v970, 4
      %v973 = vshll.u32 %v794, 16
      %v975 = vrot.slane %v973, 5
      %v976 = vor.u32 %v972, %v975
      %v977 = vrot.slane %v976, 4
      %v979 = vshll.u32 %v795, 16
      %v981 = vrot.slane %v979, 5
      %v982 = vsel %vm824, %v977, %v981
      %v983 = vshrl.u32 %v795, 16
      %v985 = vrot.slane %v983, 4
      %v986 = vor.u32 %v985, %v981
      %v987 = vrot.slane %v986, 4
      %v989 = vshll.u32 %v820, 16
      %v991 = vrot.slane %v989, 5
      %v992 = vsel %vm824, %v987, %v991
      %v994 = vshrl.u32 %v796, 16
      %v996 = vrot.slane %v994, 4
      %v997 = vshll.u32 %v796, 16
      %v999 = vrot.slane %v997, 5
      %v1000 = vor.u32 %v996, %v999
      %v1001 = vrot.slane %v1000, 4
      %v1003 = vshll.u32 %v797, 16
      %v1005 = vrot.slane %v1003, 5
      %v1006 = vsel %vm824, %v1001, %v1005
      %v1007 = vshrl.u32 %v797, 16
      %v1009 = vrot.slane %v1007, 4
      %v1010 = vor.u32 %v1009, %v1005
      %v1011 = vrot.slane %v1010, 4
      %v1013 = vshll.u32 %v821, 16
      %v1015 = vrot.slane %v1013, 5
      %v1016 = vsel %vm824, %v1011, %v1015
      %s1017 = scalar_lea.vmem %s3, 64
      %v1018 = vld [vmem:[%s1017] sm:$0xf]
      %v1019 = vld [vmem:[%s1017 + $0x4] sm:$0xf]
      %v1020 = vld [vmem:[%s1017 + $0x8] sm:$0xf]
      %v1021 = vld [vmem:[%s1017 + $0xc] sm:$0xf]
      %v1022 = vld [vmem:[%s1017 + $0x10] sm:$0xf]
      %v1023 = vld [vmem:[%s1017 + $0x14] sm:$0xf]
      %v1024 = vld [vmem:[%s1017 + $0x18] sm:$0xf]
      %v1025 = vld [vmem:[%s1017 + $0x1c] sm:$0xf]
      %v1026 = vld [vmem:[%s1017 + $0x20] sm:$0xf]
      %v1027 = vld [vmem:[%s1017 + $0x24] sm:$0xf]
      %v1028 = vld [vmem:[%s1017 + $0x28] sm:$0xf]
      %v1029 = vld [vmem:[%s1017 + $0x2c] sm:$0xf]
      %v1030 = vld [vmem:[%s1017 + $0x30] sm:$0xf]
      %v1031 = vld [vmem:[%s1017 + $0x34] sm:$0xf]
      %v1032 = vld [vmem:[%s1017 + $0x38] sm:$0xf]
      %v1033 = vld [vmem:[%s1017 + $0x3c] sm:$0xf]
      %v1034 = vunpack.c.l.b16 %v838
      %v1035 = vunpack.c.l.b16 %v848
      %v1036 = vunpack.c.l.b16 %v862
      %v1037 = vunpack.c.l.b16 %v872
      %v1038 = vunpack.c.l.b16 %v886
      %v1039 = vunpack.c.l.b16 %v896
      %v1040 = vunpack.c.l.b16 %v910
      %v1041 = vunpack.c.l.b16 %v920
      %v1042 = vunpack.c.l.b16 %v934
      %v1043 = vunpack.c.l.b16 %v944
      %v1044 = vunpack.c.l.b16 %v958
      %v1045 = vunpack.c.l.b16 %v968
      %v1046 = vunpack.c.l.b16 %v982
      %v1047 = vunpack.c.l.b16 %v992
      %v1048 = vunpack.c.l.b16 %v1006
      %v1049 = vunpack.c.l.b16 %v1016
      %v1050 = vpack.c.b16 %v1035, %v1034
      %v1051 = vpack.c.b16 %v1037, %v1036
      %v1052 = vpack.c.b16 %v1039, %v1038
      %v1053 = vpack.c.b16 %v1041, %v1040
      %v1054 = vpack.c.b16 %v1043, %v1042
      %v1055 = vpack.c.b16 %v1045, %v1044
      %v1056 = vpack.c.b16 %v1047, %v1046
      %v1057 = vpack.c.b16 %v1049, %v1048
      %v1082 = vunpack.c.l.b16 %v1018
      %v1083 = vunpack.c.l.b16 %v1019
      %v1084 = vunpack.c.l.b16 %v1020
      %v1085 = vunpack.c.l.b16 %v1021
      %v1086 = vunpack.c.l.b16 %v1022
      %v1087 = vunpack.c.l.b16 %v1023
      %v1088 = vunpack.c.l.b16 %v1024
      %v1089 = vunpack.c.l.b16 %v1025
      %v1090 = vunpack.c.l.b16 %v1026
      %v1091 = vunpack.c.l.b16 %v1027
      %v1092 = vunpack.c.l.b16 %v1028
      %v1093 = vunpack.c.l.b16 %v1029
      %v1094 = vunpack.c.l.b16 %v1030
      %v1095 = vunpack.c.l.b16 %v1031
      %v1096 = vunpack.c.l.b16 %v1032
      %v1097 = vunpack.c.l.b16 %v1033
      %v1098 = vpack.c.b16 %v1083, %v1082
      %v1099 = vpack.c.b16 %v1085, %v1084
      %v1100 = vpack.c.b16 %v1087, %v1086
      %v1101 = vpack.c.b16 %v1089, %v1088
      %v1102 = vpack.c.b16 %v1091, %v1090
      %v1103 = vpack.c.b16 %v1093, %v1092
      %v1104 = vpack.c.b16 %v1095, %v1094
      %v1105 = vpack.c.b16 %v1097, %v1096
      %1114 = vmatprep.subr.bf16.mxu0 0
      %1115 = vmatpush1.bf16.msra.mxu0 %v1098
      %1116 = vmatprep.subr.bf16.mxu0 0
      %1117 = vmatpush1.bf16.msra.mxu0 %v1099
      %1118 = vmatprep.subr.bf16.mxu0 0
      %1119 = vmatpush1.bf16.msra.mxu0 %v1100
      %1120 = vmatprep.subr.bf16.mxu0 0
      %1121 = vmatpush1.bf16.msra.mxu0 %v1101
      %1122 = vmatprep.subr.bf16.mxu0 0
      %1123 = vmatpush1.bf16.msra.mxu0 %v1102
      %1124 = vmatprep.subr.bf16.mxu0 0
      %1125 = vmatpush1.bf16.msra.mxu0 %v1103
      %1126 = vmatprep.subr.bf16.mxu0 0
      %1127 = vmatpush1.bf16.msra.mxu0 %v1104
      %1128 = vmatprep.subr.bf16.mxu0 0
      %1129 = vmatpush1.bf16.msra.mxu0 %v1105
      %1130 = vmatprep.subr.bf16.mxu0 0
      %1131 = vmatpush1.bf16.msra.mxu0 0
      %1132 = vmatprep.subr.bf16.mxu0 0
      %1133 = vmatpush1.bf16.msra.mxu0 0
      %1134 = vmatprep.subr.bf16.mxu0 0
      %1135 = vmatpush1.bf16.msra.mxu0 0
      %1136 = vmatprep.subr.bf16.mxu0 0
      %1137 = vmatpush1.bf16.msra.mxu0 0
      %1138 = vmatprep.subr.bf16.mxu0 0
      %1139 = vmatpush1.bf16.msra.mxu0 0
      %1140 = vmatprep.subr.bf16.mxu0 0
      %1141 = vmatpush1.bf16.msra.mxu0 0
      %1142 = vmatprep.subr.bf16.mxu0 0
      %1143 = vmatpush1.bf16.msra.mxu0 0
      %1144 = vmatprep.subr.bf16.mxu0 0
      %1145 = vmatpush1.bf16.msra.mxu0 0
      %1146 = vmatprep.mubr.bf16.mxu0 0
      %1147 = vmatmul.mubr.bf16.gmra.mrb[0].mxu0 %v1050
      %v1148 = vpop.f32.mrb[0].mxu0
      %v1149 = vadd.f32 0.0, %v1148
      %v1150 = vpop.f32.mrb[0].mxu0
      %v1151 = vpop.f32.mrb[0].mxu0
      %v1152 = vadd.f32 0.0, %v1151
      %v1153 = vpop.f32.mrb[0].mxu0
      %1154 = vmatprep.mubr.bf16.mxu0 0
      %1155 = vmatmul.mubr.bf16.gmra.mrb[0].mxu0 %v1051
      %v1156 = vpop.f32.mrb[0].mxu0
      %v1157 = vadd.f32 0.0, %v1156
      %v1158 = vpop.f32.mrb[0].mxu0
      %v1159 = vpop.f32.mrb[0].mxu0
      %v1160 = vadd.f32 0.0, %v1159
      %v1161 = vpop.f32.mrb[0].mxu0
      %1162 = vmatprep.mubr.bf16.mxu0 0
      %1163 = vmatmul.mubr.bf16.gmra.mrb[0].mxu0 %v1052
      %v1164 = vpop.f32.mrb[0].mxu0
      %v1165 = vadd.f32 0.0, %v1164
      %v1166 = vpop.f32.mrb[0].mxu0
      %v1167 = vpop.f32.mrb[0].mxu0
      %v1168 = vadd.f32 0.0, %v1167
      %v1169 = vpop.f32.mrb[0].mxu0
      %1170 = vmatprep.mubr.bf16.mxu0 0
      %1171 = vmatmul.mubr.bf16.gmra.mrb[0].mxu0 %v1053
      %v1172 = vpop.f32.mrb[0].mxu0
      %v1173 = vadd.f32 0.0, %v1172
      %v1174 = vpop.f32.mrb[0].mxu0
      %v1175 = vpop.f32.mrb[0].mxu0
      %v1176 = vadd.f32 0.0, %v1175
      %v1177 = vpop.f32.mrb[0].mxu0
      %1178 = vmatprep.mubr.bf16.mxu0 0
      %1179 = vmatmul.mubr.bf16.gmra.mrb[0].mxu0 %v1054
      %v1180 = vpop.f32.mrb[0].mxu0
      %v1181 = vadd.f32 0.0, %v1180
      %v1182 = vpop.f32.mrb[0].mxu0
      %v1183 = vpop.f32.mrb[0].mxu0
      %v1184 = vadd.f32 0.0, %v1183
      %v1185 = vpop.f32.mrb[0].mxu0
      %1186 = vmatprep.mubr.bf16.mxu0 0
      %1187 = vmatmul.mubr.bf16.gmra.mrb[0].mxu0 %v1055
      %v1188 = vpop.f32.mrb[0].mxu0
      %v1189 = vadd.f32 0.0, %v1188
      %v1190 = vpop.f32.mrb[0].mxu0
      %v1191 = vpop.f32.mrb[0].mxu0
      %v1192 = vadd.f32 0.0, %v1191
      %v1193 = vpop.f32.mrb[0].mxu0
      %1194 = vmatprep.mubr.bf16.mxu0 0
      %1195 = vmatmul.mubr.bf16.gmra.mrb[0].mxu0 %v1056
      %v1196 = vpop.f32.mrb[0].mxu0
      %v1197 = vadd.f32 0.0, %v1196
      %v1198 = vpop.f32.mrb[0].mxu0
      %v1199 = vpop.f32.mrb[0].mxu0
      %v1200 = vadd.f32 0.0, %v1199
      %v1201 = vpop.f32.mrb[0].mxu0
      %1202 = vmatprep.mubr.bf16.mxu0 0
      %1203 = vmatmul.mubr.bf16.gmra.mrb[0].mxu0 %v1057
      %v1204 = vpop.f32.mrb[0].mxu0
      %v1205 = vadd.f32 0.0, %v1204
      %v1206 = vpop.f32.mrb[0].mxu0
      %v1207 = vpop.f32.mrb[0].mxu0
      %v1208 = vadd.f32 0.0, %v1207
      %v1209 = vpop.f32.mrb[0].mxu0
      %1210 = vdwg.mxu0
      %v1227 = vunpack.c.l.b16 %v782
      %v1228 = vunpack.c.l.b16 %v783
      %v1229 = vunpack.c.l.b16 %v784
      %v1230 = vunpack.c.l.b16 %v785
      %v1231 = vunpack.c.l.b16 %v786
      %v1232 = vunpack.c.l.b16 %v787
      %v1233 = vunpack.c.l.b16 %v788
      %v1234 = vunpack.c.l.b16 %v789
      %v1235 = vunpack.c.l.b16 %v790
      %v1236 = vunpack.c.l.b16 %v791
      %v1237 = vunpack.c.l.b16 %v792
      %v1238 = vunpack.c.l.b16 %v793
      %v1239 = vunpack.c.l.b16 %v794
      %v1240 = vunpack.c.l.b16 %v795
      %v1241 = vunpack.c.l.b16 %v796
      %v1242 = vunpack.c.l.b16 %v797
      %v1243 = vpack.c.b16 %v1228, %v1227
      %v1244 = vpack.c.b16 %v1230, %v1229
      %v1245 = vpack.c.b16 %v1232, %v1231
      %v1246 = vpack.c.b16 %v1234, %v1233
      %v1247 = vpack.c.b16 %v1236, %v1235
      %v1248 = vpack.c.b16 %v1238, %v1237
      %v1249 = vpack.c.b16 %v1240, %v1239
      %v1250 = vpack.c.b16 %v1242, %v1241
      %v1275 = vunpack.c.l.b16 %v798
      %v1276 = vunpack.c.l.b16 %v799
      %v1277 = vunpack.c.l.b16 %v800
      %v1278 = vunpack.c.l.b16 %v801
      %v1279 = vunpack.c.l.b16 %v802
      %v1280 = vunpack.c.l.b16 %v803
      %v1281 = vunpack.c.l.b16 %v804
      %v1282 = vunpack.c.l.b16 %v805
      %v1283 = vunpack.c.l.b16 %v806
      %v1284 = vunpack.c.l.b16 %v807
      %v1285 = vunpack.c.l.b16 %v808
      %v1286 = vunpack.c.l.b16 %v809
      %v1287 = vunpack.c.l.b16 %v810
      %v1288 = vunpack.c.l.b16 %v811
      %v1289 = vunpack.c.l.b16 %v812
      %v1290 = vunpack.c.l.b16 %v813
      %v1291 = vpack.c.b16 %v1276, %v1275
      %v1292 = vpack.c.b16 %v1278, %v1277
      %v1293 = vpack.c.b16 %v1280, %v1279
      %v1294 = vpack.c.b16 %v1282, %v1281
      %v1295 = vpack.c.b16 %v1284, %v1283
      %v1296 = vpack.c.b16 %v1286, %v1285
      %v1297 = vpack.c.b16 %v1288, %v1287
      %v1298 = vpack.c.b16 %v1290, %v1289
      %1307 = vmatprep.subr.bf16.mxu0 0
      %1308 = vmatpush1.bf16.msra.mxu0 %v1291
      %1309 = vmatprep.subr.bf16.mxu0 0
      %1310 = vmatpush1.bf16.msra.mxu0 %v1292
      %1311 = vmatprep.subr.bf16.mxu0 0
      %1312 = vmatpush1.bf16.msra.mxu0 %v1293
      %1313 = vmatprep.subr.bf16.mxu0 0
      %1314 = vmatpush1.bf16.msra.mxu0 %v1294
      %1315 = vmatprep.subr.bf16.mxu0 0
      %1316 = vmatpush1.bf16.msra.mxu0 %v1295
      %1317 = vmatprep.subr.bf16.mxu0 0
      %1318 = vmatpush1.bf16.msra.mxu0 %v1296
      %1319 = vmatprep.subr.bf16.mxu0 0
      %1320 = vmatpush1.bf16.msra.mxu0 %v1297
      %1321 = vmatprep.subr.bf16.mxu0 0
      %1322 = vmatpush1.bf16.msra.mxu0 %v1298
      %1323 = vmatprep.subr.bf16.mxu0 0
      %1324 = vmatpush1.bf16.msra.mxu0 0
      %1325 = vmatprep.subr.bf16.mxu0 0
      %1326 = vmatpush1.bf16.msra.mxu0 0
      %1327 = vmatprep.subr.bf16.mxu0 0
      %1328 = vmatpush1.bf16.msra.mxu0 0
      %1329 = vmatprep.subr.bf16.mxu0 0
      %1330 = vmatpush1.bf16.msra.mxu0 0
      %1331 = vmatprep.subr.bf16.mxu0 0
      %1332 = vmatpush1.bf16.msra.mxu0 0
      %1333 = vmatprep.subr.bf16.mxu0 0
      %1334 = vmatpush1.bf16.msra.mxu0 0
      %1335 = vmatprep.subr.bf16.mxu0 0
      %1336 = vmatpush1.bf16.msra.mxu0 0
      %1337 = vmatprep.subr.bf16.mxu0 0
      %1338 = vmatpush1.bf16.msra.mxu0 0
      %1339 = vmatprep.mubr.bf16.mxu0 0
      %1340 = vmatmul.mubr.bf16.gmra.mrb[0].mxu0 %v1243
      %v1341 = vpop.f32.mrb[0].mxu0
      %v1342 = vadd.f32 %v1149, %v1341
      %v1343 = vpop.f32.mrb[0].mxu0
      %v1344 = vpop.f32.mrb[0].mxu0
      %v1345 = vadd.f32 %v1152, %v1344
      %v1346 = vpop.f32.mrb[0].mxu0
      %1347 = vmatprep.mubr.bf16.mxu0 0
      %1348 = vmatmul.mubr.bf16.gmra.mrb[0].mxu0 %v1244
      %v1349 = vpop.f32.mrb[0].mxu0
      %v1350 = vadd.f32 %v1157, %v1349
      %v1351 = vpop.f32.mrb[0].mxu0
      %v1352 = vpop.f32.mrb[0].mxu0
      %v1353 = vadd.f32 %v1160, %v1352
      %v1354 = vpop.f32.mrb[0].mxu0
      %1355 = vmatprep.mubr.bf16.mxu0 0
      %1356 = vmatmul.mubr.bf16.gmra.mrb[0].mxu0 %v1245
      %v1357 = vpop.f32.mrb[0].mxu0
      %v1358 = vadd.f32 %v1165, %v1357
      %v1359 = vpop.f32.mrb[0].mxu0
      %v1360 = vpop.f32.mrb[0].mxu0
      %v1361 = vadd.f32 %v1168, %v1360
      %v1362 = vpop.f32.mrb[0].mxu0
      %1363 = vmatprep.mubr.bf16.mxu0 0
      %1364 = vmatmul.mubr.bf16.gmra.mrb[0].mxu0 %v1246
      %v1365 = vpop.f32.mrb[0].mxu0
      %v1366 = vadd.f32 %v1173, %v1365
      %v1367 = vpop.f32.mrb[0].mxu0
      %v1368 = vpop.f32.mrb[0].mxu0
      %v1369 = vadd.f32 %v1176, %v1368
      %v1370 = vpop.f32.mrb[0].mxu0
      %1371 = vmatprep.mubr.bf16.mxu0 0
      %1372 = vmatmul.mubr.bf16.gmra.mrb[0].mxu0 %v1247
      %v1373 = vpop.f32.mrb[0].mxu0
      %v1374 = vadd.f32 %v1181, %v1373
      %v1375 = vpop.f32.mrb[0].mxu0
      %v1376 = vpop.f32.mrb[0].mxu0
      %v1377 = vadd.f32 %v1184, %v1376
      %v1378 = vpop.f32.mrb[0].mxu0
      %1379 = vmatprep.mubr.bf16.mxu0 0
      %1380 = vmatmul.mubr.bf16.gmra.mrb[0].mxu0 %v1248
      %v1381 = vpop.f32.mrb[0].mxu0
      %v1382 = vadd.f32 %v1189, %v1381
      %v1383 = vpop.f32.mrb[0].mxu0
      %v1384 = vpop.f32.mrb[0].mxu0
      %v1385 = vadd.f32 %v1192, %v1384
      %v1386 = vpop.f32.mrb[0].mxu0
      %1387 = vmatprep.mubr.bf16.mxu0 0
      %1388 = vmatmul.mubr.bf16.gmra.mrb[0].mxu0 %v1249
      %v1389 = vpop.f32.mrb[0].mxu0
      %v1390 = vadd.f32 %v1197, %v1389
      %v1391 = vpop.f32.mrb[0].mxu0
      %v1392 = vpop.f32.mrb[0].mxu0
      %v1393 = vadd.f32 %v1200, %v1392
      %v1394 = vpop.f32.mrb[0].mxu0
      %1395 = vmatprep.mubr.bf16.mxu0 0
      %1396 = vmatmul.mubr.bf16.gmra.mrb[0].mxu0 %v1250
      %v1397 = vpop.f32.mrb[0].mxu0
      %v1398 = vadd.f32 %v1205, %v1397
      %v1399 = vpop.f32.mrb[0].mxu0
      %v1400 = vpop.f32.mrb[0].mxu0
      %v1401 = vadd.f32 %v1208, %v1400
      %v1402 = vpop.f32.mrb[0].mxu0
      %1403 = vdwg.mxu0
      %v1404 = vld [vmem:[#allocation2] sm:$0xe]
      %v1405 = vld [vmem:[#allocation2 + $0xc] sm:$0xe]
      %v1406 = vld [vmem:[#allocation2 + $0x18] sm:$0xe]
      %v1407 = vld [vmem:[#allocation2 + $0x24] sm:$0xe]
      %v1408 = vld [vmem:[#allocation2 + $0x30] sm:$0xe]
      %v1409 = vld [vmem:[#allocation2 + $0x3c] sm:$0xe]
      %v1410 = vld [vmem:[#allocation2 + $0x48] sm:$0xe]
      %v1411 = vld [vmem:[#allocation2 + $0x54] sm:$0xe]
      %vm1428 = vcmask 1042432
      %vm1429 = vcmask 1046532
      %vm1430 = vmor %vm1428, %vm1429
      %v1431 = vrot.slane %v1404, 5
      %v1432 = vrot.slane %v1431, 4
      %v1433 = vrot.slane %v783, 5
      %v1434 = vsel %vm1430, %v1432, %v1433
      %v1435 = vrot.slane %v1433, 4
      %v1436 = vrot.slane %v814, 5
      %v1437 = vsel %vm1430, %v1435, %v1436
      %v1438 = vrot.slane %v1405, 5
      %v1439 = vrot.slane %v1438, 4
      %v1440 = vrot.slane %v785, 5
      %v1441 = vsel %vm1430, %v1439, %v1440
      %v1442 = vrot.slane %v1440, 4
      %v1443 = vrot.slane %v815, 5
      %v1444 = vsel %vm1430, %v1442, %v1443
      %v1445 = vrot.slane %v1406, 5
      %v1446 = vrot.slane %v1445, 4
      %v1447 = vrot.slane %v787, 5
      %v1448 = vsel %vm1430, %v1446, %v1447
      %v1449 = vrot.slane %v1447, 4
      %v1450 = vrot.slane %v816, 5
      %v1451 = vsel %vm1430, %v1449, %v1450
      %v1452 = vrot.slane %v1407, 5
      %v1453 = vrot.slane %v1452, 4
      %v1454 = vrot.slane %v789, 5
      %v1455 = vsel %vm1430, %v1453, %v1454
      %v1456 = vrot.slane %v1454, 4
      %v1457 = vrot.slane %v817, 5
      %v1458 = vsel %vm1430, %v1456, %v1457
      %v1459 = vrot.slane %v1408, 5
      %v1460 = vrot.slane %v1459, 4
      %v1461 = vrot.slane %v791, 5
      %v1462 = vsel %vm1430, %v1460, %v1461
      %v1463 = vrot.slane %v1461, 4
      %v1464 = vrot.slane %v818, 5
      %v1465 = vsel %vm1430, %v1463, %v1464
      %v1466 = vrot.slane %v1409, 5
      %v1467 = vrot.slane %v1466, 4
      %v1468 = vrot.slane %v793, 5
      %v1469 = vsel %vm1430, %v1467, %v1468
      %v1470 = vrot.slane %v1468, 4
      %v1471 = vrot.slane %v819, 5
      %v1472 = vsel %vm1430, %v1470, %v1471
      %v1473 = vrot.slane %v1410, 5
      %v1474 = vrot.slane %v1473, 4
      %v1475 = vrot.slane %v795, 5
      %v1476 = vsel %vm1430, %v1474, %v1475
      %v1477 = vrot.slane %v1475, 4
      %v1478 = vrot.slane %v820, 5
      %v1479 = vsel %vm1430, %v1477, %v1478
      %v1480 = vrot.slane %v1411, 5
      %v1481 = vrot.slane %v1480, 4
      %v1482 = vrot.slane %v797, 5
      %v1483 = vsel %vm1430, %v1481, %v1482
      %v1484 = vrot.slane %v1482, 4
      %v1485 = vrot.slane %v821, 5
      %v1486 = vsel %vm1430, %v1484, %v1485
      %s1487 = scalar_lea.vmem %s3, 128
      %v1488 = vld [vmem:[%s1487] sm:$0xf]
      %v1489 = vld [vmem:[%s1487 + $0x4] sm:$0xf]
      %v1490 = vld [vmem:[%s1487 + $0x8] sm:$0xf]
      %v1491 = vld [vmem:[%s1487 + $0xc] sm:$0xf]
      %v1492 = vld [vmem:[%s1487 + $0x10] sm:$0xf]
      %v1493 = vld [vmem:[%s1487 + $0x14] sm:$0xf]
      %v1494 = vld [vmem:[%s1487 + $0x18] sm:$0xf]
      %v1495 = vld [vmem:[%s1487 + $0x1c] sm:$0xf]
      %v1496 = vld [vmem:[%s1487 + $0x20] sm:$0xf]
      %v1497 = vld [vmem:[%s1487 + $0x24] sm:$0xf]
      %v1498 = vld [vmem:[%s1487 + $0x28] sm:$0xf]
      %v1499 = vld [vmem:[%s1487 + $0x2c] sm:$0xf]
      %v1500 = vld [vmem:[%s1487 + $0x30] sm:$0xf]
      %v1501 = vld [vmem:[%s1487 + $0x34] sm:$0xf]
      %v1502 = vld [vmem:[%s1487 + $0x38] sm:$0xf]
      %v1503 = vld [vmem:[%s1487 + $0x3c] sm:$0xf]
      %v1504 = vunpack.c.l.b16 %v1434
      %v1505 = vunpack.c.l.b16 %v1437
      %v1506 = vunpack.c.l.b16 %v1441
      %v1507 = vunpack.c.l.b16 %v1444
      %v1508 = vunpack.c.l.b16 %v1448
      %v1509 = vunpack.c.l.b16 %v1451
      %v1510 = vunpack.c.l.b16 %v1455
      %v1511 = vunpack.c.l.b16 %v1458
      %v1512 = vunpack.c.l.b16 %v1462
      %v1513 = vunpack.c.l.b16 %v1465
      %v1514 = vunpack.c.l.b16 %v1469
      %v1515 = vunpack.c.l.b16 %v1472
      %v1516 = vunpack.c.l.b16 %v1476
      %v1517 = vunpack.c.l.b16 %v1479
      %v1518 = vunpack.c.l.b16 %v1483
      %v1519 = vunpack.c.l.b16 %v1486
      %v1520 = vpack.c.b16 %v1505, %v1504
      %v1521 = vpack.c.b16 %v1507, %v1506
      %v1522 = vpack.c.b16 %v1509, %v1508
      %v1523 = vpack.c.b16 %v1511, %v1510
      %v1524 = vpack.c.b16 %v1513, %v1512
      %v1525 = vpack.c.b16 %v1515, %v1514
      %v1526 = vpack.c.b16 %v1517, %v1516
      %v1527 = vpack.c.b16 %v1519, %v1518
      %v1552 = vunpack.c.l.b16 %v1488
      %v1553 = vunpack.c.l.b16 %v1489
      %v1554 = vunpack.c.l.b16 %v1490
      %v1555 = vunpack.c.l.b16 %v1491
      %v1556 = vunpack.c.l.b16 %v1492
      %v1557 = vunpack.c.l.b16 %v1493
      %v1558 = vunpack.c.l.b16 %v1494
      %v1559 = vunpack.c.l.b16 %v1495
      %v1560 = vunpack.c.l.b16 %v1496
      %v1561 = vunpack.c.l.b16 %v1497
      %v1562 = vunpack.c.l.b16 %v1498
      %v1563 = vunpack.c.l.b16 %v1499
      %v1564 = vunpack.c.l.b16 %v1500
      %v1565 = vunpack.c.l.b16 %v1501
      %v1566 = vunpack.c.l.b16 %v1502
      %v1567 = vunpack.c.l.b16 %v1503
      %v1568 = vpack.c.b16 %v1553, %v1552
      %v1569 = vpack.c.b16 %v1555, %v1554
      %v1570 = vpack.c.b16 %v1557, %v1556
      %v1571 = vpack.c.b16 %v1559, %v1558
      %v1572 = vpack.c.b16 %v1561, %v1560
      %v1573 = vpack.c.b16 %v1563, %v1562
      %v1574 = vpack.c.b16 %v1565, %v1564
      %v1575 = vpack.c.b16 %v1567, %v1566
      %1584 = vmatprep.subr.bf16.mxu0 0
      %1585 = vmatpush1.bf16.msra.mxu0 %v1568
      %1586 = vmatprep.subr.bf16.mxu0 0
      %1587 = vmatpush1.bf16.msra.mxu0 %v1569
      %1588 = vmatprep.subr.bf16.mxu0 0
      %1589 = vmatpush1.bf16.msra.mxu0 %v1570
      %1590 = vmatprep.subr.bf16.mxu0 0
      %1591 = vmatpush1.bf16.msra.mxu0 %v1571
      %1592 = vmatprep.subr.bf16.mxu0 0
      %1593 = vmatpush1.bf16.msra.mxu0 %v1572
      %1594 = vmatprep.subr.bf16.mxu0 0
      %1595 = vmatpush1.bf16.msra.mxu0 %v1573
      %1596 = vmatprep.subr.bf16.mxu0 0
      %1597 = vmatpush1.bf16.msra.mxu0 %v1574
      %1598 = vmatprep.subr.bf16.mxu0 0
      %1599 = vmatpush1.bf16.msra.mxu0 %v1575
      %1600 = vmatprep.subr.bf16.mxu0 0
      %1601 = vmatpush1.bf16.msra.mxu0 0
      %1602 = vmatprep.subr.bf16.mxu0 0
      %1603 = vmatpush1.bf16.msra.mxu0 0
      %1604 = vmatprep.subr.bf16.mxu0 0
      %1605 = vmatpush1.bf16.msra.mxu0 0
      %1606 = vmatprep.subr.bf16.mxu0 0
      %1607 = vmatpush1.bf16.msra.mxu0 0
      %1608 = vmatprep.subr.bf16.mxu0 0
      %1609 = vmatpush1.bf16.msra.mxu0 0
      %1610 = vmatprep.subr.bf16.mxu0 0
      %1611 = vmatpush1.bf16.msra.mxu0 0
      %1612 = vmatprep.subr.bf16.mxu0 0
      %1613 = vmatpush1.bf16.msra.mxu0 0
      %1614 = vmatprep.subr.bf16.mxu0 0
      %1615 = vmatpush1.bf16.msra.mxu0 0
      %1616 = vmatprep.mubr.bf16.mxu0 0
      %1617 = vmatmul.mubr.bf16.gmra.mrb[0].mxu0 %v1520
      %v1618 = vpop.f32.mrb[0].mxu0
      %v1619 = vadd.f32 0.0, %v1618
      %v1620 = vpop.f32.mrb[0].mxu0
      %v1621 = vpop.f32.mrb[0].mxu0
      %v1622 = vadd.f32 0.0, %v1621
      %v1623 = vpop.f32.mrb[0].mxu0
      %1624 = vmatprep.mubr.bf16.mxu0 0
      %1625 = vmatmul.mubr.bf16.gmra.mrb[0].mxu0 %v1521
      %v1626 = vpop.f32.mrb[0].mxu0
      %v1627 = vadd.f32 0.0, %v1626
      %v1628 = vpop.f32.mrb[0].mxu0
      %v1629 = vpop.f32.mrb[0].mxu0
      %v1630 = vadd.f32 0.0, %v1629
      %v1631 = vpop.f32.mrb[0].mxu0
      %1632 = vmatprep.mubr.bf16.mxu0 0
      %1633 = vmatmul.mubr.bf16.gmra.mrb[0].mxu0 %v1522
      %v1634 = vpop.f32.mrb[0].mxu0
      %v1635 = vadd.f32 0.0, %v1634
      %v1636 = vpop.f32.mrb[0].mxu0
      %v1637 = vpop.f32.mrb[0].mxu0
      %v1638 = vadd.f32 0.0, %v1637
      %v1639 = vpop.f32.mrb[0].mxu0
      %1640 = vmatprep.mubr.bf16.mxu0 0
      %1641 = vmatmul.mubr.bf16.gmra.mrb[0].mxu0 %v1523
      %v1642 = vpop.f32.mrb[0].mxu0
      %v1643 = vadd.f32 0.0, %v1642
      %v1644 = vpop.f32.mrb[0].mxu0
      %v1645 = vpop.f32.mrb[0].mxu0
      %v1646 = vadd.f32 0.0, %v1645
      %v1647 = vpop.f32.mrb[0].mxu0
      %1648 = vmatprep.mubr.bf16.mxu0 0
      %1649 = vmatmul.mubr.bf16.gmra.mrb[0].mxu0 %v1524
      %v1650 = vpop.f32.mrb[0].mxu0
      %v1651 = vadd.f32 0.0, %v1650
      %v1652 = vpop.f32.mrb[0].mxu0
      %v1653 = vpop.f32.mrb[0].mxu0
      %v1654 = vadd.f32 0.0, %v1653
      %v1655 = vpop.f32.mrb[0].mxu0
      %1656 = vmatprep.mubr.bf16.mxu0 0
      %1657 = vmatmul.mubr.bf16.gmra.mrb[0].mxu0 %v1525
      %v1658 = vpop.f32.mrb[0].mxu0
      %v1659 = vadd.f32 0.0, %v1658
      %v1660 = vpop.f32.mrb[0].mxu0
      %v1661 = vpop.f32.mrb[0].mxu0
      %v1662 = vadd.f32 0.0, %v1661
      %v1663 = vpop.f32.mrb[0].mxu0
      %1664 = vmatprep.mubr.bf16.mxu0 0
      %1665 = vmatmul.mubr.bf16.gmra.mrb[0].mxu0 %v1526
      %v1666 = vpop.f32.mrb[0].mxu0
      %v1667 = vadd.f32 0.0, %v1666
      %v1668 = vpop.f32.mrb[0].mxu0
      %v1669 = vpop.f32.mrb[0].mxu0
      %v1670 = vadd.f32 0.0, %v1669
      %v1671 = vpop.f32.mrb[0].mxu0
      %1672 = vmatprep.mubr.bf16.mxu0 0
      %1673 = vmatmul.mubr.bf16.gmra.mrb[0].mxu0 %v1527
      %v1674 = vpop.f32.mrb[0].mxu0
      %v1675 = vadd.f32 0.0, %v1674
      %v1676 = vpop.f32.mrb[0].mxu0
      %v1677 = vpop.f32.mrb[0].mxu0
      %v1678 = vadd.f32 0.0, %v1677
      %v1679 = vpop.f32.mrb[0].mxu0
      %1680 = vdwg.mxu0
      %v1681 = vadd.f32 %v1342, %v1619
      %v1682 = vadd.f32 %v1345, %v1622
      %v1683 = vadd.f32 %v1350, %v1627
      %v1684 = vadd.f32 %v1353, %v1630
      %v1685 = vadd.f32 %v1358, %v1635
      %v1686 = vadd.f32 %v1361, %v1638
      %v1687 = vadd.f32 %v1366, %v1643
      %v1688 = vadd.f32 %v1369, %v1646
      %v1689 = vadd.f32 %v1374, %v1651
      %v1690 = vadd.f32 %v1377, %v1654
      %v1691 = vadd.f32 %v1382, %v1659
      %v1692 = vadd.f32 %v1385, %v1662
      %v1693 = vadd.f32 %v1390, %v1667
      %v1694 = vadd.f32 %v1393, %v1670
      %v1695 = vadd.f32 %v1398, %v1675
      %v1696 = vadd.f32 %v1401, %v1678
      %v1697 = vld [vmem:[%s691] sm:$0xf]
      %v1698 = vld [vmem:[%s691 + $0x4] sm:$0xf]
      %v1699 = vld [vmem:[%s691 + $0xc] sm:$0xf]
      %v1700 = vld [vmem:[%s691 + $0x10] sm:$0xf]
      %v1701 = vld [vmem:[%s691 + $0x18] sm:$0xf]
      %v1702 = vld [vmem:[%s691 + $0x1c] sm:$0xf]
      %v1703 = vld [vmem:[%s691 + $0x24] sm:$0xf]
      %v1704 = vld [vmem:[%s691 + $0x28] sm:$0xf]
      %v1705 = vld [vmem:[%s691 + $0x30] sm:$0xf]
      %v1706 = vld [vmem:[%s691 + $0x34] sm:$0xf]
      %v1707 = vld [vmem:[%s691 + $0x3c] sm:$0xf]
      %v1708 = vld [vmem:[%s691 + $0x40] sm:$0xf]
      %v1709 = vld [vmem:[%s691 + $0x48] sm:$0xf]
      %v1710 = vld [vmem:[%s691 + $0x4c] sm:$0xf]
      %v1711 = vld [vmem:[%s691 + $0x54] sm:$0xf]
      %v1712 = vld [vmem:[%s691 + $0x58] sm:$0xf]
      %s1713 = scalar_lea.vmem %s3, 192
      %v1714 = vld [vmem:[%s1713] sm:$0xf]
      %v1715 = vld [vmem:[%s1713 + $0x4] sm:$0xf]
      %v1716 = vld [vmem:[%s1713 + $0x8] sm:$0xf]
      %v1717 = vld [vmem:[%s1713 + $0xc] sm:$0xf]
      %v1718 = vld [vmem:[%s1713 + $0x10] sm:$0xf]
      %v1719 = vld [vmem:[%s1713 + $0x14] sm:$0xf]
      %v1720 = vld [vmem:[%s1713 + $0x18] sm:$0xf]
      %v1721 = vld [vmem:[%s1713 + $0x1c] sm:$0xf]
      %v1722 = vld [vmem:[%s1713 + $0x20] sm:$0xf]
      %v1723 = vld [vmem:[%s1713 + $0x24] sm:$0xf]
      %v1724 = vld [vmem:[%s1713 + $0x28] sm:$0xf]
      %v1725 = vld [vmem:[%s1713 + $0x2c] sm:$0xf]
      %v1726 = vld [vmem:[%s1713 + $0x30] sm:$0xf]
      %v1727 = vld [vmem:[%s1713 + $0x34] sm:$0xf]
      %v1728 = vld [vmem:[%s1713 + $0x38] sm:$0xf]
      %v1729 = vld [vmem:[%s1713 + $0x3c] sm:$0xf]
      %v1746 = vunpack.c.l.b16 %v1697
      %v1747 = vunpack.c.l.b16 %v1698
      %v1748 = vunpack.c.l.b16 %v1699
      %v1749 = vunpack.c.l.b16 %v1700
      %v1750 = vunpack.c.l.b16 %v1701
      %v1751 = vunpack.c.l.b16 %v1702
      %v1752 = vunpack.c.l.b16 %v1703
      %v1753 = vunpack.c.l.b16 %v1704
      %v1754 = vunpack.c.l.b16 %v1705
      %v1755 = vunpack.c.l.b16 %v1706
      %v1756 = vunpack.c.l.b16 %v1707
      %v1757 = vunpack.c.l.b16 %v1708
      %v1758 = vunpack.c.l.b16 %v1709
      %v1759 = vunpack.c.l.b16 %v1710
      %v1760 = vunpack.c.l.b16 %v1711
      %v1761 = vunpack.c.l.b16 %v1712
      %v1762 = vpack.c.b16 %v1747, %v1746
      %v1763 = vpack.c.b16 %v1749, %v1748
      %v1764 = vpack.c.b16 %v1751, %v1750
      %v1765 = vpack.c.b16 %v1753, %v1752
      %v1766 = vpack.c.b16 %v1755, %v1754
      %v1767 = vpack.c.b16 %v1757, %v1756
      %v1768 = vpack.c.b16 %v1759, %v1758
      %v1769 = vpack.c.b16 %v1761, %v1760
      %v1794 = vunpack.c.l.b16 %v1714
      %v1795 = vunpack.c.l.b16 %v1715
      %v1796 = vunpack.c.l.b16 %v1716
      %v1797 = vunpack.c.l.b16 %v1717
      %v1798 = vunpack.c.l.b16 %v1718
      %v1799 = vunpack.c.l.b16 %v1719
      %v1800 = vunpack.c.l.b16 %v1720
      %v1801 = vunpack.c.l.b16 %v1721
      %v1802 = vunpack.c.l.b16 %v1722
      %v1803 = vunpack.c.l.b16 %v1723
      %v1804 = vunpack.c.l.b16 %v1724
      %v1805 = vunpack.c.l.b16 %v1725
      %v1806 = vunpack.c.l.b16 %v1726
      %v1807 = vunpack.c.l.b16 %v1727
      %v1808 = vunpack.c.l.b16 %v1728
      %v1809 = vunpack.c.l.b16 %v1729
      %v1810 = vpack.c.b16 %v1795, %v1794
      %v1811 = vpack.c.b16 %v1797, %v1796
      %v1812 = vpack.c.b16 %v1799, %v1798
      %v1813 = vpack.c.b16 %v1801, %v1800
      %v1814 = vpack.c.b16 %v1803, %v1802
      %v1815 = vpack.c.b16 %v1805, %v1804
      %v1816 = vpack.c.b16 %v1807, %v1806
      %v1817 = vpack.c.b16 %v1809, %v1808
      %1826 = vmatprep.subr.bf16.mxu0 0
      %1827 = vmatpush1.bf16.msra.mxu0 %v1810
      %1828 = vmatprep.subr.bf16.mxu0 0
      %1829 = vmatpush1.bf16.msra.mxu0 %v1811
      %1830 = vmatprep.subr.bf16.mxu0 0
      %1831 = vmatpush1.bf16.msra.mxu0 %v1812
      %1832 = vmatprep.subr.bf16.mxu0 0
      %1833 = vmatpush1.bf16.msra.mxu0 %v1813
      %1834 = vmatprep.subr.bf16.mxu0 0
      %1835 = vmatpush1.bf16.msra.mxu0 %v1814
      %1836 = vmatprep.subr.bf16.mxu0 0
      %1837 = vmatpush1.bf16.msra.mxu0 %v1815
      %1838 = vmatprep.subr.bf16.mxu0 0
      %1839 = vmatpush1.bf16.msra.mxu0 %v1816
      %1840 = vmatprep.subr.bf16.mxu0 0
      %1841 = vmatpush1.bf16.msra.mxu0 %v1817
      %1842 = vmatprep.subr.bf16.mxu0 0
      %1843 = vmatpush1.bf16.msra.mxu0 0
      %1844 = vmatprep.subr.bf16.mxu0 0
      %1845 = vmatpush1.bf16.msra.mxu0 0
      %1846 = vmatprep.subr.bf16.mxu0 0
      %1847 = vmatpush1.bf16.msra.mxu0 0
      %1848 = vmatprep.subr.bf16.mxu0 0
      %1849 = vmatpush1.bf16.msra.mxu0 0
      %1850 = vmatprep.subr.bf16.mxu0 0
      %1851 = vmatpush1.bf16.msra.mxu0 0
      %1852 = vmatprep.subr.bf16.mxu0 0
      %1853 = vmatpush1.bf16.msra.mxu0 0
      %1854 = vmatprep.subr.bf16.mxu0 0
      %1855 = vmatpush1.bf16.msra.mxu0 0
      %1856 = vmatprep.subr.bf16.mxu0 0
      %1857 = vmatpush1.bf16.msra.mxu0 0
      %1858 = vmatprep.mubr.bf16.mxu0 0
      %1859 = vmatmul.mubr.bf16.gmra.mrb[0].mxu0 %v1762
      %v1860 = vpop.f32.mrb[0].mxu0
      %v1861 = vadd.f32 0.0, %v1860
      %v1862 = vpop.f32.mrb[0].mxu0
      %v1863 = vpop.f32.mrb[0].mxu0
      %v1864 = vadd.f32 0.0, %v1863
      %v1865 = vpop.f32.mrb[0].mxu0
      %1866 = vmatprep.mubr.bf16.mxu0 0
      %1867 = vmatmul.mubr.bf16.gmra.mrb[0].mxu0 %v1763
      %v1868 = vpop.f32.mrb[0].mxu0
      %v1869 = vadd.f32 0.0, %v1868
      %v1870 = vpop.f32.mrb[0].mxu0
      %v1871 = vpop.f32.mrb[0].mxu0
      %v1872 = vadd.f32 0.0, %v1871
      %v1873 = vpop.f32.mrb[0].mxu0
      %1874 = vmatprep.mubr.bf16.mxu0 0
      %1875 = vmatmul.mubr.bf16.gmra.mrb[0].mxu0 %v1764
      %v1876 = vpop.f32.mrb[0].mxu0
      %v1877 = vadd.f32 0.0, %v1876
      %v1878 = vpop.f32.mrb[0].mxu0
      %v1879 = vpop.f32.mrb[0].mxu0
      %v1880 = vadd.f32 0.0, %v1879
      %v1881 = vpop.f32.mrb[0].mxu0
      %1882 = vmatprep.mubr.bf16.mxu0 0
      %1883 = vmatmul.mubr.bf16.gmra.mrb[0].mxu0 %v1765
      %v1884 = vpop.f32.mrb[0].mxu0
      %v1885 = vadd.f32 0.0, %v1884
      %v1886 = vpop.f32.mrb[0].mxu0
      %v1887 = vpop.f32.mrb[0].mxu0
      %v1888 = vadd.f32 0.0, %v1887
      %v1889 = vpop.f32.mrb[0].mxu0
      %1890 = vmatprep.mubr.bf16.mxu0 0
      %1891 = vmatmul.mubr.bf16.gmra.mrb[0].mxu0 %v1766
      %v1892 = vpop.f32.mrb[0].mxu0
      %v1893 = vadd.f32 0.0, %v1892
      %v1894 = vpop.f32.mrb[0].mxu0
      %v1895 = vpop.f32.mrb[0].mxu0
      %v1896 = vadd.f32 0.0, %v1895
      %v1897 = vpop.f32.mrb[0].mxu0
      %1898 = vmatprep.mubr.bf16.mxu0 0
      %1899 = vmatmul.mubr.bf16.gmra.mrb[0].mxu0 %v1767
      %v1900 = vpop.f32.mrb[0].mxu0
      %v1901 = vadd.f32 0.0, %v1900
      %v1902 = vpop.f32.mrb[0].mxu0
      %v1903 = vpop.f32.mrb[0].mxu0
      %v1904 = vadd.f32 0.0, %v1903
      %v1905 = vpop.f32.mrb[0].mxu0
      %1906 = vmatprep.mubr.bf16.mxu0 0
      %1907 = vmatmul.mubr.bf16.gmra.mrb[0].mxu0 %v1768
      %v1908 = vpop.f32.mrb[0].mxu0
      %v1909 = vadd.f32 0.0, %v1908
      %v1910 = vpop.f32.mrb[0].mxu0
      %v1911 = vpop.f32.mrb[0].mxu0
      %v1912 = vadd.f32 0.0, %v1911
      %v1913 = vpop.f32.mrb[0].mxu0
      %1914 = vmatprep.mubr.bf16.mxu0 0
      %1915 = vmatmul.mubr.bf16.gmra.mrb[0].mxu0 %v1769
      %v1916 = vpop.f32.mrb[0].mxu0
      %v1917 = vadd.f32 0.0, %v1916
      %v1918 = vpop.f32.mrb[0].mxu0
      %v1919 = vpop.f32.mrb[0].mxu0
      %v1920 = vadd.f32 0.0, %v1919
      %v1921 = vpop.f32.mrb[0].mxu0
      %1922 = vdwg.mxu0
      %v1923 = vadd.f32 %v1681, %v1861
      %v1924 = vadd.f32 %v1682, %v1864
      %v1925 = vadd.f32 %v1683, %v1869
      %v1926 = vadd.f32 %v1684, %v1872
      %v1927 = vadd.f32 %v1685, %v1877
      %v1928 = vadd.f32 %v1686, %v1880
      %v1929 = vadd.f32 %v1687, %v1885
      %v1930 = vadd.f32 %v1688, %v1888
      %v1931 = vadd.f32 %v1689, %v1893
      %v1932 = vadd.f32 %v1690, %v1896
      %v1933 = vadd.f32 %v1691, %v1901
      %v1934 = vadd.f32 %v1692, %v1904
      %v1935 = vadd.f32 %v1693, %v1909
      %v1936 = vadd.f32 %v1694, %v1912
      %v1937 = vadd.f32 %v1695, %v1917
      %v1938 = vadd.f32 %v1696, %v1920
      %v1939 = vld [vmem:[%s691] sm:$0xf]
      %v1940 = vld [vmem:[%s691 + $0x4] sm:$0xf]
      %v1941 = vld [vmem:[%s691 + $0x8] sm:$0x1]
      %v1942 = vld [vmem:[%s691 + $0xc] sm:$0xf]
      %v1943 = vld [vmem:[%s691 + $0x10] sm:$0xf]
      %v1944 = vld [vmem:[%s691 + $0x14] sm:$0x1]
      %v1945 = vld [vmem:[%s691 + $0x18] sm:$0xf]
      %v1946 = vld [vmem:[%s691 + $0x1c] sm:$0xf]
      %v1947 = vld [vmem:[%s691 + $0x20] sm:$0x1]
      %v1948 = vld [vmem:[%s691 + $0x24] sm:$0xf]
      %v1949 = vld [vmem:[%s691 + $0x28] sm:$0xf]
      %v1950 = vld [vmem:[%s691 + $0x2c] sm:$0x1]
      %v1951 = vld [vmem:[%s691 + $0x30] sm:$0xf]
      %v1952 = vld [vmem:[%s691 + $0x34] sm:$0xf]
      %v1953 = vld [vmem:[%s691 + $0x38] sm:$0x1]
      %v1954 = vld [vmem:[%s691 + $0x3c] sm:$0xf]
      %v1955 = vld [vmem:[%s691 + $0x40] sm:$0xf]
      %v1956 = vld [vmem:[%s691 + $0x44] sm:$0x1]
      %v1957 = vld [vmem:[%s691 + $0x48] sm:$0xf]
      %v1958 = vld [vmem:[%s691 + $0x4c] sm:$0xf]
      %v1959 = vld [vmem:[%s691 + $0x50] sm:$0x1]
      %v1960 = vld [vmem:[%s691 + $0x54] sm:$0xf]
      %v1961 = vld [vmem:[%s691 + $0x58] sm:$0xf]
      %v1962 = vld [vmem:[%s691 + $0x5c] sm:$0x1]
      %v1964 = vshrl.u32 %v1939, 16
      %v1966 = vrot.slane %v1964, 4
      %v1967 = vshll.u32 %v1939, 16
      %v1969 = vrot.slane %v1967, 5
      %v1970 = vor.u32 %v1966, %v1969
      %v1971 = vrot.slane %v1970, 4
      %v1973 = vshll.u32 %v1940, 16
      %v1975 = vrot.slane %v1973, 5
      %v1976 = vsel %vm824, %v1971, %v1975
      %v1977 = vshrl.u32 %v1940, 16
      %v1979 = vrot.slane %v1977, 4
      %v1980 = vor.u32 %v1979, %v1975
      %v1981 = vrot.slane %v1980, 4
      %v1983 = vshll.u32 %v1941, 16
      %v1985 = vrot.slane %v1983, 5
      %v1986 = vsel %vm824, %v1981, %v1985
      %v1988 = vshrl.u32 %v1942, 16
      %v1990 = vrot.slane %v1988, 4
      %v1991 = vshll.u32 %v1942, 16
      %v1993 = vrot.slane %v1991, 5
      %v1994 = vor.u32 %v1990, %v1993
      %v1995 = vrot.slane %v1994, 4
      %v1997 = vshll.u32 %v1943, 16
      %v1999 = vrot.slane %v1997, 5
      %v2000 = vsel %vm824, %v1995, %v1999
      %v2001 = vshrl.u32 %v1943, 16
      %v2003 = vrot.slane %v2001, 4
      %v2004 = vor.u32 %v2003, %v1999
      %v2005 = vrot.slane %v2004, 4
      %v2007 = vshll.u32 %v1944, 16
      %v2009 = vrot.slane %v2007, 5
      %v2010 = vsel %vm824, %v2005, %v2009
      %v2012 = vshrl.u32 %v1945, 16
      %v2014 = vrot.slane %v2012, 4
      %v2015 = vshll.u32 %v1945, 16
      %v2017 = vrot.slane %v2015, 5
      %v2018 = vor.u32 %v2014, %v2017
      %v2019 = vrot.slane %v2018, 4
      %v2021 = vshll.u32 %v1946, 16
      %v2023 = vrot.slane %v2021, 5
      %v2024 = vsel %vm824, %v2019, %v2023
      %v2025 = vshrl.u32 %v1946, 16
      %v2027 = vrot.slane %v2025, 4
      %v2028 = vor.u32 %v2027, %v2023
      %v2029 = vrot.slane %v2028, 4
      %v2031 = vshll.u32 %v1947, 16
      %v2033 = vrot.slane %v2031, 5
      %v2034 = vsel %vm824, %v2029, %v2033
      %v2036 = vshrl.u32 %v1948, 16
      %v2038 = vrot.slane %v2036, 4
      %v2039 = vshll.u32 %v1948, 16
      %v2041 = vrot.slane %v2039, 5
      %v2042 = vor.u32 %v2038, %v2041
      %v2043 = vrot.slane %v2042, 4
      %v2045 = vshll.u32 %v1949, 16
      %v2047 = vrot.slane %v2045, 5
      %v2048 = vsel %vm824, %v2043, %v2047
      %v2049 = vshrl.u32 %v1949, 16
      %v2051 = vrot.slane %v2049, 4
      %v2052 = vor.u32 %v2051, %v2047
      %v2053 = vrot.slane %v2052, 4
      %v2055 = vshll.u32 %v1950, 16
      %v2057 = vrot.slane %v2055, 5
      %v2058 = vsel %vm824, %v2053, %v2057
      %v2060 = vshrl.u32 %v1951, 16
      %v2062 = vrot.slane %v2060, 4
      %v2063 = vshll.u32 %v1951, 16
      %v2065 = vrot.slane %v2063, 5
      %v2066 = vor.u32 %v2062, %v2065
      %v2067 = vrot.slane %v2066, 4
      %v2069 = vshll.u32 %v1952, 16
      %v2071 = vrot.slane %v2069, 5
      %v2072 = vsel %vm824, %v2067, %v2071
      %v2073 = vshrl.u32 %v1952, 16
      %v2075 = vrot.slane %v2073, 4
      %v2076 = vor.u32 %v2075, %v2071
      %v2077 = vrot.slane %v2076, 4
      %v2079 = vshll.u32 %v1953, 16
      %v2081 = vrot.slane %v2079, 5
      %v2082 = vsel %vm824, %v2077, %v2081
      %v2084 = vshrl.u32 %v1954, 16
      %v2086 = vrot.slane %v2084, 4
      %v2087 = vshll.u32 %v1954, 16
      %v2089 = vrot.slane %v2087, 5
      %v2090 = vor.u32 %v2086, %v2089
      %v2091 = vrot.slane %v2090, 4
      %v2093 = vshll.u32 %v1955, 16
      %v2095 = vrot.slane %v2093, 5
      %v2096 = vsel %vm824, %v2091, %v2095
      %v2097 = vshrl.u32 %v1955, 16
      %v2099 = vrot.slane %v2097, 4
      %v2100 = vor.u32 %v2099, %v2095
      %v2101 = vrot.slane %v2100, 4
      %v2103 = vshll.u32 %v1956, 16
      %v2105 = vrot.slane %v2103, 5
      %v2106 = vsel %vm824, %v2101, %v2105
      %v2108 = vshrl.u32 %v1957, 16
      %v2110 = vrot.slane %v2108, 4
      %v2111 = vshll.u32 %v1957, 16
      %v2113 = vrot.slane %v2111, 5
      %v2114 = vor.u32 %v2110, %v2113
      %v2115 = vrot.slane %v2114, 4
      %v2117 = vshll.u32 %v1958, 16
      %v2119 = vrot.slane %v2117, 5
      %v2120 = vsel %vm824, %v2115, %v2119
      %v2121 = vshrl.u32 %v1958, 16
      %v2123 = vrot.slane %v2121, 4
      %v2124 = vor.u32 %v2123, %v2119
      %v2125 = vrot.slane %v2124, 4
      %v2127 = vshll.u32 %v1959, 16
      %v2129 = vrot.slane %v2127, 5
      %v2130 = vsel %vm824, %v2125, %v2129
      %v2132 = vshrl.u32 %v1960, 16
      %v2134 = vrot.slane %v2132, 4
      %v2135 = vshll.u32 %v1960, 16
      %v2137 = vrot.slane %v2135, 5
      %v2138 = vor.u32 %v2134, %v2137
      %v2139 = vrot.slane %v2138, 4
      %v2141 = vshll.u32 %v1961, 16
      %v2143 = vrot.slane %v2141, 5
      %v2144 = vsel %vm824, %v2139, %v2143
      %v2145 = vshrl.u32 %v1961, 16
      %v2147 = vrot.slane %v2145, 4
      %v2148 = vor.u32 %v2147, %v2143
      %v2149 = vrot.slane %v2148, 4
      %v2151 = vshll.u32 %v1962, 16
      %v2153 = vrot.slane %v2151, 5
      %v2154 = vsel %vm824, %v2149, %v2153
      %s2155 = scalar_lea.vmem %s3, 256
      %v2156 = vld [vmem:[%s2155] sm:$0xf]
      %v2157 = vld [vmem:[%s2155 + $0x4] sm:$0xf]
      %v2158 = vld [vmem:[%s2155 + $0x8] sm:$0xf]
      %v2159 = vld [vmem:[%s2155 + $0xc] sm:$0xf]
      %v2160 = vld [vmem:[%s2155 + $0x10] sm:$0xf]
      %v2161 = vld [vmem:[%s2155 + $0x14] sm:$0xf]
      %v2162 = vld [vmem:[%s2155 + $0x18] sm:$0xf]
      %v2163 = vld [vmem:[%s2155 + $0x1c] sm:$0xf]
      %v2164 = vld [vmem:[%s2155 + $0x20] sm:$0xf]
      %v2165 = vld [vmem:[%s2155 + $0x24] sm:$0xf]
      %v2166 = vld [vmem:[%s2155 + $0x28] sm:$0xf]
      %v2167 = vld [vmem:[%s2155 + $0x2c] sm:$0xf]
      %v2168 = vld [vmem:[%s2155 + $0x30] sm:$0xf]
      %v2169 = vld [vmem:[%s2155 + $0x34] sm:$0xf]
      %v2170 = vld [vmem:[%s2155 + $0x38] sm:$0xf]
      %v2171 = vld [vmem:[%s2155 + $0x3c] sm:$0xf]
      %v2172 = vunpack.c.l.b16 %v1976
      %v2173 = vunpack.c.l.b16 %v1986
      %v2174 = vunpack.c.l.b16 %v2000
      %v2175 = vunpack.c.l.b16 %v2010
      %v2176 = vunpack.c.l.b16 %v2024
      %v2177 = vunpack.c.l.b16 %v2034
      %v2178 = vunpack.c.l.b16 %v2048
      %v2179 = vunpack.c.l.b16 %v2058
      %v2180 = vunpack.c.l.b16 %v2072
      %v2181 = vunpack.c.l.b16 %v2082
      %v2182 = vunpack.c.l.b16 %v2096
      %v2183 = vunpack.c.l.b16 %v2106
      %v2184 = vunpack.c.l.b16 %v2120
      %v2185 = vunpack.c.l.b16 %v2130
      %v2186 = vunpack.c.l.b16 %v2144
      %v2187 = vunpack.c.l.b16 %v2154
      %v2188 = vpack.c.b16 %v2173, %v2172
      %v2189 = vpack.c.b16 %v2175, %v2174
      %v2190 = vpack.c.b16 %v2177, %v2176
      %v2191 = vpack.c.b16 %v2179, %v2178
      %v2192 = vpack.c.b16 %v2181, %v2180
      %v2193 = vpack.c.b16 %v2183, %v2182
      %v2194 = vpack.c.b16 %v2185, %v2184
      %v2195 = vpack.c.b16 %v2187, %v2186
      %v2220 = vunpack.c.l.b16 %v2156
      %v2221 = vunpack.c.l.b16 %v2157
      %v2222 = vunpack.c.l.b16 %v2158
      %v2223 = vunpack.c.l.b16 %v2159
      %v2224 = vunpack.c.l.b16 %v2160
      %v2225 = vunpack.c.l.b16 %v2161
      %v2226 = vunpack.c.l.b16 %v2162
      %v2227 = vunpack.c.l.b16 %v2163
      %v2228 = vunpack.c.l.b16 %v2164
      %v2229 = vunpack.c.l.b16 %v2165
      %v2230 = vunpack.c.l.b16 %v2166
      %v2231 = vunpack.c.l.b16 %v2167
      %v2232 = vunpack.c.l.b16 %v2168
      %v2233 = vunpack.c.l.b16 %v2169
      %v2234 = vunpack.c.l.b16 %v2170
      %v2235 = vunpack.c.l.b16 %v2171
      %v2236 = vpack.c.b16 %v2221, %v2220
      %v2237 = vpack.c.b16 %v2223, %v2222
      %v2238 = vpack.c.b16 %v2225, %v2224
      %v2239 = vpack.c.b16 %v2227, %v2226
      %v2240 = vpack.c.b16 %v2229, %v2228
      %v2241 = vpack.c.b16 %v2231, %v2230
      %v2242 = vpack.c.b16 %v2233, %v2232
      %v2243 = vpack.c.b16 %v2235, %v2234
      %2252 = vmatprep.subr.bf16.mxu0 0
      %2253 = vmatpush1.bf16.msra.mxu0 %v2236
      %2254 = vmatprep.subr.bf16.mxu0 0
      %2255 = vmatpush1.bf16.msra.mxu0 %v2237
      %2256 = vmatprep.subr.bf16.mxu0 0
      %2257 = vmatpush1.bf16.msra.mxu0 %v2238
      %2258 = vmatprep.subr.bf16.mxu0 0
      %2259 = vmatpush1.bf16.msra.mxu0 %v2239
      %2260 = vmatprep.subr.bf16.mxu0 0
      %2261 = vmatpush1.bf16.msra.mxu0 %v2240
      %2262 = vmatprep.subr.bf16.mxu0 0
      %2263 = vmatpush1.bf16.msra.mxu0 %v2241
      %2264 = vmatprep.subr.bf16.mxu0 0
      %2265 = vmatpush1.bf16.msra.mxu0 %v2242
      %2266 = vmatprep.subr.bf16.mxu0 0
      %2267 = vmatpush1.bf16.msra.mxu0 %v2243
      %2268 = vmatprep.subr.bf16.mxu0 0
      %2269 = vmatpush1.bf16.msra.mxu0 0
      %2270 = vmatprep.subr.bf16.mxu0 0
      %2271 = vmatpush1.bf16.msra.mxu0 0
      %2272 = vmatprep.subr.bf16.mxu0 0
      %2273 = vmatpush1.bf16.msra.mxu0 0
      %2274 = vmatprep.subr.bf16.mxu0 0
      %2275 = vmatpush1.bf16.msra.mxu0 0
      %2276 = vmatprep.subr.bf16.mxu0 0
      %2277 = vmatpush1.bf16.msra.mxu0 0
      %2278 = vmatprep.subr.bf16.mxu0 0
      %2279 = vmatpush1.bf16.msra.mxu0 0
      %2280 = vmatprep.subr.bf16.mxu0 0
      %2281 = vmatpush1.bf16.msra.mxu0 0
      %2282 = vmatprep.subr.bf16.mxu0 0
      %2283 = vmatpush1.bf16.msra.mxu0 0
      %2284 = vmatprep.mubr.bf16.mxu0 0
      %2285 = vmatmul.mubr.bf16.gmra.mrb[0].mxu0 %v2188
      %v2286 = vpop.f32.mrb[0].mxu0
      %v2287 = vadd.f32 0.0, %v2286
      %v2288 = vpop.f32.mrb[0].mxu0
      %v2289 = vpop.f32.mrb[0].mxu0
      %v2290 = vadd.f32 0.0, %v2289
      %v2291 = vpop.f32.mrb[0].mxu0
      %2292 = vmatprep.mubr.bf16.mxu0 0
      %2293 = vmatmul.mubr.bf16.gmra.mrb[0].mxu0 %v2189
      %v2294 = vpop.f32.mrb[0].mxu0
      %v2295 = vadd.f32 0.0, %v2294
      %v2296 = vpop.f32.mrb[0].mxu0
      %v2297 = vpop.f32.mrb[0].mxu0
      %v2298 = vadd.f32 0.0, %v2297
      %v2299 = vpop.f32.mrb[0].mxu0
      %2300 = vmatprep.mubr.bf16.mxu0 0
      %2301 = vmatmul.mubr.bf16.gmra.mrb[0].mxu0 %v2190
      %v2302 = vpop.f32.mrb[0].mxu0
      %v2303 = vadd.f32 0.0, %v2302
      %v2304 = vpop.f32.mrb[0].mxu0
      %v2305 = vpop.f32.mrb[0].mxu0
      %v2306 = vadd.f32 0.0, %v2305
      %v2307 = vpop.f32.mrb[0].mxu0
      %2308 = vmatprep.mubr.bf16.mxu0 0
      %2309 = vmatmul.mubr.bf16.gmra.mrb[0].mxu0 %v2191
      %v2310 = vpop.f32.mrb[0].mxu0
      %v2311 = vadd.f32 0.0, %v2310
      %v2312 = vpop.f32.mrb[0].mxu0
      %v2313 = vpop.f32.mrb[0].mxu0
      %v2314 = vadd.f32 0.0, %v2313
      %v2315 = vpop.f32.mrb[0].mxu0
      %2316 = vmatprep.mubr.bf16.mxu0 0
      %2317 = vmatmul.mubr.bf16.gmra.mrb[0].mxu0 %v2192
      %v2318 = vpop.f32.mrb[0].mxu0
      %v2319 = vadd.f32 0.0, %v2318
      %v2320 = vpop.f32.mrb[0].mxu0
      %v2321 = vpop.f32.mrb[0].mxu0
      %v2322 = vadd.f32 0.0, %v2321
      %v2323 = vpop.f32.mrb[0].mxu0
      %2324 = vmatprep.mubr.bf16.mxu0 0
      %2325 = vmatmul.mubr.bf16.gmra.mrb[0].mxu0 %v2193
      %v2326 = vpop.f32.mrb[0].mxu0
      %v2327 = vadd.f32 0.0, %v2326
      %v2328 = vpop.f32.mrb[0].mxu0
      %v2329 = vpop.f32.mrb[0].mxu0
      %v2330 = vadd.f32 0.0, %v2329
      %v2331 = vpop.f32.mrb[0].mxu0
      %2332 = vmatprep.mubr.bf16.mxu0 0
      %2333 = vmatmul.mubr.bf16.gmra.mrb[0].mxu0 %v2194
      %v2334 = vpop.f32.mrb[0].mxu0
      %v2335 = vadd.f32 0.0, %v2334
      %v2336 = vpop.f32.mrb[0].mxu0
      %v2337 = vpop.f32.mrb[0].mxu0
      %v2338 = vadd.f32 0.0, %v2337
      %v2339 = vpop.f32.mrb[0].mxu0
      %2340 = vmatprep.mubr.bf16.mxu0 0
      %2341 = vmatmul.mubr.bf16.gmra.mrb[0].mxu0 %v2195
      %v2342 = vpop.f32.mrb[0].mxu0
      %v2343 = vadd.f32 0.0, %v2342
      %v2344 = vpop.f32.mrb[0].mxu0
      %v2345 = vpop.f32.mrb[0].mxu0
      %v2346 = vadd.f32 0.0, %v2345
      %v2347 = vpop.f32.mrb[0].mxu0
      %2348 = vdwg.mxu0
      %v2349 = vadd.f32 %v1923, %v2287
      %v2350 = vadd.f32 %v1924, %v2290
      %v2351 = vadd.f32 %v1925, %v2295
      %v2352 = vadd.f32 %v1926, %v2298
      %v2353 = vadd.f32 %v1927, %v2303
      %v2354 = vadd.f32 %v1928, %v2306
      %v2355 = vadd.f32 %v1929, %v2311
      %v2356 = vadd.f32 %v1930, %v2314
      %v2357 = vadd.f32 %v1931, %v2319
      %v2358 = vadd.f32 %v1932, %v2322
      %v2359 = vadd.f32 %v1933, %v2327
      %v2360 = vadd.f32 %v1934, %v2330
      %v2361 = vadd.f32 %v1935, %v2335
      %v2362 = vadd.f32 %v1936, %v2338
      %v2363 = vadd.f32 %v1937, %v2343
      %v2364 = vadd.f32 %v1938, %v2346
      %v2365 = vld [vmem:[%s691] sm:$0xe]
      %v2366 = vld [vmem:[%s691 + $0xc] sm:$0xe]
      %v2367 = vld [vmem:[%s691 + $0x18] sm:$0xe]
      %v2368 = vld [vmem:[%s691 + $0x24] sm:$0xe]
      %v2369 = vld [vmem:[%s691 + $0x30] sm:$0xe]
      %v2370 = vld [vmem:[%s691 + $0x3c] sm:$0xe]
      %v2371 = vld [vmem:[%s691 + $0x48] sm:$0xe]
      %v2372 = vld [vmem:[%s691 + $0x54] sm:$0xe]
      %v2397 = vrot.slane %v2365, 5
      %v2398 = vrot.slane %v2397, 4
      %v2399 = vrot.slane %v1940, 5
      %v2400 = vsel %vm1430, %v2398, %v2399
      %v2401 = vrot.slane %v2399, 4
      %v2402 = vrot.slane %v1941, 5
      %v2403 = vsel %vm1430, %v2401, %v2402
      %v2404 = vrot.slane %v2366, 5
      %v2405 = vrot.slane %v2404, 4
      %v2406 = vrot.slane %v1943, 5
      %v2407 = vsel %vm1430, %v2405, %v2406
      %v2408 = vrot.slane %v2406, 4
      %v2409 = vrot.slane %v1944, 5
      %v2410 = vsel %vm1430, %v2408, %v2409
      %v2411 = vrot.slane %v2367, 5
      %v2412 = vrot.slane %v2411, 4
      %v2413 = vrot.slane %v1946, 5
      %v2414 = vsel %vm1430, %v2412, %v2413
      %v2415 = vrot.slane %v2413, 4
      %v2416 = vrot.slane %v1947, 5
      %v2417 = vsel %vm1430, %v2415, %v2416
      %v2418 = vrot.slane %v2368, 5
      %v2419 = vrot.slane %v2418, 4
      %v2420 = vrot.slane %v1949, 5
      %v2421 = vsel %vm1430, %v2419, %v2420
      %v2422 = vrot.slane %v2420, 4
      %v2423 = vrot.slane %v1950, 5
      %v2424 = vsel %vm1430, %v2422, %v2423
      %v2425 = vrot.slane %v2369, 5
      %v2426 = vrot.slane %v2425, 4
      %v2427 = vrot.slane %v1952, 5
      %v2428 = vsel %vm1430, %v2426, %v2427
      %v2429 = vrot.slane %v2427, 4
      %v2430 = vrot.slane %v1953, 5
      %v2431 = vsel %vm1430, %v2429, %v2430
      %v2432 = vrot.slane %v2370, 5
      %v2433 = vrot.slane %v2432, 4
      %v2434 = vrot.slane %v1955, 5
      %v2435 = vsel %vm1430, %v2433, %v2434
      %v2436 = vrot.slane %v2434, 4
      %v2437 = vrot.slane %v1956, 5
      %v2438 = vsel %vm1430, %v2436, %v2437
      %v2439 = vrot.slane %v2371, 5
      %v2440 = vrot.slane %v2439, 4
      %v2441 = vrot.slane %v1958, 5
      %v2442 = vsel %vm1430, %v2440, %v2441
      %v2443 = vrot.slane %v2441, 4
      %v2444 = vrot.slane %v1959, 5
      %v2445 = vsel %vm1430, %v2443, %v2444
      %v2446 = vrot.slane %v2372, 5
      %v2447 = vrot.slane %v2446, 4
      %v2448 = vrot.slane %v1961, 5
      %v2449 = vsel %vm1430, %v2447, %v2448
      %v2450 = vrot.slane %v2448, 4
      %v2451 = vrot.slane %v1962, 5
      %v2452 = vsel %vm1430, %v2450, %v2451
      %s2453 = scalar_lea.vmem %s3, 320
      %v2454 = vld [vmem:[%s2453] sm:$0xf]
      %v2455 = vld [vmem:[%s2453 + $0x4] sm:$0xf]
      %v2456 = vld [vmem:[%s2453 + $0x8] sm:$0xf]
      %v2457 = vld [vmem:[%s2453 + $0xc] sm:$0xf]
      %v2458 = vld [vmem:[%s2453 + $0x10] sm:$0xf]
      %v2459 = vld [vmem:[%s2453 + $0x14] sm:$0xf]
      %v2460 = vld [vmem:[%s2453 + $0x18] sm:$0xf]
      %v2461 = vld [vmem:[%s2453 + $0x1c] sm:$0xf]
      %v2462 = vld [vmem:[%s2453 + $0x20] sm:$0xf]
      %v2463 = vld [vmem:[%s2453 + $0x24] sm:$0xf]
      %v2464 = vld [vmem:[%s2453 + $0x28] sm:$0xf]
      %v2465 = vld [vmem:[%s2453 + $0x2c] sm:$0xf]
      %v2466 = vld [vmem:[%s2453 + $0x30] sm:$0xf]
      %v2467 = vld [vmem:[%s2453 + $0x34] sm:$0xf]
      %v2468 = vld [vmem:[%s2453 + $0x38] sm:$0xf]
      %v2469 = vld [vmem:[%s2453 + $0x3c] sm:$0xf]
      %v2470 = vunpack.c.l.b16 %v2400
      %v2471 = vunpack.c.l.b16 %v2403
      %v2472 = vunpack.c.l.b16 %v2407
      %v2473 = vunpack.c.l.b16 %v2410
      %v2474 = vunpack.c.l.b16 %v2414
      %v2475 = vunpack.c.l.b16 %v2417
      %v2476 = vunpack.c.l.b16 %v2421
      %v2477 = vunpack.c.l.b16 %v2424
      %v2478 = vunpack.c.l.b16 %v2428
      %v2479 = vunpack.c.l.b16 %v2431
      %v2480 = vunpack.c.l.b16 %v2435
      %v2481 = vunpack.c.l.b16 %v2438
      %v2482 = vunpack.c.l.b16 %v2442
      %v2483 = vunpack.c.l.b16 %v2445
      %v2484 = vunpack.c.l.b16 %v2449
      %v2485 = vunpack.c.l.b16 %v2452
      %v2486 = vpack.c.b16 %v2471, %v2470
      %v2487 = vpack.c.b16 %v2473, %v2472
      %v2488 = vpack.c.b16 %v2475, %v2474
      %v2489 = vpack.c.b16 %v2477, %v2476
      %v2490 = vpack.c.b16 %v2479, %v2478
      %v2491 = vpack.c.b16 %v2481, %v2480
      %v2492 = vpack.c.b16 %v2483, %v2482
      %v2493 = vpack.c.b16 %v2485, %v2484
      %v2518 = vunpack.c.l.b16 %v2454
      %v2519 = vunpack.c.l.b16 %v2455
      %v2520 = vunpack.c.l.b16 %v2456
      %v2521 = vunpack.c.l.b16 %v2457
      %v2522 = vunpack.c.l.b16 %v2458
      %v2523 = vunpack.c.l.b16 %v2459
      %v2524 = vunpack.c.l.b16 %v2460
      %v2525 = vunpack.c.l.b16 %v2461
      %v2526 = vunpack.c.l.b16 %v2462
      %v2527 = vunpack.c.l.b16 %v2463
      %v2528 = vunpack.c.l.b16 %v2464
      %v2529 = vunpack.c.l.b16 %v2465
      %v2530 = vunpack.c.l.b16 %v2466
      %v2531 = vunpack.c.l.b16 %v2467
      %v2532 = vunpack.c.l.b16 %v2468
      %v2533 = vunpack.c.l.b16 %v2469
      %v2534 = vpack.c.b16 %v2519, %v2518
      %v2535 = vpack.c.b16 %v2521, %v2520
      %v2536 = vpack.c.b16 %v2523, %v2522
      %v2537 = vpack.c.b16 %v2525, %v2524
      %v2538 = vpack.c.b16 %v2527, %v2526
      %v2539 = vpack.c.b16 %v2529, %v2528
      %v2540 = vpack.c.b16 %v2531, %v2530
      %v2541 = vpack.c.b16 %v2533, %v2532
      %2550 = vmatprep.subr.bf16.mxu0 0
      %2551 = vmatpush1.bf16.msra.mxu0 %v2534
      %2552 = vmatprep.subr.bf16.mxu0 0
      %2553 = vmatpush1.bf16.msra.mxu0 %v2535
      %2554 = vmatprep.subr.bf16.mxu0 0
      %2555 = vmatpush1.bf16.msra.mxu0 %v2536
      %2556 = vmatprep.subr.bf16.mxu0 0
      %2557 = vmatpush1.bf16.msra.mxu0 %v2537
      %2558 = vmatprep.subr.bf16.mxu0 0
      %2559 = vmatpush1.bf16.msra.mxu0 %v2538
      %2560 = vmatprep.subr.bf16.mxu0 0
      %2561 = vmatpush1.bf16.msra.mxu0 %v2539
      %2562 = vmatprep.subr.bf16.mxu0 0
      %2563 = vmatpush1.bf16.msra.mxu0 %v2540
      %2564 = vmatprep.subr.bf16.mxu0 0
      %2565 = vmatpush1.bf16.msra.mxu0 %v2541
      %2566 = vmatprep.subr.bf16.mxu0 0
      %2567 = vmatpush1.bf16.msra.mxu0 0
      %2568 = vmatprep.subr.bf16.mxu0 0
      %2569 = vmatpush1.bf16.msra.mxu0 0
      %2570 = vmatprep.subr.bf16.mxu0 0
      %2571 = vmatpush1.bf16.msra.mxu0 0
      %2572 = vmatprep.subr.bf16.mxu0 0
      %2573 = vmatpush1.bf16.msra.mxu0 0
      %2574 = vmatprep.subr.bf16.mxu0 0
      %2575 = vmatpush1.bf16.msra.mxu0 0
      %2576 = vmatprep.subr.bf16.mxu0 0
      %2577 = vmatpush1.bf16.msra.mxu0 0
      %2578 = vmatprep.subr.bf16.mxu0 0
      %2579 = vmatpush1.bf16.msra.mxu0 0
      %2580 = vmatprep.subr.bf16.mxu0 0
      %2581 = vmatpush1.bf16.msra.mxu0 0
      %2582 = vmatprep.mubr.bf16.mxu0 0
      %2583 = vmatmul.mubr.bf16.gmra.mrb[0].mxu0 %v2486
      %v2584 = vpop.f32.mrb[0].mxu0
      %v2585 = vadd.f32 0.0, %v2584
      %v2586 = vpop.f32.mrb[0].mxu0
      %v2587 = vpop.f32.mrb[0].mxu0
      %v2588 = vadd.f32 0.0, %v2587
      %v2589 = vpop.f32.mrb[0].mxu0
      %2590 = vmatprep.mubr.bf16.mxu0 0
      %2591 = vmatmul.mubr.bf16.gmra.mrb[0].mxu0 %v2487
      %v2592 = vpop.f32.mrb[0].mxu0
      %v2593 = vadd.f32 0.0, %v2592
      %v2594 = vpop.f32.mrb[0].mxu0
      %v2595 = vpop.f32.mrb[0].mxu0
      %v2596 = vadd.f32 0.0, %v2595
      %v2597 = vpop.f32.mrb[0].mxu0
      %2598 = vmatprep.mubr.bf16.mxu0 0
      %2599 = vmatmul.mubr.bf16.gmra.mrb[0].mxu0 %v2488
      %v2600 = vpop.f32.mrb[0].mxu0
      %v2601 = vadd.f32 0.0, %v2600
      %v2602 = vpop.f32.mrb[0].mxu0
      %v2603 = vpop.f32.mrb[0].mxu0
      %v2604 = vadd.f32 0.0, %v2603
      %v2605 = vpop.f32.mrb[0].mxu0
      %2606 = vmatprep.mubr.bf16.mxu0 0
      %2607 = vmatmul.mubr.bf16.gmra.mrb[0].mxu0 %v2489
      %v2608 = vpop.f32.mrb[0].mxu0
      %v2609 = vadd.f32 0.0, %v2608
      %v2610 = vpop.f32.mrb[0].mxu0
      %v2611 = vpop.f32.mrb[0].mxu0
      %v2612 = vadd.f32 0.0, %v2611
      %v2613 = vpop.f32.mrb[0].mxu0
      %2614 = vmatprep.mubr.bf16.mxu0 0
      %2615 = vmatmul.mubr.bf16.gmra.mrb[0].mxu0 %v2490
      %v2616 = vpop.f32.mrb[0].mxu0
      %v2617 = vadd.f32 0.0, %v2616
      %v2618 = vpop.f32.mrb[0].mxu0
      %v2619 = vpop.f32.mrb[0].mxu0
      %v2620 = vadd.f32 0.0, %v2619
      %v2621 = vpop.f32.mrb[0].mxu0
      %2622 = vmatprep.mubr.bf16.mxu0 0
      %2623 = vmatmul.mubr.bf16.gmra.mrb[0].mxu0 %v2491
      %v2624 = vpop.f32.mrb[0].mxu0
      %v2625 = vadd.f32 0.0, %v2624
      %v2626 = vpop.f32.mrb[0].mxu0
      %v2627 = vpop.f32.mrb[0].mxu0
      %v2628 = vadd.f32 0.0, %v2627
      %v2629 = vpop.f32.mrb[0].mxu0
      %2630 = vmatprep.mubr.bf16.mxu0 0
      %2631 = vmatmul.mubr.bf16.gmra.mrb[0].mxu0 %v2492
      %v2632 = vpop.f32.mrb[0].mxu0
      %v2633 = vadd.f32 0.0, %v2632
      %v2634 = vpop.f32.mrb[0].mxu0
      %v2635 = vpop.f32.mrb[0].mxu0
      %v2636 = vadd.f32 0.0, %v2635
      %v2637 = vpop.f32.mrb[0].mxu0
      %2638 = vmatprep.mubr.bf16.mxu0 0
      %2639 = vmatmul.mubr.bf16.gmra.mrb[0].mxu0 %v2493
      %v2640 = vpop.f32.mrb[0].mxu0
      %v2641 = vadd.f32 0.0, %v2640
      %v2642 = vpop.f32.mrb[0].mxu0
      %v2643 = vpop.f32.mrb[0].mxu0
      %v2644 = vadd.f32 0.0, %v2643
      %v2645 = vpop.f32.mrb[0].mxu0
      %2646 = vdwg.mxu0
      %v2647 = vadd.f32 %v2349, %v2585
      %v2648 = vadd.f32 %v2350, %v2588
      %v2649 = vadd.f32 %v2351, %v2593
      %v2650 = vadd.f32 %v2352, %v2596
      %v2651 = vadd.f32 %v2353, %v2601
      %v2652 = vadd.f32 %v2354, %v2604
      %v2653 = vadd.f32 %v2355, %v2609
      %v2654 = vadd.f32 %v2356, %v2612
      %v2655 = vadd.f32 %v2357, %v2617
      %v2656 = vadd.f32 %v2358, %v2620
      %v2657 = vadd.f32 %v2359, %v2625
      %v2658 = vadd.f32 %v2360, %v2628
      %v2659 = vadd.f32 %v2361, %v2633
      %v2660 = vadd.f32 %v2362, %v2636
      %v2661 = vadd.f32 %v2363, %v2641
      %v2662 = vadd.f32 %v2364, %v2644
      %s2663 = scalar_lea.vmem [#allocation2], 24
      %v2664 = vld [vmem:[%s2663] sm:$0xf]
      %v2665 = vld [vmem:[%s2663 + $0x4] sm:$0xf]
      %v2666 = vld [vmem:[%s2663 + $0xc] sm:$0xf]
      %v2667 = vld [vmem:[%s2663 + $0x10] sm:$0xf]
      %v2668 = vld [vmem:[%s2663 + $0x18] sm:$0xf]
      %v2669 = vld [vmem:[%s2663 + $0x1c] sm:$0xf]
      %v2670 = vld [vmem:[%s2663 + $0x24] sm:$0xf]
      %v2671 = vld [vmem:[%s2663 + $0x28] sm:$0xf]
      %v2672 = vld [vmem:[%s2663 + $0x30] sm:$0xf]
      %v2673 = vld [vmem:[%s2663 + $0x34] sm:$0xf]
      %v2674 = vld [vmem:[%s2663 + $0x3c] sm:$0xf]
      %v2675 = vld [vmem:[%s2663 + $0x40] sm:$0xf]
      %v2676 = vld [vmem:[%s2663 + $0x48] sm:$0xf]
      %v2677 = vld [vmem:[%s2663 + $0x4c] sm:$0xf]
      %v2678 = vld [vmem:[%s2663 + $0x54] sm:$0xf]
      %v2679 = vld [vmem:[%s2663 + $0x58] sm:$0xf]
      %s2680 = scalar_lea.vmem %s3, 384
      %v2681 = vld [vmem:[%s2680] sm:$0xf]
      %v2682 = vld [vmem:[%s2680 + $0x4] sm:$0xf]
      %v2683 = vld [vmem:[%s2680 + $0x8] sm:$0xf]
      %v2684 = vld [vmem:[%s2680 + $0xc] sm:$0xf]
      %v2685 = vld [vmem:[%s2680 + $0x10] sm:$0xf]
      %v2686 = vld [vmem:[%s2680 + $0x14] sm:$0xf]
      %v2687 = vld [vmem:[%s2680 + $0x18] sm:$0xf]
      %v2688 = vld [vmem:[%s2680 + $0x1c] sm:$0xf]
      %v2689 = vld [vmem:[%s2680 + $0x20] sm:$0xf]
      %v2690 = vld [vmem:[%s2680 + $0x24] sm:$0xf]
      %v2691 = vld [vmem:[%s2680 + $0x28] sm:$0xf]
      %v2692 = vld [vmem:[%s2680 + $0x2c] sm:$0xf]
      %v2693 = vld [vmem:[%s2680 + $0x30] sm:$0xf]
      %v2694 = vld [vmem:[%s2680 + $0x34] sm:$0xf]
      %v2695 = vld [vmem:[%s2680 + $0x38] sm:$0xf]
      %v2696 = vld [vmem:[%s2680 + $0x3c] sm:$0xf]
      %v2713 = vunpack.c.l.b16 %v2664
      %v2714 = vunpack.c.l.b16 %v2665
      %v2715 = vunpack.c.l.b16 %v2666
      %v2716 = vunpack.c.l.b16 %v2667
      %v2717 = vunpack.c.l.b16 %v2668
      %v2718 = vunpack.c.l.b16 %v2669
      %v2719 = vunpack.c.l.b16 %v2670
      %v2720 = vunpack.c.l.b16 %v2671
      %v2721 = vunpack.c.l.b16 %v2672
      %v2722 = vunpack.c.l.b16 %v2673
      %v2723 = vunpack.c.l.b16 %v2674
      %v2724 = vunpack.c.l.b16 %v2675
      %v2725 = vunpack.c.l.b16 %v2676
      %v2726 = vunpack.c.l.b16 %v2677
      %v2727 = vunpack.c.l.b16 %v2678
      %v2728 = vunpack.c.l.b16 %v2679
      %v2729 = vpack.c.b16 %v2714, %v2713
      %v2730 = vpack.c.b16 %v2716, %v2715
      %v2731 = vpack.c.b16 %v2718, %v2717
      %v2732 = vpack.c.b16 %v2720, %v2719
      %v2733 = vpack.c.b16 %v2722, %v2721
      %v2734 = vpack.c.b16 %v2724, %v2723
      %v2735 = vpack.c.b16 %v2726, %v2725
      %v2736 = vpack.c.b16 %v2728, %v2727
      %v2761 = vunpack.c.l.b16 %v2681
      %v2762 = vunpack.c.l.b16 %v2682
      %v2763 = vunpack.c.l.b16 %v2683
      %v2764 = vunpack.c.l.b16 %v2684
      %v2765 = vunpack.c.l.b16 %v2685
      %v2766 = vunpack.c.l.b16 %v2686
      %v2767 = vunpack.c.l.b16 %v2687
      %v2768 = vunpack.c.l.b16 %v2688
      %v2769 = vunpack.c.l.b16 %v2689
      %v2770 = vunpack.c.l.b16 %v2690
      %v2771 = vunpack.c.l.b16 %v2691
      %v2772 = vunpack.c.l.b16 %v2692
      %v2773 = vunpack.c.l.b16 %v2693
      %v2774 = vunpack.c.l.b16 %v2694
      %v2775 = vunpack.c.l.b16 %v2695
      %v2776 = vunpack.c.l.b16 %v2696
      %v2777 = vpack.c.b16 %v2762, %v2761
      %v2778 = vpack.c.b16 %v2764, %v2763
      %v2779 = vpack.c.b16 %v2766, %v2765
      %v2780 = vpack.c.b16 %v2768, %v2767
      %v2781 = vpack.c.b16 %v2770, %v2769
      %v2782 = vpack.c.b16 %v2772, %v2771
      %v2783 = vpack.c.b16 %v2774, %v2773
      %v2784 = vpack.c.b16 %v2776, %v2775
      %2793 = vmatprep.subr.bf16.mxu0 0
      %2794 = vmatpush1.bf16.msra.mxu0 %v2777
      %2795 = vmatprep.subr.bf16.mxu0 0
      %2796 = vmatpush1.bf16.msra.mxu0 %v2778
      %2797 = vmatprep.subr.bf16.mxu0 0
      %2798 = vmatpush1.bf16.msra.mxu0 %v2779
      %2799 = vmatprep.subr.bf16.mxu0 0
      %2800 = vmatpush1.bf16.msra.mxu0 %v2780
      %2801 = vmatprep.subr.bf16.mxu0 0
      %2802 = vmatpush1.bf16.msra.mxu0 %v2781
      %2803 = vmatprep.subr.bf16.mxu0 0
      %2804 = vmatpush1.bf16.msra.mxu0 %v2782
      %2805 = vmatprep.subr.bf16.mxu0 0
      %2806 = vmatpush1.bf16.msra.mxu0 %v2783
      %2807 = vmatprep.subr.bf16.mxu0 0
      %2808 = vmatpush1.bf16.msra.mxu0 %v2784
      %2809 = vmatprep.subr.bf16.mxu0 0
      %2810 = vmatpush1.bf16.msra.mxu0 0
      %2811 = vmatprep.subr.bf16.mxu0 0
      %2812 = vmatpush1.bf16.msra.mxu0 0
      %2813 = vmatprep.subr.bf16.mxu0 0
      %2814 = vmatpush1.bf16.msra.mxu0 0
      %2815 = vmatprep.subr.bf16.mxu0 0
      %2816 = vmatpush1.bf16.msra.mxu0 0
      %2817 = vmatprep.subr.bf16.mxu0 0
      %2818 = vmatpush1.bf16.msra.mxu0 0
      %2819 = vmatprep.subr.bf16.mxu0 0
      %2820 = vmatpush1.bf16.msra.mxu0 0
      %2821 = vmatprep.subr.bf16.mxu0 0
      %2822 = vmatpush1.bf16.msra.mxu0 0
      %2823 = vmatprep.subr.bf16.mxu0 0
      %2824 = vmatpush1.bf16.msra.mxu0 0
      %2825 = vmatprep.mubr.bf16.mxu0 0
      %2826 = vmatmul.mubr.bf16.gmra.mrb[0].mxu0 %v2729
      %v2827 = vpop.f32.mrb[0].mxu0
      %v2828 = vadd.f32 0.0, %v2827
      %v2829 = vpop.f32.mrb[0].mxu0
      %v2830 = vpop.f32.mrb[0].mxu0
      %v2831 = vadd.f32 0.0, %v2830
      %v2832 = vpop.f32.mrb[0].mxu0
      %2833 = vmatprep.mubr.bf16.mxu0 0
      %2834 = vmatmul.mubr.bf16.gmra.mrb[0].mxu0 %v2730
      %v2835 = vpop.f32.mrb[0].mxu0
      %v2836 = vadd.f32 0.0, %v2835
      %v2837 = vpop.f32.mrb[0].mxu0
      %v2838 = vpop.f32.mrb[0].mxu0
      %v2839 = vadd.f32 0.0, %v2838
      %v2840 = vpop.f32.mrb[0].mxu0
      %2841 = vmatprep.mubr.bf16.mxu0 0
      %2842 = vmatmul.mubr.bf16.gmra.mrb[0].mxu0 %v2731
      %v2843 = vpop.f32.mrb[0].mxu0
      %v2844 = vadd.f32 0.0, %v2843
      %v2845 = vpop.f32.mrb[0].mxu0
      %v2846 = vpop.f32.mrb[0].mxu0
      %v2847 = vadd.f32 0.0, %v2846
      %v2848 = vpop.f32.mrb[0].mxu0
      %2849 = vmatprep.mubr.bf16.mxu0 0
      %2850 = vmatmul.mubr.bf16.gmra.mrb[0].mxu0 %v2732
      %v2851 = vpop.f32.mrb[0].mxu0
      %v2852 = vadd.f32 0.0, %v2851
      %v2853 = vpop.f32.mrb[0].mxu0
      %v2854 = vpop.f32.mrb[0].mxu0
      %v2855 = vadd.f32 0.0, %v2854
      %v2856 = vpop.f32.mrb[0].mxu0
      %2857 = vmatprep.mubr.bf16.mxu0 0
      %2858 = vmatmul.mubr.bf16.gmra.mrb[0].mxu0 %v2733
      %v2859 = vpop.f32.mrb[0].mxu0
      %v2860 = vadd.f32 0.0, %v2859
      %v2861 = vpop.f32.mrb[0].mxu0
      %v2862 = vpop.f32.mrb[0].mxu0
      %v2863 = vadd.f32 0.0, %v2862
      %v2864 = vpop.f32.mrb[0].mxu0
      %2865 = vmatprep.mubr.bf16.mxu0 0
      %2866 = vmatmul.mubr.bf16.gmra.mrb[0].mxu0 %v2734
      %v2867 = vpop.f32.mrb[0].mxu0
      %v2868 = vadd.f32 0.0, %v2867
      %v2869 = vpop.f32.mrb[0].mxu0
      %v2870 = vpop.f32.mrb[0].mxu0
      %v2871 = vadd.f32 0.0, %v2870
      %v2872 = vpop.f32.mrb[0].mxu0
      %2873 = vmatprep.mubr.bf16.mxu0 0
      %2874 = vmatmul.mubr.bf16.gmra.mrb[0].mxu0 %v2735
      %v2875 = vpop.f32.mrb[0].mxu0
      %v2876 = vadd.f32 0.0, %v2875
      %v2877 = vpop.f32.mrb[0].mxu0
      %v2878 = vpop.f32.mrb[0].mxu0
      %v2879 = vadd.f32 0.0, %v2878
      %v2880 = vpop.f32.mrb[0].mxu0
      %2881 = vmatprep.mubr.bf16.mxu0 0
      %2882 = vmatmul.mubr.bf16.gmra.mrb[0].mxu0 %v2736
      %v2883 = vpop.f32.mrb[0].mxu0
      %v2884 = vadd.f32 0.0, %v2883
      %v2885 = vpop.f32.mrb[0].mxu0
      %v2886 = vpop.f32.mrb[0].mxu0
      %v2887 = vadd.f32 0.0, %v2886
      %v2888 = vpop.f32.mrb[0].mxu0
      %2889 = vdwg.mxu0
      %v2890 = vadd.f32 %v2647, %v2828
      %v2891 = vadd.f32 %v2648, %v2831
      %v2892 = vadd.f32 %v2649, %v2836
      %v2893 = vadd.f32 %v2650, %v2839
      %v2894 = vadd.f32 %v2651, %v2844
      %v2895 = vadd.f32 %v2652, %v2847
      %v2896 = vadd.f32 %v2653, %v2852
      %v2897 = vadd.f32 %v2654, %v2855
      %v2898 = vadd.f32 %v2655, %v2860
      %v2899 = vadd.f32 %v2656, %v2863
      %v2900 = vadd.f32 %v2657, %v2868
      %v2901 = vadd.f32 %v2658, %v2871
      %v2902 = vadd.f32 %v2659, %v2876
      %v2903 = vadd.f32 %v2660, %v2879
      %v2904 = vadd.f32 %v2661, %v2884
      %v2905 = vadd.f32 %v2662, %v2887
      %v2906 = vld [vmem:[%s2663] sm:$0xf]
      %v2907 = vld [vmem:[%s2663 + $0x4] sm:$0xf]
      %v2908 = vld [vmem:[%s2663 + $0x8] sm:$0x1]
      %v2909 = vld [vmem:[%s2663 + $0xc] sm:$0xf]
      %v2910 = vld [vmem:[%s2663 + $0x10] sm:$0xf]
      %v2911 = vld [vmem:[%s2663 + $0x14] sm:$0x1]
      %v2912 = vld [vmem:[%s2663 + $0x18] sm:$0xf]
      %v2913 = vld [vmem:[%s2663 + $0x1c] sm:$0xf]
      %v2914 = vld [vmem:[%s2663 + $0x20] sm:$0x1]
      %v2915 = vld [vmem:[%s2663 + $0x24] sm:$0xf]
      %v2916 = vld [vmem:[%s2663 + $0x28] sm:$0xf]
      %v2917 = vld [vmem:[%s2663 + $0x2c] sm:$0x1]
      %v2918 = vld [vmem:[%s2663 + $0x30] sm:$0xf]
      %v2919 = vld [vmem:[%s2663 + $0x34] sm:$0xf]
      %v2920 = vld [vmem:[%s2663 + $0x38] sm:$0x1]
      %v2921 = vld [vmem:[%s2663 + $0x3c] sm:$0xf]
      %v2922 = vld [vmem:[%s2663 + $0x40] sm:$0xf]
      %v2923 = vld [vmem:[%s2663 + $0x44] sm:$0x1]
      %v2924 = vld [vmem:[%s2663 + $0x48] sm:$0xf]
      %v2925 = vld [vmem:[%s2663 + $0x4c] sm:$0xf]
      %v2926 = vld [vmem:[%s2663 + $0x50] sm:$0x1]
      %v2927 = vld [vmem:[%s2663 + $0x54] sm:$0xf]
      %v2928 = vld [vmem:[%s2663 + $0x58] sm:$0xf]
      %v2929 = vld [vmem:[%s2663 + $0x5c] sm:$0x1]
      %v2931 = vshrl.u32 %v2906, 16
      %v2933 = vrot.slane %v2931, 4
      %v2934 = vshll.u32 %v2906, 16
      %v2936 = vrot.slane %v2934, 5
      %v2937 = vor.u32 %v2933, %v2936
      %v2938 = vrot.slane %v2937, 4
      %v2940 = vshll.u32 %v2907, 16
      %v2942 = vrot.slane %v2940, 5
      %v2943 = vsel %vm824, %v2938, %v2942
      %v2944 = vshrl.u32 %v2907, 16
      %v2946 = vrot.slane %v2944, 4
      %v2947 = vor.u32 %v2946, %v2942
      %v2948 = vrot.slane %v2947, 4
      %v2950 = vshll.u32 %v2908, 16
      %v2952 = vrot.slane %v2950, 5
      %v2953 = vsel %vm824, %v2948, %v2952
      %v2955 = vshrl.u32 %v2909, 16
      %v2957 = vrot.slane %v2955, 4
      %v2958 = vshll.u32 %v2909, 16
      %v2960 = vrot.slane %v2958, 5
      %v2961 = vor.u32 %v2957, %v2960
      %v2962 = vrot.slane %v2961, 4
      %v2964 = vshll.u32 %v2910, 16
      %v2966 = vrot.slane %v2964, 5
      %v2967 = vsel %vm824, %v2962, %v2966
      %v2968 = vshrl.u32 %v2910, 16
      %v2970 = vrot.slane %v2968, 4
      %v2971 = vor.u32 %v2970, %v2966
      %v2972 = vrot.slane %v2971, 4
      %v2974 = vshll.u32 %v2911, 16
      %v2976 = vrot.slane %v2974, 5
      %v2977 = vsel %vm824, %v2972, %v2976
      %v2979 = vshrl.u32 %v2912, 16
      %v2981 = vrot.slane %v2979, 4
      %v2982 = vshll.u32 %v2912, 16
      %v2984 = vrot.slane %v2982, 5
      %v2985 = vor.u32 %v2981, %v2984
      %v2986 = vrot.slane %v2985, 4
      %v2988 = vshll.u32 %v2913, 16
      %v2990 = vrot.slane %v2988, 5
      %v2991 = vsel %vm824, %v2986, %v2990
      %v2992 = vshrl.u32 %v2913, 16
      %v2994 = vrot.slane %v2992, 4
      %v2995 = vor.u32 %v2994, %v2990
      %v2996 = vrot.slane %v2995, 4
      %v2998 = vshll.u32 %v2914, 16
      %v3000 = vrot.slane %v2998, 5
      %v3001 = vsel %vm824, %v2996, %v3000
      %v3003 = vshrl.u32 %v2915, 16
      %v3005 = vrot.slane %v3003, 4
      %v3006 = vshll.u32 %v2915, 16
      %v3008 = vrot.slane %v3006, 5
      %v3009 = vor.u32 %v3005, %v3008
      %v3010 = vrot.slane %v3009, 4
      %v3012 = vshll.u32 %v2916, 16
      %v3014 = vrot.slane %v3012, 5
      %v3015 = vsel %vm824, %v3010, %v3014
      %v3016 = vshrl.u32 %v2916, 16
      %v3018 = vrot.slane %v3016, 4
      %v3019 = vor.u32 %v3018, %v3014
      %v3020 = vrot.slane %v3019, 4
      %v3022 = vshll.u32 %v2917, 16
      %v3024 = vrot.slane %v3022, 5
      %v3025 = vsel %vm824, %v3020, %v3024
      %v3027 = vshrl.u32 %v2918, 16
      %v3029 = vrot.slane %v3027, 4
      %v3030 = vshll.u32 %v2918, 16
      %v3032 = vrot.slane %v3030, 5
      %v3033 = vor.u32 %v3029, %v3032
      %v3034 = vrot.slane %v3033, 4
      %v3036 = vshll.u32 %v2919, 16
      %v3038 = vrot.slane %v3036, 5
      %v3039 = vsel %vm824, %v3034, %v3038
      %v3040 = vshrl.u32 %v2919, 16
      %v3042 = vrot.slane %v3040, 4
      %v3043 = vor.u32 %v3042, %v3038
      %v3044 = vrot.slane %v3043, 4
      %v3046 = vshll.u32 %v2920, 16
      %v3048 = vrot.slane %v3046, 5
      %v3049 = vsel %vm824, %v3044, %v3048
      %v3051 = vshrl.u32 %v2921, 16
      %v3053 = vrot.slane %v3051, 4
      %v3054 = vshll.u32 %v2921, 16
      %v3056 = vrot.slane %v3054, 5
      %v3057 = vor.u32 %v3053, %v3056
      %v3058 = vrot.slane %v3057, 4
      %v3060 = vshll.u32 %v2922, 16
      %v3062 = vrot.slane %v3060, 5
      %v3063 = vsel %vm824, %v3058, %v3062
      %v3064 = vshrl.u32 %v2922, 16
      %v3066 = vrot.slane %v3064, 4
      %v3067 = vor.u32 %v3066, %v3062
      %v3068 = vrot.slane %v3067, 4
      %v3070 = vshll.u32 %v2923, 16
      %v3072 = vrot.slane %v3070, 5
      %v3073 = vsel %vm824, %v3068, %v3072
      %v3075 = vshrl.u32 %v2924, 16
      %v3077 = vrot.slane %v3075, 4
      %v3078 = vshll.u32 %v2924, 16
      %v3080 = vrot.slane %v3078, 5
      %v3081 = vor.u32 %v3077, %v3080
      %v3082 = vrot.slane %v3081, 4
      %v3084 = vshll.u32 %v2925, 16
      %v3086 = vrot.slane %v3084, 5
      %v3087 = vsel %vm824, %v3082, %v3086
      %v3088 = vshrl.u32 %v2925, 16
      %v3090 = vrot.slane %v3088, 4
      %v3091 = vor.u32 %v3090, %v3086
      %v3092 = vrot.slane %v3091, 4
      %v3094 = vshll.u32 %v2926, 16
      %v3096 = vrot.slane %v3094, 5
      %v3097 = vsel %vm824, %v3092, %v3096
      %v3099 = vshrl.u32 %v2927, 16
      %v3101 = vrot.slane %v3099, 4
      %v3102 = vshll.u32 %v2927, 16
      %v3104 = vrot.slane %v3102, 5
      %v3105 = vor.u32 %v3101, %v3104
      %v3106 = vrot.slane %v3105, 4
      %v3108 = vshll.u32 %v2928, 16
      %v3110 = vrot.slane %v3108, 5
      %v3111 = vsel %vm824, %v3106, %v3110
      %v3112 = vshrl.u32 %v2928, 16
      %v3114 = vrot.slane %v3112, 4
      %v3115 = vor.u32 %v3114, %v3110
      %v3116 = vrot.slane %v3115, 4
      %v3118 = vshll.u32 %v2929, 16
      %v3120 = vrot.slane %v3118, 5
      %v3121 = vsel %vm824, %v3116, %v3120
      %s3122 = scalar_lea.vmem %s3, 448
      %v3123 = vld [vmem:[%s3122] sm:$0xf]
      %v3124 = vld [vmem:[%s3122 + $0x4] sm:$0xf]
      %v3125 = vld [vmem:[%s3122 + $0x8] sm:$0xf]
      %v3126 = vld [vmem:[%s3122 + $0xc] sm:$0xf]
      %v3127 = vld [vmem:[%s3122 + $0x10] sm:$0xf]
      %v3128 = vld [vmem:[%s3122 + $0x14] sm:$0xf]
      %v3129 = vld [vmem:[%s3122 + $0x18] sm:$0xf]
      %v3130 = vld [vmem:[%s3122 + $0x1c] sm:$0xf]
      %v3131 = vld [vmem:[%s3122 + $0x20] sm:$0xf]
      %v3132 = vld [vmem:[%s3122 + $0x24] sm:$0xf]
      %v3133 = vld [vmem:[%s3122 + $0x28] sm:$0xf]
      %v3134 = vld [vmem:[%s3122 + $0x2c] sm:$0xf]
      %v3135 = vld [vmem:[%s3122 + $0x30] sm:$0xf]
      %v3136 = vld [vmem:[%s3122 + $0x34] sm:$0xf]
      %v3137 = vld [vmem:[%s3122 + $0x38] sm:$0xf]
      %v3138 = vld [vmem:[%s3122 + $0x3c] sm:$0xf]
      %v3139 = vunpack.c.l.b16 %v2943
      %v3140 = vunpack.c.l.b16 %v2953
      %v3141 = vunpack.c.l.b16 %v2967
      %v3142 = vunpack.c.l.b16 %v2977
      %v3143 = vunpack.c.l.b16 %v2991
      %v3144 = vunpack.c.l.b16 %v3001
      %v3145 = vunpack.c.l.b16 %v3015
      %v3146 = vunpack.c.l.b16 %v3025
      %v3147 = vunpack.c.l.b16 %v3039
      %v3148 = vunpack.c.l.b16 %v3049
      %v3149 = vunpack.c.l.b16 %v3063
      %v3150 = vunpack.c.l.b16 %v3073
      %v3151 = vunpack.c.l.b16 %v3087
      %v3152 = vunpack.c.l.b16 %v3097
      %v3153 = vunpack.c.l.b16 %v3111
      %v3154 = vunpack.c.l.b16 %v3121
      %v3155 = vpack.c.b16 %v3140, %v3139
      %v3156 = vpack.c.b16 %v3142, %v3141
      %v3157 = vpack.c.b16 %v3144, %v3143
      %v3158 = vpack.c.b16 %v3146, %v3145
      %v3159 = vpack.c.b16 %v3148, %v3147
      %v3160 = vpack.c.b16 %v3150, %v3149
      %v3161 = vpack.c.b16 %v3152, %v3151
      %v3162 = vpack.c.b16 %v3154, %v3153
      %v3187 = vunpack.c.l.b16 %v3123
      %v3188 = vunpack.c.l.b16 %v3124
      %v3189 = vunpack.c.l.b16 %v3125
      %v3190 = vunpack.c.l.b16 %v3126
      %v3191 = vunpack.c.l.b16 %v3127
      %v3192 = vunpack.c.l.b16 %v3128
      %v3193 = vunpack.c.l.b16 %v3129
      %v3194 = vunpack.c.l.b16 %v3130
      %v3195 = vunpack.c.l.b16 %v3131
      %v3196 = vunpack.c.l.b16 %v3132
      %v3197 = vunpack.c.l.b16 %v3133
      %v3198 = vunpack.c.l.b16 %v3134
      %v3199 = vunpack.c.l.b16 %v3135
      %v3200 = vunpack.c.l.b16 %v3136
      %v3201 = vunpack.c.l.b16 %v3137
      %v3202 = vunpack.c.l.b16 %v3138
      %v3203 = vpack.c.b16 %v3188, %v3187
      %v3204 = vpack.c.b16 %v3190, %v3189
      %v3205 = vpack.c.b16 %v3192, %v3191
      %v3206 = vpack.c.b16 %v3194, %v3193
      %v3207 = vpack.c.b16 %v3196, %v3195
      %v3208 = vpack.c.b16 %v3198, %v3197
      %v3209 = vpack.c.b16 %v3200, %v3199
      %v3210 = vpack.c.b16 %v3202, %v3201
      %3219 = vmatprep.subr.bf16.mxu0 0
      %3220 = vmatpush1.bf16.msra.mxu0 %v3203
      %3221 = vmatprep.subr.bf16.mxu0 0
      %3222 = vmatpush1.bf16.msra.mxu0 %v3204
      %3223 = vmatprep.subr.bf16.mxu0 0
      %3224 = vmatpush1.bf16.msra.mxu0 %v3205
      %3225 = vmatprep.subr.bf16.mxu0 0
      %3226 = vmatpush1.bf16.msra.mxu0 %v3206
      %3227 = vmatprep.subr.bf16.mxu0 0
      %3228 = vmatpush1.bf16.msra.mxu0 %v3207
      %3229 = vmatprep.subr.bf16.mxu0 0
      %3230 = vmatpush1.bf16.msra.mxu0 %v3208
      %3231 = vmatprep.subr.bf16.mxu0 0
      %3232 = vmatpush1.bf16.msra.mxu0 %v3209
      %3233 = vmatprep.subr.bf16.mxu0 0
      %3234 = vmatpush1.bf16.msra.mxu0 %v3210
      %3235 = vmatprep.subr.bf16.mxu0 0
      %3236 = vmatpush1.bf16.msra.mxu0 0
      %3237 = vmatprep.subr.bf16.mxu0 0
      %3238 = vmatpush1.bf16.msra.mxu0 0
      %3239 = vmatprep.subr.bf16.mxu0 0
      %3240 = vmatpush1.bf16.msra.mxu0 0
      %3241 = vmatprep.subr.bf16.mxu0 0
      %3242 = vmatpush1.bf16.msra.mxu0 0
      %3243 = vmatprep.subr.bf16.mxu0 0
      %3244 = vmatpush1.bf16.msra.mxu0 0
      %3245 = vmatprep.subr.bf16.mxu0 0
      %3246 = vmatpush1.bf16.msra.mxu0 0
      %3247 = vmatprep.subr.bf16.mxu0 0
      %3248 = vmatpush1.bf16.msra.mxu0 0
      %3249 = vmatprep.subr.bf16.mxu0 0
      %3250 = vmatpush1.bf16.msra.mxu0 0
      %3251 = vmatprep.mubr.bf16.mxu0 0
      %3252 = vmatmul.mubr.bf16.gmra.mrb[0].mxu0 %v3155
      %v3253 = vpop.f32.mrb[0].mxu0
      %v3254 = vadd.f32 0.0, %v3253
      %v3255 = vpop.f32.mrb[0].mxu0
      %v3256 = vpop.f32.mrb[0].mxu0
      %v3257 = vadd.f32 0.0, %v3256
      %v3258 = vpop.f32.mrb[0].mxu0
      %3259 = vmatprep.mubr.bf16.mxu0 0
      %3260 = vmatmul.mubr.bf16.gmra.mrb[0].mxu0 %v3156
      %v3261 = vpop.f32.mrb[0].mxu0
      %v3262 = vadd.f32 0.0, %v3261
      %v3263 = vpop.f32.mrb[0].mxu0
      %v3264 = vpop.f32.mrb[0].mxu0
      %v3265 = vadd.f32 0.0, %v3264
      %v3266 = vpop.f32.mrb[0].mxu0
      %3267 = vmatprep.mubr.bf16.mxu0 0
      %3268 = vmatmul.mubr.bf16.gmra.mrb[0].mxu0 %v3157
      %v3269 = vpop.f32.mrb[0].mxu0
      %v3270 = vadd.f32 0.0, %v3269
      %v3271 = vpop.f32.mrb[0].mxu0
      %v3272 = vpop.f32.mrb[0].mxu0
      %v3273 = vadd.f32 0.0, %v3272
      %v3274 = vpop.f32.mrb[0].mxu0
      %3275 = vmatprep.mubr.bf16.mxu0 0
      %3276 = vmatmul.mubr.bf16.gmra.mrb[0].mxu0 %v3158
      %v3277 = vpop.f32.mrb[0].mxu0
      %v3278 = vadd.f32 0.0, %v3277
      %v3279 = vpop.f32.mrb[0].mxu0
      %v3280 = vpop.f32.mrb[0].mxu0
      %v3281 = vadd.f32 0.0, %v3280
      %v3282 = vpop.f32.mrb[0].mxu0
      %3283 = vmatprep.mubr.bf16.mxu0 0
      %3284 = vmatmul.mubr.bf16.gmra.mrb[0].mxu0 %v3159
      %v3285 = vpop.f32.mrb[0].mxu0
      %v3286 = vadd.f32 0.0, %v3285
      %v3287 = vpop.f32.mrb[0].mxu0
      %v3288 = vpop.f32.mrb[0].mxu0
      %v3289 = vadd.f32 0.0, %v3288
      %v3290 = vpop.f32.mrb[0].mxu0
      %3291 = vmatprep.mubr.bf16.mxu0 0
      %3292 = vmatmul.mubr.bf16.gmra.mrb[0].mxu0 %v3160
      %v3293 = vpop.f32.mrb[0].mxu0
      %v3294 = vadd.f32 0.0, %v3293
      %v3295 = vpop.f32.mrb[0].mxu0
      %v3296 = vpop.f32.mrb[0].mxu0
      %v3297 = vadd.f32 0.0, %v3296
      %v3298 = vpop.f32.mrb[0].mxu0
      %3299 = vmatprep.mubr.bf16.mxu0 0
      %3300 = vmatmul.mubr.bf16.gmra.mrb[0].mxu0 %v3161
      %v3301 = vpop.f32.mrb[0].mxu0
      %v3302 = vadd.f32 0.0, %v3301
      %v3303 = vpop.f32.mrb[0].mxu0
      %v3304 = vpop.f32.mrb[0].mxu0
      %v3305 = vadd.f32 0.0, %v3304
      %v3306 = vpop.f32.mrb[0].mxu0
      %3307 = vmatprep.mubr.bf16.mxu0 0
      %3308 = vmatmul.mubr.bf16.gmra.mrb[0].mxu0 %v3162
      %v3309 = vpop.f32.mrb[0].mxu0
      %v3310 = vadd.f32 0.0, %v3309
      %v3311 = vpop.f32.mrb[0].mxu0
      %v3312 = vpop.f32.mrb[0].mxu0
      %v3313 = vadd.f32 0.0, %v3312
      %v3314 = vpop.f32.mrb[0].mxu0
      %3315 = vdwg.mxu0
      %v3316 = vadd.f32 %v2890, %v3254
      %v3317 = vadd.f32 %v2891, %v3257
      %v3318 = vadd.f32 %v2892, %v3262
      %v3319 = vadd.f32 %v2893, %v3265
      %v3320 = vadd.f32 %v2894, %v3270
      %v3321 = vadd.f32 %v2895, %v3273
      %v3322 = vadd.f32 %v2896, %v3278
      %v3323 = vadd.f32 %v2897, %v3281
      %v3324 = vadd.f32 %v2898, %v3286
      %v3325 = vadd.f32 %v2899, %v3289
      %v3326 = vadd.f32 %v2900, %v3294
      %v3327 = vadd.f32 %v2901, %v3297
      %v3328 = vadd.f32 %v2902, %v3302
      %v3329 = vadd.f32 %v2903, %v3305
      %v3330 = vadd.f32 %v2904, %v3310
      %v3331 = vadd.f32 %v2905, %v3313
      %v3332 = vld [vmem:[%s2663] sm:$0xe]
      %v3333 = vld [vmem:[%s2663 + $0xc] sm:$0xe]
      %v3334 = vld [vmem:[%s2663 + $0x18] sm:$0xe]
      %v3335 = vld [vmem:[%s2663 + $0x24] sm:$0xe]
      %v3336 = vld [vmem:[%s2663 + $0x30] sm:$0xe]
      %v3337 = vld [vmem:[%s2663 + $0x3c] sm:$0xe]
      %v3338 = vld [vmem:[%s2663 + $0x48] sm:$0xe]
      %v3339 = vld [vmem:[%s2663 + $0x54] sm:$0xe]
      %v3364 = vrot.slane %v3332, 5
      %v3365 = vrot.slane %v3364, 4
      %v3366 = vrot.slane %v2907, 5
      %v3367 = vsel %vm1430, %v3365, %v3366
      %v3368 = vrot.slane %v3366, 4
      %v3369 = vrot.slane %v2908, 5
      %v3370 = vsel %vm1430, %v3368, %v3369
      %v3371 = vrot.slane %v3333, 5
      %v3372 = vrot.slane %v3371, 4
      %v3373 = vrot.slane %v2910, 5
      %v3374 = vsel %vm1430, %v3372, %v3373
      %v3375 = vrot.slane %v3373, 4
      %v3376 = vrot.slane %v2911, 5
      %v3377 = vsel %vm1430, %v3375, %v3376
      %v3378 = vrot.slane %v3334, 5
      %v3379 = vrot.slane %v3378, 4
      %v3380 = vrot.slane %v2913, 5
      %v3381 = vsel %vm1430, %v3379, %v3380
      %v3382 = vrot.slane %v3380, 4
      %v3383 = vrot.slane %v2914, 5
      %v3384 = vsel %vm1430, %v3382, %v3383
      %v3385 = vrot.slane %v3335, 5
      %v3386 = vrot.slane %v3385, 4
      %v3387 = vrot.slane %v2916, 5
      %v3388 = vsel %vm1430, %v3386, %v3387
      %v3389 = vrot.slane %v3387, 4
      %v3390 = vrot.slane %v2917, 5
      %v3391 = vsel %vm1430, %v3389, %v3390
      %v3392 = vrot.slane %v3336, 5
      %v3393 = vrot.slane %v3392, 4
      %v3394 = vrot.slane %v2919, 5
      %v3395 = vsel %vm1430, %v3393, %v3394
      %v3396 = vrot.slane %v3394, 4
      %v3397 = vrot.slane %v2920, 5
      %v3398 = vsel %vm1430, %v3396, %v3397
      %v3399 = vrot.slane %v3337, 5
      %v3400 = vrot.slane %v3399, 4
      %v3401 = vrot.slane %v2922, 5
      %v3402 = vsel %vm1430, %v3400, %v3401
      %v3403 = vrot.slane %v3401, 4
      %v3404 = vrot.slane %v2923, 5
      %v3405 = vsel %vm1430, %v3403, %v3404
      %v3406 = vrot.slane %v3338, 5
      %v3407 = vrot.slane %v3406, 4
      %v3408 = vrot.slane %v2925, 5
      %v3409 = vsel %vm1430, %v3407, %v3408
      %v3410 = vrot.slane %v3408, 4
      %v3411 = vrot.slane %v2926, 5
      %v3412 = vsel %vm1430, %v3410, %v3411
      %v3413 = vrot.slane %v3339, 5
      %v3414 = vrot.slane %v3413, 4
      %v3415 = vrot.slane %v2928, 5
      %v3416 = vsel %vm1430, %v3414, %v3415
      %v3417 = vrot.slane %v3415, 4
      %v3418 = vrot.slane %v2929, 5
      %v3419 = vsel %vm1430, %v3417, %v3418
      %s3420 = scalar_lea.vmem %s3, 512
      %v3421 = vld [vmem:[%s3420] sm:$0xf]
      %v3422 = vld [vmem:[%s3420 + $0x4] sm:$0xf]
      %v3423 = vld [vmem:[%s3420 + $0x8] sm:$0xf]
      %v3424 = vld [vmem:[%s3420 + $0xc] sm:$0xf]
      %v3425 = vld [vmem:[%s3420 + $0x10] sm:$0xf]
      %v3426 = vld [vmem:[%s3420 + $0x14] sm:$0xf]
      %v3427 = vld [vmem:[%s3420 + $0x18] sm:$0xf]
      %v3428 = vld [vmem:[%s3420 + $0x1c] sm:$0xf]
      %v3429 = vld [vmem:[%s3420 + $0x20] sm:$0xf]
      %v3430 = vld [vmem:[%s3420 + $0x24] sm:$0xf]
      %v3431 = vld [vmem:[%s3420 + $0x28] sm:$0xf]
      %v3432 = vld [vmem:[%s3420 + $0x2c] sm:$0xf]
      %v3433 = vld [vmem:[%s3420 + $0x30] sm:$0xf]
      %v3434 = vld [vmem:[%s3420 + $0x34] sm:$0xf]
      %v3435 = vld [vmem:[%s3420 + $0x38] sm:$0xf]
      %v3436 = vld [vmem:[%s3420 + $0x3c] sm:$0xf]
      %v3437 = vunpack.c.l.b16 %v3367
      %v3438 = vunpack.c.l.b16 %v3370
      %v3439 = vunpack.c.l.b16 %v3374
      %v3440 = vunpack.c.l.b16 %v3377
      %v3441 = vunpack.c.l.b16 %v3381
      %v3442 = vunpack.c.l.b16 %v3384
      %v3443 = vunpack.c.l.b16 %v3388
      %v3444 = vunpack.c.l.b16 %v3391
      %v3445 = vunpack.c.l.b16 %v3395
      %v3446 = vunpack.c.l.b16 %v3398
      %v3447 = vunpack.c.l.b16 %v3402
      %v3448 = vunpack.c.l.b16 %v3405
      %v3449 = vunpack.c.l.b16 %v3409
      %v3450 = vunpack.c.l.b16 %v3412
      %v3451 = vunpack.c.l.b16 %v3416
      %v3452 = vunpack.c.l.b16 %v3419
      %v3453 = vpack.c.b16 %v3438, %v3437
      %v3454 = vpack.c.b16 %v3440, %v3439
      %v3455 = vpack.c.b16 %v3442, %v3441
      %v3456 = vpack.c.b16 %v3444, %v3443
      %v3457 = vpack.c.b16 %v3446, %v3445
      %v3458 = vpack.c.b16 %v3448, %v3447
      %v3459 = vpack.c.b16 %v3450, %v3449
      %v3460 = vpack.c.b16 %v3452, %v3451
      %v3485 = vunpack.c.l.b16 %v3421
      %v3486 = vunpack.c.l.b16 %v3422
      %v3487 = vunpack.c.l.b16 %v3423
      %v3488 = vunpack.c.l.b16 %v3424
      %v3489 = vunpack.c.l.b16 %v3425
      %v3490 = vunpack.c.l.b16 %v3426
      %v3491 = vunpack.c.l.b16 %v3427
      %v3492 = vunpack.c.l.b16 %v3428
      %v3493 = vunpack.c.l.b16 %v3429
      %v3494 = vunpack.c.l.b16 %v3430
      %v3495 = vunpack.c.l.b16 %v3431
      %v3496 = vunpack.c.l.b16 %v3432
      %v3497 = vunpack.c.l.b16 %v3433
      %v3498 = vunpack.c.l.b16 %v3434
      %v3499 = vunpack.c.l.b16 %v3435
      %v3500 = vunpack.c.l.b16 %v3436
      %v3501 = vpack.c.b16 %v3486, %v3485
      %v3502 = vpack.c.b16 %v3488, %v3487
      %v3503 = vpack.c.b16 %v3490, %v3489
      %v3504 = vpack.c.b16 %v3492, %v3491
      %v3505 = vpack.c.b16 %v3494, %v3493
      %v3506 = vpack.c.b16 %v3496, %v3495
      %v3507 = vpack.c.b16 %v3498, %v3497
      %v3508 = vpack.c.b16 %v3500, %v3499
      %3517 = vmatprep.subr.bf16.mxu0 0
      %3518 = vmatpush1.bf16.msra.mxu0 %v3501
      %3519 = vmatprep.subr.bf16.mxu0 0
      %3520 = vmatpush1.bf16.msra.mxu0 %v3502
      %3521 = vmatprep.subr.bf16.mxu0 0
      %3522 = vmatpush1.bf16.msra.mxu0 %v3503
      %3523 = vmatprep.subr.bf16.mxu0 0
      %3524 = vmatpush1.bf16.msra.mxu0 %v3504
      %3525 = vmatprep.subr.bf16.mxu0 0
      %3526 = vmatpush1.bf16.msra.mxu0 %v3505
      %3527 = vmatprep.subr.bf16.mxu0 0
      %3528 = vmatpush1.bf16.msra.mxu0 %v3506
      %3529 = vmatprep.subr.bf16.mxu0 0
      %3530 = vmatpush1.bf16.msra.mxu0 %v3507
      %3531 = vmatprep.subr.bf16.mxu0 0
      %3532 = vmatpush1.bf16.msra.mxu0 %v3508
      %3533 = vmatprep.subr.bf16.mxu0 0
      %3534 = vmatpush1.bf16.msra.mxu0 0
      %3535 = vmatprep.subr.bf16.mxu0 0
      %3536 = vmatpush1.bf16.msra.mxu0 0
      %3537 = vmatprep.subr.bf16.mxu0 0
      %3538 = vmatpush1.bf16.msra.mxu0 0
      %3539 = vmatprep.subr.bf16.mxu0 0
      %3540 = vmatpush1.bf16.msra.mxu0 0
      %3541 = vmatprep.subr.bf16.mxu0 0
      %3542 = vmatpush1.bf16.msra.mxu0 0
      %3543 = vmatprep.subr.bf16.mxu0 0
      %3544 = vmatpush1.bf16.msra.mxu0 0
      %3545 = vmatprep.subr.bf16.mxu0 0
      %3546 = vmatpush1.bf16.msra.mxu0 0
      %3547 = vmatprep.subr.bf16.mxu0 0
      %3548 = vmatpush1.bf16.msra.mxu0 0
      %3549 = vmatprep.mubr.bf16.mxu0 0
      %3550 = vmatmul.mubr.bf16.gmra.mrb[0].mxu0 %v3453
      %v3551 = vpop.f32.mrb[0].mxu0
      %v3552 = vadd.f32 0.0, %v3551
      %v3553 = vpop.f32.mrb[0].mxu0
      %v3554 = vpop.f32.mrb[0].mxu0
      %v3555 = vadd.f32 0.0, %v3554
      %v3556 = vpop.f32.mrb[0].mxu0
      %3557 = vmatprep.mubr.bf16.mxu0 0
      %3558 = vmatmul.mubr.bf16.gmra.mrb[0].mxu0 %v3454
      %v3559 = vpop.f32.mrb[0].mxu0
      %v3560 = vadd.f32 0.0, %v3559
      %v3561 = vpop.f32.mrb[0].mxu0
      %v3562 = vpop.f32.mrb[0].mxu0
      %v3563 = vadd.f32 0.0, %v3562
      %v3564 = vpop.f32.mrb[0].mxu0
      %3565 = vmatprep.mubr.bf16.mxu0 0
      %3566 = vmatmul.mubr.bf16.gmra.mrb[0].mxu0 %v3455
      %v3567 = vpop.f32.mrb[0].mxu0
      %v3568 = vadd.f32 0.0, %v3567
      %v3569 = vpop.f32.mrb[0].mxu0
      %v3570 = vpop.f32.mrb[0].mxu0
      %v3571 = vadd.f32 0.0, %v3570
      %v3572 = vpop.f32.mrb[0].mxu0
      %3573 = vmatprep.mubr.bf16.mxu0 0
      %3574 = vmatmul.mubr.bf16.gmra.mrb[0].mxu0 %v3456
      %v3575 = vpop.f32.mrb[0].mxu0
      %v3576 = vadd.f32 0.0, %v3575
      %v3577 = vpop.f32.mrb[0].mxu0
      %v3578 = vpop.f32.mrb[0].mxu0
      %v3579 = vadd.f32 0.0, %v3578
      %v3580 = vpop.f32.mrb[0].mxu0
      %3581 = vmatprep.mubr.bf16.mxu0 0
      %3582 = vmatmul.mubr.bf16.gmra.mrb[0].mxu0 %v3457
      %v3583 = vpop.f32.mrb[0].mxu0
      %v3584 = vadd.f32 0.0, %v3583
      %v3585 = vpop.f32.mrb[0].mxu0
      %v3586 = vpop.f32.mrb[0].mxu0
      %v3587 = vadd.f32 0.0, %v3586
      %v3588 = vpop.f32.mrb[0].mxu0
      %3589 = vmatprep.mubr.bf16.mxu0 0
      %3590 = vmatmul.mubr.bf16.gmra.mrb[0].mxu0 %v3458
      %v3591 = vpop.f32.mrb[0].mxu0
      %v3592 = vadd.f32 0.0, %v3591
      %v3593 = vpop.f32.mrb[0].mxu0
      %v3594 = vpop.f32.mrb[0].mxu0
      %v3595 = vadd.f32 0.0, %v3594
      %v3596 = vpop.f32.mrb[0].mxu0
      %3597 = vmatprep.mubr.bf16.mxu0 0
      %3598 = vmatmul.mubr.bf16.gmra.mrb[0].mxu0 %v3459
      %v3599 = vpop.f32.mrb[0].mxu0
      %v3600 = vadd.f32 0.0, %v3599
      %v3601 = vpop.f32.mrb[0].mxu0
      %v3602 = vpop.f32.mrb[0].mxu0
      %v3603 = vadd.f32 0.0, %v3602
      %v3604 = vpop.f32.mrb[0].mxu0
      %3605 = vmatprep.mubr.bf16.mxu0 0
      %3606 = vmatmul.mubr.bf16.gmra.mrb[0].mxu0 %v3460
      %v3607 = vpop.f32.mrb[0].mxu0
      %v3608 = vadd.f32 0.0, %v3607
      %v3609 = vpop.f32.mrb[0].mxu0
      %v3610 = vpop.f32.mrb[0].mxu0
      %v3611 = vadd.f32 0.0, %v3610
      %v3612 = vpop.f32.mrb[0].mxu0
      %3613 = vdwg.mxu0
      %v3614 = vadd.f32 %v3316, %v3552
      %v3615 = vadd.f32 %v3317, %v3555
      %v3616 = vadd.f32 %v3318, %v3560
      %v3617 = vadd.f32 %v3319, %v3563
      %v3618 = vadd.f32 %v3320, %v3568
      %v3619 = vadd.f32 %v3321, %v3571
      %v3620 = vadd.f32 %v3322, %v3576
      %v3621 = vadd.f32 %v3323, %v3579
      %v3622 = vadd.f32 %v3324, %v3584
      %v3623 = vadd.f32 %v3325, %v3587
      %v3624 = vadd.f32 %v3326, %v3592
      %v3625 = vadd.f32 %v3327, %v3595
      %v3626 = vadd.f32 %v3328, %v3600
      %v3627 = vadd.f32 %v3329, %v3603
      %v3628 = vadd.f32 %v3330, %v3608
      %v3629 = vadd.f32 %v3331, %v3611
      %v3630 = vpack.c.bf16 %v3615, %v3614
      %v3631 = vpack.c.bf16 %v3617, %v3616
      %v3632 = vpack.c.bf16 %v3619, %v3618
      %v3633 = vpack.c.bf16 %v3621, %v3620
      %v3634 = vpack.c.bf16 %v3623, %v3622
      %v3635 = vpack.c.bf16 %v3625, %v3624
      %v3636 = vpack.c.bf16 %v3627, %v3626
      %v3637 = vpack.c.bf16 %v3629, %v3628
      %v3646 = vunpack.c.l.b16 %v3630
      %v3647 = vunpack.c.h.b16 %v3630
      %v3648 = vunpack.c.l.b16 %v3631
      %v3649 = vunpack.c.h.b16 %v3631
      %v3650 = vunpack.c.l.b16 %v3632
      %v3651 = vunpack.c.h.b16 %v3632
      %v3652 = vunpack.c.l.b16 %v3633
      %v3653 = vunpack.c.h.b16 %v3633
      %v3654 = vunpack.c.l.b16 %v3634
      %v3655 = vunpack.c.h.b16 %v3634
      %v3656 = vunpack.c.l.b16 %v3635
      %v3657 = vunpack.c.h.b16 %v3635
      %v3658 = vunpack.c.l.b16 %v3636
      %v3659 = vunpack.c.h.b16 %v3636
      %v3660 = vunpack.c.l.b16 %v3637
      %v3661 = vunpack.c.h.b16 %v3637
      %v3662 = vpack.c.b16 %v3646, %v3646
      %v3663 = vpack.c.b16 %v3647, %v3647
      %v3664 = vpack.c.b16 %v3648, %v3648
      %v3665 = vpack.c.b16 %v3649, %v3649
      %v3666 = vpack.c.b16 %v3650, %v3650
      %v3667 = vpack.c.b16 %v3651, %v3651
      %v3668 = vpack.c.b16 %v3652, %v3652
      %v3669 = vpack.c.b16 %v3653, %v3653
      %v3670 = vpack.c.b16 %v3654, %v3654
      %v3671 = vpack.c.b16 %v3655, %v3655
      %v3672 = vpack.c.b16 %v3656, %v3656
      %v3673 = vpack.c.b16 %v3657, %v3657
      %v3674 = vpack.c.b16 %v3658, %v3658
      %v3675 = vpack.c.b16 %v3659, %v3659
      %v3676 = vpack.c.b16 %v3660, %v3660
      %v3677 = vpack.c.b16 %v3661, %v3661
      %3694 = vst [vmem:[%s261] sm:$0xf] %v3662
      %3695 = vst [vmem:[%s261 + $0x4] sm:$0xf] %v3663
      %3696 = vst [vmem:[%s261 + $0x8] sm:$0xf] %v3664
      %3697 = vst [vmem:[%s261 + $0xc] sm:$0xf] %v3665
      %3698 = vst [vmem:[%s261 + $0x10] sm:$0xf] %v3666
      %3699 = vst [vmem:[%s261 + $0x14] sm:$0xf] %v3667
      %3700 = vst [vmem:[%s261 + $0x18] sm:$0xf] %v3668
      %3701 = vst [vmem:[%s261 + $0x1c] sm:$0xf] %v3669
      %3702 = vst [vmem:[%s261 + $0x20] sm:$0xf] %v3670
      %3703 = vst [vmem:[%s261 + $0x24] sm:$0xf] %v3671
      %3704 = vst [vmem:[%s261 + $0x28] sm:$0xf] %v3672
      %3705 = vst [vmem:[%s261 + $0x2c] sm:$0xf] %v3673
      %3706 = vst [vmem:[%s261 + $0x30] sm:$0xf] %v3674
      %3707 = vst [vmem:[%s261 + $0x34] sm:$0xf] %v3675
      %3708 = vst [vmem:[%s261 + $0x38] sm:$0xf] %v3676
      %3709 = vst [vmem:[%s261 + $0x3c] sm:$0xf] %v3677
      %v3710 = vadd.f32 %v3614, %v3615
      %v3711 = vadd.f32 %v3710, %v3616
      %v3712 = vadd.f32 %v3711, %v3617
      %v3713 = vadd.f32 %v3712, %v3618
      %v3714 = vadd.f32 %v3713, %v3619
      %v3715 = vadd.f32 %v3714, %v3620
      %v3716 = vadd.f32 %v3715, %v3621
      %v3717 = vadd.f32 %v3716, %v3622
      %v3718 = vadd.f32 %v3717, %v3623
      %v3719 = vadd.f32 %v3718, %v3624
      %v3720 = vadd.f32 %v3719, %v3625
      %v3721 = vadd.f32 %v3720, %v3626
      %v3722 = vadd.f32 %v3721, %v3627
      %v3723 = vadd.f32 %v3722, %v3628
      %v3724 = vadd.f32 %v3723, %v3629
      %v3725 = vrot.slane %v3724, 4
      %v3726 = vadd.f32 %v3724, %v3725
      %v3727 = vrot.slane %v3726, 2
      %v3728 = vadd.f32 %v3726, %v3727
      %v3729 = vrot.slane %v3728, 1
      %v3730 = vadd.f32 %v3728, %v3729
      %3731 = vst [vmem:[%s270] sm:$0x1] %v3730
      %v3732 = vmul.f32 %v3614, %v3614
      %v3733 = vmul.f32 %v3615, %v3615
      %v3734 = vmul.f32 %v3616, %v3616
      %v3735 = vmul.f32 %v3617, %v3617
      %v3736 = vmul.f32 %v3618, %v3618
      %v3737 = vmul.f32 %v3619, %v3619
      %v3738 = vmul.f32 %v3620, %v3620
      %v3739 = vmul.f32 %v3621, %v3621
      %v3740 = vmul.f32 %v3622, %v3622
      %v3741 = vmul.f32 %v3623, %v3623
      %v3742 = vmul.f32 %v3624, %v3624
      %v3743 = vmul.f32 %v3625, %v3625
      %v3744 = vmul.f32 %v3626, %v3626
      %v3745 = vmul.f32 %v3627, %v3627
      %v3746 = vmul.f32 %v3628, %v3628
      %v3747 = vmul.f32 %v3629, %v3629
      %v3748 = vadd.f32 %v3732, %v3733
      %v3749 = vadd.f32 %v3748, %v3734
      %v3750 = vadd.f32 %v3749, %v3735
      %v3751 = vadd.f32 %v3750, %v3736
      %v3752 = vadd.f32 %v3751, %v3737
      %v3753 = vadd.f32 %v3752, %v3738
      %v3754 = vadd.f32 %v3753, %v3739
      %v3755 = vadd.f32 %v3754, %v3740
      %v3756 = vadd.f32 %v3755, %v3741
      %v3757 = vadd.f32 %v3756, %v3742
      %v3758 = vadd.f32 %v3757, %v3743
      %v3759 = vadd.f32 %v3758, %v3744
      %v3760 = vadd.f32 %v3759, %v3745
      %v3761 = vadd.f32 %v3760, %v3746
      %v3762 = vadd.f32 %v3761, %v3747
      %v3763 = vrot.slane %v3762, 4
      %v3764 = vadd.f32 %v3762, %v3763
      %v3765 = vrot.slane %v3764, 2
      %v3766 = vadd.f32 %v3764, %v3765
      %v3767 = vrot.slane %v3766, 1
      %v3768 = vadd.f32 %v3766, %v3767
      %3769 = vst [vmem:[%s270 + $0x1] sm:$0x1] %v3768
      %s3770 = smul.u32 8, %s22
      %p3771 = scmp.lt.s32.totalorder %s21, 1
      %s3772 = scalar_select %p3771, %s21, 1
      %p3773 = scmp.lt.s32.totalorder %s3770, 15
      %s3774 = scalar_select %p3773, %s3770, 15
      %s3775 = smul.addr %s3774, 2
      %s3776 = smul.addr %s3772, 32
      %s3777 = sadd.s32 %s3775, %s3776
      %s3778 = smul.addr %s3777, 4
      %s3779 = scalar_lea.vmem %s4, %s3778
      %p3780 = scmp.lt.s32.totalorder %s21, 1
      %s3781 = scalar_select %p3780, %s21, 1
      %p3782 = scmp.lt.s32.totalorder %s22, 1
      %s3783 = scalar_select %p3782, %s22, 1
      %s3784 = smul.addr %s3781, 2
      %s3785 = sadd.s32 %s3783, %s3784
      %s3786 = smul.addr %s3785, 2
      %s3787 = scalar_lea.vmem %s5, %s3786
      // Predicated region
      $region37: #{residual_block_forward.4} parent=35 // pred_check
        %p3788 = pneg %p138
      $region38: #{residual_block_forward.4} parent=35 // pred_check_branch
        %3790 = sbr.rel (%p3788) target = $region40
      $region39: #{residual_block_forward.4} parent=35 // pred_region
        %s3791 = smul.u32 8, %s22
      $region40: #{residual_block_forward.4} parent=35 // pred_fallthru
        _
      // Predicated region
      $region41: #{residual_block_forward.4} parent=35 // pred_check
        %p3792 = pneg %p166
      $region42: #{residual_block_forward.4} parent=35 // pred_check_branch
        %3794 = sbr.rel (%p3792) target = $region44
      $region43: #{residual_block_forward.4} parent=35 // pred_region
        _
      $region44: #{residual_block_forward.4} parent=35 // pred_fallthru
        _
    $region36: #{residual_block_forward.4} parent=5 // pred_fallthru
      _
    %p3795 = scmp.le.s32.totalorder 2, %s12
    // Predicated region
    $region45: #{residual_block_forward.4} parent=5 // pred_check
      %p3796 = pneg %p3795
    $region46: #{residual_block_forward.4} parent=5 // pred_check_branch
      %3798 = sbr.rel (%p3796) target = $region48
    $region47: #{residual_block_forward.4} parent=5 // pred_region
      %s3799 = ssub.s32 %s12, 2
      // Predicated region
      $region49: #{residual_block_forward.4} parent=47 // pred_check
        %p3800 = pneg %p144
      $region50: #{residual_block_forward.4} parent=47 // pred_check_branch
        %3802 = sbr.rel (%p3800) target = $region52
      $region51: #{residual_block_forward.4} parent=47 // pred_region
        %s3803 = smul.u32 8, %s24
        %p3804 = scmp.lt.s32.totalorder %s23, 1
        %s3805 = scalar_select %p3804, %s23, 1
        %p3806 = scmp.lt.s32.totalorder %s3803, 15
        %s3807 = scalar_select %p3806, %s3803, 15
        %s3808 = smul.addr %s3807, 2
        %s3809 = smul.addr %s3805, 32
        %s3810 = sadd.s32 %s3808, %s3809
        %s3811 = smul.addr %s3810, 4
        %s3812 = scalar_lea.vmem %s4, %s3811
      $region52: #{residual_block_forward.4} parent=47 // pred_fallthru
        _
      // Predicated region
      $region53: #{residual_block_forward.4} parent=47 // pred_check
        %p3813 = pneg %p172
      $region54: #{residual_block_forward.4} parent=47 // pred_check_branch
        %3815 = sbr.rel (%p3813) target = $region56
      $region55: #{residual_block_forward.4} parent=47 // pred_region
        %p3816 = scmp.lt.s32.totalorder %s23, 1
        %s3817 = scalar_select %p3816, %s23, 1
        %p3818 = scmp.lt.s32.totalorder %s24, 1
        %s3819 = scalar_select %p3818, %s24, 1
        %s3820 = smul.addr %s3817, 2
        %s3821 = sadd.s32 %s3819, %s3820
        %s3822 = smul.addr %s3821, 2
        %s3823 = scalar_lea.vmem %s5, %s3822
      $region56: #{residual_block_forward.4} parent=47 // pred_fallthru
        _
    $region48: #{residual_block_forward.4} parent=5 // pred_fallthru
      _
  $region6: #{residual_block_forward.4} parent=0 // loop_footer
    %s16 = sadd.s32 1, %s12
  $region7: #{residual_block_forward.4} parent=0 // loop_footer_branch
    %11 = sbr.rel target = $region3
  $region8: #{residual_block_forward.4} parent=0 // loop_exit
    _

</llo_original>
